<compile_context>
chip_gen: v7x
topology: tpu7x:2x2x1
jax: 0.10.0
libtpu: 0.0.40
codegen_flags: <defaults>
</compile_context>

<pallas_src>
import jax
import jax.numpy as jnp
import numpy as np
from jax.experimental import pallas as pl
from jax.experimental.pallas import tpu as pltpu


LEFT = 8  # left pad of the padded scratch: interior starts at a sublane-aligned column


def _round_up(x, m):
    return ((x + m - 1) // m) * m


def _divisors_desc(n):
    return [d for d in range(n, 0, -1) if n % d == 0]


# -----------------------------------------------------------------------------
# Kernel: one batch-block per grid step, whole residual double-conv block fused.
# Per conv layer: im2col (9 shifted band copies, cast to bf16) -> one MXU matmul
# with K = 9*Cp -> folded-BN bias + ReLU, written band-by-band into the other
# ping-pong padded map (or combined with the resident skip and written to out).
# -----------------------------------------------------------------------------
def _make_kernel(B, H, W, Wp, Cp, Hb):
    nbands = H // Hb
    taps = [(dh, dw) for dh in range(3) for dw in range(3)]
    Wtot = Wp + 2 * LEFT

    def kernel(x_ref, w_ref, bias_ref, out_ref, pad_a, pad_b, col_ref):
        f32 = jnp.float32
        bf16 = jnp.bfloat16

        # Re-zero only the halo borders of both padded scratches.  The interior
        # is fully overwritten every layer, so this O(perimeter) zeroing is all
        # the zero-fill that "padding=1" needs.  Done every grid step (cheap) so
        # it stays correct when the parallel batch axis is split across cores.
        for pad in (pad_a, pad_b):
            pad[:, 0:1, :, :] = jnp.zeros((B, 1, Wtot, Cp), f32)
            pad[:, H + 1:H + 2, :, :] = jnp.zeros((B, 1, Wtot, Cp), f32)
            pad[:, :, 0:LEFT, :] = jnp.zeros((B, H + 2, LEFT, Cp), f32)
            pad[:, :, LEFT + W:Wtot, :] = jnp.zeros(
                (B, H + 2, Wtot - LEFT - W, Cp), f32)

        def store_interior(pad, h0, v):
            # v: (B, Hb, Wp, Cp) f32.  Only the valid W columns are written so
            # the zero spatial-padding strip never leaks into the next conv.
            if W == Wp:
                pad[:, 1 + h0:1 + h0 + Hb, LEFT:LEFT + Wp, :] = v
            else:
                pad[:, 1 + h0:1 + h0 + Hb, LEFT:LEFT + W, :] = v[:, :, :W, :]

        def load_interior(pad, h0):
            return pad[:, 1 + h0:1 + h0 + Hb, LEFT:LEFT + Wp, :]

        def conv_bn_relu(layer, src_pad, consume):
            w = w_ref[layer]                        # (9*Cp, Cp) bf16, BN scale folded
            bias = bias_ref[layer:layer + 1, :]     # (1, Cp) f32 folded BN bias
            for bi in range(nbands):
                h0 = bi * Hb
                # im2col band: 9 shifted slice copies cast to bf16 on the store
                # (halves store traffic); lane offsets t*Cp are 128-aligned, the
                # centre tap (and the interior store) are sublane-aligned.
                for t, (dh, dw) in enumerate(taps):
                    col_ref[:, :, :, t * Cp:(t + 1) * Cp] = (
                        src_pad[:, dh + h0:dh + h0 + Hb,
                                LEFT - 1 + dw:LEFT - 1 + dw + Wp, :].astype(bf16))
                col = col_ref[...].reshape(B * Hb * Wp, 9 * Cp)
                y = jnp.dot(col, w, preferred_element_type=f32)
                y = jnp.maximum(y + bias, 0.0).reshape(B, Hb, Wp, Cp)
                consume(h0, y)

        # skip_1: the input image, written once into pad_a's interior (its
        # spatial/channel padding columns are already zero from the wrapper).
        pad_a[:, 1:H + 1, LEFT:LEFT + Wp, :] = x_ref[...]

        # double_conv_1, conv #1:   pad_a -> pad_b
        conv_bn_relu(0, pad_a, lambda h0, y: store_interior(pad_b, h0, y))

        # double_conv_1, conv #2 + residual add #1 (skip_1 still resident in
        # pad_a):  pad_b -> pad_a   (skip_2 now lives in pad_a)
        def consume_1(h0, y):
            store_interior(pad_a, h0, load_interior(pad_a, h0) + y)
        conv_bn_relu(1, pad_b, consume_1)

        # double_conv_2, conv #1:   pad_a -> pad_b
        conv_bn_relu(2, pad_a, lambda h0, y: store_interior(pad_b, h0, y))

        # double_conv_2, conv #2 + residual add #2 (skip_2 still resident in
        # pad_a):  pad_b -> out_ref (single f32 write of the output block)
        def consume_3(h0, y):
            out_ref[:, h0:h0 + Hb, :, :] = load_interior(pad_a, h0) + y
        conv_bn_relu(3, pad_b, consume_3)

    return kernel


# -----------------------------------------------------------------------------
# VMEM budgeting & block picking
# -----------------------------------------------------------------------------
def _vmem_limit_and_budget():
    cap = 128 * 1024 * 1024
    try:
        cap = int(getattr(pltpu.get_tpu_info(), "vmem_capacity_bytes", cap))
    except Exception:
        pass
    limit = cap * 3 // 4        # ~48 MiB on v7x (64 MiB/core), ~96 MiB on v5e/v6e
    budget = limit * 17 // 20   # headroom for compiler scratch / value buffers
    return limit, budget


def _footprint_bytes(B, Hb, H, Wp, Cp):
    bf16, f32 = 2, 4
    x_blk = 2 * B * H * Wp * Cp * f32                       # input block (2 bufs)
    o_blk = 2 * B * H * Wp * Cp * f32                       # output block (2 bufs)
    w_blk = 2 * 4 * 9 * Cp * Cp * bf16                      # packed weights (2 bufs)
    b_blk = 2 * 4 * Cp * f32                                # folded BN biases
    pads = 2 * B * (H + 2) * (Wp + 2 * LEFT) * Cp * f32     # ping-pong padded maps
    col = B * Hb * Wp * 9 * Cp * bf16                       # per-band im2col scratch
    return x_blk + o_blk + w_blk + b_blk + pads + col


def _pick_blocks(N, H, Wp, Cp, budget_bytes):
    """Pick (batch block B, H band Hb): largest that fit the VMEM budget while
    keeping the grid >= 4 steps (>= 2 as fallback) for pipeline overlap."""
    feasible = []
    for b in _divisors_desc(N):
        for hb in _divisors_desc(H):
            if _footprint_bytes(b, hb, H, Wp, Cp) <= budget_bytes:
                feasible.append((b, hb))
                break
    if not feasible:
        return 1, 1
    for min_steps in (4, 2, 1):
        cand = [bh for bh in feasible if N // bh[0] >= min_steps]
        if cand:
            return max(cand)
    return feasible[-1]


# -----------------------------------------------------------------------------
# Wrapper
# -----------------------------------------------------------------------------
@jax.jit
def residual_double_conv(x_nchw, w_packed, bias):
    """x_nchw: (N, C, H, W) f32.  w_packed: (4, 9*Cp, Cp) bf16 (BN scale folded).
    bias: (4, Cp) f32 folded BN bias.  Returns (N, C, H, W) f32."""
    N, C, H, W = x_nchw.shape
    Cp = w_packed.shape[-1]
    Wp = _round_up(W, 8)
    vmem_limit, budget = _vmem_limit_and_budget()
    B, Hb = _pick_blocks(N, H, Wp, Cp, budget)

    # NCHW -> NHWC (channels on lanes), zero-pad W -> Wp and C -> Cp.
    x = jnp.transpose(x_nchw, (0, 2, 3, 1)).astype(jnp.float32)
    x = jnp.pad(x, ((0, 0), (0, 0), (0, Wp - W), (0, Cp - C)))

    flops = 4 * 2 * N * H * Wp * 9 * Cp * Cp
    bytes_accessed = (x.size * 4 + N * H * Wp * Cp * 4
                      + w_packed.size * 2 + bias.size * 4)

    out = pl.pallas_call(
        _make_kernel(B, H, W, Wp, Cp, Hb),
        out_shape=jax.ShapeDtypeStruct((N, H, Wp, Cp), jnp.float32),
        grid=(N // B,),
        in_specs=[
            pl.BlockSpec((B, H, Wp, Cp), lambda b: (b, 0, 0, 0)),   # x (NHWC)
            pl.BlockSpec((4, 9 * Cp, Cp), lambda b: (0, 0, 0)),     # bf16 conv weights
            pl.BlockSpec((4, Cp), lambda b: (0, 0)),                # folded BN biases
        ],
        out_specs=pl.BlockSpec((B, H, Wp, Cp), lambda b: (b, 0, 0, 0)),
        scratch_shapes=[
            pltpu.VMEM((B, H + 2, Wp + 2 * LEFT, Cp), jnp.float32),  # padded map A
            pltpu.VMEM((B, H + 2, Wp + 2 * LEFT, Cp), jnp.float32),  # padded map B
            pltpu.VMEM((B, Hb, Wp, 9 * Cp), jnp.bfloat16),           # band im2col
        ],
        compiler_params=pltpu.CompilerParams(
            dimension_semantics=("parallel",),
            vmem_limit_bytes=vmem_limit,
        ),
        cost_estimate=pl.CostEstimate(
            flops=flops, transcendentals=0, bytes_accessed=bytes_accessed),
    )(x, w_packed, bias)

    out = out[:, :, :W, :C]
    return jnp.transpose(out, (0, 3, 1, 2))


def pack_params(ws_oihw, scales, biases):
    """Fold the inference-mode BatchNorm affine into the conv weights and pack:
      w_packed: (4, 9*Cp, Cp) bf16, rows ordered (kh, kw, cin), BN scale folded
      bias:     (4, Cp) f32 folded BN bias
    Channels are zero-padded to Cp = round_up(C, 128) for lane alignment."""
    C = ws_oihw[0].shape[0]
    Cp = _round_up(C, 128)
    w_list, b_list = [], []
    for w, s, b in zip(ws_oihw, scales, biases):
        w = w * s[:, None, None, None]          # fold BN scale into out-channels
        w = jnp.transpose(w, (2, 3, 1, 0))      # OIHW -> (kh, kw, cin, cout)
        w = jnp.pad(w, ((0, 0), (0, 0), (0, Cp - C), (0, Cp - C)))
        w_list.append(w.reshape(9 * Cp, Cp))
        b_list.append(jnp.pad(b, (0, Cp - C)))
    return (jnp.stack(w_list, 0).astype(jnp.bfloat16),
            jnp.stack(b_list, 0).astype(jnp.float32))


# -----------------------------------------------------------------------------
# Pure-JAX f32 reference (NCHW, lax.conv) for correctness checking.
# -----------------------------------------------------------------------------
def _ref_forward(x, ws_oihw, scales, biases):
    def conv_bn_relu(h, w, s, b):
        y = jax.lax.conv_general_dilated(
            h, w, window_strides=(1, 1), padding=((1, 1), (1, 1)),
            dimension_numbers=("NCHW", "OIHW", "NCHW"))
        y = y * s[None, :, None, None] + b[None, :, None, None]
        return jnp.maximum(y, 0.0)

    h = conv_bn_relu(x, ws_oihw[0], scales[0], biases[0])
    h = conv_bn_relu(h, ws_oihw[1], scales[1], biases[1])
    h = x + h
    skip2 = h
    h = conv_bn_relu(h, ws_oihw[2], scales[2], biases[2])
    h = conv_bn_relu(h, ws_oihw[3], scales[3], biases[3])
    return skip2 + h


if __name__ == "__main__":
    N, C, H, W = 2, 4, 16, 16     # in_channels == mid_channels == out_channels
    eps = 1e-5

    key = jax.random.PRNGKey(0)
    keys = jax.random.split(key, 1 + 4 * 5)
    x = jax.random.normal(keys[0], (N, C, H, W), dtype=jnp.float32)

    ws_oihw, scales, biases = [], [], []
    kstd = float(np.sqrt(2.0 / (C * 9)))
    for l in range(4):
        kw, kg, kb, km, kv = keys[1 + 5 * l: 1 + 5 * (l + 1)]
        w = jax.random.normal(kw, (C, C, 3, 3), jnp.float32) * kstd
        gamma = jax.random.uniform(kg, (C,), minval=0.5, maxval=1.5)
        beta = jax.random.normal(kb, (C,)) * 0.1
        r_mean = jax.random.normal(km, (C,)) * 0.1
        r_var = jax.random.uniform(kv, (C,), minval=0.5, maxval=1.5)
        s = gamma / jnp.sqrt(r_var + eps)          # fold BN into scale/bias
        b = beta - r_mean * s
        ws_oihw.append(w)
        scales.append(s.astype(jnp.float32))
        biases.append(b.astype(jnp.float32))

    w_packed, bias_packed = pack_params(ws_oihw, scales, biases)

    out = residual_double_conv(x, w_packed, bias_packed)
    out = jax.block_until_ready(out)

    ref = jax.block_until_ready(_ref_forward(x, ws_oihw, scales, biases))

    # bf16 matmul operands / weights -> loosened tolerance vs the f32 reference.
    np.testing.assert_allclose(np.asarray(out), np.asarray(ref),
                               rtol=5e-2, atol=5e-2)
    print("KERNEL_OK")
</pallas_src>

<mosaic_0001>
module attributes {stable_mosaic.version = 11 : i64} {
  func.func @kernel(%arg0: i32, %arg1: memref<1x16x16x128xf32, #tpu.memory_space<vmem>>, %arg2: memref<4x1152x128xbf16, #tpu.memory_space<vmem>>, %arg3: memref<4x128xf32, #tpu.memory_space<vmem>>, %arg4: memref<1x16x16x128xf32, #tpu.memory_space<vmem>>, %arg5: memref<1x18x32x128xf32, #tpu.memory_space<vmem>>, %arg6: memref<1x18x32x128xf32, #tpu.memory_space<vmem>>, %arg7: memref<1x16x16x1152xbf16, #tpu.memory_space<vmem>>) attributes {dimension_semantics = [#tpu.dimension_semantics<parallel>], iteration_bounds = array<i64: 2>, scalar_prefetch = 0 : i64, scratch_operands = 3 : i64, tpu.core_type = #tpu.core_type<tc>, window_params = [{transform_indices = @transform_0, window_bounds = array<i64: 1, 16, 16, 128>}, {pipeline_mode = #tpu.pipeline_mode<synchronous>, transform_indices = @transform_1, window_bounds = array<i64: 4, 1152, 128>}, {pipeline_mode = #tpu.pipeline_mode<synchronous>, transform_indices = @transform_2, window_bounds = array<i64: 4, 128>}, {transform_indices = @transform_3, window_bounds = array<i64: 1, 16, 16, 128>}]} {
    %cst = arith.constant 0.000000e+00 : f32
    %0 = vector.broadcast %cst : f32 to vector<1x1x32x128xf32>
    %c0 = arith.constant 0 : index
    %c0_0 = arith.constant 0 : index
    %c0_1 = arith.constant 0 : index
    %c0_2 = arith.constant 0 : index
    %1 = vector.load %arg5[%c0, %c0_0, %c0_1, %c0_2] : memref<1x18x32x128xf32, #tpu.memory_space<vmem>>, vector<1x1x32x128xf32>
    tpu.vector_store %arg5[%c0, %c0_0, %c0_1, %c0_2], %0 {strides = array<i32>} : memref<1x18x32x128xf32, #tpu.memory_space<vmem>>, vector<1x1x32x128xf32>,
    %cst_3 = arith.constant 0.000000e+00 : f32
    %2 = vector.broadcast %cst_3 : f32 to vector<1x1x32x128xf32>
    %c0_4 = arith.constant 0 : index
    %c17 = arith.constant 17 : index
    %c0_5 = arith.constant 0 : index
    %c0_6 = arith.constant 0 : index
    %3 = vector.load %arg5[%c0_4, %c17, %c0_5, %c0_6] : memref<1x18x32x128xf32, #tpu.memory_space<vmem>>, vector<1x1x32x128xf32>
    tpu.vector_store %arg5[%c0_4, %c17, %c0_5, %c0_6], %2 {strides = array<i32>} : memref<1x18x32x128xf32, #tpu.memory_space<vmem>>, vector<1x1x32x128xf32>,
    %cst_7 = arith.constant 0.000000e+00 : f32
    %4 = vector.broadcast %cst_7 : f32 to vector<1x18x8x128xf32>
    %c0_8 = arith.constant 0 : index
    %c0_9 = arith.constant 0 : index
    %c0_10 = arith.constant 0 : index
    %c0_11 = arith.constant 0 : index
    %5 = vector.load %arg5[%c0_8, %c0_9, %c0_10, %c0_11] : memref<1x18x32x128xf32, #tpu.memory_space<vmem>>, vector<1x18x8x128xf32>
    tpu.vector_store %arg5[%c0_8, %c0_9, %c0_10, %c0_11], %4 {strides = array<i32>} : memref<1x18x32x128xf32, #tpu.memory_space<vmem>>, vector<1x18x8x128xf32>,
    %cst_12 = arith.constant 0.000000e+00 : f32
    %6 = vector.broadcast %cst_12 : f32 to vector<1x18x8x128xf32>
    %c0_13 = arith.constant 0 : index
    %c0_14 = arith.constant 0 : index
    %c24 = arith.constant 24 : index
    %c0_15 = arith.constant 0 : index
    %7 = vector.load %arg5[%c0_13, %c0_14, %c24, %c0_15] : memref<1x18x32x128xf32, #tpu.memory_space<vmem>>, vector<1x18x8x128xf32>
    tpu.vector_store %arg5[%c0_13, %c0_14, %c24, %c0_15], %6 {strides = array<i32>} : memref<1x18x32x128xf32, #tpu.memory_space<vmem>>, vector<1x18x8x128xf32>,
    %cst_16 = arith.constant 0.000000e+00 : f32
    %8 = vector.broadcast %cst_16 : f32 to vector<1x1x32x128xf32>
    %c0_17 = arith.constant 0 : index
    %c0_18 = arith.constant 0 : index
    %c0_19 = arith.constant 0 : index
    %c0_20 = arith.constant 0 : index
    %9 = vector.load %arg6[%c0_17, %c0_18, %c0_19, %c0_20] : memref<1x18x32x128xf32, #tpu.memory_space<vmem>>, vector<1x1x32x128xf32>
    tpu.vector_store %arg6[%c0_17, %c0_18, %c0_19, %c0_20], %8 {strides = array<i32>} : memref<1x18x32x128xf32, #tpu.memory_space<vmem>>, vector<1x1x32x128xf32>,
    %cst_21 = arith.constant 0.000000e+00 : f32
    %10 = vector.broadcast %cst_21 : f32 to vector<1x1x32x128xf32>
    %c0_22 = arith.constant 0 : index
    %c17_23 = arith.constant 17 : index
    %c0_24 = arith.constant 0 : index
    %c0_25 = arith.constant 0 : index
    %11 = vector.load %arg6[%c0_22, %c17_23, %c0_24, %c0_25] : memref<1x18x32x128xf32, #tpu.memory_space<vmem>>, vector<1x1x32x128xf32>
    tpu.vector_store %arg6[%c0_22, %c17_23, %c0_24, %c0_25], %10 {strides = array<i32>} : memref<1x18x32x128xf32, #tpu.memory_space<vmem>>, vector<1x1x32x128xf32>,
    %cst_26 = arith.constant 0.000000e+00 : f32
    %12 = vector.broadcast %cst_26 : f32 to vector<1x18x8x128xf32>
    %c0_27 = arith.constant 0 : index
    %c0_28 = arith.constant 0 : index
    %c0_29 = arith.constant 0 : index
    %c0_30 = arith.constant 0 : index
    %13 = vector.load %arg6[%c0_27, %c0_28, %c0_29, %c0_30] : memref<1x18x32x128xf32, #tpu.memory_space<vmem>>, vector<1x18x8x128xf32>
    tpu.vector_store %arg6[%c0_27, %c0_28, %c0_29, %c0_30], %12 {strides = array<i32>} : memref<1x18x32x128xf32, #tpu.memory_space<vmem>>, vector<1x18x8x128xf32>,
    %cst_31 = arith.constant 0.000000e+00 : f32
    %14 = vector.broadcast %cst_31 : f32 to vector<1x18x8x128xf32>
    %c0_32 = arith.constant 0 : index
    %c0_33 = arith.constant 0 : index
    %c24_34 = arith.constant 24 : index
    %c0_35 = arith.constant 0 : index
    %15 = vector.load %arg6[%c0_32, %c0_33, %c24_34, %c0_35] : memref<1x18x32x128xf32, #tpu.memory_space<vmem>>, vector<1x18x8x128xf32>
    tpu.vector_store %arg6[%c0_32, %c0_33, %c24_34, %c0_35], %14 {strides = array<i32>} : memref<1x18x32x128xf32, #tpu.memory_space<vmem>>, vector<1x18x8x128xf32>,
    %c0_36 = arith.constant 0 : index
    %c0_37 = arith.constant 0 : index
    %c0_38 = arith.constant 0 : index
    %c0_39 = arith.constant 0 : index
    %16 = vector.load %arg1[%c0_36, %c0_37, %c0_38, %c0_39] : memref<1x16x16x128xf32, #tpu.memory_space<vmem>>, vector<1x16x16x128xf32>
    %c0_40 = arith.constant 0 : index
    %c1 = arith.constant 1 : index
    %c8 = arith.constant 8 : index
    %c0_41 = arith.constant 0 : index
    %17 = vector.load %arg5[%c0_40, %c1, %c8, %c0_41] : memref<1x18x32x128xf32, #tpu.memory_space<vmem>>, vector<1x16x16x128xf32>
    tpu.vector_store %arg5[%c0_40, %c1, %c8, %c0_41], %16 {strides = array<i32>} : memref<1x18x32x128xf32, #tpu.memory_space<vmem>>, vector<1x16x16x128xf32>,
    %c0_42 = arith.constant 0 : index
    %c0_43 = arith.constant 0 : index
    %c0_44 = arith.constant 0 : index
    %18 = vector.load %arg2[%c0_42, %c0_43, %c0_44] : memref<4x1152x128xbf16, #tpu.memory_space<vmem>>, vector<1x1152x128xbf16>
    %19 = vector.shape_cast %18 : vector<1x1152x128xbf16> to vector<1152x128xbf16>
    %c0_45 = arith.constant 0 : index
    %c0_46 = arith.constant 0 : index
    %20 = vector.load %arg3[%c0_45, %c0_46] : memref<4x128xf32, #tpu.memory_space<vmem>>, vector<1x128xf32>
    %c0_47 = arith.constant 0 : index
    %c0_48 = arith.constant 0 : index
    %c7 = arith.constant 7 : index
    %c0_49 = arith.constant 0 : index
    %21 = vector.load %arg5[%c0_47, %c0_48, %c7, %c0_49] : memref<1x18x32x128xf32, #tpu.memory_space<vmem>>, vector<1x16x16x128xf32>
    %22 = arith.truncf %21 : vector<1x16x16x128xf32> to vector<1x16x16x128xbf16>
    %c0_50 = arith.constant 0 : index
    %c0_51 = arith.constant 0 : index
    %c0_52 = arith.constant 0 : index
    %c0_53 = arith.constant 0 : index
    %23 = vector.load %arg7[%c0_50, %c0_51, %c0_52, %c0_53] : memref<1x16x16x1152xbf16, #tpu.memory_space<vmem>>, vector<1x16x16x128xbf16>
    tpu.vector_store %arg7[%c0_50, %c0_51, %c0_52, %c0_53], %22 {strides = array<i32>} : memref<1x16x16x1152xbf16, #tpu.memory_space<vmem>>, vector<1x16x16x128xbf16>,
    %c0_54 = arith.constant 0 : index
    %c0_55 = arith.constant 0 : index
    %c8_56 = arith.constant 8 : index
    %c0_57 = arith.constant 0 : index
    %24 = vector.load %arg5[%c0_54, %c0_55, %c8_56, %c0_57] : memref<1x18x32x128xf32, #tpu.memory_space<vmem>>, vector<1x16x16x128xf32>
    %25 = arith.truncf %24 : vector<1x16x16x128xf32> to vector<1x16x16x128xbf16>
    %c0_58 = arith.constant 0 : index
    %c0_59 = arith.constant 0 : index
    %c0_60 = arith.constant 0 : index
    %c128 = arith.constant 128 : index
    %26 = vector.load %arg7[%c0_58, %c0_59, %c0_60, %c128] : memref<1x16x16x1152xbf16, #tpu.memory_space<vmem>>, vector<1x16x16x128xbf16>
    tpu.vector_store %arg7[%c0_58, %c0_59, %c0_60, %c128], %25 {strides = array<i32>} : memref<1x16x16x1152xbf16, #tpu.memory_space<vmem>>, vector<1x16x16x128xbf16>,
    %c0_61 = arith.constant 0 : index
    %c0_62 = arith.constant 0 : index
    %c9 = arith.constant 9 : index
    %c0_63 = arith.constant 0 : index
    %27 = vector.load %arg5[%c0_61, %c0_62, %c9, %c0_63] : memref<1x18x32x128xf32, #tpu.memory_space<vmem>>, vector<1x16x16x128xf32>
    %28 = arith.truncf %27 : vector<1x16x16x128xf32> to vector<1x16x16x128xbf16>
    %c0_64 = arith.constant 0 : index
    %c0_65 = arith.constant 0 : index
    %c0_66 = arith.constant 0 : index
    %c256 = arith.constant 256 : index
    %29 = vector.load %arg7[%c0_64, %c0_65, %c0_66, %c256] : memref<1x16x16x1152xbf16, #tpu.memory_space<vmem>>, vector<1x16x16x128xbf16>
    tpu.vector_store %arg7[%c0_64, %c0_65, %c0_66, %c256], %28 {strides = array<i32>} : memref<1x16x16x1152xbf16, #tpu.memory_space<vmem>>, vector<1x16x16x128xbf16>,
    %c0_67 = arith.constant 0 : index
    %c1_68 = arith.constant 1 : index
    %c7_69 = arith.constant 7 : index
    %c0_70 = arith.constant 0 : index
    %30 = vector.load %arg5[%c0_67, %c1_68, %c7_69, %c0_70] : memref<1x18x32x128xf32, #tpu.memory_space<vmem>>, vector<1x16x16x128xf32>
    %31 = arith.truncf %30 : vector<1x16x16x128xf32> to vector<1x16x16x128xbf16>
    %c0_71 = arith.constant 0 : index
    %c0_72 = arith.constant 0 : index
    %c0_73 = arith.constant 0 : index
    %c384 = arith.constant 384 : index
    %32 = vector.load %arg7[%c0_71, %c0_72, %c0_73, %c384] : memref<1x16x16x1152xbf16, #tpu.memory_space<vmem>>, vector<1x16x16x128xbf16>
    tpu.vector_store %arg7[%c0_71, %c0_72, %c0_73, %c384], %31 {strides = array<i32>} : memref<1x16x16x1152xbf16, #tpu.memory_space<vmem>>, vector<1x16x16x128xbf16>,
    %c0_74 = arith.constant 0 : index
    %c1_75 = arith.constant 1 : index
    %c8_76 = arith.constant 8 : index
    %c0_77 = arith.constant 0 : index
    %33 = vector.load %arg5[%c0_74, %c1_75, %c8_76, %c0_77] : memref<1x18x32x128xf32, #tpu.memory_space<vmem>>, vector<1x16x16x128xf32>
    %34 = arith.truncf %33 : vector<1x16x16x128xf32> to vector<1x16x16x128xbf16>
    %c0_78 = arith.constant 0 : index
    %c0_79 = arith.constant 0 : index
    %c0_80 = arith.constant 0 : index
    %c512 = arith.constant 512 : index
    %35 = vector.load %arg7[%c0_78, %c0_79, %c0_80, %c512] : memref<1x16x16x1152xbf16, #tpu.memory_space<vmem>>, vector<1x16x16x128xbf16>
    tpu.vector_store %arg7[%c0_78, %c0_79, %c0_80, %c512], %34 {strides = array<i32>} : memref<1x16x16x1152xbf16, #tpu.memory_space<vmem>>, vector<1x16x16x128xbf16>,
    %c0_81 = arith.constant 0 : index
    %c1_82 = arith.constant 1 : index
    %c9_83 = arith.constant 9 : index
    %c0_84 = arith.constant 0 : index
    %36 = vector.load %arg5[%c0_81, %c1_82, %c9_83, %c0_84] : memref<1x18x32x128xf32, #tpu.memory_space<vmem>>, vector<1x16x16x128xf32>
    %37 = arith.truncf %36 : vector<1x16x16x128xf32> to vector<1x16x16x128xbf16>
    %c0_85 = arith.constant 0 : index
    %c0_86 = arith.constant 0 : index
    %c0_87 = arith.constant 0 : index
    %c640 = arith.constant 640 : index
    %38 = vector.load %arg7[%c0_85, %c0_86, %c0_87, %c640] : memref<1x16x16x1152xbf16, #tpu.memory_space<vmem>>, vector<1x16x16x128xbf16>
    tpu.vector_store %arg7[%c0_85, %c0_86, %c0_87, %c640], %37 {strides = array<i32>} : memref<1x16x16x1152xbf16, #tpu.memory_space<vmem>>, vector<1x16x16x128xbf16>,
    %c0_88 = arith.constant 0 : index
    %c2 = arith.constant 2 : index
    %c7_89 = arith.constant 7 : index
    %c0_90 = arith.constant 0 : index
    %39 = vector.load %arg5[%c0_88, %c2, %c7_89, %c0_90] : memref<1x18x32x128xf32, #tpu.memory_space<vmem>>, vector<1x16x16x128xf32>
    %40 = arith.truncf %39 : vector<1x16x16x128xf32> to vector<1x16x16x128xbf16>
    %c0_91 = arith.constant 0 : index
    %c0_92 = arith.constant 0 : index
    %c0_93 = arith.constant 0 : index
    %c768 = arith.constant 768 : index
    %41 = vector.load %arg7[%c0_91, %c0_92, %c0_93, %c768] : memref<1x16x16x1152xbf16, #tpu.memory_space<vmem>>, vector<1x16x16x128xbf16>
    tpu.vector_store %arg7[%c0_91, %c0_92, %c0_93, %c768], %40 {strides = array<i32>} : memref<1x16x16x1152xbf16, #tpu.memory_space<vmem>>, vector<1x16x16x128xbf16>,
    %c0_94 = arith.constant 0 : index
    %c2_95 = arith.constant 2 : index
    %c8_96 = arith.constant 8 : index
    %c0_97 = arith.constant 0 : index
    %42 = vector.load %arg5[%c0_94, %c2_95, %c8_96, %c0_97] : memref<1x18x32x128xf32, #tpu.memory_space<vmem>>, vector<1x16x16x128xf32>
    %43 = arith.truncf %42 : vector<1x16x16x128xf32> to vector<1x16x16x128xbf16>
    %c0_98 = arith.constant 0 : index
    %c0_99 = arith.constant 0 : index
    %c0_100 = arith.constant 0 : index
    %c896 = arith.constant 896 : index
    %44 = vector.load %arg7[%c0_98, %c0_99, %c0_100, %c896] : memref<1x16x16x1152xbf16, #tpu.memory_space<vmem>>, vector<1x16x16x128xbf16>
    tpu.vector_store %arg7[%c0_98, %c0_99, %c0_100, %c896], %43 {strides = array<i32>} : memref<1x16x16x1152xbf16, #tpu.memory_space<vmem>>, vector<1x16x16x128xbf16>,
    %c0_101 = arith.constant 0 : index
    %c2_102 = arith.constant 2 : index
    %c9_103 = arith.constant 9 : index
    %c0_104 = arith.constant 0 : index
    %45 = vector.load %arg5[%c0_101, %c2_102, %c9_103, %c0_104] : memref<1x18x32x128xf32, #tpu.memory_space<vmem>>, vector<1x16x16x128xf32>
    %46 = arith.truncf %45 : vector<1x16x16x128xf32> to vector<1x16x16x128xbf16>
    %c0_105 = arith.constant 0 : index
    %c0_106 = arith.constant 0 : index
    %c0_107 = arith.constant 0 : index
    %c1024 = arith.constant 1024 : index
    %47 = vector.load %arg7[%c0_105, %c0_106, %c0_107, %c1024] : memref<1x16x16x1152xbf16, #tpu.memory_space<vmem>>, vector<1x16x16x128xbf16>
    tpu.vector_store %arg7[%c0_105, %c0_106, %c0_107, %c1024], %46 {strides = array<i32>} : memref<1x16x16x1152xbf16, #tpu.memory_space<vmem>>, vector<1x16x16x128xbf16>,
    %c0_108 = arith.constant 0 : index
    %c0_109 = arith.constant 0 : index
    %c0_110 = arith.constant 0 : index
    %c0_111 = arith.constant 0 : index
    %48 = vector.load %arg7[%c0_108, %c0_109, %c0_110, %c0_111] : memref<1x16x16x1152xbf16, #tpu.memory_space<vmem>>, vector<1x16x16x1152xbf16>
    %49 = vector.shape_cast %48 : vector<1x16x16x1152xbf16> to vector<256x1152xbf16>
    %cst_112 = arith.constant dense<0.000000e+00> : vector<256x128xf32>
    %50 = tpu.matmul %49, %19, %cst_112 {dimension_numbers = #tpu.dot_dimension_numbers<[1], [0], [0], [1], [0, 0, 1, 1], [], []>} : vector<256x1152xbf16>, vector<1152x128xbf16>, vector<256x128xf32> -> vector<256x128xf32>
    %51 = vector.broadcast %20 : vector<1x128xf32> to vector<256x128xf32>
    %52 = arith.addf %50, %51 : vector<256x128xf32>
    %cst_113 = arith.constant 0.000000e+00 : f32
    %53 = vector.broadcast %cst_113 : f32 to vector<256x128xf32>
    %54 = arith.maximumf %52, %53 : vector<256x128xf32>
    %55 = vector.shape_cast %54 : vector<256x128xf32> to vector<1x16x16x128xf32>
    %c0_114 = arith.constant 0 : index
    %c1_115 = arith.constant 1 : index
    %c8_116 = arith.constant 8 : index
    %c0_117 = arith.constant 0 : index
    %56 = vector.load %arg6[%c0_114, %c1_115, %c8_116, %c0_117] : memref<1x18x32x128xf32, #tpu.memory_space<vmem>>, vector<1x16x16x128xf32>
    tpu.vector_store %arg6[%c0_114, %c1_115, %c8_116, %c0_117], %55 {strides = array<i32>} : memref<1x18x32x128xf32, #tpu.memory_space<vmem>>, vector<1x16x16x128xf32>,
    %c1_118 = arith.constant 1 : index
    %c0_119 = arith.constant 0 : index
    %c0_120 = arith.constant 0 : index
    %57 = vector.load %arg2[%c1_118, %c0_119, %c0_120] : memref<4x1152x128xbf16, #tpu.memory_space<vmem>>, vector<1x1152x128xbf16>
    %58 = vector.shape_cast %57 : vector<1x1152x128xbf16> to vector<1152x128xbf16>
    %c1_121 = arith.constant 1 : index
    %c0_122 = arith.constant 0 : index
    %59 = vector.load %arg3[%c1_121, %c0_122] : memref<4x128xf32, #tpu.memory_space<vmem>>, vector<1x128xf32>
    %c0_123 = arith.constant 0 : index
    %c0_124 = arith.constant 0 : index
    %c7_125 = arith.constant 7 : index
    %c0_126 = arith.constant 0 : index
    %60 = vector.load %arg6[%c0_123, %c0_124, %c7_125, %c0_126] : memref<1x18x32x128xf32, #tpu.memory_space<vmem>>, vector<1x16x16x128xf32>
    %61 = arith.truncf %60 : vector<1x16x16x128xf32> to vector<1x16x16x128xbf16>
    %c0_127 = arith.constant 0 : index
    %c0_128 = arith.constant 0 : index
    %c0_129 = arith.constant 0 : index
    %c0_130 = arith.constant 0 : index
    %62 = vector.load %arg7[%c0_127, %c0_128, %c0_129, %c0_130] : memref<1x16x16x1152xbf16, #tpu.memory_space<vmem>>, vector<1x16x16x128xbf16>
    tpu.vector_store %arg7[%c0_127, %c0_128, %c0_129, %c0_130], %61 {strides = array<i32>} : memref<1x16x16x1152xbf16, #tpu.memory_space<vmem>>, vector<1x16x16x128xbf16>,
    %c0_131 = arith.constant 0 : index
    %c0_132 = arith.constant 0 : index
    %c8_133 = arith.constant 8 : index
    %c0_134 = arith.constant 0 : index
    %63 = vector.load %arg6[%c0_131, %c0_132, %c8_133, %c0_134] : memref<1x18x32x128xf32, #tpu.memory_space<vmem>>, vector<1x16x16x128xf32>
    %64 = arith.truncf %63 : vector<1x16x16x128xf32> to vector<1x16x16x128xbf16>
    %c0_135 = arith.constant 0 : index
    %c0_136 = arith.constant 0 : index
    %c0_137 = arith.constant 0 : index
    %c128_138 = arith.constant 128 : index
    %65 = vector.load %arg7[%c0_135, %c0_136, %c0_137, %c128_138] : memref<1x16x16x1152xbf16, #tpu.memory_space<vmem>>, vector<1x16x16x128xbf16>
    tpu.vector_store %arg7[%c0_135, %c0_136, %c0_137, %c128_138], %64 {strides = array<i32>} : memref<1x16x16x1152xbf16, #tpu.memory_space<vmem>>, vector<1x16x16x128xbf16>,
    %c0_139 = arith.constant 0 : index
    %c0_140 = arith.constant 0 : index
    %c9_141 = arith.constant 9 : index
    %c0_142 = arith.constant 0 : index
    %66 = vector.load %arg6[%c0_139, %c0_140, %c9_141, %c0_142] : memref<1x18x32x128xf32, #tpu.memory_space<vmem>>, vector<1x16x16x128xf32>
    %67 = arith.truncf %66 : vector<1x16x16x128xf32> to vector<1x16x16x128xbf16>
    %c0_143 = arith.constant 0 : index
    %c0_144 = arith.constant 0 : index
    %c0_145 = arith.constant 0 : index
    %c256_146 = arith.constant 256 : index
    %68 = vector.load %arg7[%c0_143, %c0_144, %c0_145, %c256_146] : memref<1x16x16x1152xbf16, #tpu.memory_space<vmem>>, vector<1x16x16x128xbf16>
    tpu.vector_store %arg7[%c0_143, %c0_144, %c0_145, %c256_146], %67 {strides = array<i32>} : memref<1x16x16x1152xbf16, #tpu.memory_space<vmem>>, vector<1x16x16x128xbf16>,
    %c0_147 = arith.constant 0 : index
    %c1_148 = arith.constant 1 : index
    %c7_149 = arith.constant 7 : index
    %c0_150 = arith.constant 0 : index
    %69 = vector.load %arg6[%c0_147, %c1_148, %c7_149, %c0_150] : memref<1x18x32x128xf32, #tpu.memory_space<vmem>>, vector<1x16x16x128xf32>
    %70 = arith.truncf %69 : vector<1x16x16x128xf32> to vector<1x16x16x128xbf16>
    %c0_151 = arith.constant 0 : index
    %c0_152 = arith.constant 0 : index
    %c0_153 = arith.constant 0 : index
    %c384_154 = arith.constant 384 : index
    %71 = vector.load %arg7[%c0_151, %c0_152, %c0_153, %c384_154] : memref<1x16x16x1152xbf16, #tpu.memory_space<vmem>>, vector<1x16x16x128xbf16>
    tpu.vector_store %arg7[%c0_151, %c0_152, %c0_153, %c384_154], %70 {strides = array<i32>} : memref<1x16x16x1152xbf16, #tpu.memory_space<vmem>>, vector<1x16x16x128xbf16>,
    %c0_155 = arith.constant 0 : index
    %c1_156 = arith.constant 1 : index
    %c8_157 = arith.constant 8 : index
    %c0_158 = arith.constant 0 : index
    %72 = vector.load %arg6[%c0_155, %c1_156, %c8_157, %c0_158] : memref<1x18x32x128xf32, #tpu.memory_space<vmem>>, vector<1x16x16x128xf32>
    %73 = arith.truncf %72 : vector<1x16x16x128xf32> to vector<1x16x16x128xbf16>
    %c0_159 = arith.constant 0 : index
    %c0_160 = arith.constant 0 : index
    %c0_161 = arith.constant 0 : index
    %c512_162 = arith.constant 512 : index
    %74 = vector.load %arg7[%c0_159, %c0_160, %c0_161, %c512_162] : memref<1x16x16x1152xbf16, #tpu.memory_space<vmem>>, vector<1x16x16x128xbf16>
    tpu.vector_store %arg7[%c0_159, %c0_160, %c0_161, %c512_162], %73 {strides = array<i32>} : memref<1x16x16x1152xbf16, #tpu.memory_space<vmem>>, vector<1x16x16x128xbf16>,
    %c0_163 = arith.constant 0 : index
    %c1_164 = arith.constant 1 : index
    %c9_165 = arith.constant 9 : index
    %c0_166 = arith.constant 0 : index
    %75 = vector.load %arg6[%c0_163, %c1_164, %c9_165, %c0_166] : memref<1x18x32x128xf32, #tpu.memory_space<vmem>>, vector<1x16x16x128xf32>
    %76 = arith.truncf %75 : vector<1x16x16x128xf32> to vector<1x16x16x128xbf16>
    %c0_167 = arith.constant 0 : index
    %c0_168 = arith.constant 0 : index
    %c0_169 = arith.constant 0 : index
    %c640_170 = arith.constant 640 : index
    %77 = vector.load %arg7[%c0_167, %c0_168, %c0_169, %c640_170] : memref<1x16x16x1152xbf16, #tpu.memory_space<vmem>>, vector<1x16x16x128xbf16>
    tpu.vector_store %arg7[%c0_167, %c0_168, %c0_169, %c640_170], %76 {strides = array<i32>} : memref<1x16x16x1152xbf16, #tpu.memory_space<vmem>>, vector<1x16x16x128xbf16>,
    %c0_171 = arith.constant 0 : index
    %c2_172 = arith.constant 2 : index
    %c7_173 = arith.constant 7 : index
    %c0_174 = arith.constant 0 : index
    %78 = vector.load %arg6[%c0_171, %c2_172, %c7_173, %c0_174] : memref<1x18x32x128xf32, #tpu.memory_space<vmem>>, vector<1x16x16x128xf32>
    %79 = arith.truncf %78 : vector<1x16x16x128xf32> to vector<1x16x16x128xbf16>
    %c0_175 = arith.constant 0 : index
    %c0_176 = arith.constant 0 : index
    %c0_177 = arith.constant 0 : index
    %c768_178 = arith.constant 768 : index
    %80 = vector.load %arg7[%c0_175, %c0_176, %c0_177, %c768_178] : memref<1x16x16x1152xbf16, #tpu.memory_space<vmem>>, vector<1x16x16x128xbf16>
    tpu.vector_store %arg7[%c0_175, %c0_176, %c0_177, %c768_178], %79 {strides = array<i32>} : memref<1x16x16x1152xbf16, #tpu.memory_space<vmem>>, vector<1x16x16x128xbf16>,
    %c0_179 = arith.constant 0 : index
    %c2_180 = arith.constant 2 : index
    %c8_181 = arith.constant 8 : index
    %c0_182 = arith.constant 0 : index
    %81 = vector.load %arg6[%c0_179, %c2_180, %c8_181, %c0_182] : memref<1x18x32x128xf32, #tpu.memory_space<vmem>>, vector<1x16x16x128xf32>
    %82 = arith.truncf %81 : vector<1x16x16x128xf32> to vector<1x16x16x128xbf16>
    %c0_183 = arith.constant 0 : index
    %c0_184 = arith.constant 0 : index
    %c0_185 = arith.constant 0 : index
    %c896_186 = arith.constant 896 : index
    %83 = vector.load %arg7[%c0_183, %c0_184, %c0_185, %c896_186] : memref<1x16x16x1152xbf16, #tpu.memory_space<vmem>>, vector<1x16x16x128xbf16>
    tpu.vector_store %arg7[%c0_183, %c0_184, %c0_185, %c896_186], %82 {strides = array<i32>} : memref<1x16x16x1152xbf16, #tpu.memory_space<vmem>>, vector<1x16x16x128xbf16>,
    %c0_187 = arith.constant 0 : index
    %c2_188 = arith.constant 2 : index
    %c9_189 = arith.constant 9 : index
    %c0_190 = arith.constant 0 : index
    %84 = vector.load %arg6[%c0_187, %c2_188, %c9_189, %c0_190] : memref<1x18x32x128xf32, #tpu.memory_space<vmem>>, vector<1x16x16x128xf32>
    %85 = arith.truncf %84 : vector<1x16x16x128xf32> to vector<1x16x16x128xbf16>
    %c0_191 = arith.constant 0 : index
    %c0_192 = arith.constant 0 : index
    %c0_193 = arith.constant 0 : index
    %c1024_194 = arith.constant 1024 : index
    %86 = vector.load %arg7[%c0_191, %c0_192, %c0_193, %c1024_194] : memref<1x16x16x1152xbf16, #tpu.memory_space<vmem>>, vector<1x16x16x128xbf16>
    tpu.vector_store %arg7[%c0_191, %c0_192, %c0_193, %c1024_194], %85 {strides = array<i32>} : memref<1x16x16x1152xbf16, #tpu.memory_space<vmem>>, vector<1x16x16x128xbf16>,
    %c0_195 = arith.constant 0 : index
    %c0_196 = arith.constant 0 : index
    %c0_197 = arith.constant 0 : index
    %c0_198 = arith.constant 0 : index
    %87 = vector.load %arg7[%c0_195, %c0_196, %c0_197, %c0_198] : memref<1x16x16x1152xbf16, #tpu.memory_space<vmem>>, vector<1x16x16x1152xbf16>
    %88 = vector.shape_cast %87 : vector<1x16x16x1152xbf16> to vector<256x1152xbf16>
    %cst_199 = arith.constant dense<0.000000e+00> : vector<256x128xf32>
    %89 = tpu.matmul %88, %58, %cst_199 {dimension_numbers = #tpu.dot_dimension_numbers<[1], [0], [0], [1], [0, 0, 1, 1], [], []>} : vector<256x1152xbf16>, vector<1152x128xbf16>, vector<256x128xf32> -> vector<256x128xf32>
    %90 = vector.broadcast %59 : vector<1x128xf32> to vector<256x128xf32>
    %91 = arith.addf %89, %90 : vector<256x128xf32>
    %cst_200 = arith.constant 0.000000e+00 : f32
    %92 = vector.broadcast %cst_200 : f32 to vector<256x128xf32>
    %93 = arith.maximumf %91, %92 : vector<256x128xf32>
    %94 = vector.shape_cast %93 : vector<256x128xf32> to vector<1x16x16x128xf32>
    %c0_201 = arith.constant 0 : index
    %c1_202 = arith.constant 1 : index
    %c8_203 = arith.constant 8 : index
    %c0_204 = arith.constant 0 : index
    %95 = vector.load %arg5[%c0_201, %c1_202, %c8_203, %c0_204] : memref<1x18x32x128xf32, #tpu.memory_space<vmem>>, vector<1x16x16x128xf32>
    %96 = arith.addf %95, %94 : vector<1x16x16x128xf32>
    %c0_205 = arith.constant 0 : index
    %c1_206 = arith.constant 1 : index
    %c8_207 = arith.constant 8 : index
    %c0_208 = arith.constant 0 : index
    %97 = vector.load %arg5[%c0_205, %c1_206, %c8_207, %c0_208] : memref<1x18x32x128xf32, #tpu.memory_space<vmem>>, vector<1x16x16x128xf32>
    tpu.vector_store %arg5[%c0_205, %c1_206, %c8_207, %c0_208], %96 {strides = array<i32>} : memref<1x18x32x128xf32, #tpu.memory_space<vmem>>, vector<1x16x16x128xf32>,
    %c2_209 = arith.constant 2 : index
    %c0_210 = arith.constant 0 : index
    %c0_211 = arith.constant 0 : index
    %98 = vector.load %arg2[%c2_209, %c0_210, %c0_211] : memref<4x1152x128xbf16, #tpu.memory_space<vmem>>, vector<1x1152x128xbf16>
    %99 = vector.shape_cast %98 : vector<1x1152x128xbf16> to vector<1152x128xbf16>
    %c2_212 = arith.constant 2 : index
    %c0_213 = arith.constant 0 : index
    %100 = vector.load %arg3[%c2_212, %c0_213] : memref<4x128xf32, #tpu.memory_space<vmem>>, vector<1x128xf32>
    %c0_214 = arith.constant 0 : index
    %c0_215 = arith.constant 0 : index
    %c7_216 = arith.constant 7 : index
    %c0_217 = arith.constant 0 : index
    %101 = vector.load %arg5[%c0_214, %c0_215, %c7_216, %c0_217] : memref<1x18x32x128xf32, #tpu.memory_space<vmem>>, vector<1x16x16x128xf32>
    %102 = arith.truncf %101 : vector<1x16x16x128xf32> to vector<1x16x16x128xbf16>
    %c0_218 = arith.constant 0 : index
    %c0_219 = arith.constant 0 : index
    %c0_220 = arith.constant 0 : index
    %c0_221 = arith.constant 0 : index
    %103 = vector.load %arg7[%c0_218, %c0_219, %c0_220, %c0_221] : memref<1x16x16x1152xbf16, #tpu.memory_space<vmem>>, vector<1x16x16x128xbf16>
    tpu.vector_store %arg7[%c0_218, %c0_219, %c0_220, %c0_221], %102 {strides = array<i32>} : memref<1x16x16x1152xbf16, #tpu.memory_space<vmem>>, vector<1x16x16x128xbf16>,
    %c0_222 = arith.constant 0 : index
    %c0_223 = arith.constant 0 : index
    %c8_224 = arith.constant 8 : index
    %c0_225 = arith.constant 0 : index
    %104 = vector.load %arg5[%c0_222, %c0_223, %c8_224, %c0_225] : memref<1x18x32x128xf32, #tpu.memory_space<vmem>>, vector<1x16x16x128xf32>
    %105 = arith.truncf %104 : vector<1x16x16x128xf32> to vector<1x16x16x128xbf16>
    %c0_226 = arith.constant 0 : index
    %c0_227 = arith.constant 0 : index
    %c0_228 = arith.constant 0 : index
    %c128_229 = arith.constant 128 : index
    %106 = vector.load %arg7[%c0_226, %c0_227, %c0_228, %c128_229] : memref<1x16x16x1152xbf16, #tpu.memory_space<vmem>>, vector<1x16x16x128xbf16>
    tpu.vector_store %arg7[%c0_226, %c0_227, %c0_228, %c128_229], %105 {strides = array<i32>} : memref<1x16x16x1152xbf16, #tpu.memory_space<vmem>>, vector<1x16x16x128xbf16>,
    %c0_230 = arith.constant 0 : index
    %c0_231 = arith.constant 0 : index
    %c9_232 = arith.constant 9 : index
    %c0_233 = arith.constant 0 : index
    %107 = vector.load %arg5[%c0_230, %c0_231, %c9_232, %c0_233] : memref<1x18x32x128xf32, #tpu.memory_space<vmem>>, vector<1x16x16x128xf32>
    %108 = arith.truncf %107 : vector<1x16x16x128xf32> to vector<1x16x16x128xbf16>
    %c0_234 = arith.constant 0 : index
    %c0_235 = arith.constant 0 : index
    %c0_236 = arith.constant 0 : index
    %c256_237 = arith.constant 256 : index
    %109 = vector.load %arg7[%c0_234, %c0_235, %c0_236, %c256_237] : memref<1x16x16x1152xbf16, #tpu.memory_space<vmem>>, vector<1x16x16x128xbf16>
    tpu.vector_store %arg7[%c0_234, %c0_235, %c0_236, %c256_237], %108 {strides = array<i32>} : memref<1x16x16x1152xbf16, #tpu.memory_space<vmem>>, vector<1x16x16x128xbf16>,
    %c0_238 = arith.constant 0 : index
    %c1_239 = arith.constant 1 : index
    %c7_240 = arith.constant 7 : index
    %c0_241 = arith.constant 0 : index
    %110 = vector.load %arg5[%c0_238, %c1_239, %c7_240, %c0_241] : memref<1x18x32x128xf32, #tpu.memory_space<vmem>>, vector<1x16x16x128xf32>
    %111 = arith.truncf %110 : vector<1x16x16x128xf32> to vector<1x16x16x128xbf16>
    %c0_242 = arith.constant 0 : index
    %c0_243 = arith.constant 0 : index
    %c0_244 = arith.constant 0 : index
    %c384_245 = arith.constant 384 : index
    %112 = vector.load %arg7[%c0_242, %c0_243, %c0_244, %c384_245] : memref<1x16x16x1152xbf16, #tpu.memory_space<vmem>>, vector<1x16x16x128xbf16>
    tpu.vector_store %arg7[%c0_242, %c0_243, %c0_244, %c384_245], %111 {strides = array<i32>} : memref<1x16x16x1152xbf16, #tpu.memory_space<vmem>>, vector<1x16x16x128xbf16>,
    %c0_246 = arith.constant 0 : index
    %c1_247 = arith.constant 1 : index
    %c8_248 = arith.constant 8 : index
    %c0_249 = arith.constant 0 : index
    %113 = vector.load %arg5[%c0_246, %c1_247, %c8_248, %c0_249] : memref<1x18x32x128xf32, #tpu.memory_space<vmem>>, vector<1x16x16x128xf32>
    %114 = arith.truncf %113 : vector<1x16x16x128xf32> to vector<1x16x16x128xbf16>
    %c0_250 = arith.constant 0 : index
    %c0_251 = arith.constant 0 : index
    %c0_252 = arith.constant 0 : index
    %c512_253 = arith.constant 512 : index
    %115 = vector.load %arg7[%c0_250, %c0_251, %c0_252, %c512_253] : memref<1x16x16x1152xbf16, #tpu.memory_space<vmem>>, vector<1x16x16x128xbf16>
    tpu.vector_store %arg7[%c0_250, %c0_251, %c0_252, %c512_253], %114 {strides = array<i32>} : memref<1x16x16x1152xbf16, #tpu.memory_space<vmem>>, vector<1x16x16x128xbf16>,
    %c0_254 = arith.constant 0 : index
    %c1_255 = arith.constant 1 : index
    %c9_256 = arith.constant 9 : index
    %c0_257 = arith.constant 0 : index
    %116 = vector.load %arg5[%c0_254, %c1_255, %c9_256, %c0_257] : memref<1x18x32x128xf32, #tpu.memory_space<vmem>>, vector<1x16x16x128xf32>
    %117 = arith.truncf %116 : vector<1x16x16x128xf32> to vector<1x16x16x128xbf16>
    %c0_258 = arith.constant 0 : index
    %c0_259 = arith.constant 0 : index
    %c0_260 = arith.constant 0 : index
    %c640_261 = arith.constant 640 : index
    %118 = vector.load %arg7[%c0_258, %c0_259, %c0_260, %c640_261] : memref<1x16x16x1152xbf16, #tpu.memory_space<vmem>>, vector<1x16x16x128xbf16>
    tpu.vector_store %arg7[%c0_258, %c0_259, %c0_260, %c640_261], %117 {strides = array<i32>} : memref<1x16x16x1152xbf16, #tpu.memory_space<vmem>>, vector<1x16x16x128xbf16>,
    %c0_262 = arith.constant 0 : index
    %c2_263 = arith.constant 2 : index
    %c7_264 = arith.constant 7 : index
    %c0_265 = arith.constant 0 : index
    %119 = vector.load %arg5[%c0_262, %c2_263, %c7_264, %c0_265] : memref<1x18x32x128xf32, #tpu.memory_space<vmem>>, vector<1x16x16x128xf32>
    %120 = arith.truncf %119 : vector<1x16x16x128xf32> to vector<1x16x16x128xbf16>
    %c0_266 = arith.constant 0 : index
    %c0_267 = arith.constant 0 : index
    %c0_268 = arith.constant 0 : index
    %c768_269 = arith.constant 768 : index
    %121 = vector.load %arg7[%c0_266, %c0_267, %c0_268, %c768_269] : memref<1x16x16x1152xbf16, #tpu.memory_space<vmem>>, vector<1x16x16x128xbf16>
    tpu.vector_store %arg7[%c0_266, %c0_267, %c0_268, %c768_269], %120 {strides = array<i32>} : memref<1x16x16x1152xbf16, #tpu.memory_space<vmem>>, vector<1x16x16x128xbf16>,
    %c0_270 = arith.constant 0 : index
    %c2_271 = arith.constant 2 : index
    %c8_272 = arith.constant 8 : index
    %c0_273 = arith.constant 0 : index
    %122 = vector.load %arg5[%c0_270, %c2_271, %c8_272, %c0_273] : memref<1x18x32x128xf32, #tpu.memory_space<vmem>>, vector<1x16x16x128xf32>
    %123 = arith.truncf %122 : vector<1x16x16x128xf32> to vector<1x16x16x128xbf16>
    %c0_274 = arith.constant 0 : index
    %c0_275 = arith.constant 0 : index
    %c0_276 = arith.constant 0 : index
    %c896_277 = arith.constant 896 : index
    %124 = vector.load %arg7[%c0_274, %c0_275, %c0_276, %c896_277] : memref<1x16x16x1152xbf16, #tpu.memory_space<vmem>>, vector<1x16x16x128xbf16>
    tpu.vector_store %arg7[%c0_274, %c0_275, %c0_276, %c896_277], %123 {strides = array<i32>} : memref<1x16x16x1152xbf16, #tpu.memory_space<vmem>>, vector<1x16x16x128xbf16>,
    %c0_278 = arith.constant 0 : index
    %c2_279 = arith.constant 2 : index
    %c9_280 = arith.constant 9 : index
    %c0_281 = arith.constant 0 : index
    %125 = vector.load %arg5[%c0_278, %c2_279, %c9_280, %c0_281] : memref<1x18x32x128xf32, #tpu.memory_space<vmem>>, vector<1x16x16x128xf32>
    %126 = arith.truncf %125 : vector<1x16x16x128xf32> to vector<1x16x16x128xbf16>
    %c0_282 = arith.constant 0 : index
    %c0_283 = arith.constant 0 : index
    %c0_284 = arith.constant 0 : index
    %c1024_285 = arith.constant 1024 : index
    %127 = vector.load %arg7[%c0_282, %c0_283, %c0_284, %c1024_285] : memref<1x16x16x1152xbf16, #tpu.memory_space<vmem>>, vector<1x16x16x128xbf16>
    tpu.vector_store %arg7[%c0_282, %c0_283, %c0_284, %c1024_285], %126 {strides = array<i32>} : memref<1x16x16x1152xbf16, #tpu.memory_space<vmem>>, vector<1x16x16x128xbf16>,
    %c0_286 = arith.constant 0 : index
    %c0_287 = arith.constant 0 : index
    %c0_288 = arith.constant 0 : index
    %c0_289 = arith.constant 0 : index
    %128 = vector.load %arg7[%c0_286, %c0_287, %c0_288, %c0_289] : memref<1x16x16x1152xbf16, #tpu.memory_space<vmem>>, vector<1x16x16x1152xbf16>
    %129 = vector.shape_cast %128 : vector<1x16x16x1152xbf16> to vector<256x1152xbf16>
    %cst_290 = arith.constant dense<0.000000e+00> : vector<256x128xf32>
    %130 = tpu.matmul %129, %99, %cst_290 {dimension_numbers = #tpu.dot_dimension_numbers<[1], [0], [0], [1], [0, 0, 1, 1], [], []>} : vector<256x1152xbf16>, vector<1152x128xbf16>, vector<256x128xf32> -> vector<256x128xf32>
    %131 = vector.broadcast %100 : vector<1x128xf32> to vector<256x128xf32>
    %132 = arith.addf %130, %131 : vector<256x128xf32>
    %cst_291 = arith.constant 0.000000e+00 : f32
    %133 = vector.broadcast %cst_291 : f32 to vector<256x128xf32>
    %134 = arith.maximumf %132, %133 : vector<256x128xf32>
    %135 = vector.shape_cast %134 : vector<256x128xf32> to vector<1x16x16x128xf32>
    %c0_292 = arith.constant 0 : index
    %c1_293 = arith.constant 1 : index
    %c8_294 = arith.constant 8 : index
    %c0_295 = arith.constant 0 : index
    %136 = vector.load %arg6[%c0_292, %c1_293, %c8_294, %c0_295] : memref<1x18x32x128xf32, #tpu.memory_space<vmem>>, vector<1x16x16x128xf32>
    tpu.vector_store %arg6[%c0_292, %c1_293, %c8_294, %c0_295], %135 {strides = array<i32>} : memref<1x18x32x128xf32, #tpu.memory_space<vmem>>, vector<1x16x16x128xf32>,
    %c3 = arith.constant 3 : index
    %c0_296 = arith.constant 0 : index
    %c0_297 = arith.constant 0 : index
    %137 = vector.load %arg2[%c3, %c0_296, %c0_297] : memref<4x1152x128xbf16, #tpu.memory_space<vmem>>, vector<1x1152x128xbf16>
    %138 = vector.shape_cast %137 : vector<1x1152x128xbf16> to vector<1152x128xbf16>
    %c3_298 = arith.constant 3 : index
    %c0_299 = arith.constant 0 : index
    %139 = vector.load %arg3[%c3_298, %c0_299] : memref<4x128xf32, #tpu.memory_space<vmem>>, vector<1x128xf32>
    %c0_300 = arith.constant 0 : index
    %c0_301 = arith.constant 0 : index
    %c7_302 = arith.constant 7 : index
    %c0_303 = arith.constant 0 : index
    %140 = vector.load %arg6[%c0_300, %c0_301, %c7_302, %c0_303] : memref<1x18x32x128xf32, #tpu.memory_space<vmem>>, vector<1x16x16x128xf32>
    %141 = arith.truncf %140 : vector<1x16x16x128xf32> to vector<1x16x16x128xbf16>
    %c0_304 = arith.constant 0 : index
    %c0_305 = arith.constant 0 : index
    %c0_306 = arith.constant 0 : index
    %c0_307 = arith.constant 0 : index
    %142 = vector.load %arg7[%c0_304, %c0_305, %c0_306, %c0_307] : memref<1x16x16x1152xbf16, #tpu.memory_space<vmem>>, vector<1x16x16x128xbf16>
    tpu.vector_store %arg7[%c0_304, %c0_305, %c0_306, %c0_307], %141 {strides = array<i32>} : memref<1x16x16x1152xbf16, #tpu.memory_space<vmem>>, vector<1x16x16x128xbf16>,
    %c0_308 = arith.constant 0 : index
    %c0_309 = arith.constant 0 : index
    %c8_310 = arith.constant 8 : index
    %c0_311 = arith.constant 0 : index
    %143 = vector.load %arg6[%c0_308, %c0_309, %c8_310, %c0_311] : memref<1x18x32x128xf32, #tpu.memory_space<vmem>>, vector<1x16x16x128xf32>
    %144 = arith.truncf %143 : vector<1x16x16x128xf32> to vector<1x16x16x128xbf16>
    %c0_312 = arith.constant 0 : index
    %c0_313 = arith.constant 0 : index
    %c0_314 = arith.constant 0 : index
    %c128_315 = arith.constant 128 : index
    %145 = vector.load %arg7[%c0_312, %c0_313, %c0_314, %c128_315] : memref<1x16x16x1152xbf16, #tpu.memory_space<vmem>>, vector<1x16x16x128xbf16>
    tpu.vector_store %arg7[%c0_312, %c0_313, %c0_314, %c128_315], %144 {strides = array<i32>} : memref<1x16x16x1152xbf16, #tpu.memory_space<vmem>>, vector<1x16x16x128xbf16>,
    %c0_316 = arith.constant 0 : index
    %c0_317 = arith.constant 0 : index
    %c9_318 = arith.constant 9 : index
    %c0_319 = arith.constant 0 : index
    %146 = vector.load %arg6[%c0_316, %c0_317, %c9_318, %c0_319] : memref<1x18x32x128xf32, #tpu.memory_space<vmem>>, vector<1x16x16x128xf32>
    %147 = arith.truncf %146 : vector<1x16x16x128xf32> to vector<1x16x16x128xbf16>
    %c0_320 = arith.constant 0 : index
    %c0_321 = arith.constant 0 : index
    %c0_322 = arith.constant 0 : index
    %c256_323 = arith.constant 256 : index
    %148 = vector.load %arg7[%c0_320, %c0_321, %c0_322, %c256_323] : memref<1x16x16x1152xbf16, #tpu.memory_space<vmem>>, vector<1x16x16x128xbf16>
    tpu.vector_store %arg7[%c0_320, %c0_321, %c0_322, %c256_323], %147 {strides = array<i32>} : memref<1x16x16x1152xbf16, #tpu.memory_space<vmem>>, vector<1x16x16x128xbf16>,
    %c0_324 = arith.constant 0 : index
    %c1_325 = arith.constant 1 : index
    %c7_326 = arith.constant 7 : index
    %c0_327 = arith.constant 0 : index
    %149 = vector.load %arg6[%c0_324, %c1_325, %c7_326, %c0_327] : memref<1x18x32x128xf32, #tpu.memory_space<vmem>>, vector<1x16x16x128xf32>
    %150 = arith.truncf %149 : vector<1x16x16x128xf32> to vector<1x16x16x128xbf16>
    %c0_328 = arith.constant 0 : index
    %c0_329 = arith.constant 0 : index
    %c0_330 = arith.constant 0 : index
    %c384_331 = arith.constant 384 : index
    %151 = vector.load %arg7[%c0_328, %c0_329, %c0_330, %c384_331] : memref<1x16x16x1152xbf16, #tpu.memory_space<vmem>>, vector<1x16x16x128xbf16>
    tpu.vector_store %arg7[%c0_328, %c0_329, %c0_330, %c384_331], %150 {strides = array<i32>} : memref<1x16x16x1152xbf16, #tpu.memory_space<vmem>>, vector<1x16x16x128xbf16>,
    %c0_332 = arith.constant 0 : index
    %c1_333 = arith.constant 1 : index
    %c8_334 = arith.constant 8 : index
    %c0_335 = arith.constant 0 : index
    %152 = vector.load %arg6[%c0_332, %c1_333, %c8_334, %c0_335] : memref<1x18x32x128xf32, #tpu.memory_space<vmem>>, vector<1x16x16x128xf32>
    %153 = arith.truncf %152 : vector<1x16x16x128xf32> to vector<1x16x16x128xbf16>
    %c0_336 = arith.constant 0 : index
    %c0_337 = arith.constant 0 : index
    %c0_338 = arith.constant 0 : index
    %c512_339 = arith.constant 512 : index
    %154 = vector.load %arg7[%c0_336, %c0_337, %c0_338, %c512_339] : memref<1x16x16x1152xbf16, #tpu.memory_space<vmem>>, vector<1x16x16x128xbf16>
    tpu.vector_store %arg7[%c0_336, %c0_337, %c0_338, %c512_339], %153 {strides = array<i32>} : memref<1x16x16x1152xbf16, #tpu.memory_space<vmem>>, vector<1x16x16x128xbf16>,
    %c0_340 = arith.constant 0 : index
    %c1_341 = arith.constant 1 : index
    %c9_342 = arith.constant 9 : index
    %c0_343 = arith.constant 0 : index
    %155 = vector.load %arg6[%c0_340, %c1_341, %c9_342, %c0_343] : memref<1x18x32x128xf32, #tpu.memory_space<vmem>>, vector<1x16x16x128xf32>
    %156 = arith.truncf %155 : vector<1x16x16x128xf32> to vector<1x16x16x128xbf16>
    %c0_344 = arith.constant 0 : index
    %c0_345 = arith.constant 0 : index
    %c0_346 = arith.constant 0 : index
    %c640_347 = arith.constant 640 : index
    %157 = vector.load %arg7[%c0_344, %c0_345, %c0_346, %c640_347] : memref<1x16x16x1152xbf16, #tpu.memory_space<vmem>>, vector<1x16x16x128xbf16>
    tpu.vector_store %arg7[%c0_344, %c0_345, %c0_346, %c640_347], %156 {strides = array<i32>} : memref<1x16x16x1152xbf16, #tpu.memory_space<vmem>>, vector<1x16x16x128xbf16>,
    %c0_348 = arith.constant 0 : index
    %c2_349 = arith.constant 2 : index
    %c7_350 = arith.constant 7 : index
    %c0_351 = arith.constant 0 : index
    %158 = vector.load %arg6[%c0_348, %c2_349, %c7_350, %c0_351] : memref<1x18x32x128xf32, #tpu.memory_space<vmem>>, vector<1x16x16x128xf32>
    %159 = arith.truncf %158 : vector<1x16x16x128xf32> to vector<1x16x16x128xbf16>
    %c0_352 = arith.constant 0 : index
    %c0_353 = arith.constant 0 : index
    %c0_354 = arith.constant 0 : index
    %c768_355 = arith.constant 768 : index
    %160 = vector.load %arg7[%c0_352, %c0_353, %c0_354, %c768_355] : memref<1x16x16x1152xbf16, #tpu.memory_space<vmem>>, vector<1x16x16x128xbf16>
    tpu.vector_store %arg7[%c0_352, %c0_353, %c0_354, %c768_355], %159 {strides = array<i32>} : memref<1x16x16x1152xbf16, #tpu.memory_space<vmem>>, vector<1x16x16x128xbf16>,
    %c0_356 = arith.constant 0 : index
    %c2_357 = arith.constant 2 : index
    %c8_358 = arith.constant 8 : index
    %c0_359 = arith.constant 0 : index
    %161 = vector.load %arg6[%c0_356, %c2_357, %c8_358, %c0_359] : memref<1x18x32x128xf32, #tpu.memory_space<vmem>>, vector<1x16x16x128xf32>
    %162 = arith.truncf %161 : vector<1x16x16x128xf32> to vector<1x16x16x128xbf16>
    %c0_360 = arith.constant 0 : index
    %c0_361 = arith.constant 0 : index
    %c0_362 = arith.constant 0 : index
    %c896_363 = arith.constant 896 : index
    %163 = vector.load %arg7[%c0_360, %c0_361, %c0_362, %c896_363] : memref<1x16x16x1152xbf16, #tpu.memory_space<vmem>>, vector<1x16x16x128xbf16>
    tpu.vector_store %arg7[%c0_360, %c0_361, %c0_362, %c896_363], %162 {strides = array<i32>} : memref<1x16x16x1152xbf16, #tpu.memory_space<vmem>>, vector<1x16x16x128xbf16>,
    %c0_364 = arith.constant 0 : index
    %c2_365 = arith.constant 2 : index
    %c9_366 = arith.constant 9 : index
    %c0_367 = arith.constant 0 : index
    %164 = vector.load %arg6[%c0_364, %c2_365, %c9_366, %c0_367] : memref<1x18x32x128xf32, #tpu.memory_space<vmem>>, vector<1x16x16x128xf32>
    %165 = arith.truncf %164 : vector<1x16x16x128xf32> to vector<1x16x16x128xbf16>
    %c0_368 = arith.constant 0 : index
    %c0_369 = arith.constant 0 : index
    %c0_370 = arith.constant 0 : index
    %c1024_371 = arith.constant 1024 : index
    %166 = vector.load %arg7[%c0_368, %c0_369, %c0_370, %c1024_371] : memref<1x16x16x1152xbf16, #tpu.memory_space<vmem>>, vector<1x16x16x128xbf16>
    tpu.vector_store %arg7[%c0_368, %c0_369, %c0_370, %c1024_371], %165 {strides = array<i32>} : memref<1x16x16x1152xbf16, #tpu.memory_space<vmem>>, vector<1x16x16x128xbf16>,
    %c0_372 = arith.constant 0 : index
    %c0_373 = arith.constant 0 : index
    %c0_374 = arith.constant 0 : index
    %c0_375 = arith.constant 0 : index
    %167 = vector.load %arg7[%c0_372, %c0_373, %c0_374, %c0_375] : memref<1x16x16x1152xbf16, #tpu.memory_space<vmem>>, vector<1x16x16x1152xbf16>
    %168 = vector.shape_cast %167 : vector<1x16x16x1152xbf16> to vector<256x1152xbf16>
    %cst_376 = arith.constant dense<0.000000e+00> : vector<256x128xf32>
    %169 = tpu.matmul %168, %138, %cst_376 {dimension_numbers = #tpu.dot_dimension_numbers<[1], [0], [0], [1], [0, 0, 1, 1], [], []>} : vector<256x1152xbf16>, vector<1152x128xbf16>, vector<256x128xf32> -> vector<256x128xf32>
    %170 = vector.broadcast %139 : vector<1x128xf32> to vector<256x128xf32>
    %171 = arith.addf %169, %170 : vector<256x128xf32>
    %cst_377 = arith.constant 0.000000e+00 : f32
    %172 = vector.broadcast %cst_377 : f32 to vector<256x128xf32>
    %173 = arith.maximumf %171, %172 : vector<256x128xf32>
    %174 = vector.shape_cast %173 : vector<256x128xf32> to vector<1x16x16x128xf32>
    %c0_378 = arith.constant 0 : index
    %c1_379 = arith.constant 1 : index
    %c8_380 = arith.constant 8 : index
    %c0_381 = arith.constant 0 : index
    %175 = vector.load %arg5[%c0_378, %c1_379, %c8_380, %c0_381] : memref<1x18x32x128xf32, #tpu.memory_space<vmem>>, vector<1x16x16x128xf32>
    %176 = arith.addf %175, %174 : vector<1x16x16x128xf32>
    %c0_382 = arith.constant 0 : index
    %c0_383 = arith.constant 0 : index
    %c0_384 = arith.constant 0 : index
    %c0_385 = arith.constant 0 : index
    %177 = vector.load %arg4[%c0_382, %c0_383, %c0_384, %c0_385] : memref<1x16x16x128xf32, #tpu.memory_space<vmem>>, vector<1x16x16x128xf32>
    tpu.vector_store %arg4[%c0_382, %c0_383, %c0_384, %c0_385], %176 {strides = array<i32>} : memref<1x16x16x128xf32, #tpu.memory_space<vmem>>, vector<1x16x16x128xf32>,
    return
  }
  func.func @transform_0(%arg0: i32) -> (i32, i32, i32, i32) {
    %c0_i32 = arith.constant 0 : i32
    %c0_i32_0 = arith.constant 0 : i32
    %c0_i32_1 = arith.constant 0 : i32
    %c0_i32_2 = arith.constant 0 : i32
    return %arg0, %c0_i32, %c0_i32_0, %c0_i32_1 : i32, i32, i32, i32
  }
  func.func @transform_1(%arg0: i32) -> (i32, i32, i32) {
    %c0_i32 = arith.constant 0 : i32
    %c0_i32_0 = arith.constant 0 : i32
    %c0_i32_1 = arith.constant 0 : i32
    %c0_i32_2 = arith.constant 0 : i32
    return %c0_i32, %c0_i32_0, %c0_i32_1 : i32, i32, i32
  }
  func.func @transform_2(%arg0: i32) -> (i32, i32) {
    %c0_i32 = arith.constant 0 : i32
    %c0_i32_0 = arith.constant 0 : i32
    %c0_i32_1 = arith.constant 0 : i32
    return %c0_i32, %c0_i32_0 : i32, i32
  }
  func.func @transform_3(%arg0: i32) -> (i32, i32, i32, i32) {
    %c0_i32 = arith.constant 0 : i32
    %c0_i32_0 = arith.constant 0 : i32
    %c0_i32_1 = arith.constant 0 : i32
    %c0_i32_2 = arith.constant 0 : i32
    return %arg0, %c0_i32, %c0_i32_0, %c0_i32_1 : i32, i32, i32, i32
  }
}

</mosaic_0001>

<llo_original>
// kernel: residual_double_conv.1
$region0: #{residual_double_conv.1}
  #allocation0 [shape = 'u32[]', space=smem, size = 0x4, offset = 0x4, fixed_abs, tag = 'smem constant byte address 0x4 - core index']
  #allocation1 [shape = 'u32[144,128]{1,0:T(1,128)}', space=vmem, size = 0x12000, scoped, tag = 'internal scratch']
  #allocation2 [shape = 'f32[1,18,32,128]{3,2,1,0:T(8,128)}', space=vmem, size = 0x48000, scoped, tag = 'scratch operand']
  #allocation3 [shape = 'f32[1,18,32,128]{3,2,1,0:T(8,128)}', space=vmem, size = 0x48000, scoped, tag = 'scratch operand']
  #allocation4 [shape = 'bf16[1,16,16,1152]{3,2,1,0:T(16,128)(2,1)}', space=vmem, size = 0x90000, scoped, tag = 'scratch operand']
  %s0 = inlined_call_operand.hbm [shape: f32[2,16,16,128], index: 0, kind: input, shape index: {}]
  %s1 = inlined_call_operand.hbm [shape: bf16[4,1152,128], index: 1, kind: input, shape index: {}]
  %s2 = inlined_call_operand.hbm [shape: f32[4,128], index: 2, kind: input, shape index: {}]
  %s3 = inlined_call_operand.hbm [shape: f32[2,16,16,128], index: 3, kind: output, shape index: {}]
  %s4 = sld [smem:[#allocation0]]
  $region57: #{residual_double_conv.1} parent=0
    _
  %s6 = ssub.s32 1, %s4
  %s7 = scalar_select 0, %s6, %s4
  $region1: #{residual_double_conv.1} parent=0
    #allocation5 [shape = 'u8[262144]{0}', space=vmem, size = 0x40000, scoped, tag = 'input window, operand 0']
    #allocation6 [shape = 's32[2]{0}', space=sflag, size = 0x8, scoped, tag = 'scoped memory for residual_double_conv.1']
    #allocation7 [shape = 's32[2]{0}', space=sflag, size = 0x8, scoped, tag = 'scoped memory for residual_double_conv.1']
    #allocation8 [shape = 'u8[1179648]{0}', space=vmem, size = 0x120000, scoped, tag = 'input window, operand 1, single buffered']
    #allocation9 [shape = 's32[1]{0}', space=sflag, size = 0x4, scoped, tag = 'scoped memory for residual_double_conv.1']
    #allocation10 [shape = 'u8[2048]{0}', space=vmem, size = 0x800, scoped, tag = 'input window, operand 2, single buffered']
    #allocation11 [shape = 'u8[262144]{0}', space=vmem, size = 0x40000, scoped, tag = 'output window, operand 0']
    %8 = vsyncpa [#allocation6], 0
    %s9 = scalar_lea.sflag [#allocation6], 1
    %10 = vsyncpa %s9, 0
    %11 = vsyncpa [#allocation9], 0
    %12 = vsyncpa [#allocation7], 0
    %s13 = scalar_lea.sflag [#allocation7], 1
    %14 = vsyncpa %s13, 0
    loop: start=0, step=1, limit=4
    $region2: #{residual_double_conv.1} parent=1 // loop_pre_header
      _
    $region3: #{residual_double_conv.1} parent=1 // loop_header
      %s16 = sphi 0, %s20
      %p17 = scmp.ge.s32.totalorder %s16, 4
      %s26 = sphi 0, %s28
      %s29 = sphi 0, %s26
      %s30 = sphi 0, %s29
      %s46 = sphi 0, %s30
      %s50 = sphi 0, %s50
      %s52 = sphi 0, %s50
      %s53 = sphi 0, %s52
      %s67 = sphi 0, %s53
      %s71 = sphi 0, %s71
      %s73 = sphi 0, %s71
      %s74 = sphi 0, %s73
      %s88 = sphi 0, %s74
      %s94 = sphi 0, %s96
      %s97 = sphi 0, %s94
      %s98 = sphi 0, %s97
      %s114 = sphi 0, %s98
    $region4: #{residual_double_conv.1} parent=1 // loop_header_branch
      %19 = sbr.rel (%p17) target = $region8
    $region5: #{residual_double_conv.1} parent=1 // loop_body
      %s21 = ssub.s32 %s16, 1
      %s22 = ssub.s32 %s16, 2
      %s23 = sadd.s32 %s16, 1
      %s24 = ssub.s32 %s16, %s23
      %p25 = scmp.eq.s32.totalorder %s24, 0
      %s27 = sadd.s32 %s26, 1
      %s28 = scalar_select %p25, %s26, %s27
      %p31 = pneg %p25
      %p32 = scmp.eq.s32.totalorder %s16, 1
      %p33 = por %p31, %p32
      %p34 = scmp.ne.s32.totalorder %s26, %s29
      %p35 = scmp.eq.s32.totalorder %s16, 0
      %p36 = por %p34, %p35
      %p37 = scmp.ne.s32.totalorder %s26, %s29
      %p38 = scmp.eq.s32.totalorder %s21, 1
      %p39 = por %p37, %p38
      %p40 = scmp.ne.s32.totalorder %s29, %s30
      %p41 = scmp.eq.s32.totalorder %s21, 0
      %p42 = por %p40, %p41
      %p43 = scmp.ne.s32.totalorder %s29, %s30
      %p44 = scmp.eq.s32.totalorder %s22, 1
      %p45 = por %p43, %p44
      %p47 = scmp.ne.s32.totalorder %s30, %s46
      %p48 = scmp.eq.s32.totalorder %s22, 0
      %p49 = por %p47, %p48
      %s51 = sadd.s32 %s50, 1
      %p54 = scmp.eq.s32.totalorder %s16, 1
      %p55 = scmp.ne.s32.totalorder %s50, %s52
      %p56 = scmp.eq.s32.totalorder %s16, 0
      %p57 = por %p55, %p56
      %p58 = scmp.ne.s32.totalorder %s50, %s52
      %p59 = scmp.eq.s32.totalorder %s21, 1
      %p60 = por %p58, %p59
      %p61 = scmp.ne.s32.totalorder %s52, %s53
      %p62 = scmp.eq.s32.totalorder %s21, 0
      %p63 = por %p61, %p62
      %p64 = scmp.ne.s32.totalorder %s52, %s53
      %p65 = scmp.eq.s32.totalorder %s22, 1
      %p66 = por %p64, %p65
      %p68 = scmp.ne.s32.totalorder %s53, %s67
      %p69 = scmp.eq.s32.totalorder %s22, 0
      %p70 = por %p68, %p69
      %s72 = sadd.s32 %s71, 1
      %p75 = scmp.eq.s32.totalorder %s16, 1
      %p76 = scmp.ne.s32.totalorder %s71, %s73
      %p77 = scmp.eq.s32.totalorder %s16, 0
      %p78 = por %p76, %p77
      %p79 = scmp.ne.s32.totalorder %s71, %s73
      %p80 = scmp.eq.s32.totalorder %s21, 1
      %p81 = por %p79, %p80
      %p82 = scmp.ne.s32.totalorder %s73, %s74
      %p83 = scmp.eq.s32.totalorder %s21, 0
      %p84 = por %p82, %p83
      %p85 = scmp.ne.s32.totalorder %s73, %s74
      %p86 = scmp.eq.s32.totalorder %s22, 1
      %p87 = por %p85, %p86
      %p89 = scmp.ne.s32.totalorder %s74, %s88
      %p90 = scmp.eq.s32.totalorder %s22, 0
      %p91 = por %p89, %p90
      %s92 = ssub.s32 %s16, %s23
      %p93 = scmp.eq.s32.totalorder %s92, 0
      %s95 = sadd.s32 %s94, 1
      %s96 = scalar_select %p93, %s94, %s95
      %p99 = pneg %p93
      %p100 = scmp.eq.s32.totalorder %s16, 1
      %p101 = por %p99, %p100
      %p102 = scmp.ne.s32.totalorder %s94, %s97
      %p103 = scmp.eq.s32.totalorder %s16, 0
      %p104 = por %p102, %p103
      %p105 = scmp.ne.s32.totalorder %s94, %s97
      %p106 = scmp.eq.s32.totalorder %s21, 1
      %p107 = por %p105, %p106
      %p108 = scmp.ne.s32.totalorder %s97, %s98
      %p109 = scmp.eq.s32.totalorder %s21, 0
      %p110 = por %p108, %p109
      %p111 = scmp.ne.s32.totalorder %s97, %s98
      %p112 = scmp.eq.s32.totalorder %s22, 1
      %p113 = por %p111, %p112
      %p115 = scmp.ne.s32.totalorder %s98, %s114
      %p116 = scmp.eq.s32.totalorder %s22, 0
      %p117 = por %p115, %p116
      %p118 = scmp.le.s32.totalorder 1, %s16
      %p119 = scmp.lt.s32.totalorder %s16, 3
      %p120 = pnand %p118, %p119
      %p121 = pneg %p120
      // Predicated region
      $region9: #{residual_double_conv.1} parent=5 // pred_check
        _
      $region10: #{residual_double_conv.1} parent=5 // pred_check_branch
        %123 = sbr.rel (%p120) target = $region12
      $region11: #{residual_double_conv.1} parent=5 // pred_region
        %s124 = ssub.s32 %s16, 1
        // Predicated region
        $region13: #{residual_double_conv.1} parent=11 // pred_check
          %p125 = pneg %p63
        $region14: #{residual_double_conv.1} parent=11 // pred_check_branch
          %127 = sbr.rel (%p125) target = $region16
        $region15: #{residual_double_conv.1} parent=11 // pred_region
          %s129 = ssub.s32 36864, 36864
          %130 = vsyncadd [#allocation9], %s129
          %s131 = sshll.u32 [#allocation8], 4
          %s132 = int_to_ptr.vmem [resolvable:$true] %s131
          %137 = dma.hbm_to_vmem [thread:$0]  %s1, 36864, %s132, [#allocation9], 64, 64, 4
        $region16: #{residual_double_conv.1} parent=11 // pred_fallthru
          _
        // Predicated region
        $region17: #{residual_double_conv.1} parent=11 // pred_check
          %p138 = pneg %p84
        $region18: #{residual_double_conv.1} parent=11 // pred_check_branch
          %140 = sbr.rel (%p138) target = $region20
        $region19: #{residual_double_conv.1} parent=11 // pred_region
          %s142 = ssub.s32 64, 64
          %143 = vsyncadd [#allocation9], %s142
          %s145 = sshll.u32 [#allocation10], 4
          %s146 = int_to_ptr.vmem [resolvable:$true] %s145
          %148 = dma.hbm_to_vmem [thread:$0]  %s2, 64, %s146, [#allocation9]
        $region20: #{residual_double_conv.1} parent=11 // pred_fallthru
          _
      $region12: #{residual_double_conv.1} parent=5 // pred_fallthru
        _
      %p149 = scmp.lt.s32.totalorder %s16, 2
      // Predicated region
      $region21: #{residual_double_conv.1} parent=5 // pred_check
        %p150 = pneg %p149
      $region22: #{residual_double_conv.1} parent=5 // pred_check_branch
        %152 = sbr.rel (%p150) target = $region24
      $region23: #{residual_double_conv.1} parent=5 // pred_region
        // Predicated region
        $region25: #{residual_double_conv.1} parent=23 // pred_check
          %p153 = pneg %p36
        $region26: #{residual_double_conv.1} parent=23 // pred_check_branch
          %155 = sbr.rel (%p153) target = $region28
        $region27: #{residual_double_conv.1} parent=23 // pred_region
          %s156 = sand.u32 %s26, 1
          %s157 = scalar_lea.sflag [#allocation6], %s156
          %s158 = sand.u32 %s26, 1
          %s159 = smul.addr %s158, 256
          %s160 = scalar_lea.vmem [#allocation5], %s159
          %s162 = ssub.s32 4096, 4096
          %163 = vsyncadd %s157, %s162
          %s164 = smul.addr %s16, 32
          %s165 = smul.addr %s164, 128
          %s166 = scalar_lea.hbm %s0, %s165
          %s167 = sshll.u32 %s160, 4
          %s168 = int_to_ptr.vmem [resolvable:$true] %s167
          %173 = dma.hbm_to_vmem [thread:$0]  %s166, 4096, %s168, %s157, 128, 128, 8
        $region28: #{residual_double_conv.1} parent=23 // pred_fallthru
          _
      $region24: #{residual_double_conv.1} parent=5 // pred_fallthru
        _
      %p174 = scmp.le.s32.totalorder 1, %s16
      %p175 = scmp.lt.s32.totalorder %s16, 3
      %p176 = pnand %p174, %p175
      %p177 = pneg %p176
      // Predicated region
      $region29: #{residual_double_conv.1} parent=5 // pred_check
        _
      $region30: #{residual_double_conv.1} parent=5 // pred_check_branch
        %179 = sbr.rel (%p176) target = $region32
      $region31: #{residual_double_conv.1} parent=5 // pred_region
        %s180 = ssub.s32 %s16, 1
        %s181 = sand.u32 %s29, 1
        %s182 = scalar_lea.sflag [#allocation6], %s181
        %s183 = sand.u32 %s29, 1
        %s184 = smul.addr %s183, 256
        %s185 = scalar_lea.vmem [#allocation5], %s184
        // Predicated region
        $region33: #{residual_double_conv.1} parent=31 // pred_check
          %p186 = pneg %p42
        $region34: #{residual_double_conv.1} parent=31 // pred_check_branch
          %188 = sbr.rel (%p186) target = $region36
        $region35: #{residual_double_conv.1} parent=31 // pred_region
          %189 = dma.done %s182, 4096
        $region36: #{residual_double_conv.1} parent=31 // pred_fallthru
          _
        // Predicated region
        $region37: #{residual_double_conv.1} parent=31 // pred_check
          %p190 = pneg %p63
        $region38: #{residual_double_conv.1} parent=31 // pred_check_branch
          %192 = sbr.rel (%p190) target = $region40
        $region39: #{residual_double_conv.1} parent=31 // pred_region
          %193 = dma.done [#allocation9], 36864
        $region40: #{residual_double_conv.1} parent=31 // pred_fallthru
          _
        // Predicated region
        $region41: #{residual_double_conv.1} parent=31 // pred_check
          %p194 = pneg %p84
        $region42: #{residual_double_conv.1} parent=31 // pred_check_branch
          %196 = sbr.rel (%p194) target = $region44
        $region43: #{residual_double_conv.1} parent=31 // pred_region
          %197 = dma.done [#allocation9], 64
        $region44: #{residual_double_conv.1} parent=31 // pred_fallthru
          _
        %s198 = sand.u32 %s29, 1
        %s199 = scalar_lea.sflag [#allocation6], %s198
        %s200 = sand.u32 %s29, 1
        %s201 = smul.addr %s200, 256
        %s202 = scalar_lea.vmem [#allocation5], %s201
        %p203 = pneg %p42
        %p204 = pneg %p39
        %p205 = pneg %p63
        %p206 = pneg %p60
        %p207 = pneg %p84
        %p208 = pneg %p81
        %p209 = pneg %p110
        %p210 = pneg %p107
        %s211 = sand.u32 %s97, 1
        %s212 = scalar_lea.sflag [#allocation7], %s211
        %s213 = sand.u32 %s97, 1
        %s214 = smul.addr %s213, 256
        %s215 = scalar_lea.vmem [#allocation11], %s214
        %217 = vst [vmem:[#allocation2] sm:$0xff] 0.0
        %218 = vst [vmem:[#allocation2 + $0x8] sm:$0xff] 0.0
        %219 = vst [vmem:[#allocation2 + $0x10] sm:$0xff] 0.0
        %220 = vst [vmem:[#allocation2 + $0x18] sm:$0xff] 0.0
        %s221 = scalar_lea.vmem [#allocation2], 544
        %222 = vst [vmem:[%s221] sm:$0xff] 0.0
        %223 = vst [vmem:[%s221 + $0x8] sm:$0xff] 0.0
        %224 = vst [vmem:[%s221 + $0x10] sm:$0xff] 0.0
        %225 = vst [vmem:[%s221 + $0x18] sm:$0xff] 0.0
        %226 = vst [vmem:[#allocation2] sm:$0xff] 0.0
        %227 = vst [vmem:[#allocation2 + $0x20] sm:$0xff] 0.0
        %228 = vst [vmem:[#allocation2 + $0x40] sm:$0xff] 0.0
        %229 = vst [vmem:[#allocation2 + $0x60] sm:$0xff] 0.0
        %230 = vst [vmem:[#allocation2 + $0x80] sm:$0xff] 0.0
        %231 = vst [vmem:[#allocation2 + $0xa0] sm:$0xff] 0.0
        %232 = vst [vmem:[#allocation2 + $0xc0] sm:$0xff] 0.0
        %233 = vst [vmem:[#allocation2 + $0xe0] sm:$0xff] 0.0
        %234 = vst [vmem:[#allocation2 + $0x100] sm:$0xff] 0.0
        %235 = vst [vmem:[#allocation2 + $0x120] sm:$0xff] 0.0
        %236 = vst [vmem:[#allocation2 + $0x140] sm:$0xff] 0.0
        %237 = vst [vmem:[#allocation2 + $0x160] sm:$0xff] 0.0
        %238 = vst [vmem:[#allocation2 + $0x180] sm:$0xff] 0.0
        %239 = vst [vmem:[#allocation2 + $0x1a0] sm:$0xff] 0.0
        %240 = vst [vmem:[#allocation2 + $0x1c0] sm:$0xff] 0.0
        %241 = vst [vmem:[#allocation2 + $0x1e0] sm:$0xff] 0.0
        %242 = vst [vmem:[#allocation2 + $0x200] sm:$0xff] 0.0
        %243 = vst [vmem:[#allocation2 + $0x220] sm:$0xff] 0.0
        %244 = vst [vmem:[#allocation2 + $0x18] sm:$0xff] 0.0
        %245 = vst [vmem:[#allocation2 + $0x38] sm:$0xff] 0.0
        %246 = vst [vmem:[#allocation2 + $0x58] sm:$0xff] 0.0
        %247 = vst [vmem:[#allocation2 + $0x78] sm:$0xff] 0.0
        %248 = vst [vmem:[#allocation2 + $0x98] sm:$0xff] 0.0
        %249 = vst [vmem:[#allocation2 + $0xb8] sm:$0xff] 0.0
        %250 = vst [vmem:[#allocation2 + $0xd8] sm:$0xff] 0.0
        %251 = vst [vmem:[#allocation2 + $0xf8] sm:$0xff] 0.0
        %252 = vst [vmem:[#allocation2 + $0x118] sm:$0xff] 0.0
        %253 = vst [vmem:[#allocation2 + $0x138] sm:$0xff] 0.0
        %254 = vst [vmem:[#allocation2 + $0x158] sm:$0xff] 0.0
        %255 = vst [vmem:[#allocation2 + $0x178] sm:$0xff] 0.0
        %256 = vst [vmem:[#allocation2 + $0x198] sm:$0xff] 0.0
        %257 = vst [vmem:[#allocation2 + $0x1b8] sm:$0xff] 0.0
        %258 = vst [vmem:[#allocation2 + $0x1d8] sm:$0xff] 0.0
        %259 = vst [vmem:[#allocation2 + $0x1f8] sm:$0xff] 0.0
        %260 = vst [vmem:[#allocation2 + $0x218] sm:$0xff] 0.0
        %261 = vst [vmem:[#allocation2 + $0x238] sm:$0xff] 0.0
        %262 = vst [vmem:[#allocation3] sm:$0xff] 0.0
        %263 = vst [vmem:[#allocation3 + $0x8] sm:$0xff] 0.0
        %264 = vst [vmem:[#allocation3 + $0x10] sm:$0xff] 0.0
        %265 = vst [vmem:[#allocation3 + $0x18] sm:$0xff] 0.0
        %s266 = scalar_lea.vmem [#allocation3], 544
        %267 = vst [vmem:[%s266] sm:$0xff] 0.0
        %268 = vst [vmem:[%s266 + $0x8] sm:$0xff] 0.0
        %269 = vst [vmem:[%s266 + $0x10] sm:$0xff] 0.0
        %270 = vst [vmem:[%s266 + $0x18] sm:$0xff] 0.0
        %271 = vst [vmem:[#allocation3] sm:$0xff] 0.0
        %272 = vst [vmem:[#allocation3 + $0x20] sm:$0xff] 0.0
        %273 = vst [vmem:[#allocation3 + $0x40] sm:$0xff] 0.0
        %274 = vst [vmem:[#allocation3 + $0x60] sm:$0xff] 0.0
        %275 = vst [vmem:[#allocation3 + $0x80] sm:$0xff] 0.0
        %276 = vst [vmem:[#allocation3 + $0xa0] sm:$0xff] 0.0
        %277 = vst [vmem:[#allocation3 + $0xc0] sm:$0xff] 0.0
        %278 = vst [vmem:[#allocation3 + $0xe0] sm:$0xff] 0.0
        %279 = vst [vmem:[#allocation3 + $0x100] sm:$0xff] 0.0
        %280 = vst [vmem:[#allocation3 + $0x120] sm:$0xff] 0.0
        %281 = vst [vmem:[#allocation3 + $0x140] sm:$0xff] 0.0
        %282 = vst [vmem:[#allocation3 + $0x160] sm:$0xff] 0.0
        %283 = vst [vmem:[#allocation3 + $0x180] sm:$0xff] 0.0
        %284 = vst [vmem:[#allocation3 + $0x1a0] sm:$0xff] 0.0
        %285 = vst [vmem:[#allocation3 + $0x1c0] sm:$0xff] 0.0
        %286 = vst [vmem:[#allocation3 + $0x1e0] sm:$0xff] 0.0
        %287 = vst [vmem:[#allocation3 + $0x200] sm:$0xff] 0.0
        %288 = vst [vmem:[#allocation3 + $0x220] sm:$0xff] 0.0
        %289 = vst [vmem:[#allocation3 + $0x18] sm:$0xff] 0.0
        %290 = vst [vmem:[#allocation3 + $0x38] sm:$0xff] 0.0
        %291 = vst [vmem:[#allocation3 + $0x58] sm:$0xff] 0.0
        %292 = vst [vmem:[#allocation3 + $0x78] sm:$0xff] 0.0
        %293 = vst [vmem:[#allocation3 + $0x98] sm:$0xff] 0.0
        %294 = vst [vmem:[#allocation3 + $0xb8] sm:$0xff] 0.0
        %295 = vst [vmem:[#allocation3 + $0xd8] sm:$0xff] 0.0
        %296 = vst [vmem:[#allocation3 + $0xf8] sm:$0xff] 0.0
        %297 = vst [vmem:[#allocation3 + $0x118] sm:$0xff] 0.0
        %298 = vst [vmem:[#allocation3 + $0x138] sm:$0xff] 0.0
        %299 = vst [vmem:[#allocation3 + $0x158] sm:$0xff] 0.0
        %300 = vst [vmem:[#allocation3 + $0x178] sm:$0xff] 0.0
        %301 = vst [vmem:[#allocation3 + $0x198] sm:$0xff] 0.0
        %302 = vst [vmem:[#allocation3 + $0x1b8] sm:$0xff] 0.0
        %303 = vst [vmem:[#allocation3 + $0x1d8] sm:$0xff] 0.0
        %304 = vst [vmem:[#allocation3 + $0x1f8] sm:$0xff] 0.0
        %305 = vst [vmem:[#allocation3 + $0x218] sm:$0xff] 0.0
        %306 = vst [vmem:[#allocation3 + $0x238] sm:$0xff] 0.0
        %v307 = vld [vmem:[%s185] sm:$0xff]
        %v308 = vld [vmem:[%s185 + $0x8] sm:$0xff]
        %v309 = vld [vmem:[%s185 + $0x10] sm:$0xff]
        %v310 = vld [vmem:[%s185 + $0x18] sm:$0xff]
        %v311 = vld [vmem:[%s185 + $0x20] sm:$0xff]
        %v312 = vld [vmem:[%s185 + $0x28] sm:$0xff]
        %v313 = vld [vmem:[%s185 + $0x30] sm:$0xff]
        %v314 = vld [vmem:[%s185 + $0x38] sm:$0xff]
        %v315 = vld [vmem:[%s185 + $0x40] sm:$0xff]
        %v316 = vld [vmem:[%s185 + $0x48] sm:$0xff]
        %v317 = vld [vmem:[%s185 + $0x50] sm:$0xff]
        %v318 = vld [vmem:[%s185 + $0x58] sm:$0xff]
        %v319 = vld [vmem:[%s185 + $0x60] sm:$0xff]
        %v320 = vld [vmem:[%s185 + $0x68] sm:$0xff]
        %v321 = vld [vmem:[%s185 + $0x70] sm:$0xff]
        %v322 = vld [vmem:[%s185 + $0x78] sm:$0xff]
        %v323 = vld [vmem:[%s185 + $0x80] sm:$0xff]
        %v324 = vld [vmem:[%s185 + $0x88] sm:$0xff]
        %v325 = vld [vmem:[%s185 + $0x90] sm:$0xff]
        %v326 = vld [vmem:[%s185 + $0x98] sm:$0xff]
        %v327 = vld [vmem:[%s185 + $0xa0] sm:$0xff]
        %v328 = vld [vmem:[%s185 + $0xa8] sm:$0xff]
        %v329 = vld [vmem:[%s185 + $0xb0] sm:$0xff]
        %v330 = vld [vmem:[%s185 + $0xb8] sm:$0xff]
        %v331 = vld [vmem:[%s185 + $0xc0] sm:$0xff]
        %v332 = vld [vmem:[%s185 + $0xc8] sm:$0xff]
        %v333 = vld [vmem:[%s185 + $0xd0] sm:$0xff]
        %v334 = vld [vmem:[%s185 + $0xd8] sm:$0xff]
        %v335 = vld [vmem:[%s185 + $0xe0] sm:$0xff]
        %v336 = vld [vmem:[%s185 + $0xe8] sm:$0xff]
        %v337 = vld [vmem:[%s185 + $0xf0] sm:$0xff]
        %v338 = vld [vmem:[%s185 + $0xf8] sm:$0xff]
        %s339 = scalar_lea.vmem [#allocation2], 32
        %340 = vst [vmem:[%s339 + $0x8] sm:$0xff] %v307
        %341 = vst [vmem:[%s339 + $0x10] sm:$0xff] %v308
        %342 = vst [vmem:[%s339 + $0x28] sm:$0xff] %v309
        %343 = vst [vmem:[%s339 + $0x30] sm:$0xff] %v310
        %344 = vst [vmem:[%s339 + $0x48] sm:$0xff] %v311
        %345 = vst [vmem:[%s339 + $0x50] sm:$0xff] %v312
        %346 = vst [vmem:[%s339 + $0x68] sm:$0xff] %v313
        %347 = vst [vmem:[%s339 + $0x70] sm:$0xff] %v314
        %348 = vst [vmem:[%s339 + $0x88] sm:$0xff] %v315
        %349 = vst [vmem:[%s339 + $0x90] sm:$0xff] %v316
        %350 = vst [vmem:[%s339 + $0xa8] sm:$0xff] %v317
        %351 = vst [vmem:[%s339 + $0xb0] sm:$0xff] %v318
        %352 = vst [vmem:[%s339 + $0xc8] sm:$0xff] %v319
        %353 = vst [vmem:[%s339 + $0xd0] sm:$0xff] %v320
        %354 = vst [vmem:[%s339 + $0xe8] sm:$0xff] %v321
        %355 = vst [vmem:[%s339 + $0xf0] sm:$0xff] %v322
        %356 = vst [vmem:[%s339 + $0x108] sm:$0xff] %v323
        %357 = vst [vmem:[%s339 + $0x110] sm:$0xff] %v324
        %358 = vst [vmem:[%s339 + $0x128] sm:$0xff] %v325
        %359 = vst [vmem:[%s339 + $0x130] sm:$0xff] %v326
        %360 = vst [vmem:[%s339 + $0x148] sm:$0xff] %v327
        %361 = vst [vmem:[%s339 + $0x150] sm:$0xff] %v328
        %362 = vst [vmem:[%s339 + $0x168] sm:$0xff] %v329
        %363 = vst [vmem:[%s339 + $0x170] sm:$0xff] %v330
        %364 = vst [vmem:[%s339 + $0x188] sm:$0xff] %v331
        %365 = vst [vmem:[%s339 + $0x190] sm:$0xff] %v332
        %366 = vst [vmem:[%s339 + $0x1a8] sm:$0xff] %v333
        %367 = vst [vmem:[%s339 + $0x1b0] sm:$0xff] %v334
        %368 = vst [vmem:[%s339 + $0x1c8] sm:$0xff] %v335
        %369 = vst [vmem:[%s339 + $0x1d0] sm:$0xff] %v336
        %370 = vst [vmem:[%s339 + $0x1e8] sm:$0xff] %v337
        %371 = vst [vmem:[%s339 + $0x1f0] sm:$0xff] %v338
        %v372 = vld [vmem:[#allocation8] sm:$0xf]
        %v373 = vld [vmem:[#allocation8 + $0x4] sm:$0xf]
        %v374 = vld [vmem:[#allocation8 + $0x8] sm:$0xf]
        %v375 = vld [vmem:[#allocation8 + $0xc] sm:$0xf]
        %v376 = vld [vmem:[#allocation8 + $0x10] sm:$0xf]
        %v377 = vld [vmem:[#allocation8 + $0x14] sm:$0xf]
        %v378 = vld [vmem:[#allocation8 + $0x18] sm:$0xf]
        %v379 = vld [vmem:[#allocation8 + $0x1c] sm:$0xf]
        %v380 = vld [vmem:[#allocation8 + $0x20] sm:$0xf]
        %v381 = vld [vmem:[#allocation8 + $0x24] sm:$0xf]
        %v382 = vld [vmem:[#allocation8 + $0x28] sm:$0xf]
        %v383 = vld [vmem:[#allocation8 + $0x2c] sm:$0xf]
        %v384 = vld [vmem:[#allocation8 + $0x30] sm:$0xf]
        %v385 = vld [vmem:[#allocation8 + $0x34] sm:$0xf]
        %v386 = vld [vmem:[#allocation8 + $0x38] sm:$0xf]
        %v387 = vld [vmem:[#allocation8 + $0x3c] sm:$0xf]
        %v388 = vld [vmem:[#allocation8 + $0x40] sm:$0xf]
        %v389 = vld [vmem:[#allocation8 + $0x44] sm:$0xf]
        %v390 = vld [vmem:[#allocation8 + $0x48] sm:$0xf]
        %v391 = vld [vmem:[#allocation8 + $0x4c] sm:$0xf]
        %v392 = vld [vmem:[#allocation8 + $0x50] sm:$0xf]
        %v393 = vld [vmem:[#allocation8 + $0x54] sm:$0xf]
        %v394 = vld [vmem:[#allocation8 + $0x58] sm:$0xf]
        %v395 = vld [vmem:[#allocation8 + $0x5c] sm:$0xf]
        %v396 = vld [vmem:[#allocation8 + $0x60] sm:$0xf]
        %v397 = vld [vmem:[#allocation8 + $0x64] sm:$0xf]
        %v398 = vld [vmem:[#allocation8 + $0x68] sm:$0xf]
        %v399 = vld [vmem:[#allocation8 + $0x6c] sm:$0xf]
        %v400 = vld [vmem:[#allocation8 + $0x70] sm:$0xf]
        %v401 = vld [vmem:[#allocation8 + $0x74] sm:$0xf]
        %v402 = vld [vmem:[#allocation8 + $0x78] sm:$0xf]
        %v403 = vld [vmem:[#allocation8 + $0x7c] sm:$0xf]
        %v404 = vld [vmem:[#allocation8 + $0x80] sm:$0xf]
        %v405 = vld [vmem:[#allocation8 + $0x84] sm:$0xf]
        %v406 = vld [vmem:[#allocation8 + $0x88] sm:$0xf]
        %v407 = vld [vmem:[#allocation8 + $0x8c] sm:$0xf]
        %v408 = vld [vmem:[#allocation8 + $0x90] sm:$0xf]
        %v409 = vld [vmem:[#allocation8 + $0x94] sm:$0xf]
        %v410 = vld [vmem:[#allocation8 + $0x98] sm:$0xf]
        %v411 = vld [vmem:[#allocation8 + $0x9c] sm:$0xf]
        %v412 = vld [vmem:[#allocation8 + $0xa0] sm:$0xf]
        %v413 = vld [vmem:[#allocation8 + $0xa4] sm:$0xf]
        %v414 = vld [vmem:[#allocation8 + $0xa8] sm:$0xf]
        %v415 = vld [vmem:[#allocation8 + $0xac] sm:$0xf]
        %v416 = vld [vmem:[#allocation8 + $0xb0] sm:$0xf]
        %v417 = vld [vmem:[#allocation8 + $0xb4] sm:$0xf]
        %v418 = vld [vmem:[#allocation8 + $0xb8] sm:$0xf]
        %v419 = vld [vmem:[#allocation8 + $0xbc] sm:$0xf]
        %v420 = vld [vmem:[#allocation8 + $0xc0] sm:$0xf]
        %v421 = vld [vmem:[#allocation8 + $0xc4] sm:$0xf]
        %v422 = vld [vmem:[#allocation8 + $0xc8] sm:$0xf]
        %v423 = vld [vmem:[#allocation8 + $0xcc] sm:$0xf]
        %v424 = vld [vmem:[#allocation8 + $0xd0] sm:$0xf]
        %v425 = vld [vmem:[#allocation8 + $0xd4] sm:$0xf]
        %v426 = vld [vmem:[#allocation8 + $0xd8] sm:$0xf]
        %v427 = vld [vmem:[#allocation8 + $0xdc] sm:$0xf]
        %v428 = vld [vmem:[#allocation8 + $0xe0] sm:$0xf]
        %v429 = vld [vmem:[#allocation8 + $0xe4] sm:$0xf]
        %v430 = vld [vmem:[#allocation8 + $0xe8] sm:$0xf]
        %v431 = vld [vmem:[#allocation8 + $0xec] sm:$0xf]
        %v432 = vld [vmem:[#allocation8 + $0xf0] sm:$0xf]
        %v433 = vld [vmem:[#allocation8 + $0xf4] sm:$0xf]
        %v434 = vld [vmem:[#allocation8 + $0xf8] sm:$0xf]
        %v435 = vld [vmem:[#allocation8 + $0xfc] sm:$0xf]
        %v436 = vld [vmem:[#allocation8 + $0x100] sm:$0xf]
        %v437 = vld [vmem:[#allocation8 + $0x104] sm:$0xf]
        %v438 = vld [vmem:[#allocation8 + $0x108] sm:$0xf]
        %v439 = vld [vmem:[#allocation8 + $0x10c] sm:$0xf]
        %v440 = vld [vmem:[#allocation8 + $0x110] sm:$0xf]
        %v441 = vld [vmem:[#allocation8 + $0x114] sm:$0xf]
        %v442 = vld [vmem:[#allocation8 + $0x118] sm:$0xf]
        %v443 = vld [vmem:[#allocation8 + $0x11c] sm:$0xf]
        %v444 = vld [vmem:[#allocation8 + $0x120] sm:$0xf]
        %v445 = vld [vmem:[#allocation8 + $0x124] sm:$0xf]
        %v446 = vld [vmem:[#allocation8 + $0x128] sm:$0xf]
        %v447 = vld [vmem:[#allocation8 + $0x12c] sm:$0xf]
        %v448 = vld [vmem:[#allocation8 + $0x130] sm:$0xf]
        %v449 = vld [vmem:[#allocation8 + $0x134] sm:$0xf]
        %v450 = vld [vmem:[#allocation8 + $0x138] sm:$0xf]
        %v451 = vld [vmem:[#allocation8 + $0x13c] sm:$0xf]
        %v452 = vld [vmem:[#allocation8 + $0x140] sm:$0xf]
        %v453 = vld [vmem:[#allocation8 + $0x144] sm:$0xf]
        %v454 = vld [vmem:[#allocation8 + $0x148] sm:$0xf]
        %v455 = vld [vmem:[#allocation8 + $0x14c] sm:$0xf]
        %v456 = vld [vmem:[#allocation8 + $0x150] sm:$0xf]
        %v457 = vld [vmem:[#allocation8 + $0x154] sm:$0xf]
        %v458 = vld [vmem:[#allocation8 + $0x158] sm:$0xf]
        %v459 = vld [vmem:[#allocation8 + $0x15c] sm:$0xf]
        %v460 = vld [vmem:[#allocation8 + $0x160] sm:$0xf]
        %v461 = vld [vmem:[#allocation8 + $0x164] sm:$0xf]
        %v462 = vld [vmem:[#allocation8 + $0x168] sm:$0xf]
        %v463 = vld [vmem:[#allocation8 + $0x16c] sm:$0xf]
        %v464 = vld [vmem:[#allocation8 + $0x170] sm:$0xf]
        %v465 = vld [vmem:[#allocation8 + $0x174] sm:$0xf]
        %v466 = vld [vmem:[#allocation8 + $0x178] sm:$0xf]
        %v467 = vld [vmem:[#allocation8 + $0x17c] sm:$0xf]
        %v468 = vld [vmem:[#allocation8 + $0x180] sm:$0xf]
        %v469 = vld [vmem:[#allocation8 + $0x184] sm:$0xf]
        %v470 = vld [vmem:[#allocation8 + $0x188] sm:$0xf]
        %v471 = vld [vmem:[#allocation8 + $0x18c] sm:$0xf]
        %v472 = vld [vmem:[#allocation8 + $0x190] sm:$0xf]
        %v473 = vld [vmem:[#allocation8 + $0x194] sm:$0xf]
        %v474 = vld [vmem:[#allocation8 + $0x198] sm:$0xf]
        %v475 = vld [vmem:[#allocation8 + $0x19c] sm:$0xf]
        %v476 = vld [vmem:[#allocation8 + $0x1a0] sm:$0xf]
        %v477 = vld [vmem:[#allocation8 + $0x1a4] sm:$0xf]
        %v478 = vld [vmem:[#allocation8 + $0x1a8] sm:$0xf]
        %v479 = vld [vmem:[#allocation8 + $0x1ac] sm:$0xf]
        %v480 = vld [vmem:[#allocation8 + $0x1b0] sm:$0xf]
        %v481 = vld [vmem:[#allocation8 + $0x1b4] sm:$0xf]
        %v482 = vld [vmem:[#allocation8 + $0x1b8] sm:$0xf]
        %v483 = vld [vmem:[#allocation8 + $0x1bc] sm:$0xf]
        %v484 = vld [vmem:[#allocation8 + $0x1c0] sm:$0xf]
        %v485 = vld [vmem:[#allocation8 + $0x1c4] sm:$0xf]
        %v486 = vld [vmem:[#allocation8 + $0x1c8] sm:$0xf]
        %v487 = vld [vmem:[#allocation8 + $0x1cc] sm:$0xf]
        %v488 = vld [vmem:[#allocation8 + $0x1d0] sm:$0xf]
        %v489 = vld [vmem:[#allocation8 + $0x1d4] sm:$0xf]
        %v490 = vld [vmem:[#allocation8 + $0x1d8] sm:$0xf]
        %v491 = vld [vmem:[#allocation8 + $0x1dc] sm:$0xf]
        %v492 = vld [vmem:[#allocation8 + $0x1e0] sm:$0xf]
        %v493 = vld [vmem:[#allocation8 + $0x1e4] sm:$0xf]
        %v494 = vld [vmem:[#allocation8 + $0x1e8] sm:$0xf]
        %v495 = vld [vmem:[#allocation8 + $0x1ec] sm:$0xf]
        %v496 = vld [vmem:[#allocation8 + $0x1f0] sm:$0xf]
        %v497 = vld [vmem:[#allocation8 + $0x1f4] sm:$0xf]
        %v498 = vld [vmem:[#allocation8 + $0x1f8] sm:$0xf]
        %v499 = vld [vmem:[#allocation8 + $0x1fc] sm:$0xf]
        %v500 = vld [vmem:[#allocation8 + $0x200] sm:$0xf]
        %v501 = vld [vmem:[#allocation8 + $0x204] sm:$0xf]
        %v502 = vld [vmem:[#allocation8 + $0x208] sm:$0xf]
        %v503 = vld [vmem:[#allocation8 + $0x20c] sm:$0xf]
        %v504 = vld [vmem:[#allocation8 + $0x210] sm:$0xf]
        %v505 = vld [vmem:[#allocation8 + $0x214] sm:$0xf]
        %v506 = vld [vmem:[#allocation8 + $0x218] sm:$0xf]
        %v507 = vld [vmem:[#allocation8 + $0x21c] sm:$0xf]
        %v508 = vld [vmem:[#allocation8 + $0x220] sm:$0xf]
        %v509 = vld [vmem:[#allocation8 + $0x224] sm:$0xf]
        %v510 = vld [vmem:[#allocation8 + $0x228] sm:$0xf]
        %v511 = vld [vmem:[#allocation8 + $0x22c] sm:$0xf]
        %v512 = vld [vmem:[#allocation8 + $0x230] sm:$0xf]
        %v513 = vld [vmem:[#allocation8 + $0x234] sm:$0xf]
        %v514 = vld [vmem:[#allocation8 + $0x238] sm:$0xf]
        %v515 = vld [vmem:[#allocation8 + $0x23c] sm:$0xf]
        %v516 = vld [vmem:[#allocation10] sm:$0x1]
        %v517 = vld [vmem:[#allocation2 + $0x7] sm:$0xff]
        %v518 = vld [vmem:[#allocation2 + $0xf] sm:$0xff]
        %v519 = vld [vmem:[#allocation2 + $0x27] sm:$0xff]
        %v520 = vld [vmem:[#allocation2 + $0x2f] sm:$0xff]
        %v521 = vld [vmem:[#allocation2 + $0x47] sm:$0xff]
        %v522 = vld [vmem:[#allocation2 + $0x4f] sm:$0xff]
        %v523 = vld [vmem:[#allocation2 + $0x67] sm:$0xff]
        %v524 = vld [vmem:[#allocation2 + $0x6f] sm:$0xff]
        %v525 = vld [vmem:[#allocation2 + $0x87] sm:$0xff]
        %v526 = vld [vmem:[#allocation2 + $0x8f] sm:$0xff]
        %v527 = vld [vmem:[#allocation2 + $0xa7] sm:$0xff]
        %v528 = vld [vmem:[#allocation2 + $0xaf] sm:$0xff]
        %v529 = vld [vmem:[#allocation2 + $0xc7] sm:$0xff]
        %v530 = vld [vmem:[#allocation2 + $0xcf] sm:$0xff]
        %v531 = vld [vmem:[#allocation2 + $0xe7] sm:$0xff]
        %v532 = vld [vmem:[#allocation2 + $0xef] sm:$0xff]
        %v533 = vld [vmem:[#allocation2 + $0x107] sm:$0xff]
        %v534 = vld [vmem:[#allocation2 + $0x10f] sm:$0xff]
        %v535 = vld [vmem:[#allocation2 + $0x127] sm:$0xff]
        %v536 = vld [vmem:[#allocation2 + $0x12f] sm:$0xff]
        %v537 = vld [vmem:[#allocation2 + $0x147] sm:$0xff]
        %v538 = vld [vmem:[#allocation2 + $0x14f] sm:$0xff]
        %v539 = vld [vmem:[#allocation2 + $0x167] sm:$0xff]
        %v540 = vld [vmem:[#allocation2 + $0x16f] sm:$0xff]
        %v541 = vld [vmem:[#allocation2 + $0x187] sm:$0xff]
        %v542 = vld [vmem:[#allocation2 + $0x18f] sm:$0xff]
        %v543 = vld [vmem:[#allocation2 + $0x1a7] sm:$0xff]
        %v544 = vld [vmem:[#allocation2 + $0x1af] sm:$0xff]
        %v545 = vld [vmem:[#allocation2 + $0x1c7] sm:$0xff]
        %v546 = vld [vmem:[#allocation2 + $0x1cf] sm:$0xff]
        %v547 = vld [vmem:[#allocation2 + $0x1e7] sm:$0xff]
        %v548 = vld [vmem:[#allocation2 + $0x1ef] sm:$0xff]
        %v549 = vpack.c.bf16 %v518, %v517
        %v550 = vpack.c.bf16 %v520, %v519
        %v551 = vpack.c.bf16 %v522, %v521
        %v552 = vpack.c.bf16 %v524, %v523
        %v553 = vpack.c.bf16 %v526, %v525
        %v554 = vpack.c.bf16 %v528, %v527
        %v555 = vpack.c.bf16 %v530, %v529
        %v556 = vpack.c.bf16 %v532, %v531
        %v557 = vpack.c.bf16 %v534, %v533
        %v558 = vpack.c.bf16 %v536, %v535
        %v559 = vpack.c.bf16 %v538, %v537
        %v560 = vpack.c.bf16 %v540, %v539
        %v561 = vpack.c.bf16 %v542, %v541
        %v562 = vpack.c.bf16 %v544, %v543
        %v563 = vpack.c.bf16 %v546, %v545
        %v564 = vpack.c.bf16 %v548, %v547
        %565 = vst [vmem:[#allocation4] sm:$0xff] %v549
        %566 = vst [vmem:[#allocation4 + $0x48] sm:$0xff] %v550
        %567 = vst [vmem:[#allocation4 + $0x90] sm:$0xff] %v551
        %568 = vst [vmem:[#allocation4 + $0xd8] sm:$0xff] %v552
        %569 = vst [vmem:[#allocation4 + $0x120] sm:$0xff] %v553
        %570 = vst [vmem:[#allocation4 + $0x168] sm:$0xff] %v554
        %571 = vst [vmem:[#allocation4 + $0x1b0] sm:$0xff] %v555
        %572 = vst [vmem:[#allocation4 + $0x1f8] sm:$0xff] %v556
        %573 = vst [vmem:[#allocation4 + $0x240] sm:$0xff] %v557
        %574 = vst [vmem:[#allocation4 + $0x288] sm:$0xff] %v558
        %575 = vst [vmem:[#allocation4 + $0x2d0] sm:$0xff] %v559
        %576 = vst [vmem:[#allocation4 + $0x318] sm:$0xff] %v560
        %577 = vst [vmem:[#allocation4 + $0x360] sm:$0xff] %v561
        %578 = vst [vmem:[#allocation4 + $0x3a8] sm:$0xff] %v562
        %579 = vst [vmem:[#allocation4 + $0x3f0] sm:$0xff] %v563
        %580 = vst [vmem:[#allocation4 + $0x438] sm:$0xff] %v564
        %v581 = vld [vmem:[#allocation2 + $0x8] sm:$0xff]
        %v582 = vld [vmem:[#allocation2 + $0x10] sm:$0xff]
        %v583 = vld [vmem:[#allocation2 + $0x28] sm:$0xff]
        %v584 = vld [vmem:[#allocation2 + $0x30] sm:$0xff]
        %v585 = vld [vmem:[#allocation2 + $0x48] sm:$0xff]
        %v586 = vld [vmem:[#allocation2 + $0x50] sm:$0xff]
        %v587 = vld [vmem:[#allocation2 + $0x68] sm:$0xff]
        %v588 = vld [vmem:[#allocation2 + $0x70] sm:$0xff]
        %v589 = vld [vmem:[#allocation2 + $0x88] sm:$0xff]
        %v590 = vld [vmem:[#allocation2 + $0x90] sm:$0xff]
        %v591 = vld [vmem:[#allocation2 + $0xa8] sm:$0xff]
        %v592 = vld [vmem:[#allocation2 + $0xb0] sm:$0xff]
        %v593 = vld [vmem:[#allocation2 + $0xc8] sm:$0xff]
        %v594 = vld [vmem:[#allocation2 + $0xd0] sm:$0xff]
        %v595 = vld [vmem:[#allocation2 + $0xe8] sm:$0xff]
        %v596 = vld [vmem:[#allocation2 + $0xf0] sm:$0xff]
        %v597 = vld [vmem:[#allocation2 + $0x108] sm:$0xff]
        %v598 = vld [vmem:[#allocation2 + $0x110] sm:$0xff]
        %v599 = vld [vmem:[#allocation2 + $0x128] sm:$0xff]
        %v600 = vld [vmem:[#allocation2 + $0x130] sm:$0xff]
        %v601 = vld [vmem:[#allocation2 + $0x148] sm:$0xff]
        %v602 = vld [vmem:[#allocation2 + $0x150] sm:$0xff]
        %v603 = vld [vmem:[#allocation2 + $0x168] sm:$0xff]
        %v604 = vld [vmem:[#allocation2 + $0x170] sm:$0xff]
        %v605 = vld [vmem:[#allocation2 + $0x188] sm:$0xff]
        %v606 = vld [vmem:[#allocation2 + $0x190] sm:$0xff]
        %v607 = vld [vmem:[#allocation2 + $0x1a8] sm:$0xff]
        %v608 = vld [vmem:[#allocation2 + $0x1b0] sm:$0xff]
        %v609 = vld [vmem:[#allocation2 + $0x1c8] sm:$0xff]
        %v610 = vld [vmem:[#allocation2 + $0x1d0] sm:$0xff]
        %v611 = vld [vmem:[#allocation2 + $0x1e8] sm:$0xff]
        %v612 = vld [vmem:[#allocation2 + $0x1f0] sm:$0xff]
        %v613 = vpack.c.bf16 %v582, %v581
        %v614 = vpack.c.bf16 %v584, %v583
        %v615 = vpack.c.bf16 %v586, %v585
        %v616 = vpack.c.bf16 %v588, %v587
        %v617 = vpack.c.bf16 %v590, %v589
        %v618 = vpack.c.bf16 %v592, %v591
        %v619 = vpack.c.bf16 %v594, %v593
        %v620 = vpack.c.bf16 %v596, %v595
        %v621 = vpack.c.bf16 %v598, %v597
        %v622 = vpack.c.bf16 %v600, %v599
        %v623 = vpack.c.bf16 %v602, %v601
        %v624 = vpack.c.bf16 %v604, %v603
        %v625 = vpack.c.bf16 %v606, %v605
        %v626 = vpack.c.bf16 %v608, %v607
        %v627 = vpack.c.bf16 %v610, %v609
        %v628 = vpack.c.bf16 %v612, %v611
        %629 = vst [vmem:[#allocation4 + $0x8] sm:$0xff] %v613
        %630 = vst [vmem:[#allocation4 + $0x50] sm:$0xff] %v614
        %631 = vst [vmem:[#allocation4 + $0x98] sm:$0xff] %v615
        %632 = vst [vmem:[#allocation4 + $0xe0] sm:$0xff] %v616
        %633 = vst [vmem:[#allocation4 + $0x128] sm:$0xff] %v617
        %634 = vst [vmem:[#allocation4 + $0x170] sm:$0xff] %v618
        %635 = vst [vmem:[#allocation4 + $0x1b8] sm:$0xff] %v619
        %636 = vst [vmem:[#allocation4 + $0x200] sm:$0xff] %v620
        %637 = vst [vmem:[#allocation4 + $0x248] sm:$0xff] %v621
        %638 = vst [vmem:[#allocation4 + $0x290] sm:$0xff] %v622
        %639 = vst [vmem:[#allocation4 + $0x2d8] sm:$0xff] %v623
        %640 = vst [vmem:[#allocation4 + $0x320] sm:$0xff] %v624
        %641 = vst [vmem:[#allocation4 + $0x368] sm:$0xff] %v625
        %642 = vst [vmem:[#allocation4 + $0x3b0] sm:$0xff] %v626
        %643 = vst [vmem:[#allocation4 + $0x3f8] sm:$0xff] %v627
        %644 = vst [vmem:[#allocation4 + $0x440] sm:$0xff] %v628
        %v645 = vld [vmem:[#allocation2 + $0x9] sm:$0xff]
        %v646 = vld [vmem:[#allocation2 + $0x11] sm:$0xff]
        %v647 = vld [vmem:[#allocation2 + $0x29] sm:$0xff]
        %v648 = vld [vmem:[#allocation2 + $0x31] sm:$0xff]
        %v649 = vld [vmem:[#allocation2 + $0x49] sm:$0xff]
        %v650 = vld [vmem:[#allocation2 + $0x51] sm:$0xff]
        %v651 = vld [vmem:[#allocation2 + $0x69] sm:$0xff]
        %v652 = vld [vmem:[#allocation2 + $0x71] sm:$0xff]
        %v653 = vld [vmem:[#allocation2 + $0x89] sm:$0xff]
        %v654 = vld [vmem:[#allocation2 + $0x91] sm:$0xff]
        %v655 = vld [vmem:[#allocation2 + $0xa9] sm:$0xff]
        %v656 = vld [vmem:[#allocation2 + $0xb1] sm:$0xff]
        %v657 = vld [vmem:[#allocation2 + $0xc9] sm:$0xff]
        %v658 = vld [vmem:[#allocation2 + $0xd1] sm:$0xff]
        %v659 = vld [vmem:[#allocation2 + $0xe9] sm:$0xff]
        %v660 = vld [vmem:[#allocation2 + $0xf1] sm:$0xff]
        %v661 = vld [vmem:[#allocation2 + $0x109] sm:$0xff]
        %v662 = vld [vmem:[#allocation2 + $0x111] sm:$0xff]
        %v663 = vld [vmem:[#allocation2 + $0x129] sm:$0xff]
        %v664 = vld [vmem:[#allocation2 + $0x131] sm:$0xff]
        %v665 = vld [vmem:[#allocation2 + $0x149] sm:$0xff]
        %v666 = vld [vmem:[#allocation2 + $0x151] sm:$0xff]
        %v667 = vld [vmem:[#allocation2 + $0x169] sm:$0xff]
        %v668 = vld [vmem:[#allocation2 + $0x171] sm:$0xff]
        %v669 = vld [vmem:[#allocation2 + $0x189] sm:$0xff]
        %v670 = vld [vmem:[#allocation2 + $0x191] sm:$0xff]
        %v671 = vld [vmem:[#allocation2 + $0x1a9] sm:$0xff]
        %v672 = vld [vmem:[#allocation2 + $0x1b1] sm:$0xff]
        %v673 = vld [vmem:[#allocation2 + $0x1c9] sm:$0xff]
        %v674 = vld [vmem:[#allocation2 + $0x1d1] sm:$0xff]
        %v675 = vld [vmem:[#allocation2 + $0x1e9] sm:$0xff]
        %v676 = vld [vmem:[#allocation2 + $0x1f1] sm:$0xff]
        %v677 = vpack.c.bf16 %v646, %v645
        %v678 = vpack.c.bf16 %v648, %v647
        %v679 = vpack.c.bf16 %v650, %v649
        %v680 = vpack.c.bf16 %v652, %v651
        %v681 = vpack.c.bf16 %v654, %v653
        %v682 = vpack.c.bf16 %v656, %v655
        %v683 = vpack.c.bf16 %v658, %v657
        %v684 = vpack.c.bf16 %v660, %v659
        %v685 = vpack.c.bf16 %v662, %v661
        %v686 = vpack.c.bf16 %v664, %v663
        %v687 = vpack.c.bf16 %v666, %v665
        %v688 = vpack.c.bf16 %v668, %v667
        %v689 = vpack.c.bf16 %v670, %v669
        %v690 = vpack.c.bf16 %v672, %v671
        %v691 = vpack.c.bf16 %v674, %v673
        %v692 = vpack.c.bf16 %v676, %v675
        %693 = vst [vmem:[#allocation4 + $0x10] sm:$0xff] %v677
        %694 = vst [vmem:[#allocation4 + $0x58] sm:$0xff] %v678
        %695 = vst [vmem:[#allocation4 + $0xa0] sm:$0xff] %v679
        %696 = vst [vmem:[#allocation4 + $0xe8] sm:$0xff] %v680
        %697 = vst [vmem:[#allocation4 + $0x130] sm:$0xff] %v681
        %698 = vst [vmem:[#allocation4 + $0x178] sm:$0xff] %v682
        %699 = vst [vmem:[#allocation4 + $0x1c0] sm:$0xff] %v683
        %700 = vst [vmem:[#allocation4 + $0x208] sm:$0xff] %v684
        %701 = vst [vmem:[#allocation4 + $0x250] sm:$0xff] %v685
        %702 = vst [vmem:[#allocation4 + $0x298] sm:$0xff] %v686
        %703 = vst [vmem:[#allocation4 + $0x2e0] sm:$0xff] %v687
        %704 = vst [vmem:[#allocation4 + $0x328] sm:$0xff] %v688
        %705 = vst [vmem:[#allocation4 + $0x370] sm:$0xff] %v689
        %706 = vst [vmem:[#allocation4 + $0x3b8] sm:$0xff] %v690
        %707 = vst [vmem:[#allocation4 + $0x400] sm:$0xff] %v691
        %708 = vst [vmem:[#allocation4 + $0x448] sm:$0xff] %v692
        %v709 = vld [vmem:[%s339 + $0x7] sm:$0xff]
        %v710 = vld [vmem:[%s339 + $0xf] sm:$0xff]
        %v711 = vld [vmem:[%s339 + $0x27] sm:$0xff]
        %v712 = vld [vmem:[%s339 + $0x2f] sm:$0xff]
        %v713 = vld [vmem:[%s339 + $0x47] sm:$0xff]
        %v714 = vld [vmem:[%s339 + $0x4f] sm:$0xff]
        %v715 = vld [vmem:[%s339 + $0x67] sm:$0xff]
        %v716 = vld [vmem:[%s339 + $0x6f] sm:$0xff]
        %v717 = vld [vmem:[%s339 + $0x87] sm:$0xff]
        %v718 = vld [vmem:[%s339 + $0x8f] sm:$0xff]
        %v719 = vld [vmem:[%s339 + $0xa7] sm:$0xff]
        %v720 = vld [vmem:[%s339 + $0xaf] sm:$0xff]
        %v721 = vld [vmem:[%s339 + $0xc7] sm:$0xff]
        %v722 = vld [vmem:[%s339 + $0xcf] sm:$0xff]
        %v723 = vld [vmem:[%s339 + $0xe7] sm:$0xff]
        %v724 = vld [vmem:[%s339 + $0xef] sm:$0xff]
        %v725 = vld [vmem:[%s339 + $0x107] sm:$0xff]
        %v726 = vld [vmem:[%s339 + $0x10f] sm:$0xff]
        %v727 = vld [vmem:[%s339 + $0x127] sm:$0xff]
        %v728 = vld [vmem:[%s339 + $0x12f] sm:$0xff]
        %v729 = vld [vmem:[%s339 + $0x147] sm:$0xff]
        %v730 = vld [vmem:[%s339 + $0x14f] sm:$0xff]
        %v731 = vld [vmem:[%s339 + $0x167] sm:$0xff]
        %v732 = vld [vmem:[%s339 + $0x16f] sm:$0xff]
        %v733 = vld [vmem:[%s339 + $0x187] sm:$0xff]
        %v734 = vld [vmem:[%s339 + $0x18f] sm:$0xff]
        %v735 = vld [vmem:[%s339 + $0x1a7] sm:$0xff]
        %v736 = vld [vmem:[%s339 + $0x1af] sm:$0xff]
        %v737 = vld [vmem:[%s339 + $0x1c7] sm:$0xff]
        %v738 = vld [vmem:[%s339 + $0x1cf] sm:$0xff]
        %v739 = vld [vmem:[%s339 + $0x1e7] sm:$0xff]
        %v740 = vld [vmem:[%s339 + $0x1ef] sm:$0xff]
        %v741 = vpack.c.bf16 %v710, %v709
        %v742 = vpack.c.bf16 %v712, %v711
        %v743 = vpack.c.bf16 %v714, %v713
        %v744 = vpack.c.bf16 %v716, %v715
        %v745 = vpack.c.bf16 %v718, %v717
        %v746 = vpack.c.bf16 %v720, %v719
        %v747 = vpack.c.bf16 %v722, %v721
        %v748 = vpack.c.bf16 %v724, %v723
        %v749 = vpack.c.bf16 %v726, %v725
        %v750 = vpack.c.bf16 %v728, %v727
        %v751 = vpack.c.bf16 %v730, %v729
        %v752 = vpack.c.bf16 %v732, %v731
        %v753 = vpack.c.bf16 %v734, %v733
        %v754 = vpack.c.bf16 %v736, %v735
        %v755 = vpack.c.bf16 %v738, %v737
        %v756 = vpack.c.bf16 %v740, %v739
        %757 = vst [vmem:[#allocation4 + $0x18] sm:$0xff] %v741
        %758 = vst [vmem:[#allocation4 + $0x60] sm:$0xff] %v742
        %759 = vst [vmem:[#allocation4 + $0xa8] sm:$0xff] %v743
        %760 = vst [vmem:[#allocation4 + $0xf0] sm:$0xff] %v744
        %761 = vst [vmem:[#allocation4 + $0x138] sm:$0xff] %v745
        %762 = vst [vmem:[#allocation4 + $0x180] sm:$0xff] %v746
        %763 = vst [vmem:[#allocation4 + $0x1c8] sm:$0xff] %v747
        %764 = vst [vmem:[#allocation4 + $0x210] sm:$0xff] %v748
        %765 = vst [vmem:[#allocation4 + $0x258] sm:$0xff] %v749
        %766 = vst [vmem:[#allocation4 + $0x2a0] sm:$0xff] %v750
        %767 = vst [vmem:[#allocation4 + $0x2e8] sm:$0xff] %v751
        %768 = vst [vmem:[#allocation4 + $0x330] sm:$0xff] %v752
        %769 = vst [vmem:[#allocation4 + $0x378] sm:$0xff] %v753
        %770 = vst [vmem:[#allocation4 + $0x3c0] sm:$0xff] %v754
        %771 = vst [vmem:[#allocation4 + $0x408] sm:$0xff] %v755
        %772 = vst [vmem:[#allocation4 + $0x450] sm:$0xff] %v756
        %v773 = vld [vmem:[%s339 + $0x8] sm:$0xff]
        %v774 = vld [vmem:[%s339 + $0x10] sm:$0xff]
        %v775 = vld [vmem:[%s339 + $0x28] sm:$0xff]
        %v776 = vld [vmem:[%s339 + $0x30] sm:$0xff]
        %v777 = vld [vmem:[%s339 + $0x48] sm:$0xff]
        %v778 = vld [vmem:[%s339 + $0x50] sm:$0xff]
        %v779 = vld [vmem:[%s339 + $0x68] sm:$0xff]
        %v780 = vld [vmem:[%s339 + $0x70] sm:$0xff]
        %v781 = vld [vmem:[%s339 + $0x88] sm:$0xff]
        %v782 = vld [vmem:[%s339 + $0x90] sm:$0xff]
        %v783 = vld [vmem:[%s339 + $0xa8] sm:$0xff]
        %v784 = vld [vmem:[%s339 + $0xb0] sm:$0xff]
        %v785 = vld [vmem:[%s339 + $0xc8] sm:$0xff]
        %v786 = vld [vmem:[%s339 + $0xd0] sm:$0xff]
        %v787 = vld [vmem:[%s339 + $0xe8] sm:$0xff]
        %v788 = vld [vmem:[%s339 + $0xf0] sm:$0xff]
        %v789 = vld [vmem:[%s339 + $0x108] sm:$0xff]
        %v790 = vld [vmem:[%s339 + $0x110] sm:$0xff]
        %v791 = vld [vmem:[%s339 + $0x128] sm:$0xff]
        %v792 = vld [vmem:[%s339 + $0x130] sm:$0xff]
        %v793 = vld [vmem:[%s339 + $0x148] sm:$0xff]
        %v794 = vld [vmem:[%s339 + $0x150] sm:$0xff]
        %v795 = vld [vmem:[%s339 + $0x168] sm:$0xff]
        %v796 = vld [vmem:[%s339 + $0x170] sm:$0xff]
        %v797 = vld [vmem:[%s339 + $0x188] sm:$0xff]
        %v798 = vld [vmem:[%s339 + $0x190] sm:$0xff]
        %v799 = vld [vmem:[%s339 + $0x1a8] sm:$0xff]
        %v800 = vld [vmem:[%s339 + $0x1b0] sm:$0xff]
        %v801 = vld [vmem:[%s339 + $0x1c8] sm:$0xff]
        %v802 = vld [vmem:[%s339 + $0x1d0] sm:$0xff]
        %v803 = vld [vmem:[%s339 + $0x1e8] sm:$0xff]
        %v804 = vld [vmem:[%s339 + $0x1f0] sm:$0xff]
        %v805 = vpack.c.bf16 %v774, %v773
        %v806 = vpack.c.bf16 %v776, %v775
        %v807 = vpack.c.bf16 %v778, %v777
        %v808 = vpack.c.bf16 %v780, %v779
        %v809 = vpack.c.bf16 %v782, %v781
        %v810 = vpack.c.bf16 %v784, %v783
        %v811 = vpack.c.bf16 %v786, %v785
        %v812 = vpack.c.bf16 %v788, %v787
        %v813 = vpack.c.bf16 %v790, %v789
        %v814 = vpack.c.bf16 %v792, %v791
        %v815 = vpack.c.bf16 %v794, %v793
        %v816 = vpack.c.bf16 %v796, %v795
        %v817 = vpack.c.bf16 %v798, %v797
        %v818 = vpack.c.bf16 %v800, %v799
        %v819 = vpack.c.bf16 %v802, %v801
        %v820 = vpack.c.bf16 %v804, %v803
        %821 = vst [vmem:[#allocation4 + $0x20] sm:$0xff] %v805
        %822 = vst [vmem:[#allocation4 + $0x68] sm:$0xff] %v806
        %823 = vst [vmem:[#allocation4 + $0xb0] sm:$0xff] %v807
        %824 = vst [vmem:[#allocation4 + $0xf8] sm:$0xff] %v808
        %825 = vst [vmem:[#allocation4 + $0x140] sm:$0xff] %v809
        %826 = vst [vmem:[#allocation4 + $0x188] sm:$0xff] %v810
        %827 = vst [vmem:[#allocation4 + $0x1d0] sm:$0xff] %v811
        %828 = vst [vmem:[#allocation4 + $0x218] sm:$0xff] %v812
        %829 = vst [vmem:[#allocation4 + $0x260] sm:$0xff] %v813
        %830 = vst [vmem:[#allocation4 + $0x2a8] sm:$0xff] %v814
        %831 = vst [vmem:[#allocation4 + $0x2f0] sm:$0xff] %v815
        %832 = vst [vmem:[#allocation4 + $0x338] sm:$0xff] %v816
        %833 = vst [vmem:[#allocation4 + $0x380] sm:$0xff] %v817
        %834 = vst [vmem:[#allocation4 + $0x3c8] sm:$0xff] %v818
        %835 = vst [vmem:[#allocation4 + $0x410] sm:$0xff] %v819
        %836 = vst [vmem:[#allocation4 + $0x458] sm:$0xff] %v820
        %v837 = vld [vmem:[%s339 + $0x9] sm:$0xff]
        %v838 = vld [vmem:[%s339 + $0x11] sm:$0xff]
        %v839 = vld [vmem:[%s339 + $0x29] sm:$0xff]
        %v840 = vld [vmem:[%s339 + $0x31] sm:$0xff]
        %v841 = vld [vmem:[%s339 + $0x49] sm:$0xff]
        %v842 = vld [vmem:[%s339 + $0x51] sm:$0xff]
        %v843 = vld [vmem:[%s339 + $0x69] sm:$0xff]
        %v844 = vld [vmem:[%s339 + $0x71] sm:$0xff]
        %v845 = vld [vmem:[%s339 + $0x89] sm:$0xff]
        %v846 = vld [vmem:[%s339 + $0x91] sm:$0xff]
        %v847 = vld [vmem:[%s339 + $0xa9] sm:$0xff]
        %v848 = vld [vmem:[%s339 + $0xb1] sm:$0xff]
        %v849 = vld [vmem:[%s339 + $0xc9] sm:$0xff]
        %v850 = vld [vmem:[%s339 + $0xd1] sm:$0xff]
        %v851 = vld [vmem:[%s339 + $0xe9] sm:$0xff]
        %v852 = vld [vmem:[%s339 + $0xf1] sm:$0xff]
        %v853 = vld [vmem:[%s339 + $0x109] sm:$0xff]
        %v854 = vld [vmem:[%s339 + $0x111] sm:$0xff]
        %v855 = vld [vmem:[%s339 + $0x129] sm:$0xff]
        %v856 = vld [vmem:[%s339 + $0x131] sm:$0xff]
        %v857 = vld [vmem:[%s339 + $0x149] sm:$0xff]
        %v858 = vld [vmem:[%s339 + $0x151] sm:$0xff]
        %v859 = vld [vmem:[%s339 + $0x169] sm:$0xff]
        %v860 = vld [vmem:[%s339 + $0x171] sm:$0xff]
        %v861 = vld [vmem:[%s339 + $0x189] sm:$0xff]
        %v862 = vld [vmem:[%s339 + $0x191] sm:$0xff]
        %v863 = vld [vmem:[%s339 + $0x1a9] sm:$0xff]
        %v864 = vld [vmem:[%s339 + $0x1b1] sm:$0xff]
        %v865 = vld [vmem:[%s339 + $0x1c9] sm:$0xff]
        %v866 = vld [vmem:[%s339 + $0x1d1] sm:$0xff]
        %v867 = vld [vmem:[%s339 + $0x1e9] sm:$0xff]
        %v868 = vld [vmem:[%s339 + $0x1f1] sm:$0xff]
        %v869 = vpack.c.bf16 %v838, %v837
        %v870 = vpack.c.bf16 %v840, %v839
        %v871 = vpack.c.bf16 %v842, %v841
        %v872 = vpack.c.bf16 %v844, %v843
        %v873 = vpack.c.bf16 %v846, %v845
        %v874 = vpack.c.bf16 %v848, %v847
        %v875 = vpack.c.bf16 %v850, %v849
        %v876 = vpack.c.bf16 %v852, %v851
        %v877 = vpack.c.bf16 %v854, %v853
        %v878 = vpack.c.bf16 %v856, %v855
        %v879 = vpack.c.bf16 %v858, %v857
        %v880 = vpack.c.bf16 %v860, %v859
        %v881 = vpack.c.bf16 %v862, %v861
        %v882 = vpack.c.bf16 %v864, %v863
        %v883 = vpack.c.bf16 %v866, %v865
        %v884 = vpack.c.bf16 %v868, %v867
        %885 = vst [vmem:[#allocation4 + $0x28] sm:$0xff] %v869
        %886 = vst [vmem:[#allocation4 + $0x70] sm:$0xff] %v870
        %887 = vst [vmem:[#allocation4 + $0xb8] sm:$0xff] %v871
        %888 = vst [vmem:[#allocation4 + $0x100] sm:$0xff] %v872
        %889 = vst [vmem:[#allocation4 + $0x148] sm:$0xff] %v873
        %890 = vst [vmem:[#allocation4 + $0x190] sm:$0xff] %v874
        %891 = vst [vmem:[#allocation4 + $0x1d8] sm:$0xff] %v875
        %892 = vst [vmem:[#allocation4 + $0x220] sm:$0xff] %v876
        %893 = vst [vmem:[#allocation4 + $0x268] sm:$0xff] %v877
        %894 = vst [vmem:[#allocation4 + $0x2b0] sm:$0xff] %v878
        %895 = vst [vmem:[#allocation4 + $0x2f8] sm:$0xff] %v879
        %896 = vst [vmem:[#allocation4 + $0x340] sm:$0xff] %v880
        %897 = vst [vmem:[#allocation4 + $0x388] sm:$0xff] %v881
        %898 = vst [vmem:[#allocation4 + $0x3d0] sm:$0xff] %v882
        %899 = vst [vmem:[#allocation4 + $0x418] sm:$0xff] %v883
        %900 = vst [vmem:[#allocation4 + $0x460] sm:$0xff] %v884
        %s901 = scalar_lea.vmem [#allocation2], 64
        %v902 = vld [vmem:[%s901 + $0x7] sm:$0xff]
        %v903 = vld [vmem:[%s901 + $0xf] sm:$0xff]
        %v904 = vld [vmem:[%s901 + $0x27] sm:$0xff]
        %v905 = vld [vmem:[%s901 + $0x2f] sm:$0xff]
        %v906 = vld [vmem:[%s901 + $0x47] sm:$0xff]
        %v907 = vld [vmem:[%s901 + $0x4f] sm:$0xff]
        %v908 = vld [vmem:[%s901 + $0x67] sm:$0xff]
        %v909 = vld [vmem:[%s901 + $0x6f] sm:$0xff]
        %v910 = vld [vmem:[%s901 + $0x87] sm:$0xff]
        %v911 = vld [vmem:[%s901 + $0x8f] sm:$0xff]
        %v912 = vld [vmem:[%s901 + $0xa7] sm:$0xff]
        %v913 = vld [vmem:[%s901 + $0xaf] sm:$0xff]
        %v914 = vld [vmem:[%s901 + $0xc7] sm:$0xff]
        %v915 = vld [vmem:[%s901 + $0xcf] sm:$0xff]
        %v916 = vld [vmem:[%s901 + $0xe7] sm:$0xff]
        %v917 = vld [vmem:[%s901 + $0xef] sm:$0xff]
        %v918 = vld [vmem:[%s901 + $0x107] sm:$0xff]
        %v919 = vld [vmem:[%s901 + $0x10f] sm:$0xff]
        %v920 = vld [vmem:[%s901 + $0x127] sm:$0xff]
        %v921 = vld [vmem:[%s901 + $0x12f] sm:$0xff]
        %v922 = vld [vmem:[%s901 + $0x147] sm:$0xff]
        %v923 = vld [vmem:[%s901 + $0x14f] sm:$0xff]
        %v924 = vld [vmem:[%s901 + $0x167] sm:$0xff]
        %v925 = vld [vmem:[%s901 + $0x16f] sm:$0xff]
        %v926 = vld [vmem:[%s901 + $0x187] sm:$0xff]
        %v927 = vld [vmem:[%s901 + $0x18f] sm:$0xff]
        %v928 = vld [vmem:[%s901 + $0x1a7] sm:$0xff]
        %v929 = vld [vmem:[%s901 + $0x1af] sm:$0xff]
        %v930 = vld [vmem:[%s901 + $0x1c7] sm:$0xff]
        %v931 = vld [vmem:[%s901 + $0x1cf] sm:$0xff]
        %v932 = vld [vmem:[%s901 + $0x1e7] sm:$0xff]
        %v933 = vld [vmem:[%s901 + $0x1ef] sm:$0xff]
        %v934 = vpack.c.bf16 %v903, %v902
        %v935 = vpack.c.bf16 %v905, %v904
        %v936 = vpack.c.bf16 %v907, %v906
        %v937 = vpack.c.bf16 %v909, %v908
        %v938 = vpack.c.bf16 %v911, %v910
        %v939 = vpack.c.bf16 %v913, %v912
        %v940 = vpack.c.bf16 %v915, %v914
        %v941 = vpack.c.bf16 %v917, %v916
        %v942 = vpack.c.bf16 %v919, %v918
        %v943 = vpack.c.bf16 %v921, %v920
        %v944 = vpack.c.bf16 %v923, %v922
        %v945 = vpack.c.bf16 %v925, %v924
        %v946 = vpack.c.bf16 %v927, %v926
        %v947 = vpack.c.bf16 %v929, %v928
        %v948 = vpack.c.bf16 %v931, %v930
        %v949 = vpack.c.bf16 %v933, %v932
        %950 = vst [vmem:[#allocation4 + $0x30] sm:$0xff] %v934
        %951 = vst [vmem:[#allocation4 + $0x78] sm:$0xff] %v935
        %952 = vst [vmem:[#allocation4 + $0xc0] sm:$0xff] %v936
        %953 = vst [vmem:[#allocation4 + $0x108] sm:$0xff] %v937
        %954 = vst [vmem:[#allocation4 + $0x150] sm:$0xff] %v938
        %955 = vst [vmem:[#allocation4 + $0x198] sm:$0xff] %v939
        %956 = vst [vmem:[#allocation4 + $0x1e0] sm:$0xff] %v940
        %957 = vst [vmem:[#allocation4 + $0x228] sm:$0xff] %v941
        %958 = vst [vmem:[#allocation4 + $0x270] sm:$0xff] %v942
        %959 = vst [vmem:[#allocation4 + $0x2b8] sm:$0xff] %v943
        %960 = vst [vmem:[#allocation4 + $0x300] sm:$0xff] %v944
        %961 = vst [vmem:[#allocation4 + $0x348] sm:$0xff] %v945
        %962 = vst [vmem:[#allocation4 + $0x390] sm:$0xff] %v946
        %963 = vst [vmem:[#allocation4 + $0x3d8] sm:$0xff] %v947
        %964 = vst [vmem:[#allocation4 + $0x420] sm:$0xff] %v948
        %965 = vst [vmem:[#allocation4 + $0x468] sm:$0xff] %v949
        %v966 = vld [vmem:[%s901 + $0x8] sm:$0xff]
        %v967 = vld [vmem:[%s901 + $0x10] sm:$0xff]
        %v968 = vld [vmem:[%s901 + $0x28] sm:$0xff]
        %v969 = vld [vmem:[%s901 + $0x30] sm:$0xff]
        %v970 = vld [vmem:[%s901 + $0x48] sm:$0xff]
        %v971 = vld [vmem:[%s901 + $0x50] sm:$0xff]
        %v972 = vld [vmem:[%s901 + $0x68] sm:$0xff]
        %v973 = vld [vmem:[%s901 + $0x70] sm:$0xff]
        %v974 = vld [vmem:[%s901 + $0x88] sm:$0xff]
        %v975 = vld [vmem:[%s901 + $0x90] sm:$0xff]
        %v976 = vld [vmem:[%s901 + $0xa8] sm:$0xff]
        %v977 = vld [vmem:[%s901 + $0xb0] sm:$0xff]
        %v978 = vld [vmem:[%s901 + $0xc8] sm:$0xff]
        %v979 = vld [vmem:[%s901 + $0xd0] sm:$0xff]
        %v980 = vld [vmem:[%s901 + $0xe8] sm:$0xff]
        %v981 = vld [vmem:[%s901 + $0xf0] sm:$0xff]
        %v982 = vld [vmem:[%s901 + $0x108] sm:$0xff]
        %v983 = vld [vmem:[%s901 + $0x110] sm:$0xff]
        %v984 = vld [vmem:[%s901 + $0x128] sm:$0xff]
        %v985 = vld [vmem:[%s901 + $0x130] sm:$0xff]
        %v986 = vld [vmem:[%s901 + $0x148] sm:$0xff]
        %v987 = vld [vmem:[%s901 + $0x150] sm:$0xff]
        %v988 = vld [vmem:[%s901 + $0x168] sm:$0xff]
        %v989 = vld [vmem:[%s901 + $0x170] sm:$0xff]
        %v990 = vld [vmem:[%s901 + $0x188] sm:$0xff]
        %v991 = vld [vmem:[%s901 + $0x190] sm:$0xff]
        %v992 = vld [vmem:[%s901 + $0x1a8] sm:$0xff]
        %v993 = vld [vmem:[%s901 + $0x1b0] sm:$0xff]
        %v994 = vld [vmem:[%s901 + $0x1c8] sm:$0xff]
        %v995 = vld [vmem:[%s901 + $0x1d0] sm:$0xff]
        %v996 = vld [vmem:[%s901 + $0x1e8] sm:$0xff]
        %v997 = vld [vmem:[%s901 + $0x1f0] sm:$0xff]
        %v998 = vpack.c.bf16 %v967, %v966
        %v999 = vpack.c.bf16 %v969, %v968
        %v1000 = vpack.c.bf16 %v971, %v970
        %v1001 = vpack.c.bf16 %v973, %v972
        %v1002 = vpack.c.bf16 %v975, %v974
        %v1003 = vpack.c.bf16 %v977, %v976
        %v1004 = vpack.c.bf16 %v979, %v978
        %v1005 = vpack.c.bf16 %v981, %v980
        %v1006 = vpack.c.bf16 %v983, %v982
        %v1007 = vpack.c.bf16 %v985, %v984
        %v1008 = vpack.c.bf16 %v987, %v986
        %v1009 = vpack.c.bf16 %v989, %v988
        %v1010 = vpack.c.bf16 %v991, %v990
        %v1011 = vpack.c.bf16 %v993, %v992
        %v1012 = vpack.c.bf16 %v995, %v994
        %v1013 = vpack.c.bf16 %v997, %v996
        %1014 = vst [vmem:[#allocation4 + $0x38] sm:$0xff] %v998
        %1015 = vst [vmem:[#allocation4 + $0x80] sm:$0xff] %v999
        %1016 = vst [vmem:[#allocation4 + $0xc8] sm:$0xff] %v1000
        %1017 = vst [vmem:[#allocation4 + $0x110] sm:$0xff] %v1001
        %1018 = vst [vmem:[#allocation4 + $0x158] sm:$0xff] %v1002
        %1019 = vst [vmem:[#allocation4 + $0x1a0] sm:$0xff] %v1003
        %1020 = vst [vmem:[#allocation4 + $0x1e8] sm:$0xff] %v1004
        %1021 = vst [vmem:[#allocation4 + $0x230] sm:$0xff] %v1005
        %1022 = vst [vmem:[#allocation4 + $0x278] sm:$0xff] %v1006
        %1023 = vst [vmem:[#allocation4 + $0x2c0] sm:$0xff] %v1007
        %1024 = vst [vmem:[#allocation4 + $0x308] sm:$0xff] %v1008
        %1025 = vst [vmem:[#allocation4 + $0x350] sm:$0xff] %v1009
        %1026 = vst [vmem:[#allocation4 + $0x398] sm:$0xff] %v1010
        %1027 = vst [vmem:[#allocation4 + $0x3e0] sm:$0xff] %v1011
        %1028 = vst [vmem:[#allocation4 + $0x428] sm:$0xff] %v1012
        %1029 = vst [vmem:[#allocation4 + $0x470] sm:$0xff] %v1013
        %v1030 = vld [vmem:[%s901 + $0x9] sm:$0xff]
        %v1031 = vld [vmem:[%s901 + $0x11] sm:$0xff]
        %v1032 = vld [vmem:[%s901 + $0x29] sm:$0xff]
        %v1033 = vld [vmem:[%s901 + $0x31] sm:$0xff]
        %v1034 = vld [vmem:[%s901 + $0x49] sm:$0xff]
        %v1035 = vld [vmem:[%s901 + $0x51] sm:$0xff]
        %v1036 = vld [vmem:[%s901 + $0x69] sm:$0xff]
        %v1037 = vld [vmem:[%s901 + $0x71] sm:$0xff]
        %v1038 = vld [vmem:[%s901 + $0x89] sm:$0xff]
        %v1039 = vld [vmem:[%s901 + $0x91] sm:$0xff]
        %v1040 = vld [vmem:[%s901 + $0xa9] sm:$0xff]
        %v1041 = vld [vmem:[%s901 + $0xb1] sm:$0xff]
        %v1042 = vld [vmem:[%s901 + $0xc9] sm:$0xff]
        %v1043 = vld [vmem:[%s901 + $0xd1] sm:$0xff]
        %v1044 = vld [vmem:[%s901 + $0xe9] sm:$0xff]
        %v1045 = vld [vmem:[%s901 + $0xf1] sm:$0xff]
        %v1046 = vld [vmem:[%s901 + $0x109] sm:$0xff]
        %v1047 = vld [vmem:[%s901 + $0x111] sm:$0xff]
        %v1048 = vld [vmem:[%s901 + $0x129] sm:$0xff]
        %v1049 = vld [vmem:[%s901 + $0x131] sm:$0xff]
        %v1050 = vld [vmem:[%s901 + $0x149] sm:$0xff]
        %v1051 = vld [vmem:[%s901 + $0x151] sm:$0xff]
        %v1052 = vld [vmem:[%s901 + $0x169] sm:$0xff]
        %v1053 = vld [vmem:[%s901 + $0x171] sm:$0xff]
        %v1054 = vld [vmem:[%s901 + $0x189] sm:$0xff]
        %v1055 = vld [vmem:[%s901 + $0x191] sm:$0xff]
        %v1056 = vld [vmem:[%s901 + $0x1a9] sm:$0xff]
        %v1057 = vld [vmem:[%s901 + $0x1b1] sm:$0xff]
        %v1058 = vld [vmem:[%s901 + $0x1c9] sm:$0xff]
        %v1059 = vld [vmem:[%s901 + $0x1d1] sm:$0xff]
        %v1060 = vld [vmem:[%s901 + $0x1e9] sm:$0xff]
        %v1061 = vld [vmem:[%s901 + $0x1f1] sm:$0xff]
        %v1062 = vpack.c.bf16 %v1031, %v1030
        %v1063 = vpack.c.bf16 %v1033, %v1032
        %v1064 = vpack.c.bf16 %v1035, %v1034
        %v1065 = vpack.c.bf16 %v1037, %v1036
        %v1066 = vpack.c.bf16 %v1039, %v1038
        %v1067 = vpack.c.bf16 %v1041, %v1040
        %v1068 = vpack.c.bf16 %v1043, %v1042
        %v1069 = vpack.c.bf16 %v1045, %v1044
        %v1070 = vpack.c.bf16 %v1047, %v1046
        %v1071 = vpack.c.bf16 %v1049, %v1048
        %v1072 = vpack.c.bf16 %v1051, %v1050
        %v1073 = vpack.c.bf16 %v1053, %v1052
        %v1074 = vpack.c.bf16 %v1055, %v1054
        %v1075 = vpack.c.bf16 %v1057, %v1056
        %v1076 = vpack.c.bf16 %v1059, %v1058
        %v1077 = vpack.c.bf16 %v1061, %v1060
        %1078 = vst [vmem:[#allocation4 + $0x40] sm:$0xff] %v1062
        %1079 = vst [vmem:[#allocation4 + $0x88] sm:$0xff] %v1063
        %1080 = vst [vmem:[#allocation4 + $0xd0] sm:$0xff] %v1064
        %1081 = vst [vmem:[#allocation4 + $0x118] sm:$0xff] %v1065
        %1082 = vst [vmem:[#allocation4 + $0x160] sm:$0xff] %v1066
        %1083 = vst [vmem:[#allocation4 + $0x1a8] sm:$0xff] %v1067
        %1084 = vst [vmem:[#allocation4 + $0x1f0] sm:$0xff] %v1068
        %1085 = vst [vmem:[#allocation4 + $0x238] sm:$0xff] %v1069
        %1086 = vst [vmem:[#allocation4 + $0x280] sm:$0xff] %v1070
        %1087 = vst [vmem:[#allocation4 + $0x2c8] sm:$0xff] %v1071
        %1088 = vst [vmem:[#allocation4 + $0x310] sm:$0xff] %v1072
        %1089 = vst [vmem:[#allocation4 + $0x358] sm:$0xff] %v1073
        %1090 = vst [vmem:[#allocation4 + $0x3a0] sm:$0xff] %v1074
        %1091 = vst [vmem:[#allocation4 + $0x3e8] sm:$0xff] %v1075
        %1092 = vst [vmem:[#allocation4 + $0x430] sm:$0xff] %v1076
        %1093 = vst [vmem:[#allocation4 + $0x478] sm:$0xff] %v1077
        %v1094 = vld [vmem:[#allocation4] sm:$0xff]
        %v1095 = vld [vmem:[#allocation4 + $0x8] sm:$0xff]
        %v1096 = vld [vmem:[#allocation4 + $0x10] sm:$0xff]
        %v1097 = vld [vmem:[#allocation4 + $0x18] sm:$0xff]
        %v1098 = vld [vmem:[#allocation4 + $0x20] sm:$0xff]
        %v1099 = vld [vmem:[#allocation4 + $0x28] sm:$0xff]
        %v1100 = vld [vmem:[#allocation4 + $0x30] sm:$0xff]
        %v1101 = vld [vmem:[#allocation4 + $0x38] sm:$0xff]
        %v1102 = vld [vmem:[#allocation4 + $0x40] sm:$0xff]
        %v1103 = vld [vmem:[#allocation4 + $0x48] sm:$0xff]
        %v1104 = vld [vmem:[#allocation4 + $0x50] sm:$0xff]
        %v1105 = vld [vmem:[#allocation4 + $0x58] sm:$0xff]
        %v1106 = vld [vmem:[#allocation4 + $0x60] sm:$0xff]
        %v1107 = vld [vmem:[#allocation4 + $0x68] sm:$0xff]
        %v1108 = vld [vmem:[#allocation4 + $0x70] sm:$0xff]
        %v1109 = vld [vmem:[#allocation4 + $0x78] sm:$0xff]
        %v1110 = vld [vmem:[#allocation4 + $0x80] sm:$0xff]
        %v1111 = vld [vmem:[#allocation4 + $0x88] sm:$0xff]
        %v1112 = vld [vmem:[#allocation4 + $0x90] sm:$0xff]
        %v1113 = vld [vmem:[#allocation4 + $0x98] sm:$0xff]
        %v1114 = vld [vmem:[#allocation4 + $0xa0] sm:$0xff]
        %v1115 = vld [vmem:[#allocation4 + $0xa8] sm:$0xff]
        %v1116 = vld [vmem:[#allocation4 + $0xb0] sm:$0xff]
        %v1117 = vld [vmem:[#allocation4 + $0xb8] sm:$0xff]
        %v1118 = vld [vmem:[#allocation4 + $0xc0] sm:$0xff]
        %v1119 = vld [vmem:[#allocation4 + $0xc8] sm:$0xff]
        %v1120 = vld [vmem:[#allocation4 + $0xd0] sm:$0xff]
        %v1121 = vld [vmem:[#allocation4 + $0xd8] sm:$0xff]
        %v1122 = vld [vmem:[#allocation4 + $0xe0] sm:$0xff]
        %v1123 = vld [vmem:[#allocation4 + $0xe8] sm:$0xff]
        %v1124 = vld [vmem:[#allocation4 + $0xf0] sm:$0xff]
        %v1125 = vld [vmem:[#allocation4 + $0xf8] sm:$0xff]
        %v1126 = vld [vmem:[#allocation4 + $0x100] sm:$0xff]
        %v1127 = vld [vmem:[#allocation4 + $0x108] sm:$0xff]
        %v1128 = vld [vmem:[#allocation4 + $0x110] sm:$0xff]
        %v1129 = vld [vmem:[#allocation4 + $0x118] sm:$0xff]
        %v1130 = vld [vmem:[#allocation4 + $0x120] sm:$0xff]
        %v1131 = vld [vmem:[#allocation4 + $0x128] sm:$0xff]
        %v1132 = vld [vmem:[#allocation4 + $0x130] sm:$0xff]
        %v1133 = vld [vmem:[#allocation4 + $0x138] sm:$0xff]
        %v1134 = vld [vmem:[#allocation4 + $0x140] sm:$0xff]
        %v1135 = vld [vmem:[#allocation4 + $0x148] sm:$0xff]
        %v1136 = vld [vmem:[#allocation4 + $0x150] sm:$0xff]
        %v1137 = vld [vmem:[#allocation4 + $0x158] sm:$0xff]
        %v1138 = vld [vmem:[#allocation4 + $0x160] sm:$0xff]
        %v1139 = vld [vmem:[#allocation4 + $0x168] sm:$0xff]
        %v1140 = vld [vmem:[#allocation4 + $0x170] sm:$0xff]
        %v1141 = vld [vmem:[#allocation4 + $0x178] sm:$0xff]
        %v1142 = vld [vmem:[#allocation4 + $0x180] sm:$0xff]
        %v1143 = vld [vmem:[#allocation4 + $0x188] sm:$0xff]
        %v1144 = vld [vmem:[#allocation4 + $0x190] sm:$0xff]
        %v1145 = vld [vmem:[#allocation4 + $0x198] sm:$0xff]
        %v1146 = vld [vmem:[#allocation4 + $0x1a0] sm:$0xff]
        %v1147 = vld [vmem:[#allocation4 + $0x1a8] sm:$0xff]
        %v1148 = vld [vmem:[#allocation4 + $0x1b0] sm:$0xff]
        %v1149 = vld [vmem:[#allocation4 + $0x1b8] sm:$0xff]
        %v1150 = vld [vmem:[#allocation4 + $0x1c0] sm:$0xff]
        %v1151 = vld [vmem:[#allocation4 + $0x1c8] sm:$0xff]
        %v1152 = vld [vmem:[#allocation4 + $0x1d0] sm:$0xff]
        %v1153 = vld [vmem:[#allocation4 + $0x1d8] sm:$0xff]
        %v1154 = vld [vmem:[#allocation4 + $0x1e0] sm:$0xff]
        %v1155 = vld [vmem:[#allocation4 + $0x1e8] sm:$0xff]
        %v1156 = vld [vmem:[#allocation4 + $0x1f0] sm:$0xff]
        %v1157 = vld [vmem:[#allocation4 + $0x1f8] sm:$0xff]
        %v1158 = vld [vmem:[#allocation4 + $0x200] sm:$0xff]
        %v1159 = vld [vmem:[#allocation4 + $0x208] sm:$0xff]
        %v1160 = vld [vmem:[#allocation4 + $0x210] sm:$0xff]
        %v1161 = vld [vmem:[#allocation4 + $0x218] sm:$0xff]
        %v1162 = vld [vmem:[#allocation4 + $0x220] sm:$0xff]
        %v1163 = vld [vmem:[#allocation4 + $0x228] sm:$0xff]
        %v1164 = vld [vmem:[#allocation4 + $0x230] sm:$0xff]
        %v1165 = vld [vmem:[#allocation4 + $0x238] sm:$0xff]
        %v1166 = vld [vmem:[#allocation4 + $0x240] sm:$0xff]
        %v1167 = vld [vmem:[#allocation4 + $0x248] sm:$0xff]
        %v1168 = vld [vmem:[#allocation4 + $0x250] sm:$0xff]
        %v1169 = vld [vmem:[#allocation4 + $0x258] sm:$0xff]
        %v1170 = vld [vmem:[#allocation4 + $0x260] sm:$0xff]
        %v1171 = vld [vmem:[#allocation4 + $0x268] sm:$0xff]
        %v1172 = vld [vmem:[#allocation4 + $0x270] sm:$0xff]
        %v1173 = vld [vmem:[#allocation4 + $0x278] sm:$0xff]
        %v1174 = vld [vmem:[#allocation4 + $0x280] sm:$0xff]
        %v1175 = vld [vmem:[#allocation4 + $0x288] sm:$0xff]
        %v1176 = vld [vmem:[#allocation4 + $0x290] sm:$0xff]
        %v1177 = vld [vmem:[#allocation4 + $0x298] sm:$0xff]
        %v1178 = vld [vmem:[#allocation4 + $0x2a0] sm:$0xff]
        %v1179 = vld [vmem:[#allocation4 + $0x2a8] sm:$0xff]
        %v1180 = vld [vmem:[#allocation4 + $0x2b0] sm:$0xff]
        %v1181 = vld [vmem:[#allocation4 + $0x2b8] sm:$0xff]
        %v1182 = vld [vmem:[#allocation4 + $0x2c0] sm:$0xff]
        %v1183 = vld [vmem:[#allocation4 + $0x2c8] sm:$0xff]
        %v1184 = vld [vmem:[#allocation4 + $0x2d0] sm:$0xff]
        %v1185 = vld [vmem:[#allocation4 + $0x2d8] sm:$0xff]
        %v1186 = vld [vmem:[#allocation4 + $0x2e0] sm:$0xff]
        %v1187 = vld [vmem:[#allocation4 + $0x2e8] sm:$0xff]
        %v1188 = vld [vmem:[#allocation4 + $0x2f0] sm:$0xff]
        %v1189 = vld [vmem:[#allocation4 + $0x2f8] sm:$0xff]
        %v1190 = vld [vmem:[#allocation4 + $0x300] sm:$0xff]
        %v1191 = vld [vmem:[#allocation4 + $0x308] sm:$0xff]
        %v1192 = vld [vmem:[#allocation4 + $0x310] sm:$0xff]
        %v1193 = vld [vmem:[#allocation4 + $0x318] sm:$0xff]
        %v1194 = vld [vmem:[#allocation4 + $0x320] sm:$0xff]
        %v1195 = vld [vmem:[#allocation4 + $0x328] sm:$0xff]
        %v1196 = vld [vmem:[#allocation4 + $0x330] sm:$0xff]
        %v1197 = vld [vmem:[#allocation4 + $0x338] sm:$0xff]
        %v1198 = vld [vmem:[#allocation4 + $0x340] sm:$0xff]
        %v1199 = vld [vmem:[#allocation4 + $0x348] sm:$0xff]
        %v1200 = vld [vmem:[#allocation4 + $0x350] sm:$0xff]
        %v1201 = vld [vmem:[#allocation4 + $0x358] sm:$0xff]
        %v1202 = vld [vmem:[#allocation4 + $0x360] sm:$0xff]
        %v1203 = vld [vmem:[#allocation4 + $0x368] sm:$0xff]
        %v1204 = vld [vmem:[#allocation4 + $0x370] sm:$0xff]
        %v1205 = vld [vmem:[#allocation4 + $0x378] sm:$0xff]
        %v1206 = vld [vmem:[#allocation4 + $0x380] sm:$0xff]
        %v1207 = vld [vmem:[#allocation4 + $0x388] sm:$0xff]
        %v1208 = vld [vmem:[#allocation4 + $0x390] sm:$0xff]
        %v1209 = vld [vmem:[#allocation4 + $0x398] sm:$0xff]
        %v1210 = vld [vmem:[#allocation4 + $0x3a0] sm:$0xff]
        %v1211 = vld [vmem:[#allocation4 + $0x3a8] sm:$0xff]
        %v1212 = vld [vmem:[#allocation4 + $0x3b0] sm:$0xff]
        %v1213 = vld [vmem:[#allocation4 + $0x3b8] sm:$0xff]
        %v1214 = vld [vmem:[#allocation4 + $0x3c0] sm:$0xff]
        %v1215 = vld [vmem:[#allocation4 + $0x3c8] sm:$0xff]
        %v1216 = vld [vmem:[#allocation4 + $0x3d0] sm:$0xff]
        %v1217 = vld [vmem:[#allocation4 + $0x3d8] sm:$0xff]
        %v1218 = vld [vmem:[#allocation4 + $0x3e0] sm:$0xff]
        %v1219 = vld [vmem:[#allocation4 + $0x3e8] sm:$0xff]
        %v1220 = vld [vmem:[#allocation4 + $0x3f0] sm:$0xff]
        %v1221 = vld [vmem:[#allocation4 + $0x3f8] sm:$0xff]
        %v1222 = vld [vmem:[#allocation4 + $0x400] sm:$0xff]
        %v1223 = vld [vmem:[#allocation4 + $0x408] sm:$0xff]
        %v1224 = vld [vmem:[#allocation4 + $0x410] sm:$0xff]
        %v1225 = vld [vmem:[#allocation4 + $0x418] sm:$0xff]
        %v1226 = vld [vmem:[#allocation4 + $0x420] sm:$0xff]
        %v1227 = vld [vmem:[#allocation4 + $0x428] sm:$0xff]
        %v1228 = vld [vmem:[#allocation4 + $0x430] sm:$0xff]
        %v1229 = vld [vmem:[#allocation4 + $0x438] sm:$0xff]
        %v1230 = vld [vmem:[#allocation4 + $0x440] sm:$0xff]
        %v1231 = vld [vmem:[#allocation4 + $0x448] sm:$0xff]
        %v1232 = vld [vmem:[#allocation4 + $0x450] sm:$0xff]
        %v1233 = vld [vmem:[#allocation4 + $0x458] sm:$0xff]
        %v1234 = vld [vmem:[#allocation4 + $0x460] sm:$0xff]
        %v1235 = vld [vmem:[#allocation4 + $0x468] sm:$0xff]
        %v1236 = vld [vmem:[#allocation4 + $0x470] sm:$0xff]
        %v1237 = vld [vmem:[#allocation4 + $0x478] sm:$0xff]
        %v1238 = vlaneseq
        %v1239 = vshrl.u32 %v1238, 7
        %v1240 = vsub.s32 0, %v1239
        %v1241 = vrot.slane %v516, %v1240
        %v1386 = vunpack.c.l.b16 %v372
        %v1387 = vunpack.c.l.b16 %v373
        %v1388 = vunpack.c.l.b16 %v374
        %v1389 = vunpack.c.l.b16 %v375
        %v1390 = vunpack.c.l.b16 %v376
        %v1391 = vunpack.c.l.b16 %v377
        %v1392 = vunpack.c.l.b16 %v378
        %v1393 = vunpack.c.l.b16 %v379
        %v1394 = vunpack.c.l.b16 %v380
        %v1395 = vunpack.c.l.b16 %v381
        %v1396 = vunpack.c.l.b16 %v382
        %v1397 = vunpack.c.l.b16 %v383
        %v1398 = vunpack.c.l.b16 %v384
        %v1399 = vunpack.c.l.b16 %v385
        %v1400 = vunpack.c.l.b16 %v386
        %v1401 = vunpack.c.l.b16 %v387
        %v1402 = vunpack.c.l.b16 %v388
        %v1403 = vunpack.c.l.b16 %v389
        %v1404 = vunpack.c.l.b16 %v390
        %v1405 = vunpack.c.l.b16 %v391
        %v1406 = vunpack.c.l.b16 %v392
        %v1407 = vunpack.c.l.b16 %v393
        %v1408 = vunpack.c.l.b16 %v394
        %v1409 = vunpack.c.l.b16 %v395
        %v1410 = vunpack.c.l.b16 %v396
        %v1411 = vunpack.c.l.b16 %v397
        %v1412 = vunpack.c.l.b16 %v398
        %v1413 = vunpack.c.l.b16 %v399
        %v1414 = vunpack.c.l.b16 %v400
        %v1415 = vunpack.c.l.b16 %v401
        %v1416 = vunpack.c.l.b16 %v402
        %v1417 = vunpack.c.l.b16 %v403
        %v1418 = vunpack.c.l.b16 %v404
        %v1419 = vunpack.c.l.b16 %v405
        %v1420 = vunpack.c.l.b16 %v406
        %v1421 = vunpack.c.l.b16 %v407
        %v1422 = vunpack.c.l.b16 %v408
        %v1423 = vunpack.c.l.b16 %v409
        %v1424 = vunpack.c.l.b16 %v410
        %v1425 = vunpack.c.l.b16 %v411
        %v1426 = vunpack.c.l.b16 %v412
        %v1427 = vunpack.c.l.b16 %v413
        %v1428 = vunpack.c.l.b16 %v414
        %v1429 = vunpack.c.l.b16 %v415
        %v1430 = vunpack.c.l.b16 %v416
        %v1431 = vunpack.c.l.b16 %v417
        %v1432 = vunpack.c.l.b16 %v418
        %v1433 = vunpack.c.l.b16 %v419
        %v1434 = vunpack.c.l.b16 %v420
        %v1435 = vunpack.c.l.b16 %v421
        %v1436 = vunpack.c.l.b16 %v422
        %v1437 = vunpack.c.l.b16 %v423
        %v1438 = vunpack.c.l.b16 %v424
        %v1439 = vunpack.c.l.b16 %v425
        %v1440 = vunpack.c.l.b16 %v426
        %v1441 = vunpack.c.l.b16 %v427
        %v1442 = vunpack.c.l.b16 %v428
        %v1443 = vunpack.c.l.b16 %v429
        %v1444 = vunpack.c.l.b16 %v430
        %v1445 = vunpack.c.l.b16 %v431
        %v1446 = vunpack.c.l.b16 %v432
        %v1447 = vunpack.c.l.b16 %v433
        %v1448 = vunpack.c.l.b16 %v434
        %v1449 = vunpack.c.l.b16 %v435
        %v1450 = vunpack.c.l.b16 %v436
        %v1451 = vunpack.c.l.b16 %v437
        %v1452 = vunpack.c.l.b16 %v438
        %v1453 = vunpack.c.l.b16 %v439
        %v1454 = vunpack.c.l.b16 %v440
        %v1455 = vunpack.c.l.b16 %v441
        %v1456 = vunpack.c.l.b16 %v442
        %v1457 = vunpack.c.l.b16 %v443
        %v1458 = vunpack.c.l.b16 %v444
        %v1459 = vunpack.c.l.b16 %v445
        %v1460 = vunpack.c.l.b16 %v446
        %v1461 = vunpack.c.l.b16 %v447
        %v1462 = vunpack.c.l.b16 %v448
        %v1463 = vunpack.c.l.b16 %v449
        %v1464 = vunpack.c.l.b16 %v450
        %v1465 = vunpack.c.l.b16 %v451
        %v1466 = vunpack.c.l.b16 %v452
        %v1467 = vunpack.c.l.b16 %v453
        %v1468 = vunpack.c.l.b16 %v454
        %v1469 = vunpack.c.l.b16 %v455
        %v1470 = vunpack.c.l.b16 %v456
        %v1471 = vunpack.c.l.b16 %v457
        %v1472 = vunpack.c.l.b16 %v458
        %v1473 = vunpack.c.l.b16 %v459
        %v1474 = vunpack.c.l.b16 %v460
        %v1475 = vunpack.c.l.b16 %v461
        %v1476 = vunpack.c.l.b16 %v462
        %v1477 = vunpack.c.l.b16 %v463
        %v1478 = vunpack.c.l.b16 %v464
        %v1479 = vunpack.c.l.b16 %v465
        %v1480 = vunpack.c.l.b16 %v466
        %v1481 = vunpack.c.l.b16 %v467
        %v1482 = vunpack.c.l.b16 %v468
        %v1483 = vunpack.c.l.b16 %v469
        %v1484 = vunpack.c.l.b16 %v470
        %v1485 = vunpack.c.l.b16 %v471
        %v1486 = vunpack.c.l.b16 %v472
        %v1487 = vunpack.c.l.b16 %v473
        %v1488 = vunpack.c.l.b16 %v474
        %v1489 = vunpack.c.l.b16 %v475
        %v1490 = vunpack.c.l.b16 %v476
        %v1491 = vunpack.c.l.b16 %v477
        %v1492 = vunpack.c.l.b16 %v478
        %v1493 = vunpack.c.l.b16 %v479
        %v1494 = vunpack.c.l.b16 %v480
        %v1495 = vunpack.c.l.b16 %v481
        %v1496 = vunpack.c.l.b16 %v482
        %v1497 = vunpack.c.l.b16 %v483
        %v1498 = vunpack.c.l.b16 %v484
        %v1499 = vunpack.c.l.b16 %v485
        %v1500 = vunpack.c.l.b16 %v486
        %v1501 = vunpack.c.l.b16 %v487
        %v1502 = vunpack.c.l.b16 %v488
        %v1503 = vunpack.c.l.b16 %v489
        %v1504 = vunpack.c.l.b16 %v490
        %v1505 = vunpack.c.l.b16 %v491
        %v1506 = vunpack.c.l.b16 %v492
        %v1507 = vunpack.c.l.b16 %v493
        %v1508 = vunpack.c.l.b16 %v494
        %v1509 = vunpack.c.l.b16 %v495
        %v1510 = vunpack.c.l.b16 %v496
        %v1511 = vunpack.c.l.b16 %v497
        %v1512 = vunpack.c.l.b16 %v498
        %v1513 = vunpack.c.l.b16 %v499
        %v1514 = vunpack.c.l.b16 %v500
        %v1515 = vunpack.c.l.b16 %v501
        %v1516 = vunpack.c.l.b16 %v502
        %v1517 = vunpack.c.l.b16 %v503
        %v1518 = vunpack.c.l.b16 %v504
        %v1519 = vunpack.c.l.b16 %v505
        %v1520 = vunpack.c.l.b16 %v506
        %v1521 = vunpack.c.l.b16 %v507
        %v1522 = vunpack.c.l.b16 %v508
        %v1523 = vunpack.c.l.b16 %v509
        %v1524 = vunpack.c.l.b16 %v510
        %v1525 = vunpack.c.l.b16 %v511
        %v1526 = vunpack.c.l.b16 %v512
        %v1527 = vunpack.c.l.b16 %v513
        %v1528 = vunpack.c.l.b16 %v514
        %v1529 = vunpack.c.l.b16 %v515
        %v1530 = vpack.c.b16 %v1387, %v1386
        %v1531 = vpack.c.b16 %v1389, %v1388
        %v1532 = vpack.c.b16 %v1391, %v1390
        %v1533 = vpack.c.b16 %v1393, %v1392
        %v1534 = vpack.c.b16 %v1395, %v1394
        %v1535 = vpack.c.b16 %v1397, %v1396
        %v1536 = vpack.c.b16 %v1399, %v1398
        %v1537 = vpack.c.b16 %v1401, %v1400
        %v1538 = vpack.c.b16 %v1403, %v1402
        %v1539 = vpack.c.b16 %v1405, %v1404
        %v1540 = vpack.c.b16 %v1407, %v1406
        %v1541 = vpack.c.b16 %v1409, %v1408
        %v1542 = vpack.c.b16 %v1411, %v1410
        %v1543 = vpack.c.b16 %v1413, %v1412
        %v1544 = vpack.c.b16 %v1415, %v1414
        %v1545 = vpack.c.b16 %v1417, %v1416
        %v1546 = vpack.c.b16 %v1419, %v1418
        %v1547 = vpack.c.b16 %v1421, %v1420
        %v1548 = vpack.c.b16 %v1423, %v1422
        %v1549 = vpack.c.b16 %v1425, %v1424
        %v1550 = vpack.c.b16 %v1427, %v1426
        %v1551 = vpack.c.b16 %v1429, %v1428
        %v1552 = vpack.c.b16 %v1431, %v1430
        %v1553 = vpack.c.b16 %v1433, %v1432
        %v1554 = vpack.c.b16 %v1435, %v1434
        %v1555 = vpack.c.b16 %v1437, %v1436
        %v1556 = vpack.c.b16 %v1439, %v1438
        %v1557 = vpack.c.b16 %v1441, %v1440
        %v1558 = vpack.c.b16 %v1443, %v1442
        %v1559 = vpack.c.b16 %v1445, %v1444
        %v1560 = vpack.c.b16 %v1447, %v1446
        %v1561 = vpack.c.b16 %v1449, %v1448
        %v1562 = vpack.c.b16 %v1451, %v1450
        %v1563 = vpack.c.b16 %v1453, %v1452
        %v1564 = vpack.c.b16 %v1455, %v1454
        %v1565 = vpack.c.b16 %v1457, %v1456
        %v1566 = vpack.c.b16 %v1459, %v1458
        %v1567 = vpack.c.b16 %v1461, %v1460
        %v1568 = vpack.c.b16 %v1463, %v1462
        %v1569 = vpack.c.b16 %v1465, %v1464
        %v1570 = vpack.c.b16 %v1467, %v1466
        %v1571 = vpack.c.b16 %v1469, %v1468
        %v1572 = vpack.c.b16 %v1471, %v1470
        %v1573 = vpack.c.b16 %v1473, %v1472
        %v1574 = vpack.c.b16 %v1475, %v1474
        %v1575 = vpack.c.b16 %v1477, %v1476
        %v1576 = vpack.c.b16 %v1479, %v1478
        %v1577 = vpack.c.b16 %v1481, %v1480
        %v1578 = vpack.c.b16 %v1483, %v1482
        %v1579 = vpack.c.b16 %v1485, %v1484
        %v1580 = vpack.c.b16 %v1487, %v1486
        %v1581 = vpack.c.b16 %v1489, %v1488
        %v1582 = vpack.c.b16 %v1491, %v1490
        %v1583 = vpack.c.b16 %v1493, %v1492
        %v1584 = vpack.c.b16 %v1495, %v1494
        %v1585 = vpack.c.b16 %v1497, %v1496
        %v1586 = vpack.c.b16 %v1499, %v1498
        %v1587 = vpack.c.b16 %v1501, %v1500
        %v1588 = vpack.c.b16 %v1503, %v1502
        %v1589 = vpack.c.b16 %v1505, %v1504
        %v1590 = vpack.c.b16 %v1507, %v1506
        %v1591 = vpack.c.b16 %v1509, %v1508
        %v1592 = vpack.c.b16 %v1511, %v1510
        %v1593 = vpack.c.b16 %v1513, %v1512
        %v1594 = vpack.c.b16 %v1515, %v1514
        %v1595 = vpack.c.b16 %v1517, %v1516
        %v1596 = vpack.c.b16 %v1519, %v1518
        %v1597 = vpack.c.b16 %v1521, %v1520
        %v1598 = vpack.c.b16 %v1523, %v1522
        %v1599 = vpack.c.b16 %v1525, %v1524
        %v1600 = vpack.c.b16 %v1527, %v1526
        %v1601 = vpack.c.b16 %v1529, %v1528
        %1674 = vmatprep.subr.bf16.mxu0 0
        %1675 = vmatpush1.bf16.msra.mxu0 %v1530
        %1676 = vmatprep.subr.bf16.mxu0 0
        %1677 = vmatpush1.bf16.msra.mxu0 %v1531
        %1678 = vmatprep.subr.bf16.mxu0 0
        %1679 = vmatpush1.bf16.msra.mxu0 %v1532
        %1680 = vmatprep.subr.bf16.mxu0 0
        %1681 = vmatpush1.bf16.msra.mxu0 %v1533
        %1682 = vmatprep.subr.bf16.mxu0 0
        %1683 = vmatpush1.bf16.msra.mxu0 %v1534
        %1684 = vmatprep.subr.bf16.mxu0 0
        %1685 = vmatpush1.bf16.msra.mxu0 %v1535
        %1686 = vmatprep.subr.bf16.mxu0 0
        %1687 = vmatpush1.bf16.msra.mxu0 %v1536
        %1688 = vmatprep.subr.bf16.mxu0 0
        %1689 = vmatpush1.bf16.msra.mxu0 %v1537
        %1690 = vmatprep.subr.bf16.mxu0 0
        %1691 = vmatpush1.bf16.msra.mxu0 %v1538
        %1692 = vmatprep.subr.bf16.mxu0 0
        %1693 = vmatpush1.bf16.msra.mxu0 %v1539
        %1694 = vmatprep.subr.bf16.mxu0 0
        %1695 = vmatpush1.bf16.msra.mxu0 %v1540
        %1696 = vmatprep.subr.bf16.mxu0 0
        %1697 = vmatpush1.bf16.msra.mxu0 %v1541
        %1698 = vmatprep.subr.bf16.mxu0 0
        %1699 = vmatpush1.bf16.msra.mxu0 %v1542
        %1700 = vmatprep.subr.bf16.mxu0 0
        %1701 = vmatpush1.bf16.msra.mxu0 %v1543
        %1702 = vmatprep.subr.bf16.mxu0 0
        %1703 = vmatpush1.bf16.msra.mxu0 %v1544
        %1704 = vmatprep.subr.bf16.mxu0 0
        %1705 = vmatpush1.bf16.msra.mxu0 %v1545
        %1706 = vmatprep.mubr.bf16.mxu0 %v1095
        %1707 = vmatmul.mubr.bf16.gmra.mrb[0].mxu0 %v1094
        %v1708 = vpop.f32.mrb[0].mxu0
        %v1709 = vadd.f32 %v1241, %v1708
        %v1710 = vpop.f32.mrb[0].mxu0
        %v1711 = vpop.f32.mrb[0].mxu0
        %v1712 = vadd.f32 %v1241, %v1711
        %v1713 = vpop.f32.mrb[0].mxu0
        %1714 = vmatprep.mubr.bf16.mxu0 %v1104
        %1715 = vmatmul.mubr.bf16.gmra.mrb[0].mxu0 %v1103
        %v1716 = vpop.f32.mrb[0].mxu0
        %v1717 = vadd.f32 %v1241, %v1716
        %v1718 = vpop.f32.mrb[0].mxu0
        %v1719 = vpop.f32.mrb[0].mxu0
        %v1720 = vadd.f32 %v1241, %v1719
        %v1721 = vpop.f32.mrb[0].mxu0
        %1722 = vmatprep.mubr.bf16.mxu0 %v1113
        %1723 = vmatmul.mubr.bf16.gmra.mrb[0].mxu0 %v1112
        %v1724 = vpop.f32.mrb[0].mxu0
        %v1725 = vadd.f32 %v1241, %v1724
        %v1726 = vpop.f32.mrb[0].mxu0
        %v1727 = vpop.f32.mrb[0].mxu0
        %v1728 = vadd.f32 %v1241, %v1727
        %v1729 = vpop.f32.mrb[0].mxu0
        %1730 = vmatprep.mubr.bf16.mxu0 %v1122
        %1731 = vmatmul.mubr.bf16.gmra.mrb[0].mxu0 %v1121
        %v1732 = vpop.f32.mrb[0].mxu0
        %v1733 = vadd.f32 %v1241, %v1732
        %v1734 = vpop.f32.mrb[0].mxu0
        %v1735 = vpop.f32.mrb[0].mxu0
        %v1736 = vadd.f32 %v1241, %v1735
        %v1737 = vpop.f32.mrb[0].mxu0
        %1738 = vmatprep.mubr.bf16.mxu0 %v1131
        %1739 = vmatmul.mubr.bf16.gmra.mrb[0].mxu0 %v1130
        %v1740 = vpop.f32.mrb[0].mxu0
        %v1741 = vadd.f32 %v1241, %v1740
        %v1742 = vpop.f32.mrb[0].mxu0
        %v1743 = vpop.f32.mrb[0].mxu0
        %v1744 = vadd.f32 %v1241, %v1743
        %v1745 = vpop.f32.mrb[0].mxu0
        %1746 = vmatprep.mubr.bf16.mxu0 %v1140
        %1747 = vmatmul.mubr.bf16.gmra.mrb[0].mxu0 %v1139
        %v1748 = vpop.f32.mrb[0].mxu0
        %v1749 = vadd.f32 %v1241, %v1748
        %v1750 = vpop.f32.mrb[0].mxu0
        %v1751 = vpop.f32.mrb[0].mxu0
        %v1752 = vadd.f32 %v1241, %v1751
        %v1753 = vpop.f32.mrb[0].mxu0
        %1754 = vmatprep.mubr.bf16.mxu0 %v1149
        %1755 = vmatmul.mubr.bf16.gmra.mrb[0].mxu0 %v1148
        %v1756 = vpop.f32.mrb[0].mxu0
        %v1757 = vadd.f32 %v1241, %v1756
        %v1758 = vpop.f32.mrb[0].mxu0
        %v1759 = vpop.f32.mrb[0].mxu0
        %v1760 = vadd.f32 %v1241, %v1759
        %v1761 = vpop.f32.mrb[0].mxu0
        %1762 = vmatprep.mubr.bf16.mxu0 %v1158
        %1763 = vmatmul.mubr.bf16.gmra.mrb[0].mxu0 %v1157
        %v1764 = vpop.f32.mrb[0].mxu0
        %v1765 = vadd.f32 %v1241, %v1764
        %v1766 = vpop.f32.mrb[0].mxu0
        %v1767 = vpop.f32.mrb[0].mxu0
        %v1768 = vadd.f32 %v1241, %v1767
        %v1769 = vpop.f32.mrb[0].mxu0
        %1770 = vmatprep.mubr.bf16.mxu0 %v1167
        %1771 = vmatmul.mubr.bf16.gmra.mrb[0].mxu0 %v1166
        %v1772 = vpop.f32.mrb[0].mxu0
        %v1773 = vadd.f32 %v1241, %v1772
        %v1774 = vpop.f32.mrb[0].mxu0
        %v1775 = vpop.f32.mrb[0].mxu0
        %v1776 = vadd.f32 %v1241, %v1775
        %v1777 = vpop.f32.mrb[0].mxu0
        %1778 = vmatprep.mubr.bf16.mxu0 %v1176
        %1779 = vmatmul.mubr.bf16.gmra.mrb[0].mxu0 %v1175
        %v1780 = vpop.f32.mrb[0].mxu0
        %v1781 = vadd.f32 %v1241, %v1780
        %v1782 = vpop.f32.mrb[0].mxu0
        %v1783 = vpop.f32.mrb[0].mxu0
        %v1784 = vadd.f32 %v1241, %v1783
        %v1785 = vpop.f32.mrb[0].mxu0
        %1786 = vmatprep.mubr.bf16.mxu0 %v1185
        %1787 = vmatmul.mubr.bf16.gmra.mrb[0].mxu0 %v1184
        %v1788 = vpop.f32.mrb[0].mxu0
        %v1789 = vadd.f32 %v1241, %v1788
        %v1790 = vpop.f32.mrb[0].mxu0
        %v1791 = vpop.f32.mrb[0].mxu0
        %v1792 = vadd.f32 %v1241, %v1791
        %v1793 = vpop.f32.mrb[0].mxu0
        %1794 = vmatprep.mubr.bf16.mxu0 %v1194
        %1795 = vmatmul.mubr.bf16.gmra.mrb[0].mxu0 %v1193
        %v1796 = vpop.f32.mrb[0].mxu0
        %v1797 = vadd.f32 %v1241, %v1796
        %v1798 = vpop.f32.mrb[0].mxu0
        %v1799 = vpop.f32.mrb[0].mxu0
        %v1800 = vadd.f32 %v1241, %v1799
        %v1801 = vpop.f32.mrb[0].mxu0
        %1802 = vmatprep.mubr.bf16.mxu0 %v1203
        %1803 = vmatmul.mubr.bf16.gmra.mrb[0].mxu0 %v1202
        %v1804 = vpop.f32.mrb[0].mxu0
        %v1805 = vadd.f32 %v1241, %v1804
        %v1806 = vpop.f32.mrb[0].mxu0
        %v1807 = vpop.f32.mrb[0].mxu0
        %v1808 = vadd.f32 %v1241, %v1807
        %v1809 = vpop.f32.mrb[0].mxu0
        %1810 = vmatprep.mubr.bf16.mxu0 %v1212
        %1811 = vmatmul.mubr.bf16.gmra.mrb[0].mxu0 %v1211
        %v1812 = vpop.f32.mrb[0].mxu0
        %v1813 = vadd.f32 %v1241, %v1812
        %v1814 = vpop.f32.mrb[0].mxu0
        %v1815 = vpop.f32.mrb[0].mxu0
        %v1816 = vadd.f32 %v1241, %v1815
        %v1817 = vpop.f32.mrb[0].mxu0
        %1818 = vmatprep.mubr.bf16.mxu0 %v1221
        %1819 = vmatmul.mubr.bf16.gmra.mrb[0].mxu0 %v1220
        %v1820 = vpop.f32.mrb[0].mxu0
        %v1821 = vadd.f32 %v1241, %v1820
        %v1822 = vpop.f32.mrb[0].mxu0
        %v1823 = vpop.f32.mrb[0].mxu0
        %v1824 = vadd.f32 %v1241, %v1823
        %v1825 = vpop.f32.mrb[0].mxu0
        %1826 = vmatprep.mubr.bf16.mxu0 %v1230
        %1827 = vmatmul.mubr.bf16.gmra.mrb[0].mxu0 %v1229
        %v1828 = vpop.f32.mrb[0].mxu0
        %v1829 = vadd.f32 %v1241, %v1828
        %v1830 = vpop.f32.mrb[0].mxu0
        %v1831 = vpop.f32.mrb[0].mxu0
        %v1832 = vadd.f32 %v1241, %v1831
        %v1833 = vpop.f32.mrb[0].mxu0
        %1834 = vdwg.mxu0
        %1835 = vmatprep.subr.bf16.mxu0 0
        %1836 = vmatpush1.bf16.msra.mxu0 %v1546
        %1837 = vmatprep.subr.bf16.mxu0 0
        %1838 = vmatpush1.bf16.msra.mxu0 %v1547
        %1839 = vmatprep.subr.bf16.mxu0 0
        %1840 = vmatpush1.bf16.msra.mxu0 %v1548
        %1841 = vmatprep.subr.bf16.mxu0 0
        %1842 = vmatpush1.bf16.msra.mxu0 %v1549
        %1843 = vmatprep.subr.bf16.mxu0 0
        %1844 = vmatpush1.bf16.msra.mxu0 %v1550
        %1845 = vmatprep.subr.bf16.mxu0 0
        %1846 = vmatpush1.bf16.msra.mxu0 %v1551
        %1847 = vmatprep.subr.bf16.mxu0 0
        %1848 = vmatpush1.bf16.msra.mxu0 %v1552
        %1849 = vmatprep.subr.bf16.mxu0 0
        %1850 = vmatpush1.bf16.msra.mxu0 %v1553
        %1851 = vmatprep.subr.bf16.mxu0 0
        %1852 = vmatpush1.bf16.msra.mxu0 %v1554
        %1853 = vmatprep.subr.bf16.mxu0 0
        %1854 = vmatpush1.bf16.msra.mxu0 %v1555
        %1855 = vmatprep.subr.bf16.mxu0 0
        %1856 = vmatpush1.bf16.msra.mxu0 %v1556
        %1857 = vmatprep.subr.bf16.mxu0 0
        %1858 = vmatpush1.bf16.msra.mxu0 %v1557
        %1859 = vmatprep.subr.bf16.mxu0 0
        %1860 = vmatpush1.bf16.msra.mxu0 %v1558
        %1861 = vmatprep.subr.bf16.mxu0 0
        %1862 = vmatpush1.bf16.msra.mxu0 %v1559
        %1863 = vmatprep.subr.bf16.mxu0 0
        %1864 = vmatpush1.bf16.msra.mxu0 %v1560
        %1865 = vmatprep.subr.bf16.mxu0 0
        %1866 = vmatpush1.bf16.msra.mxu0 %v1561
        %1867 = vmatprep.mubr.bf16.mxu0 %v1097
        %1868 = vmatmul.mubr.bf16.gmra.mrb[0].mxu0 %v1096
        %v1869 = vpop.f32.mrb[0].mxu0
        %v1870 = vadd.f32 %v1709, %v1869
        %v1871 = vpop.f32.mrb[0].mxu0
        %v1872 = vpop.f32.mrb[0].mxu0
        %v1873 = vadd.f32 %v1712, %v1872
        %v1874 = vpop.f32.mrb[0].mxu0
        %1875 = vmatprep.mubr.bf16.mxu0 %v1106
        %1876 = vmatmul.mubr.bf16.gmra.mrb[0].mxu0 %v1105
        %v1877 = vpop.f32.mrb[0].mxu0
        %v1878 = vadd.f32 %v1717, %v1877
        %v1879 = vpop.f32.mrb[0].mxu0
        %v1880 = vpop.f32.mrb[0].mxu0
        %v1881 = vadd.f32 %v1720, %v1880
        %v1882 = vpop.f32.mrb[0].mxu0
        %1883 = vmatprep.mubr.bf16.mxu0 %v1115
        %1884 = vmatmul.mubr.bf16.gmra.mrb[0].mxu0 %v1114
        %v1885 = vpop.f32.mrb[0].mxu0
        %v1886 = vadd.f32 %v1725, %v1885
        %v1887 = vpop.f32.mrb[0].mxu0
        %v1888 = vpop.f32.mrb[0].mxu0
        %v1889 = vadd.f32 %v1728, %v1888
        %v1890 = vpop.f32.mrb[0].mxu0
        %1891 = vmatprep.mubr.bf16.mxu0 %v1124
        %1892 = vmatmul.mubr.bf16.gmra.mrb[0].mxu0 %v1123
        %v1893 = vpop.f32.mrb[0].mxu0
        %v1894 = vadd.f32 %v1733, %v1893
        %v1895 = vpop.f32.mrb[0].mxu0
        %v1896 = vpop.f32.mrb[0].mxu0
        %v1897 = vadd.f32 %v1736, %v1896
        %v1898 = vpop.f32.mrb[0].mxu0
        %1899 = vmatprep.mubr.bf16.mxu0 %v1133
        %1900 = vmatmul.mubr.bf16.gmra.mrb[0].mxu0 %v1132
        %v1901 = vpop.f32.mrb[0].mxu0
        %v1902 = vadd.f32 %v1741, %v1901
        %v1903 = vpop.f32.mrb[0].mxu0
        %v1904 = vpop.f32.mrb[0].mxu0
        %v1905 = vadd.f32 %v1744, %v1904
        %v1906 = vpop.f32.mrb[0].mxu0
        %1907 = vmatprep.mubr.bf16.mxu0 %v1142
        %1908 = vmatmul.mubr.bf16.gmra.mrb[0].mxu0 %v1141
        %v1909 = vpop.f32.mrb[0].mxu0
        %v1910 = vadd.f32 %v1749, %v1909
        %v1911 = vpop.f32.mrb[0].mxu0
        %v1912 = vpop.f32.mrb[0].mxu0
        %v1913 = vadd.f32 %v1752, %v1912
        %v1914 = vpop.f32.mrb[0].mxu0
        %1915 = vmatprep.mubr.bf16.mxu0 %v1151
        %1916 = vmatmul.mubr.bf16.gmra.mrb[0].mxu0 %v1150
        %v1917 = vpop.f32.mrb[0].mxu0
        %v1918 = vadd.f32 %v1757, %v1917
        %v1919 = vpop.f32.mrb[0].mxu0
        %v1920 = vpop.f32.mrb[0].mxu0
        %v1921 = vadd.f32 %v1760, %v1920
        %v1922 = vpop.f32.mrb[0].mxu0
        %1923 = vmatprep.mubr.bf16.mxu0 %v1160
        %1924 = vmatmul.mubr.bf16.gmra.mrb[0].mxu0 %v1159
        %v1925 = vpop.f32.mrb[0].mxu0
        %v1926 = vadd.f32 %v1765, %v1925
        %v1927 = vpop.f32.mrb[0].mxu0
        %v1928 = vpop.f32.mrb[0].mxu0
        %v1929 = vadd.f32 %v1768, %v1928
        %v1930 = vpop.f32.mrb[0].mxu0
        %1931 = vmatprep.mubr.bf16.mxu0 %v1169
        %1932 = vmatmul.mubr.bf16.gmra.mrb[0].mxu0 %v1168
        %v1933 = vpop.f32.mrb[0].mxu0
        %v1934 = vadd.f32 %v1773, %v1933
        %v1935 = vpop.f32.mrb[0].mxu0
        %v1936 = vpop.f32.mrb[0].mxu0
        %v1937 = vadd.f32 %v1776, %v1936
        %v1938 = vpop.f32.mrb[0].mxu0
        %1939 = vmatprep.mubr.bf16.mxu0 %v1178
        %1940 = vmatmul.mubr.bf16.gmra.mrb[0].mxu0 %v1177
        %v1941 = vpop.f32.mrb[0].mxu0
        %v1942 = vadd.f32 %v1781, %v1941
        %v1943 = vpop.f32.mrb[0].mxu0
        %v1944 = vpop.f32.mrb[0].mxu0
        %v1945 = vadd.f32 %v1784, %v1944
        %v1946 = vpop.f32.mrb[0].mxu0
        %1947 = vmatprep.mubr.bf16.mxu0 %v1187
        %1948 = vmatmul.mubr.bf16.gmra.mrb[0].mxu0 %v1186
        %v1949 = vpop.f32.mrb[0].mxu0
        %v1950 = vadd.f32 %v1789, %v1949
        %v1951 = vpop.f32.mrb[0].mxu0
        %v1952 = vpop.f32.mrb[0].mxu0
        %v1953 = vadd.f32 %v1792, %v1952
        %v1954 = vpop.f32.mrb[0].mxu0
        %1955 = vmatprep.mubr.bf16.mxu0 %v1196
        %1956 = vmatmul.mubr.bf16.gmra.mrb[0].mxu0 %v1195
        %v1957 = vpop.f32.mrb[0].mxu0
        %v1958 = vadd.f32 %v1797, %v1957
        %v1959 = vpop.f32.mrb[0].mxu0
        %v1960 = vpop.f32.mrb[0].mxu0
        %v1961 = vadd.f32 %v1800, %v1960
        %v1962 = vpop.f32.mrb[0].mxu0
        %1963 = vmatprep.mubr.bf16.mxu0 %v1205
        %1964 = vmatmul.mubr.bf16.gmra.mrb[0].mxu0 %v1204
        %v1965 = vpop.f32.mrb[0].mxu0
        %v1966 = vadd.f32 %v1805, %v1965
        %v1967 = vpop.f32.mrb[0].mxu0
        %v1968 = vpop.f32.mrb[0].mxu0
        %v1969 = vadd.f32 %v1808, %v1968
        %v1970 = vpop.f32.mrb[0].mxu0
        %1971 = vmatprep.mubr.bf16.mxu0 %v1214
        %1972 = vmatmul.mubr.bf16.gmra.mrb[0].mxu0 %v1213
        %v1973 = vpop.f32.mrb[0].mxu0
        %v1974 = vadd.f32 %v1813, %v1973
        %v1975 = vpop.f32.mrb[0].mxu0
        %v1976 = vpop.f32.mrb[0].mxu0
        %v1977 = vadd.f32 %v1816, %v1976
        %v1978 = vpop.f32.mrb[0].mxu0
        %1979 = vmatprep.mubr.bf16.mxu0 %v1223
        %1980 = vmatmul.mubr.bf16.gmra.mrb[0].mxu0 %v1222
        %v1981 = vpop.f32.mrb[0].mxu0
        %v1982 = vadd.f32 %v1821, %v1981
        %v1983 = vpop.f32.mrb[0].mxu0
        %v1984 = vpop.f32.mrb[0].mxu0
        %v1985 = vadd.f32 %v1824, %v1984
        %v1986 = vpop.f32.mrb[0].mxu0
        %1987 = vmatprep.mubr.bf16.mxu0 %v1232
        %1988 = vmatmul.mubr.bf16.gmra.mrb[0].mxu0 %v1231
        %v1989 = vpop.f32.mrb[0].mxu0
        %v1990 = vadd.f32 %v1829, %v1989
        %v1991 = vpop.f32.mrb[0].mxu0
        %v1992 = vpop.f32.mrb[0].mxu0
        %v1993 = vadd.f32 %v1832, %v1992
        %v1994 = vpop.f32.mrb[0].mxu0
        %1995 = vdwg.mxu0
        %1996 = vmatprep.subr.bf16.mxu0 0
        %1997 = vmatpush1.bf16.msra.mxu0 %v1562
        %1998 = vmatprep.subr.bf16.mxu0 0
        %1999 = vmatpush1.bf16.msra.mxu0 %v1563
        %2000 = vmatprep.subr.bf16.mxu0 0
        %2001 = vmatpush1.bf16.msra.mxu0 %v1564
        %2002 = vmatprep.subr.bf16.mxu0 0
        %2003 = vmatpush1.bf16.msra.mxu0 %v1565
        %2004 = vmatprep.subr.bf16.mxu0 0
        %2005 = vmatpush1.bf16.msra.mxu0 %v1566
        %2006 = vmatprep.subr.bf16.mxu0 0
        %2007 = vmatpush1.bf16.msra.mxu0 %v1567
        %2008 = vmatprep.subr.bf16.mxu0 0
        %2009 = vmatpush1.bf16.msra.mxu0 %v1568
        %2010 = vmatprep.subr.bf16.mxu0 0
        %2011 = vmatpush1.bf16.msra.mxu0 %v1569
        %2012 = vmatprep.subr.bf16.mxu0 0
        %2013 = vmatpush1.bf16.msra.mxu0 %v1570
        %2014 = vmatprep.subr.bf16.mxu0 0
        %2015 = vmatpush1.bf16.msra.mxu0 %v1571
        %2016 = vmatprep.subr.bf16.mxu0 0
        %2017 = vmatpush1.bf16.msra.mxu0 %v1572
        %2018 = vmatprep.subr.bf16.mxu0 0
        %2019 = vmatpush1.bf16.msra.mxu0 %v1573
        %2020 = vmatprep.subr.bf16.mxu0 0
        %2021 = vmatpush1.bf16.msra.mxu0 %v1574
        %2022 = vmatprep.subr.bf16.mxu0 0
        %2023 = vmatpush1.bf16.msra.mxu0 %v1575
        %2024 = vmatprep.subr.bf16.mxu0 0
        %2025 = vmatpush1.bf16.msra.mxu0 %v1576
        %2026 = vmatprep.subr.bf16.mxu0 0
        %2027 = vmatpush1.bf16.msra.mxu0 %v1577
        %2028 = vmatprep.mubr.bf16.mxu0 %v1099
        %2029 = vmatmul.mubr.bf16.gmra.mrb[0].mxu0 %v1098
        %v2030 = vpop.f32.mrb[0].mxu0
        %v2031 = vadd.f32 %v1870, %v2030
        %v2032 = vpop.f32.mrb[0].mxu0
        %v2033 = vpop.f32.mrb[0].mxu0
        %v2034 = vadd.f32 %v1873, %v2033
        %v2035 = vpop.f32.mrb[0].mxu0
        %2036 = vmatprep.mubr.bf16.mxu0 %v1108
        %2037 = vmatmul.mubr.bf16.gmra.mrb[0].mxu0 %v1107
        %v2038 = vpop.f32.mrb[0].mxu0
        %v2039 = vadd.f32 %v1878, %v2038
        %v2040 = vpop.f32.mrb[0].mxu0
        %v2041 = vpop.f32.mrb[0].mxu0
        %v2042 = vadd.f32 %v1881, %v2041
        %v2043 = vpop.f32.mrb[0].mxu0
        %2044 = vmatprep.mubr.bf16.mxu0 %v1117
        %2045 = vmatmul.mubr.bf16.gmra.mrb[0].mxu0 %v1116
        %v2046 = vpop.f32.mrb[0].mxu0
        %v2047 = vadd.f32 %v1886, %v2046
        %v2048 = vpop.f32.mrb[0].mxu0
        %v2049 = vpop.f32.mrb[0].mxu0
        %v2050 = vadd.f32 %v1889, %v2049
        %v2051 = vpop.f32.mrb[0].mxu0
        %2052 = vmatprep.mubr.bf16.mxu0 %v1126
        %2053 = vmatmul.mubr.bf16.gmra.mrb[0].mxu0 %v1125
        %v2054 = vpop.f32.mrb[0].mxu0
        %v2055 = vadd.f32 %v1894, %v2054
        %v2056 = vpop.f32.mrb[0].mxu0
        %v2057 = vpop.f32.mrb[0].mxu0
        %v2058 = vadd.f32 %v1897, %v2057
        %v2059 = vpop.f32.mrb[0].mxu0
        %2060 = vmatprep.mubr.bf16.mxu0 %v1135
        %2061 = vmatmul.mubr.bf16.gmra.mrb[0].mxu0 %v1134
        %v2062 = vpop.f32.mrb[0].mxu0
        %v2063 = vadd.f32 %v1902, %v2062
        %v2064 = vpop.f32.mrb[0].mxu0
        %v2065 = vpop.f32.mrb[0].mxu0
        %v2066 = vadd.f32 %v1905, %v2065
        %v2067 = vpop.f32.mrb[0].mxu0
        %2068 = vmatprep.mubr.bf16.mxu0 %v1144
        %2069 = vmatmul.mubr.bf16.gmra.mrb[0].mxu0 %v1143
        %v2070 = vpop.f32.mrb[0].mxu0
        %v2071 = vadd.f32 %v1910, %v2070
        %v2072 = vpop.f32.mrb[0].mxu0
        %v2073 = vpop.f32.mrb[0].mxu0
        %v2074 = vadd.f32 %v1913, %v2073
        %v2075 = vpop.f32.mrb[0].mxu0
        %2076 = vmatprep.mubr.bf16.mxu0 %v1153
        %2077 = vmatmul.mubr.bf16.gmra.mrb[0].mxu0 %v1152
        %v2078 = vpop.f32.mrb[0].mxu0
        %v2079 = vadd.f32 %v1918, %v2078
        %v2080 = vpop.f32.mrb[0].mxu0
        %v2081 = vpop.f32.mrb[0].mxu0
        %v2082 = vadd.f32 %v1921, %v2081
        %v2083 = vpop.f32.mrb[0].mxu0
        %2084 = vmatprep.mubr.bf16.mxu0 %v1162
        %2085 = vmatmul.mubr.bf16.gmra.mrb[0].mxu0 %v1161
        %v2086 = vpop.f32.mrb[0].mxu0
        %v2087 = vadd.f32 %v1926, %v2086
        %v2088 = vpop.f32.mrb[0].mxu0
        %v2089 = vpop.f32.mrb[0].mxu0
        %v2090 = vadd.f32 %v1929, %v2089
        %v2091 = vpop.f32.mrb[0].mxu0
        %2092 = vmatprep.mubr.bf16.mxu0 %v1171
        %2093 = vmatmul.mubr.bf16.gmra.mrb[0].mxu0 %v1170
        %v2094 = vpop.f32.mrb[0].mxu0
        %v2095 = vadd.f32 %v1934, %v2094
        %v2096 = vpop.f32.mrb[0].mxu0
        %v2097 = vpop.f32.mrb[0].mxu0
        %v2098 = vadd.f32 %v1937, %v2097
        %v2099 = vpop.f32.mrb[0].mxu0
        %2100 = vmatprep.mubr.bf16.mxu0 %v1180
        %2101 = vmatmul.mubr.bf16.gmra.mrb[0].mxu0 %v1179
        %v2102 = vpop.f32.mrb[0].mxu0
        %v2103 = vadd.f32 %v1942, %v2102
        %v2104 = vpop.f32.mrb[0].mxu0
        %v2105 = vpop.f32.mrb[0].mxu0
        %v2106 = vadd.f32 %v1945, %v2105
        %v2107 = vpop.f32.mrb[0].mxu0
        %2108 = vmatprep.mubr.bf16.mxu0 %v1189
        %2109 = vmatmul.mubr.bf16.gmra.mrb[0].mxu0 %v1188
        %v2110 = vpop.f32.mrb[0].mxu0
        %v2111 = vadd.f32 %v1950, %v2110
        %v2112 = vpop.f32.mrb[0].mxu0
        %v2113 = vpop.f32.mrb[0].mxu0
        %v2114 = vadd.f32 %v1953, %v2113
        %v2115 = vpop.f32.mrb[0].mxu0
        %2116 = vmatprep.mubr.bf16.mxu0 %v1198
        %2117 = vmatmul.mubr.bf16.gmra.mrb[0].mxu0 %v1197
        %v2118 = vpop.f32.mrb[0].mxu0
        %v2119 = vadd.f32 %v1958, %v2118
        %v2120 = vpop.f32.mrb[0].mxu0
        %v2121 = vpop.f32.mrb[0].mxu0
        %v2122 = vadd.f32 %v1961, %v2121
        %v2123 = vpop.f32.mrb[0].mxu0
        %2124 = vmatprep.mubr.bf16.mxu0 %v1207
        %2125 = vmatmul.mubr.bf16.gmra.mrb[0].mxu0 %v1206
        %v2126 = vpop.f32.mrb[0].mxu0
        %v2127 = vadd.f32 %v1966, %v2126
        %v2128 = vpop.f32.mrb[0].mxu0
        %v2129 = vpop.f32.mrb[0].mxu0
        %v2130 = vadd.f32 %v1969, %v2129
        %v2131 = vpop.f32.mrb[0].mxu0
        %2132 = vmatprep.mubr.bf16.mxu0 %v1216
        %2133 = vmatmul.mubr.bf16.gmra.mrb[0].mxu0 %v1215
        %v2134 = vpop.f32.mrb[0].mxu0
        %v2135 = vadd.f32 %v1974, %v2134
        %v2136 = vpop.f32.mrb[0].mxu0
        %v2137 = vpop.f32.mrb[0].mxu0
        %v2138 = vadd.f32 %v1977, %v2137
        %v2139 = vpop.f32.mrb[0].mxu0
        %2140 = vmatprep.mubr.bf16.mxu0 %v1225
        %2141 = vmatmul.mubr.bf16.gmra.mrb[0].mxu0 %v1224
        %v2142 = vpop.f32.mrb[0].mxu0
        %v2143 = vadd.f32 %v1982, %v2142
        %v2144 = vpop.f32.mrb[0].mxu0
        %v2145 = vpop.f32.mrb[0].mxu0
        %v2146 = vadd.f32 %v1985, %v2145
        %v2147 = vpop.f32.mrb[0].mxu0
        %2148 = vmatprep.mubr.bf16.mxu0 %v1234
        %2149 = vmatmul.mubr.bf16.gmra.mrb[0].mxu0 %v1233
        %v2150 = vpop.f32.mrb[0].mxu0
        %v2151 = vadd.f32 %v1990, %v2150
        %v2152 = vpop.f32.mrb[0].mxu0
        %v2153 = vpop.f32.mrb[0].mxu0
        %v2154 = vadd.f32 %v1993, %v2153
        %v2155 = vpop.f32.mrb[0].mxu0
        %2156 = vdwg.mxu0
        %2157 = vmatprep.subr.bf16.mxu0 0
        %2158 = vmatpush1.bf16.msra.mxu0 %v1578
        %2159 = vmatprep.subr.bf16.mxu0 0
        %2160 = vmatpush1.bf16.msra.mxu0 %v1579
        %2161 = vmatprep.subr.bf16.mxu0 0
        %2162 = vmatpush1.bf16.msra.mxu0 %v1580
        %2163 = vmatprep.subr.bf16.mxu0 0
        %2164 = vmatpush1.bf16.msra.mxu0 %v1581
        %2165 = vmatprep.subr.bf16.mxu0 0
        %2166 = vmatpush1.bf16.msra.mxu0 %v1582
        %2167 = vmatprep.subr.bf16.mxu0 0
        %2168 = vmatpush1.bf16.msra.mxu0 %v1583
        %2169 = vmatprep.subr.bf16.mxu0 0
        %2170 = vmatpush1.bf16.msra.mxu0 %v1584
        %2171 = vmatprep.subr.bf16.mxu0 0
        %2172 = vmatpush1.bf16.msra.mxu0 %v1585
        %2173 = vmatprep.subr.bf16.mxu0 0
        %2174 = vmatpush1.bf16.msra.mxu0 %v1586
        %2175 = vmatprep.subr.bf16.mxu0 0
        %2176 = vmatpush1.bf16.msra.mxu0 %v1587
        %2177 = vmatprep.subr.bf16.mxu0 0
        %2178 = vmatpush1.bf16.msra.mxu0 %v1588
        %2179 = vmatprep.subr.bf16.mxu0 0
        %2180 = vmatpush1.bf16.msra.mxu0 %v1589
        %2181 = vmatprep.subr.bf16.mxu0 0
        %2182 = vmatpush1.bf16.msra.mxu0 %v1590
        %2183 = vmatprep.subr.bf16.mxu0 0
        %2184 = vmatpush1.bf16.msra.mxu0 %v1591
        %2185 = vmatprep.subr.bf16.mxu0 0
        %2186 = vmatpush1.bf16.msra.mxu0 %v1592
        %2187 = vmatprep.subr.bf16.mxu0 0
        %2188 = vmatpush1.bf16.msra.mxu0 %v1593
        %2189 = vmatprep.mubr.bf16.mxu0 %v1101
        %2190 = vmatmul.mubr.bf16.gmra.mrb[0].mxu0 %v1100
        %v2191 = vpop.f32.mrb[0].mxu0
        %v2192 = vadd.f32 %v2031, %v2191
        %v2193 = vpop.f32.mrb[0].mxu0
        %v2194 = vpop.f32.mrb[0].mxu0
        %v2195 = vadd.f32 %v2034, %v2194
        %v2196 = vpop.f32.mrb[0].mxu0
        %2197 = vmatprep.mubr.bf16.mxu0 %v1110
        %2198 = vmatmul.mubr.bf16.gmra.mrb[0].mxu0 %v1109
        %v2199 = vpop.f32.mrb[0].mxu0
        %v2200 = vadd.f32 %v2039, %v2199
        %v2201 = vpop.f32.mrb[0].mxu0
        %v2202 = vpop.f32.mrb[0].mxu0
        %v2203 = vadd.f32 %v2042, %v2202
        %v2204 = vpop.f32.mrb[0].mxu0
        %2205 = vmatprep.mubr.bf16.mxu0 %v1119
        %2206 = vmatmul.mubr.bf16.gmra.mrb[0].mxu0 %v1118
        %v2207 = vpop.f32.mrb[0].mxu0
        %v2208 = vadd.f32 %v2047, %v2207
        %v2209 = vpop.f32.mrb[0].mxu0
        %v2210 = vpop.f32.mrb[0].mxu0
        %v2211 = vadd.f32 %v2050, %v2210
        %v2212 = vpop.f32.mrb[0].mxu0
        %2213 = vmatprep.mubr.bf16.mxu0 %v1128
        %2214 = vmatmul.mubr.bf16.gmra.mrb[0].mxu0 %v1127
        %v2215 = vpop.f32.mrb[0].mxu0
        %v2216 = vadd.f32 %v2055, %v2215
        %v2217 = vpop.f32.mrb[0].mxu0
        %v2218 = vpop.f32.mrb[0].mxu0
        %v2219 = vadd.f32 %v2058, %v2218
        %v2220 = vpop.f32.mrb[0].mxu0
        %2221 = vmatprep.mubr.bf16.mxu0 %v1137
        %2222 = vmatmul.mubr.bf16.gmra.mrb[0].mxu0 %v1136
        %v2223 = vpop.f32.mrb[0].mxu0
        %v2224 = vadd.f32 %v2063, %v2223
        %v2225 = vpop.f32.mrb[0].mxu0
        %v2226 = vpop.f32.mrb[0].mxu0
        %v2227 = vadd.f32 %v2066, %v2226
        %v2228 = vpop.f32.mrb[0].mxu0
        %2229 = vmatprep.mubr.bf16.mxu0 %v1146
        %2230 = vmatmul.mubr.bf16.gmra.mrb[0].mxu0 %v1145
        %v2231 = vpop.f32.mrb[0].mxu0
        %v2232 = vadd.f32 %v2071, %v2231
        %v2233 = vpop.f32.mrb[0].mxu0
        %v2234 = vpop.f32.mrb[0].mxu0
        %v2235 = vadd.f32 %v2074, %v2234
        %v2236 = vpop.f32.mrb[0].mxu0
        %2237 = vmatprep.mubr.bf16.mxu0 %v1155
        %2238 = vmatmul.mubr.bf16.gmra.mrb[0].mxu0 %v1154
        %v2239 = vpop.f32.mrb[0].mxu0
        %v2240 = vadd.f32 %v2079, %v2239
        %v2241 = vpop.f32.mrb[0].mxu0
        %v2242 = vpop.f32.mrb[0].mxu0
        %v2243 = vadd.f32 %v2082, %v2242
        %v2244 = vpop.f32.mrb[0].mxu0
        %2245 = vmatprep.mubr.bf16.mxu0 %v1164
        %2246 = vmatmul.mubr.bf16.gmra.mrb[0].mxu0 %v1163
        %v2247 = vpop.f32.mrb[0].mxu0
        %v2248 = vadd.f32 %v2087, %v2247
        %v2249 = vpop.f32.mrb[0].mxu0
        %v2250 = vpop.f32.mrb[0].mxu0
        %v2251 = vadd.f32 %v2090, %v2250
        %v2252 = vpop.f32.mrb[0].mxu0
        %2253 = vmatprep.mubr.bf16.mxu0 %v1173
        %2254 = vmatmul.mubr.bf16.gmra.mrb[0].mxu0 %v1172
        %v2255 = vpop.f32.mrb[0].mxu0
        %v2256 = vadd.f32 %v2095, %v2255
        %v2257 = vpop.f32.mrb[0].mxu0
        %v2258 = vpop.f32.mrb[0].mxu0
        %v2259 = vadd.f32 %v2098, %v2258
        %v2260 = vpop.f32.mrb[0].mxu0
        %2261 = vmatprep.mubr.bf16.mxu0 %v1182
        %2262 = vmatmul.mubr.bf16.gmra.mrb[0].mxu0 %v1181
        %v2263 = vpop.f32.mrb[0].mxu0
        %v2264 = vadd.f32 %v2103, %v2263
        %v2265 = vpop.f32.mrb[0].mxu0
        %v2266 = vpop.f32.mrb[0].mxu0
        %v2267 = vadd.f32 %v2106, %v2266
        %v2268 = vpop.f32.mrb[0].mxu0
        %2269 = vmatprep.mubr.bf16.mxu0 %v1191
        %2270 = vmatmul.mubr.bf16.gmra.mrb[0].mxu0 %v1190
        %v2271 = vpop.f32.mrb[0].mxu0
        %v2272 = vadd.f32 %v2111, %v2271
        %v2273 = vpop.f32.mrb[0].mxu0
        %v2274 = vpop.f32.mrb[0].mxu0
        %v2275 = vadd.f32 %v2114, %v2274
        %v2276 = vpop.f32.mrb[0].mxu0
        %2277 = vmatprep.mubr.bf16.mxu0 %v1200
        %2278 = vmatmul.mubr.bf16.gmra.mrb[0].mxu0 %v1199
        %v2279 = vpop.f32.mrb[0].mxu0
        %v2280 = vadd.f32 %v2119, %v2279
        %v2281 = vpop.f32.mrb[0].mxu0
        %v2282 = vpop.f32.mrb[0].mxu0
        %v2283 = vadd.f32 %v2122, %v2282
        %v2284 = vpop.f32.mrb[0].mxu0
        %2285 = vmatprep.mubr.bf16.mxu0 %v1209
        %2286 = vmatmul.mubr.bf16.gmra.mrb[0].mxu0 %v1208
        %v2287 = vpop.f32.mrb[0].mxu0
        %v2288 = vadd.f32 %v2127, %v2287
        %v2289 = vpop.f32.mrb[0].mxu0
        %v2290 = vpop.f32.mrb[0].mxu0
        %v2291 = vadd.f32 %v2130, %v2290
        %v2292 = vpop.f32.mrb[0].mxu0
        %2293 = vmatprep.mubr.bf16.mxu0 %v1218
        %2294 = vmatmul.mubr.bf16.gmra.mrb[0].mxu0 %v1217
        %v2295 = vpop.f32.mrb[0].mxu0
        %v2296 = vadd.f32 %v2135, %v2295
        %v2297 = vpop.f32.mrb[0].mxu0
        %v2298 = vpop.f32.mrb[0].mxu0
        %v2299 = vadd.f32 %v2138, %v2298
        %v2300 = vpop.f32.mrb[0].mxu0
        %2301 = vmatprep.mubr.bf16.mxu0 %v1227
        %2302 = vmatmul.mubr.bf16.gmra.mrb[0].mxu0 %v1226
        %v2303 = vpop.f32.mrb[0].mxu0
        %v2304 = vadd.f32 %v2143, %v2303
        %v2305 = vpop.f32.mrb[0].mxu0
        %v2306 = vpop.f32.mrb[0].mxu0
        %v2307 = vadd.f32 %v2146, %v2306
        %v2308 = vpop.f32.mrb[0].mxu0
        %2309 = vmatprep.mubr.bf16.mxu0 %v1236
        %2310 = vmatmul.mubr.bf16.gmra.mrb[0].mxu0 %v1235
        %v2311 = vpop.f32.mrb[0].mxu0
        %v2312 = vadd.f32 %v2151, %v2311
        %v2313 = vpop.f32.mrb[0].mxu0
        %v2314 = vpop.f32.mrb[0].mxu0
        %v2315 = vadd.f32 %v2154, %v2314
        %v2316 = vpop.f32.mrb[0].mxu0
        %2317 = vdwg.mxu0
        %2318 = vmatprep.subr.bf16.mxu0 0
        %2319 = vmatpush1.bf16.msra.mxu0 %v1594
        %2320 = vmatprep.subr.bf16.mxu0 0
        %2321 = vmatpush1.bf16.msra.mxu0 %v1595
        %2322 = vmatprep.subr.bf16.mxu0 0
        %2323 = vmatpush1.bf16.msra.mxu0 %v1596
        %2324 = vmatprep.subr.bf16.mxu0 0
        %2325 = vmatpush1.bf16.msra.mxu0 %v1597
        %2326 = vmatprep.subr.bf16.mxu0 0
        %2327 = vmatpush1.bf16.msra.mxu0 %v1598
        %2328 = vmatprep.subr.bf16.mxu0 0
        %2329 = vmatpush1.bf16.msra.mxu0 %v1599
        %2330 = vmatprep.subr.bf16.mxu0 0
        %2331 = vmatpush1.bf16.msra.mxu0 %v1600
        %2332 = vmatprep.subr.bf16.mxu0 0
        %2333 = vmatpush1.bf16.msra.mxu0 %v1601
        %2334 = vmatprep.subr.bf16.mxu0 0
        %2335 = vmatpush1.bf16.msra.mxu0 0
        %2336 = vmatprep.subr.bf16.mxu0 0
        %2337 = vmatpush1.bf16.msra.mxu0 0
        %2338 = vmatprep.subr.bf16.mxu0 0
        %2339 = vmatpush1.bf16.msra.mxu0 0
        %2340 = vmatprep.subr.bf16.mxu0 0
        %2341 = vmatpush1.bf16.msra.mxu0 0
        %2342 = vmatprep.subr.bf16.mxu0 0
        %2343 = vmatpush1.bf16.msra.mxu0 0
        %2344 = vmatprep.subr.bf16.mxu0 0
        %2345 = vmatpush1.bf16.msra.mxu0 0
        %2346 = vmatprep.subr.bf16.mxu0 0
        %2347 = vmatpush1.bf16.msra.mxu0 0
        %2348 = vmatprep.subr.bf16.mxu0 0
        %2349 = vmatpush1.bf16.msra.mxu0 0
        %2350 = vmatprep.mubr.bf16.mxu0 0
        %2351 = vmatmul.mubr.bf16.gmra.mrb[0].mxu0 %v1102
        %v2352 = vpop.f32.mrb[0].mxu0
        %v2353 = vadd.f32 %v2192, %v2352
        %v2354 = vpop.f32.mrb[0].mxu0
        %v2355 = vpop.f32.mrb[0].mxu0
        %v2356 = vadd.f32 %v2195, %v2355
        %v2357 = vpop.f32.mrb[0].mxu0
        %2358 = vmatprep.mubr.bf16.mxu0 0
        %2359 = vmatmul.mubr.bf16.gmra.mrb[0].mxu0 %v1111
        %v2360 = vpop.f32.mrb[0].mxu0
        %v2361 = vadd.f32 %v2200, %v2360
        %v2362 = vpop.f32.mrb[0].mxu0
        %v2363 = vpop.f32.mrb[0].mxu0
        %v2364 = vadd.f32 %v2203, %v2363
        %v2365 = vpop.f32.mrb[0].mxu0
        %2366 = vmatprep.mubr.bf16.mxu0 0
        %2367 = vmatmul.mubr.bf16.gmra.mrb[0].mxu0 %v1120
        %v2368 = vpop.f32.mrb[0].mxu0
        %v2369 = vadd.f32 %v2208, %v2368
        %v2370 = vpop.f32.mrb[0].mxu0
        %v2371 = vpop.f32.mrb[0].mxu0
        %v2372 = vadd.f32 %v2211, %v2371
        %v2373 = vpop.f32.mrb[0].mxu0
        %2374 = vmatprep.mubr.bf16.mxu0 0
        %2375 = vmatmul.mubr.bf16.gmra.mrb[0].mxu0 %v1129
        %v2376 = vpop.f32.mrb[0].mxu0
        %v2377 = vadd.f32 %v2216, %v2376
        %v2378 = vpop.f32.mrb[0].mxu0
        %v2379 = vpop.f32.mrb[0].mxu0
        %v2380 = vadd.f32 %v2219, %v2379
        %v2381 = vpop.f32.mrb[0].mxu0
        %2382 = vmatprep.mubr.bf16.mxu0 0
        %2383 = vmatmul.mubr.bf16.gmra.mrb[0].mxu0 %v1138
        %v2384 = vpop.f32.mrb[0].mxu0
        %v2385 = vadd.f32 %v2224, %v2384
        %v2386 = vpop.f32.mrb[0].mxu0
        %v2387 = vpop.f32.mrb[0].mxu0
        %v2388 = vadd.f32 %v2227, %v2387
        %v2389 = vpop.f32.mrb[0].mxu0
        %2390 = vmatprep.mubr.bf16.mxu0 0
        %2391 = vmatmul.mubr.bf16.gmra.mrb[0].mxu0 %v1147
        %v2392 = vpop.f32.mrb[0].mxu0
        %v2393 = vadd.f32 %v2232, %v2392
        %v2394 = vpop.f32.mrb[0].mxu0
        %v2395 = vpop.f32.mrb[0].mxu0
        %v2396 = vadd.f32 %v2235, %v2395
        %v2397 = vpop.f32.mrb[0].mxu0
        %2398 = vmatprep.mubr.bf16.mxu0 0
        %2399 = vmatmul.mubr.bf16.gmra.mrb[0].mxu0 %v1156
        %v2400 = vpop.f32.mrb[0].mxu0
        %v2401 = vadd.f32 %v2240, %v2400
        %v2402 = vpop.f32.mrb[0].mxu0
        %v2403 = vpop.f32.mrb[0].mxu0
        %v2404 = vadd.f32 %v2243, %v2403
        %v2405 = vpop.f32.mrb[0].mxu0
        %2406 = vmatprep.mubr.bf16.mxu0 0
        %2407 = vmatmul.mubr.bf16.gmra.mrb[0].mxu0 %v1165
        %v2408 = vpop.f32.mrb[0].mxu0
        %v2409 = vadd.f32 %v2248, %v2408
        %v2410 = vpop.f32.mrb[0].mxu0
        %v2411 = vpop.f32.mrb[0].mxu0
        %v2412 = vadd.f32 %v2251, %v2411
        %v2413 = vpop.f32.mrb[0].mxu0
        %2414 = vmatprep.mubr.bf16.mxu0 0
        %2415 = vmatmul.mubr.bf16.gmra.mrb[0].mxu0 %v1174
        %v2416 = vpop.f32.mrb[0].mxu0
        %v2417 = vadd.f32 %v2256, %v2416
        %v2418 = vpop.f32.mrb[0].mxu0
        %v2419 = vpop.f32.mrb[0].mxu0
        %v2420 = vadd.f32 %v2259, %v2419
        %v2421 = vpop.f32.mrb[0].mxu0
        %2422 = vmatprep.mubr.bf16.mxu0 0
        %2423 = vmatmul.mubr.bf16.gmra.mrb[0].mxu0 %v1183
        %v2424 = vpop.f32.mrb[0].mxu0
        %v2425 = vadd.f32 %v2264, %v2424
        %v2426 = vpop.f32.mrb[0].mxu0
        %v2427 = vpop.f32.mrb[0].mxu0
        %v2428 = vadd.f32 %v2267, %v2427
        %v2429 = vpop.f32.mrb[0].mxu0
        %2430 = vmatprep.mubr.bf16.mxu0 0
        %2431 = vmatmul.mubr.bf16.gmra.mrb[0].mxu0 %v1192
        %v2432 = vpop.f32.mrb[0].mxu0
        %v2433 = vadd.f32 %v2272, %v2432
        %v2434 = vpop.f32.mrb[0].mxu0
        %v2435 = vpop.f32.mrb[0].mxu0
        %v2436 = vadd.f32 %v2275, %v2435
        %v2437 = vpop.f32.mrb[0].mxu0
        %2438 = vmatprep.mubr.bf16.mxu0 0
        %2439 = vmatmul.mubr.bf16.gmra.mrb[0].mxu0 %v1201
        %v2440 = vpop.f32.mrb[0].mxu0
        %v2441 = vadd.f32 %v2280, %v2440
        %v2442 = vpop.f32.mrb[0].mxu0
        %v2443 = vpop.f32.mrb[0].mxu0
        %v2444 = vadd.f32 %v2283, %v2443
        %v2445 = vpop.f32.mrb[0].mxu0
        %2446 = vmatprep.mubr.bf16.mxu0 0
        %2447 = vmatmul.mubr.bf16.gmra.mrb[0].mxu0 %v1210
        %v2448 = vpop.f32.mrb[0].mxu0
        %v2449 = vadd.f32 %v2288, %v2448
        %v2450 = vpop.f32.mrb[0].mxu0
        %v2451 = vpop.f32.mrb[0].mxu0
        %v2452 = vadd.f32 %v2291, %v2451
        %v2453 = vpop.f32.mrb[0].mxu0
        %2454 = vmatprep.mubr.bf16.mxu0 0
        %2455 = vmatmul.mubr.bf16.gmra.mrb[0].mxu0 %v1219
        %v2456 = vpop.f32.mrb[0].mxu0
        %v2457 = vadd.f32 %v2296, %v2456
        %v2458 = vpop.f32.mrb[0].mxu0
        %v2459 = vpop.f32.mrb[0].mxu0
        %v2460 = vadd.f32 %v2299, %v2459
        %v2461 = vpop.f32.mrb[0].mxu0
        %2462 = vmatprep.mubr.bf16.mxu0 0
        %2463 = vmatmul.mubr.bf16.gmra.mrb[0].mxu0 %v1228
        %v2464 = vpop.f32.mrb[0].mxu0
        %v2465 = vadd.f32 %v2304, %v2464
        %v2466 = vpop.f32.mrb[0].mxu0
        %v2467 = vpop.f32.mrb[0].mxu0
        %v2468 = vadd.f32 %v2307, %v2467
        %v2469 = vpop.f32.mrb[0].mxu0
        %2470 = vmatprep.mubr.bf16.mxu0 0
        %2471 = vmatmul.mubr.bf16.gmra.mrb[0].mxu0 %v1237
        %v2472 = vpop.f32.mrb[0].mxu0
        %v2473 = vadd.f32 %v2312, %v2472
        %v2474 = vpop.f32.mrb[0].mxu0
        %v2475 = vpop.f32.mrb[0].mxu0
        %v2476 = vadd.f32 %v2315, %v2475
        %v2477 = vpop.f32.mrb[0].mxu0
        %2478 = vdwg.mxu0
        %v2479 = vmax.f32 %v2353, 0.0
        %v2480 = vmax.f32 %v2356, 0.0
        %v2481 = vmax.f32 %v2361, 0.0
        %v2482 = vmax.f32 %v2364, 0.0
        %v2483 = vmax.f32 %v2369, 0.0
        %v2484 = vmax.f32 %v2372, 0.0
        %v2485 = vmax.f32 %v2377, 0.0
        %v2486 = vmax.f32 %v2380, 0.0
        %v2487 = vmax.f32 %v2385, 0.0
        %v2488 = vmax.f32 %v2388, 0.0
        %v2489 = vmax.f32 %v2393, 0.0
        %v2490 = vmax.f32 %v2396, 0.0
        %v2491 = vmax.f32 %v2401, 0.0
        %v2492 = vmax.f32 %v2404, 0.0
        %v2493 = vmax.f32 %v2409, 0.0
        %v2494 = vmax.f32 %v2412, 0.0
        %v2495 = vmax.f32 %v2417, 0.0
        %v2496 = vmax.f32 %v2420, 0.0
        %v2497 = vmax.f32 %v2425, 0.0
        %v2498 = vmax.f32 %v2428, 0.0
        %v2499 = vmax.f32 %v2433, 0.0
        %v2500 = vmax.f32 %v2436, 0.0
        %v2501 = vmax.f32 %v2441, 0.0
        %v2502 = vmax.f32 %v2444, 0.0
        %v2503 = vmax.f32 %v2449, 0.0
        %v2504 = vmax.f32 %v2452, 0.0
        %v2505 = vmax.f32 %v2457, 0.0
        %v2506 = vmax.f32 %v2460, 0.0
        %v2507 = vmax.f32 %v2465, 0.0
        %v2508 = vmax.f32 %v2468, 0.0
        %v2509 = vmax.f32 %v2473, 0.0
        %v2510 = vmax.f32 %v2476, 0.0
        %s2511 = scalar_lea.vmem [#allocation3], 32
        %2512 = vst [vmem:[%s2511 + $0x8] sm:$0xff] %v2479
        %2513 = vst [vmem:[%s2511 + $0x10] sm:$0xff] %v2480
        %2514 = vst [vmem:[%s2511 + $0x28] sm:$0xff] %v2481
        %2515 = vst [vmem:[%s2511 + $0x30] sm:$0xff] %v2482
        %2516 = vst [vmem:[%s2511 + $0x48] sm:$0xff] %v2483
        %2517 = vst [vmem:[%s2511 + $0x50] sm:$0xff] %v2484
        %2518 = vst [vmem:[%s2511 + $0x68] sm:$0xff] %v2485
        %2519 = vst [vmem:[%s2511 + $0x70] sm:$0xff] %v2486
        %2520 = vst [vmem:[%s2511 + $0x88] sm:$0xff] %v2487
        %2521 = vst [vmem:[%s2511 + $0x90] sm:$0xff] %v2488
        %2522 = vst [vmem:[%s2511 + $0xa8] sm:$0xff] %v2489
        %2523 = vst [vmem:[%s2511 + $0xb0] sm:$0xff] %v2490
        %2524 = vst [vmem:[%s2511 + $0xc8] sm:$0xff] %v2491
        %2525 = vst [vmem:[%s2511 + $0xd0] sm:$0xff] %v2492
        %2526 = vst [vmem:[%s2511 + $0xe8] sm:$0xff] %v2493
        %2527 = vst [vmem:[%s2511 + $0xf0] sm:$0xff] %v2494
        %2528 = vst [vmem:[%s2511 + $0x108] sm:$0xff] %v2495
        %2529 = vst [vmem:[%s2511 + $0x110] sm:$0xff] %v2496
        %2530 = vst [vmem:[%s2511 + $0x128] sm:$0xff] %v2497
        %2531 = vst [vmem:[%s2511 + $0x130] sm:$0xff] %v2498
        %2532 = vst [vmem:[%s2511 + $0x148] sm:$0xff] %v2499
        %2533 = vst [vmem:[%s2511 + $0x150] sm:$0xff] %v2500
        %2534 = vst [vmem:[%s2511 + $0x168] sm:$0xff] %v2501
        %2535 = vst [vmem:[%s2511 + $0x170] sm:$0xff] %v2502
        %2536 = vst [vmem:[%s2511 + $0x188] sm:$0xff] %v2503
        %2537 = vst [vmem:[%s2511 + $0x190] sm:$0xff] %v2504
        %2538 = vst [vmem:[%s2511 + $0x1a8] sm:$0xff] %v2505
        %2539 = vst [vmem:[%s2511 + $0x1b0] sm:$0xff] %v2506
        %2540 = vst [vmem:[%s2511 + $0x1c8] sm:$0xff] %v2507
        %2541 = vst [vmem:[%s2511 + $0x1d0] sm:$0xff] %v2508
        %2542 = vst [vmem:[%s2511 + $0x1e8] sm:$0xff] %v2509
        %2543 = vst [vmem:[%s2511 + $0x1f0] sm:$0xff] %v2510
        %s2544 = scalar_lea.vmem [#allocation8], 576
        %v2545 = vld [vmem:[%s2544] sm:$0xf]
        %v2546 = vld [vmem:[%s2544 + $0x4] sm:$0xf]
        %v2547 = vld [vmem:[%s2544 + $0x8] sm:$0xf]
        %v2548 = vld [vmem:[%s2544 + $0xc] sm:$0xf]
        %v2549 = vld [vmem:[%s2544 + $0x10] sm:$0xf]
        %v2550 = vld [vmem:[%s2544 + $0x14] sm:$0xf]
        %v2551 = vld [vmem:[%s2544 + $0x18] sm:$0xf]
        %v2552 = vld [vmem:[%s2544 + $0x1c] sm:$0xf]
        %v2553 = vld [vmem:[%s2544 + $0x20] sm:$0xf]
        %v2554 = vld [vmem:[%s2544 + $0x24] sm:$0xf]
        %v2555 = vld [vmem:[%s2544 + $0x28] sm:$0xf]
        %v2556 = vld [vmem:[%s2544 + $0x2c] sm:$0xf]
        %v2557 = vld [vmem:[%s2544 + $0x30] sm:$0xf]
        %v2558 = vld [vmem:[%s2544 + $0x34] sm:$0xf]
        %v2559 = vld [vmem:[%s2544 + $0x38] sm:$0xf]
        %v2560 = vld [vmem:[%s2544 + $0x3c] sm:$0xf]
        %v2561 = vld [vmem:[%s2544 + $0x40] sm:$0xf]
        %v2562 = vld [vmem:[%s2544 + $0x44] sm:$0xf]
        %v2563 = vld [vmem:[%s2544 + $0x48] sm:$0xf]
        %v2564 = vld [vmem:[%s2544 + $0x4c] sm:$0xf]
        %v2565 = vld [vmem:[%s2544 + $0x50] sm:$0xf]
        %v2566 = vld [vmem:[%s2544 + $0x54] sm:$0xf]
        %v2567 = vld [vmem:[%s2544 + $0x58] sm:$0xf]
        %v2568 = vld [vmem:[%s2544 + $0x5c] sm:$0xf]
        %v2569 = vld [vmem:[%s2544 + $0x60] sm:$0xf]
        %v2570 = vld [vmem:[%s2544 + $0x64] sm:$0xf]
        %v2571 = vld [vmem:[%s2544 + $0x68] sm:$0xf]
        %v2572 = vld [vmem:[%s2544 + $0x6c] sm:$0xf]
        %v2573 = vld [vmem:[%s2544 + $0x70] sm:$0xf]
        %v2574 = vld [vmem:[%s2544 + $0x74] sm:$0xf]
        %v2575 = vld [vmem:[%s2544 + $0x78] sm:$0xf]
        %v2576 = vld [vmem:[%s2544 + $0x7c] sm:$0xf]
        %v2577 = vld [vmem:[%s2544 + $0x80] sm:$0xf]
        %v2578 = vld [vmem:[%s2544 + $0x84] sm:$0xf]
        %v2579 = vld [vmem:[%s2544 + $0x88] sm:$0xf]
        %v2580 = vld [vmem:[%s2544 + $0x8c] sm:$0xf]
        %v2581 = vld [vmem:[%s2544 + $0x90] sm:$0xf]
        %v2582 = vld [vmem:[%s2544 + $0x94] sm:$0xf]
        %v2583 = vld [vmem:[%s2544 + $0x98] sm:$0xf]
        %v2584 = vld [vmem:[%s2544 + $0x9c] sm:$0xf]
        %v2585 = vld [vmem:[%s2544 + $0xa0] sm:$0xf]
        %v2586 = vld [vmem:[%s2544 + $0xa4] sm:$0xf]
        %v2587 = vld [vmem:[%s2544 + $0xa8] sm:$0xf]
        %v2588 = vld [vmem:[%s2544 + $0xac] sm:$0xf]
        %v2589 = vld [vmem:[%s2544 + $0xb0] sm:$0xf]
        %v2590 = vld [vmem:[%s2544 + $0xb4] sm:$0xf]
        %v2591 = vld [vmem:[%s2544 + $0xb8] sm:$0xf]
        %v2592 = vld [vmem:[%s2544 + $0xbc] sm:$0xf]
        %v2593 = vld [vmem:[%s2544 + $0xc0] sm:$0xf]
        %v2594 = vld [vmem:[%s2544 + $0xc4] sm:$0xf]
        %v2595 = vld [vmem:[%s2544 + $0xc8] sm:$0xf]
        %v2596 = vld [vmem:[%s2544 + $0xcc] sm:$0xf]
        %v2597 = vld [vmem:[%s2544 + $0xd0] sm:$0xf]
        %v2598 = vld [vmem:[%s2544 + $0xd4] sm:$0xf]
        %v2599 = vld [vmem:[%s2544 + $0xd8] sm:$0xf]
        %v2600 = vld [vmem:[%s2544 + $0xdc] sm:$0xf]
        %v2601 = vld [vmem:[%s2544 + $0xe0] sm:$0xf]
        %v2602 = vld [vmem:[%s2544 + $0xe4] sm:$0xf]
        %v2603 = vld [vmem:[%s2544 + $0xe8] sm:$0xf]
        %v2604 = vld [vmem:[%s2544 + $0xec] sm:$0xf]
        %v2605 = vld [vmem:[%s2544 + $0xf0] sm:$0xf]
        %v2606 = vld [vmem:[%s2544 + $0xf4] sm:$0xf]
        %v2607 = vld [vmem:[%s2544 + $0xf8] sm:$0xf]
        %v2608 = vld [vmem:[%s2544 + $0xfc] sm:$0xf]
        %v2609 = vld [vmem:[%s2544 + $0x100] sm:$0xf]
        %v2610 = vld [vmem:[%s2544 + $0x104] sm:$0xf]
        %v2611 = vld [vmem:[%s2544 + $0x108] sm:$0xf]
        %v2612 = vld [vmem:[%s2544 + $0x10c] sm:$0xf]
        %v2613 = vld [vmem:[%s2544 + $0x110] sm:$0xf]
        %v2614 = vld [vmem:[%s2544 + $0x114] sm:$0xf]
        %v2615 = vld [vmem:[%s2544 + $0x118] sm:$0xf]
        %v2616 = vld [vmem:[%s2544 + $0x11c] sm:$0xf]
        %v2617 = vld [vmem:[%s2544 + $0x120] sm:$0xf]
        %v2618 = vld [vmem:[%s2544 + $0x124] sm:$0xf]
        %v2619 = vld [vmem:[%s2544 + $0x128] sm:$0xf]
        %v2620 = vld [vmem:[%s2544 + $0x12c] sm:$0xf]
        %v2621 = vld [vmem:[%s2544 + $0x130] sm:$0xf]
        %v2622 = vld [vmem:[%s2544 + $0x134] sm:$0xf]
        %v2623 = vld [vmem:[%s2544 + $0x138] sm:$0xf]
        %v2624 = vld [vmem:[%s2544 + $0x13c] sm:$0xf]
        %v2625 = vld [vmem:[%s2544 + $0x140] sm:$0xf]
        %v2626 = vld [vmem:[%s2544 + $0x144] sm:$0xf]
        %v2627 = vld [vmem:[%s2544 + $0x148] sm:$0xf]
        %v2628 = vld [vmem:[%s2544 + $0x14c] sm:$0xf]
        %v2629 = vld [vmem:[%s2544 + $0x150] sm:$0xf]
        %v2630 = vld [vmem:[%s2544 + $0x154] sm:$0xf]
        %v2631 = vld [vmem:[%s2544 + $0x158] sm:$0xf]
        %v2632 = vld [vmem:[%s2544 + $0x15c] sm:$0xf]
        %v2633 = vld [vmem:[%s2544 + $0x160] sm:$0xf]
        %v2634 = vld [vmem:[%s2544 + $0x164] sm:$0xf]
        %v2635 = vld [vmem:[%s2544 + $0x168] sm:$0xf]
        %v2636 = vld [vmem:[%s2544 + $0x16c] sm:$0xf]
        %v2637 = vld [vmem:[%s2544 + $0x170] sm:$0xf]
        %v2638 = vld [vmem:[%s2544 + $0x174] sm:$0xf]
        %v2639 = vld [vmem:[%s2544 + $0x178] sm:$0xf]
        %v2640 = vld [vmem:[%s2544 + $0x17c] sm:$0xf]
        %v2641 = vld [vmem:[%s2544 + $0x180] sm:$0xf]
        %v2642 = vld [vmem:[%s2544 + $0x184] sm:$0xf]
        %v2643 = vld [vmem:[%s2544 + $0x188] sm:$0xf]
        %v2644 = vld [vmem:[%s2544 + $0x18c] sm:$0xf]
        %v2645 = vld [vmem:[%s2544 + $0x190] sm:$0xf]
        %v2646 = vld [vmem:[%s2544 + $0x194] sm:$0xf]
        %v2647 = vld [vmem:[%s2544 + $0x198] sm:$0xf]
        %v2648 = vld [vmem:[%s2544 + $0x19c] sm:$0xf]
        %v2649 = vld [vmem:[%s2544 + $0x1a0] sm:$0xf]
        %v2650 = vld [vmem:[%s2544 + $0x1a4] sm:$0xf]
        %v2651 = vld [vmem:[%s2544 + $0x1a8] sm:$0xf]
        %v2652 = vld [vmem:[%s2544 + $0x1ac] sm:$0xf]
        %v2653 = vld [vmem:[%s2544 + $0x1b0] sm:$0xf]
        %v2654 = vld [vmem:[%s2544 + $0x1b4] sm:$0xf]
        %v2655 = vld [vmem:[%s2544 + $0x1b8] sm:$0xf]
        %v2656 = vld [vmem:[%s2544 + $0x1bc] sm:$0xf]
        %v2657 = vld [vmem:[%s2544 + $0x1c0] sm:$0xf]
        %v2658 = vld [vmem:[%s2544 + $0x1c4] sm:$0xf]
        %v2659 = vld [vmem:[%s2544 + $0x1c8] sm:$0xf]
        %v2660 = vld [vmem:[%s2544 + $0x1cc] sm:$0xf]
        %v2661 = vld [vmem:[%s2544 + $0x1d0] sm:$0xf]
        %v2662 = vld [vmem:[%s2544 + $0x1d4] sm:$0xf]
        %v2663 = vld [vmem:[%s2544 + $0x1d8] sm:$0xf]
        %v2664 = vld [vmem:[%s2544 + $0x1dc] sm:$0xf]
        %v2665 = vld [vmem:[%s2544 + $0x1e0] sm:$0xf]
        %v2666 = vld [vmem:[%s2544 + $0x1e4] sm:$0xf]
        %v2667 = vld [vmem:[%s2544 + $0x1e8] sm:$0xf]
        %v2668 = vld [vmem:[%s2544 + $0x1ec] sm:$0xf]
        %v2669 = vld [vmem:[%s2544 + $0x1f0] sm:$0xf]
        %v2670 = vld [vmem:[%s2544 + $0x1f4] sm:$0xf]
        %v2671 = vld [vmem:[%s2544 + $0x1f8] sm:$0xf]
        %v2672 = vld [vmem:[%s2544 + $0x1fc] sm:$0xf]
        %v2673 = vld [vmem:[%s2544 + $0x200] sm:$0xf]
        %v2674 = vld [vmem:[%s2544 + $0x204] sm:$0xf]
        %v2675 = vld [vmem:[%s2544 + $0x208] sm:$0xf]
        %v2676 = vld [vmem:[%s2544 + $0x20c] sm:$0xf]
        %v2677 = vld [vmem:[%s2544 + $0x210] sm:$0xf]
        %v2678 = vld [vmem:[%s2544 + $0x214] sm:$0xf]
        %v2679 = vld [vmem:[%s2544 + $0x218] sm:$0xf]
        %v2680 = vld [vmem:[%s2544 + $0x21c] sm:$0xf]
        %v2681 = vld [vmem:[%s2544 + $0x220] sm:$0xf]
        %v2682 = vld [vmem:[%s2544 + $0x224] sm:$0xf]
        %v2683 = vld [vmem:[%s2544 + $0x228] sm:$0xf]
        %v2684 = vld [vmem:[%s2544 + $0x22c] sm:$0xf]
        %v2685 = vld [vmem:[%s2544 + $0x230] sm:$0xf]
        %v2686 = vld [vmem:[%s2544 + $0x234] sm:$0xf]
        %v2687 = vld [vmem:[%s2544 + $0x238] sm:$0xf]
        %v2688 = vld [vmem:[%s2544 + $0x23c] sm:$0xf]
        %v2689 = vld [vmem:[#allocation10 + $0x1] sm:$0x1]
        %v2690 = vld [vmem:[#allocation3 + $0x7] sm:$0xff]
        %v2691 = vld [vmem:[#allocation3 + $0xf] sm:$0xff]
        %v2692 = vld [vmem:[#allocation3 + $0x27] sm:$0xff]
        %v2693 = vld [vmem:[#allocation3 + $0x2f] sm:$0xff]
        %v2694 = vld [vmem:[#allocation3 + $0x47] sm:$0xff]
        %v2695 = vld [vmem:[#allocation3 + $0x4f] sm:$0xff]
        %v2696 = vld [vmem:[#allocation3 + $0x67] sm:$0xff]
        %v2697 = vld [vmem:[#allocation3 + $0x6f] sm:$0xff]
        %v2698 = vld [vmem:[#allocation3 + $0x87] sm:$0xff]
        %v2699 = vld [vmem:[#allocation3 + $0x8f] sm:$0xff]
        %v2700 = vld [vmem:[#allocation3 + $0xa7] sm:$0xff]
        %v2701 = vld [vmem:[#allocation3 + $0xaf] sm:$0xff]
        %v2702 = vld [vmem:[#allocation3 + $0xc7] sm:$0xff]
        %v2703 = vld [vmem:[#allocation3 + $0xcf] sm:$0xff]
        %v2704 = vld [vmem:[#allocation3 + $0xe7] sm:$0xff]
        %v2705 = vld [vmem:[#allocation3 + $0xef] sm:$0xff]
        %v2706 = vld [vmem:[#allocation3 + $0x107] sm:$0xff]
        %v2707 = vld [vmem:[#allocation3 + $0x10f] sm:$0xff]
        %v2708 = vld [vmem:[#allocation3 + $0x127] sm:$0xff]
        %v2709 = vld [vmem:[#allocation3 + $0x12f] sm:$0xff]
        %v2710 = vld [vmem:[#allocation3 + $0x147] sm:$0xff]
        %v2711 = vld [vmem:[#allocation3 + $0x14f] sm:$0xff]
        %v2712 = vld [vmem:[#allocation3 + $0x167] sm:$0xff]
        %v2713 = vld [vmem:[#allocation3 + $0x16f] sm:$0xff]
        %v2714 = vld [vmem:[#allocation3 + $0x187] sm:$0xff]
        %v2715 = vld [vmem:[#allocation3 + $0x18f] sm:$0xff]
        %v2716 = vld [vmem:[#allocation3 + $0x1a7] sm:$0xff]
        %v2717 = vld [vmem:[#allocation3 + $0x1af] sm:$0xff]
        %v2718 = vld [vmem:[#allocation3 + $0x1c7] sm:$0xff]
        %v2719 = vld [vmem:[#allocation3 + $0x1cf] sm:$0xff]
        %v2720 = vld [vmem:[#allocation3 + $0x1e7] sm:$0xff]
        %v2721 = vld [vmem:[#allocation3 + $0x1ef] sm:$0xff]
        %v2722 = vpack.c.bf16 %v2691, %v2690
        %v2723 = vpack.c.bf16 %v2693, %v2692
        %v2724 = vpack.c.bf16 %v2695, %v2694
        %v2725 = vpack.c.bf16 %v2697, %v2696
        %v2726 = vpack.c.bf16 %v2699, %v2698
        %v2727 = vpack.c.bf16 %v2701, %v2700
        %v2728 = vpack.c.bf16 %v2703, %v2702
        %v2729 = vpack.c.bf16 %v2705, %v2704
        %v2730 = vpack.c.bf16 %v2707, %v2706
        %v2731 = vpack.c.bf16 %v2709, %v2708
        %v2732 = vpack.c.bf16 %v2711, %v2710
        %v2733 = vpack.c.bf16 %v2713, %v2712
        %v2734 = vpack.c.bf16 %v2715, %v2714
        %v2735 = vpack.c.bf16 %v2717, %v2716
        %v2736 = vpack.c.bf16 %v2719, %v2718
        %v2737 = vpack.c.bf16 %v2721, %v2720
        %2738 = vst [vmem:[#allocation4] sm:$0xff] %v2722
        %2739 = vst [vmem:[#allocation4 + $0x48] sm:$0xff] %v2723
        %2740 = vst [vmem:[#allocation4 + $0x90] sm:$0xff] %v2724
        %2741 = vst [vmem:[#allocation4 + $0xd8] sm:$0xff] %v2725
        %2742 = vst [vmem:[#allocation4 + $0x120] sm:$0xff] %v2726
        %2743 = vst [vmem:[#allocation4 + $0x168] sm:$0xff] %v2727
        %2744 = vst [vmem:[#allocation4 + $0x1b0] sm:$0xff] %v2728
        %2745 = vst [vmem:[#allocation4 + $0x1f8] sm:$0xff] %v2729
        %2746 = vst [vmem:[#allocation4 + $0x240] sm:$0xff] %v2730
        %2747 = vst [vmem:[#allocation4 + $0x288] sm:$0xff] %v2731
        %2748 = vst [vmem:[#allocation4 + $0x2d0] sm:$0xff] %v2732
        %2749 = vst [vmem:[#allocation4 + $0x318] sm:$0xff] %v2733
        %2750 = vst [vmem:[#allocation4 + $0x360] sm:$0xff] %v2734
        %2751 = vst [vmem:[#allocation4 + $0x3a8] sm:$0xff] %v2735
        %2752 = vst [vmem:[#allocation4 + $0x3f0] sm:$0xff] %v2736
        %2753 = vst [vmem:[#allocation4 + $0x438] sm:$0xff] %v2737
        %v2754 = vld [vmem:[#allocation3 + $0x8] sm:$0xff]
        %v2755 = vld [vmem:[#allocation3 + $0x10] sm:$0xff]
        %v2756 = vld [vmem:[#allocation3 + $0x28] sm:$0xff]
        %v2757 = vld [vmem:[#allocation3 + $0x30] sm:$0xff]
        %v2758 = vld [vmem:[#allocation3 + $0x48] sm:$0xff]
        %v2759 = vld [vmem:[#allocation3 + $0x50] sm:$0xff]
        %v2760 = vld [vmem:[#allocation3 + $0x68] sm:$0xff]
        %v2761 = vld [vmem:[#allocation3 + $0x70] sm:$0xff]
        %v2762 = vld [vmem:[#allocation3 + $0x88] sm:$0xff]
        %v2763 = vld [vmem:[#allocation3 + $0x90] sm:$0xff]
        %v2764 = vld [vmem:[#allocation3 + $0xa8] sm:$0xff]
        %v2765 = vld [vmem:[#allocation3 + $0xb0] sm:$0xff]
        %v2766 = vld [vmem:[#allocation3 + $0xc8] sm:$0xff]
        %v2767 = vld [vmem:[#allocation3 + $0xd0] sm:$0xff]
        %v2768 = vld [vmem:[#allocation3 + $0xe8] sm:$0xff]
        %v2769 = vld [vmem:[#allocation3 + $0xf0] sm:$0xff]
        %v2770 = vld [vmem:[#allocation3 + $0x108] sm:$0xff]
        %v2771 = vld [vmem:[#allocation3 + $0x110] sm:$0xff]
        %v2772 = vld [vmem:[#allocation3 + $0x128] sm:$0xff]
        %v2773 = vld [vmem:[#allocation3 + $0x130] sm:$0xff]
        %v2774 = vld [vmem:[#allocation3 + $0x148] sm:$0xff]
        %v2775 = vld [vmem:[#allocation3 + $0x150] sm:$0xff]
        %v2776 = vld [vmem:[#allocation3 + $0x168] sm:$0xff]
        %v2777 = vld [vmem:[#allocation3 + $0x170] sm:$0xff]
        %v2778 = vld [vmem:[#allocation3 + $0x188] sm:$0xff]
        %v2779 = vld [vmem:[#allocation3 + $0x190] sm:$0xff]
        %v2780 = vld [vmem:[#allocation3 + $0x1a8] sm:$0xff]
        %v2781 = vld [vmem:[#allocation3 + $0x1b0] sm:$0xff]
        %v2782 = vld [vmem:[#allocation3 + $0x1c8] sm:$0xff]
        %v2783 = vld [vmem:[#allocation3 + $0x1d0] sm:$0xff]
        %v2784 = vld [vmem:[#allocation3 + $0x1e8] sm:$0xff]
        %v2785 = vld [vmem:[#allocation3 + $0x1f0] sm:$0xff]
        %v2786 = vpack.c.bf16 %v2755, %v2754
        %v2787 = vpack.c.bf16 %v2757, %v2756
        %v2788 = vpack.c.bf16 %v2759, %v2758
        %v2789 = vpack.c.bf16 %v2761, %v2760
        %v2790 = vpack.c.bf16 %v2763, %v2762
        %v2791 = vpack.c.bf16 %v2765, %v2764
        %v2792 = vpack.c.bf16 %v2767, %v2766
        %v2793 = vpack.c.bf16 %v2769, %v2768
        %v2794 = vpack.c.bf16 %v2771, %v2770
        %v2795 = vpack.c.bf16 %v2773, %v2772
        %v2796 = vpack.c.bf16 %v2775, %v2774
        %v2797 = vpack.c.bf16 %v2777, %v2776
        %v2798 = vpack.c.bf16 %v2779, %v2778
        %v2799 = vpack.c.bf16 %v2781, %v2780
        %v2800 = vpack.c.bf16 %v2783, %v2782
        %v2801 = vpack.c.bf16 %v2785, %v2784
        %2802 = vst [vmem:[#allocation4 + $0x8] sm:$0xff] %v2786
        %2803 = vst [vmem:[#allocation4 + $0x50] sm:$0xff] %v2787
        %2804 = vst [vmem:[#allocation4 + $0x98] sm:$0xff] %v2788
        %2805 = vst [vmem:[#allocation4 + $0xe0] sm:$0xff] %v2789
        %2806 = vst [vmem:[#allocation4 + $0x128] sm:$0xff] %v2790
        %2807 = vst [vmem:[#allocation4 + $0x170] sm:$0xff] %v2791
        %2808 = vst [vmem:[#allocation4 + $0x1b8] sm:$0xff] %v2792
        %2809 = vst [vmem:[#allocation4 + $0x200] sm:$0xff] %v2793
        %2810 = vst [vmem:[#allocation4 + $0x248] sm:$0xff] %v2794
        %2811 = vst [vmem:[#allocation4 + $0x290] sm:$0xff] %v2795
        %2812 = vst [vmem:[#allocation4 + $0x2d8] sm:$0xff] %v2796
        %2813 = vst [vmem:[#allocation4 + $0x320] sm:$0xff] %v2797
        %2814 = vst [vmem:[#allocation4 + $0x368] sm:$0xff] %v2798
        %2815 = vst [vmem:[#allocation4 + $0x3b0] sm:$0xff] %v2799
        %2816 = vst [vmem:[#allocation4 + $0x3f8] sm:$0xff] %v2800
        %2817 = vst [vmem:[#allocation4 + $0x440] sm:$0xff] %v2801
        %v2818 = vld [vmem:[#allocation3 + $0x9] sm:$0xff]
        %v2819 = vld [vmem:[#allocation3 + $0x11] sm:$0xff]
        %v2820 = vld [vmem:[#allocation3 + $0x29] sm:$0xff]
        %v2821 = vld [vmem:[#allocation3 + $0x31] sm:$0xff]
        %v2822 = vld [vmem:[#allocation3 + $0x49] sm:$0xff]
        %v2823 = vld [vmem:[#allocation3 + $0x51] sm:$0xff]
        %v2824 = vld [vmem:[#allocation3 + $0x69] sm:$0xff]
        %v2825 = vld [vmem:[#allocation3 + $0x71] sm:$0xff]
        %v2826 = vld [vmem:[#allocation3 + $0x89] sm:$0xff]
        %v2827 = vld [vmem:[#allocation3 + $0x91] sm:$0xff]
        %v2828 = vld [vmem:[#allocation3 + $0xa9] sm:$0xff]
        %v2829 = vld [vmem:[#allocation3 + $0xb1] sm:$0xff]
        %v2830 = vld [vmem:[#allocation3 + $0xc9] sm:$0xff]
        %v2831 = vld [vmem:[#allocation3 + $0xd1] sm:$0xff]
        %v2832 = vld [vmem:[#allocation3 + $0xe9] sm:$0xff]
        %v2833 = vld [vmem:[#allocation3 + $0xf1] sm:$0xff]
        %v2834 = vld [vmem:[#allocation3 + $0x109] sm:$0xff]
        %v2835 = vld [vmem:[#allocation3 + $0x111] sm:$0xff]
        %v2836 = vld [vmem:[#allocation3 + $0x129] sm:$0xff]
        %v2837 = vld [vmem:[#allocation3 + $0x131] sm:$0xff]
        %v2838 = vld [vmem:[#allocation3 + $0x149] sm:$0xff]
        %v2839 = vld [vmem:[#allocation3 + $0x151] sm:$0xff]
        %v2840 = vld [vmem:[#allocation3 + $0x169] sm:$0xff]
        %v2841 = vld [vmem:[#allocation3 + $0x171] sm:$0xff]
        %v2842 = vld [vmem:[#allocation3 + $0x189] sm:$0xff]
        %v2843 = vld [vmem:[#allocation3 + $0x191] sm:$0xff]
        %v2844 = vld [vmem:[#allocation3 + $0x1a9] sm:$0xff]
        %v2845 = vld [vmem:[#allocation3 + $0x1b1] sm:$0xff]
        %v2846 = vld [vmem:[#allocation3 + $0x1c9] sm:$0xff]
        %v2847 = vld [vmem:[#allocation3 + $0x1d1] sm:$0xff]
        %v2848 = vld [vmem:[#allocation3 + $0x1e9] sm:$0xff]
        %v2849 = vld [vmem:[#allocation3 + $0x1f1] sm:$0xff]
        %v2850 = vpack.c.bf16 %v2819, %v2818
        %v2851 = vpack.c.bf16 %v2821, %v2820
        %v2852 = vpack.c.bf16 %v2823, %v2822
        %v2853 = vpack.c.bf16 %v2825, %v2824
        %v2854 = vpack.c.bf16 %v2827, %v2826
        %v2855 = vpack.c.bf16 %v2829, %v2828
        %v2856 = vpack.c.bf16 %v2831, %v2830
        %v2857 = vpack.c.bf16 %v2833, %v2832
        %v2858 = vpack.c.bf16 %v2835, %v2834
        %v2859 = vpack.c.bf16 %v2837, %v2836
        %v2860 = vpack.c.bf16 %v2839, %v2838
        %v2861 = vpack.c.bf16 %v2841, %v2840
        %v2862 = vpack.c.bf16 %v2843, %v2842
        %v2863 = vpack.c.bf16 %v2845, %v2844
        %v2864 = vpack.c.bf16 %v2847, %v2846
        %v2865 = vpack.c.bf16 %v2849, %v2848
        %2866 = vst [vmem:[#allocation4 + $0x10] sm:$0xff] %v2850
        %2867 = vst [vmem:[#allocation4 + $0x58] sm:$0xff] %v2851
        %2868 = vst [vmem:[#allocation4 + $0xa0] sm:$0xff] %v2852
        %2869 = vst [vmem:[#allocation4 + $0xe8] sm:$0xff] %v2853
        %2870 = vst [vmem:[#allocation4 + $0x130] sm:$0xff] %v2854
        %2871 = vst [vmem:[#allocation4 + $0x178] sm:$0xff] %v2855
        %2872 = vst [vmem:[#allocation4 + $0x1c0] sm:$0xff] %v2856
        %2873 = vst [vmem:[#allocation4 + $0x208] sm:$0xff] %v2857
        %2874 = vst [vmem:[#allocation4 + $0x250] sm:$0xff] %v2858
        %2875 = vst [vmem:[#allocation4 + $0x298] sm:$0xff] %v2859
        %2876 = vst [vmem:[#allocation4 + $0x2e0] sm:$0xff] %v2860
        %2877 = vst [vmem:[#allocation4 + $0x328] sm:$0xff] %v2861
        %2878 = vst [vmem:[#allocation4 + $0x370] sm:$0xff] %v2862
        %2879 = vst [vmem:[#allocation4 + $0x3b8] sm:$0xff] %v2863
        %2880 = vst [vmem:[#allocation4 + $0x400] sm:$0xff] %v2864
        %2881 = vst [vmem:[#allocation4 + $0x448] sm:$0xff] %v2865
        %v2882 = vld [vmem:[%s2511 + $0x7] sm:$0xff]
        %v2883 = vld [vmem:[%s2511 + $0xf] sm:$0xff]
        %v2884 = vld [vmem:[%s2511 + $0x27] sm:$0xff]
        %v2885 = vld [vmem:[%s2511 + $0x2f] sm:$0xff]
        %v2886 = vld [vmem:[%s2511 + $0x47] sm:$0xff]
        %v2887 = vld [vmem:[%s2511 + $0x4f] sm:$0xff]
        %v2888 = vld [vmem:[%s2511 + $0x67] sm:$0xff]
        %v2889 = vld [vmem:[%s2511 + $0x6f] sm:$0xff]
        %v2890 = vld [vmem:[%s2511 + $0x87] sm:$0xff]
        %v2891 = vld [vmem:[%s2511 + $0x8f] sm:$0xff]
        %v2892 = vld [vmem:[%s2511 + $0xa7] sm:$0xff]
        %v2893 = vld [vmem:[%s2511 + $0xaf] sm:$0xff]
        %v2894 = vld [vmem:[%s2511 + $0xc7] sm:$0xff]
        %v2895 = vld [vmem:[%s2511 + $0xcf] sm:$0xff]
        %v2896 = vld [vmem:[%s2511 + $0xe7] sm:$0xff]
        %v2897 = vld [vmem:[%s2511 + $0xef] sm:$0xff]
        %v2898 = vld [vmem:[%s2511 + $0x107] sm:$0xff]
        %v2899 = vld [vmem:[%s2511 + $0x10f] sm:$0xff]
        %v2900 = vld [vmem:[%s2511 + $0x127] sm:$0xff]
        %v2901 = vld [vmem:[%s2511 + $0x12f] sm:$0xff]
        %v2902 = vld [vmem:[%s2511 + $0x147] sm:$0xff]
        %v2903 = vld [vmem:[%s2511 + $0x14f] sm:$0xff]
        %v2904 = vld [vmem:[%s2511 + $0x167] sm:$0xff]
        %v2905 = vld [vmem:[%s2511 + $0x16f] sm:$0xff]
        %v2906 = vld [vmem:[%s2511 + $0x187] sm:$0xff]
        %v2907 = vld [vmem:[%s2511 + $0x18f] sm:$0xff]
        %v2908 = vld [vmem:[%s2511 + $0x1a7] sm:$0xff]
        %v2909 = vld [vmem:[%s2511 + $0x1af] sm:$0xff]
        %v2910 = vld [vmem:[%s2511 + $0x1c7] sm:$0xff]
        %v2911 = vld [vmem:[%s2511 + $0x1cf] sm:$0xff]
        %v2912 = vld [vmem:[%s2511 + $0x1e7] sm:$0xff]
        %v2913 = vld [vmem:[%s2511 + $0x1ef] sm:$0xff]
        %v2914 = vpack.c.bf16 %v2883, %v2882
        %v2915 = vpack.c.bf16 %v2885, %v2884
        %v2916 = vpack.c.bf16 %v2887, %v2886
        %v2917 = vpack.c.bf16 %v2889, %v2888
        %v2918 = vpack.c.bf16 %v2891, %v2890
        %v2919 = vpack.c.bf16 %v2893, %v2892
        %v2920 = vpack.c.bf16 %v2895, %v2894
        %v2921 = vpack.c.bf16 %v2897, %v2896
        %v2922 = vpack.c.bf16 %v2899, %v2898
        %v2923 = vpack.c.bf16 %v2901, %v2900
        %v2924 = vpack.c.bf16 %v2903, %v2902
        %v2925 = vpack.c.bf16 %v2905, %v2904
        %v2926 = vpack.c.bf16 %v2907, %v2906
        %v2927 = vpack.c.bf16 %v2909, %v2908
        %v2928 = vpack.c.bf16 %v2911, %v2910
        %v2929 = vpack.c.bf16 %v2913, %v2912
        %2930 = vst [vmem:[#allocation4 + $0x18] sm:$0xff] %v2914
        %2931 = vst [vmem:[#allocation4 + $0x60] sm:$0xff] %v2915
        %2932 = vst [vmem:[#allocation4 + $0xa8] sm:$0xff] %v2916
        %2933 = vst [vmem:[#allocation4 + $0xf0] sm:$0xff] %v2917
        %2934 = vst [vmem:[#allocation4 + $0x138] sm:$0xff] %v2918
        %2935 = vst [vmem:[#allocation4 + $0x180] sm:$0xff] %v2919
        %2936 = vst [vmem:[#allocation4 + $0x1c8] sm:$0xff] %v2920
        %2937 = vst [vmem:[#allocation4 + $0x210] sm:$0xff] %v2921
        %2938 = vst [vmem:[#allocation4 + $0x258] sm:$0xff] %v2922
        %2939 = vst [vmem:[#allocation4 + $0x2a0] sm:$0xff] %v2923
        %2940 = vst [vmem:[#allocation4 + $0x2e8] sm:$0xff] %v2924
        %2941 = vst [vmem:[#allocation4 + $0x330] sm:$0xff] %v2925
        %2942 = vst [vmem:[#allocation4 + $0x378] sm:$0xff] %v2926
        %2943 = vst [vmem:[#allocation4 + $0x3c0] sm:$0xff] %v2927
        %2944 = vst [vmem:[#allocation4 + $0x408] sm:$0xff] %v2928
        %2945 = vst [vmem:[#allocation4 + $0x450] sm:$0xff] %v2929
        %v2946 = vld [vmem:[%s2511 + $0x8] sm:$0xff]
        %v2947 = vld [vmem:[%s2511 + $0x10] sm:$0xff]
        %v2948 = vld [vmem:[%s2511 + $0x28] sm:$0xff]
        %v2949 = vld [vmem:[%s2511 + $0x30] sm:$0xff]
        %v2950 = vld [vmem:[%s2511 + $0x48] sm:$0xff]
        %v2951 = vld [vmem:[%s2511 + $0x50] sm:$0xff]
        %v2952 = vld [vmem:[%s2511 + $0x68] sm:$0xff]
        %v2953 = vld [vmem:[%s2511 + $0x70] sm:$0xff]
        %v2954 = vld [vmem:[%s2511 + $0x88] sm:$0xff]
        %v2955 = vld [vmem:[%s2511 + $0x90] sm:$0xff]
        %v2956 = vld [vmem:[%s2511 + $0xa8] sm:$0xff]
        %v2957 = vld [vmem:[%s2511 + $0xb0] sm:$0xff]
        %v2958 = vld [vmem:[%s2511 + $0xc8] sm:$0xff]
        %v2959 = vld [vmem:[%s2511 + $0xd0] sm:$0xff]
        %v2960 = vld [vmem:[%s2511 + $0xe8] sm:$0xff]
        %v2961 = vld [vmem:[%s2511 + $0xf0] sm:$0xff]
        %v2962 = vld [vmem:[%s2511 + $0x108] sm:$0xff]
        %v2963 = vld [vmem:[%s2511 + $0x110] sm:$0xff]
        %v2964 = vld [vmem:[%s2511 + $0x128] sm:$0xff]
        %v2965 = vld [vmem:[%s2511 + $0x130] sm:$0xff]
        %v2966 = vld [vmem:[%s2511 + $0x148] sm:$0xff]
        %v2967 = vld [vmem:[%s2511 + $0x150] sm:$0xff]
        %v2968 = vld [vmem:[%s2511 + $0x168] sm:$0xff]
        %v2969 = vld [vmem:[%s2511 + $0x170] sm:$0xff]
        %v2970 = vld [vmem:[%s2511 + $0x188] sm:$0xff]
        %v2971 = vld [vmem:[%s2511 + $0x190] sm:$0xff]
        %v2972 = vld [vmem:[%s2511 + $0x1a8] sm:$0xff]
        %v2973 = vld [vmem:[%s2511 + $0x1b0] sm:$0xff]
        %v2974 = vld [vmem:[%s2511 + $0x1c8] sm:$0xff]
        %v2975 = vld [vmem:[%s2511 + $0x1d0] sm:$0xff]
        %v2976 = vld [vmem:[%s2511 + $0x1e8] sm:$0xff]
        %v2977 = vld [vmem:[%s2511 + $0x1f0] sm:$0xff]
        %v2978 = vpack.c.bf16 %v2947, %v2946
        %v2979 = vpack.c.bf16 %v2949, %v2948
        %v2980 = vpack.c.bf16 %v2951, %v2950
        %v2981 = vpack.c.bf16 %v2953, %v2952
        %v2982 = vpack.c.bf16 %v2955, %v2954
        %v2983 = vpack.c.bf16 %v2957, %v2956
        %v2984 = vpack.c.bf16 %v2959, %v2958
        %v2985 = vpack.c.bf16 %v2961, %v2960
        %v2986 = vpack.c.bf16 %v2963, %v2962
        %v2987 = vpack.c.bf16 %v2965, %v2964
        %v2988 = vpack.c.bf16 %v2967, %v2966
        %v2989 = vpack.c.bf16 %v2969, %v2968
        %v2990 = vpack.c.bf16 %v2971, %v2970
        %v2991 = vpack.c.bf16 %v2973, %v2972
        %v2992 = vpack.c.bf16 %v2975, %v2974
        %v2993 = vpack.c.bf16 %v2977, %v2976
        %2994 = vst [vmem:[#allocation4 + $0x20] sm:$0xff] %v2978
        %2995 = vst [vmem:[#allocation4 + $0x68] sm:$0xff] %v2979
        %2996 = vst [vmem:[#allocation4 + $0xb0] sm:$0xff] %v2980
        %2997 = vst [vmem:[#allocation4 + $0xf8] sm:$0xff] %v2981
        %2998 = vst [vmem:[#allocation4 + $0x140] sm:$0xff] %v2982
        %2999 = vst [vmem:[#allocation4 + $0x188] sm:$0xff] %v2983
        %3000 = vst [vmem:[#allocation4 + $0x1d0] sm:$0xff] %v2984
        %3001 = vst [vmem:[#allocation4 + $0x218] sm:$0xff] %v2985
        %3002 = vst [vmem:[#allocation4 + $0x260] sm:$0xff] %v2986
        %3003 = vst [vmem:[#allocation4 + $0x2a8] sm:$0xff] %v2987
        %3004 = vst [vmem:[#allocation4 + $0x2f0] sm:$0xff] %v2988
        %3005 = vst [vmem:[#allocation4 + $0x338] sm:$0xff] %v2989
        %3006 = vst [vmem:[#allocation4 + $0x380] sm:$0xff] %v2990
        %3007 = vst [vmem:[#allocation4 + $0x3c8] sm:$0xff] %v2991
        %3008 = vst [vmem:[#allocation4 + $0x410] sm:$0xff] %v2992
        %3009 = vst [vmem:[#allocation4 + $0x458] sm:$0xff] %v2993
        %v3010 = vld [vmem:[%s2511 + $0x9] sm:$0xff]
        %v3011 = vld [vmem:[%s2511 + $0x11] sm:$0xff]
        %v3012 = vld [vmem:[%s2511 + $0x29] sm:$0xff]
        %v3013 = vld [vmem:[%s2511 + $0x31] sm:$0xff]
        %v3014 = vld [vmem:[%s2511 + $0x49] sm:$0xff]
        %v3015 = vld [vmem:[%s2511 + $0x51] sm:$0xff]
        %v3016 = vld [vmem:[%s2511 + $0x69] sm:$0xff]
        %v3017 = vld [vmem:[%s2511 + $0x71] sm:$0xff]
        %v3018 = vld [vmem:[%s2511 + $0x89] sm:$0xff]
        %v3019 = vld [vmem:[%s2511 + $0x91] sm:$0xff]
        %v3020 = vld [vmem:[%s2511 + $0xa9] sm:$0xff]
        %v3021 = vld [vmem:[%s2511 + $0xb1] sm:$0xff]
        %v3022 = vld [vmem:[%s2511 + $0xc9] sm:$0xff]
        %v3023 = vld [vmem:[%s2511 + $0xd1] sm:$0xff]
        %v3024 = vld [vmem:[%s2511 + $0xe9] sm:$0xff]
        %v3025 = vld [vmem:[%s2511 + $0xf1] sm:$0xff]
        %v3026 = vld [vmem:[%s2511 + $0x109] sm:$0xff]
        %v3027 = vld [vmem:[%s2511 + $0x111] sm:$0xff]
        %v3028 = vld [vmem:[%s2511 + $0x129] sm:$0xff]
        %v3029 = vld [vmem:[%s2511 + $0x131] sm:$0xff]
        %v3030 = vld [vmem:[%s2511 + $0x149] sm:$0xff]
        %v3031 = vld [vmem:[%s2511 + $0x151] sm:$0xff]
        %v3032 = vld [vmem:[%s2511 + $0x169] sm:$0xff]
        %v3033 = vld [vmem:[%s2511 + $0x171] sm:$0xff]
        %v3034 = vld [vmem:[%s2511 + $0x189] sm:$0xff]
        %v3035 = vld [vmem:[%s2511 + $0x191] sm:$0xff]
        %v3036 = vld [vmem:[%s2511 + $0x1a9] sm:$0xff]
        %v3037 = vld [vmem:[%s2511 + $0x1b1] sm:$0xff]
        %v3038 = vld [vmem:[%s2511 + $0x1c9] sm:$0xff]
        %v3039 = vld [vmem:[%s2511 + $0x1d1] sm:$0xff]
        %v3040 = vld [vmem:[%s2511 + $0x1e9] sm:$0xff]
        %v3041 = vld [vmem:[%s2511 + $0x1f1] sm:$0xff]
        %v3042 = vpack.c.bf16 %v3011, %v3010
        %v3043 = vpack.c.bf16 %v3013, %v3012
        %v3044 = vpack.c.bf16 %v3015, %v3014
        %v3045 = vpack.c.bf16 %v3017, %v3016
        %v3046 = vpack.c.bf16 %v3019, %v3018
        %v3047 = vpack.c.bf16 %v3021, %v3020
        %v3048 = vpack.c.bf16 %v3023, %v3022
        %v3049 = vpack.c.bf16 %v3025, %v3024
        %v3050 = vpack.c.bf16 %v3027, %v3026
        %v3051 = vpack.c.bf16 %v3029, %v3028
        %v3052 = vpack.c.bf16 %v3031, %v3030
        %v3053 = vpack.c.bf16 %v3033, %v3032
        %v3054 = vpack.c.bf16 %v3035, %v3034
        %v3055 = vpack.c.bf16 %v3037, %v3036
        %v3056 = vpack.c.bf16 %v3039, %v3038
        %v3057 = vpack.c.bf16 %v3041, %v3040
        %3058 = vst [vmem:[#allocation4 + $0x28] sm:$0xff] %v3042
        %3059 = vst [vmem:[#allocation4 + $0x70] sm:$0xff] %v3043
        %3060 = vst [vmem:[#allocation4 + $0xb8] sm:$0xff] %v3044
        %3061 = vst [vmem:[#allocation4 + $0x100] sm:$0xff] %v3045
        %3062 = vst [vmem:[#allocation4 + $0x148] sm:$0xff] %v3046
        %3063 = vst [vmem:[#allocation4 + $0x190] sm:$0xff] %v3047
        %3064 = vst [vmem:[#allocation4 + $0x1d8] sm:$0xff] %v3048
        %3065 = vst [vmem:[#allocation4 + $0x220] sm:$0xff] %v3049
        %3066 = vst [vmem:[#allocation4 + $0x268] sm:$0xff] %v3050
        %3067 = vst [vmem:[#allocation4 + $0x2b0] sm:$0xff] %v3051
        %3068 = vst [vmem:[#allocation4 + $0x2f8] sm:$0xff] %v3052
        %3069 = vst [vmem:[#allocation4 + $0x340] sm:$0xff] %v3053
        %3070 = vst [vmem:[#allocation4 + $0x388] sm:$0xff] %v3054
        %3071 = vst [vmem:[#allocation4 + $0x3d0] sm:$0xff] %v3055
        %3072 = vst [vmem:[#allocation4 + $0x418] sm:$0xff] %v3056
        %3073 = vst [vmem:[#allocation4 + $0x460] sm:$0xff] %v3057
        %s3074 = scalar_lea.vmem [#allocation3], 64
        %v3075 = vld [vmem:[%s3074 + $0x7] sm:$0xff]
        %v3076 = vld [vmem:[%s3074 + $0xf] sm:$0xff]
        %v3077 = vld [vmem:[%s3074 + $0x27] sm:$0xff]
        %v3078 = vld [vmem:[%s3074 + $0x2f] sm:$0xff]
        %v3079 = vld [vmem:[%s3074 + $0x47] sm:$0xff]
        %v3080 = vld [vmem:[%s3074 + $0x4f] sm:$0xff]
        %v3081 = vld [vmem:[%s3074 + $0x67] sm:$0xff]
        %v3082 = vld [vmem:[%s3074 + $0x6f] sm:$0xff]
        %v3083 = vld [vmem:[%s3074 + $0x87] sm:$0xff]
        %v3084 = vld [vmem:[%s3074 + $0x8f] sm:$0xff]
        %v3085 = vld [vmem:[%s3074 + $0xa7] sm:$0xff]
        %v3086 = vld [vmem:[%s3074 + $0xaf] sm:$0xff]
        %v3087 = vld [vmem:[%s3074 + $0xc7] sm:$0xff]
        %v3088 = vld [vmem:[%s3074 + $0xcf] sm:$0xff]
        %v3089 = vld [vmem:[%s3074 + $0xe7] sm:$0xff]
        %v3090 = vld [vmem:[%s3074 + $0xef] sm:$0xff]
        %v3091 = vld [vmem:[%s3074 + $0x107] sm:$0xff]
        %v3092 = vld [vmem:[%s3074 + $0x10f] sm:$0xff]
        %v3093 = vld [vmem:[%s3074 + $0x127] sm:$0xff]
        %v3094 = vld [vmem:[%s3074 + $0x12f] sm:$0xff]
        %v3095 = vld [vmem:[%s3074 + $0x147] sm:$0xff]
        %v3096 = vld [vmem:[%s3074 + $0x14f] sm:$0xff]
        %v3097 = vld [vmem:[%s3074 + $0x167] sm:$0xff]
        %v3098 = vld [vmem:[%s3074 + $0x16f] sm:$0xff]
        %v3099 = vld [vmem:[%s3074 + $0x187] sm:$0xff]
        %v3100 = vld [vmem:[%s3074 + $0x18f] sm:$0xff]
        %v3101 = vld [vmem:[%s3074 + $0x1a7] sm:$0xff]
        %v3102 = vld [vmem:[%s3074 + $0x1af] sm:$0xff]
        %v3103 = vld [vmem:[%s3074 + $0x1c7] sm:$0xff]
        %v3104 = vld [vmem:[%s3074 + $0x1cf] sm:$0xff]
        %v3105 = vld [vmem:[%s3074 + $0x1e7] sm:$0xff]
        %v3106 = vld [vmem:[%s3074 + $0x1ef] sm:$0xff]
        %v3107 = vpack.c.bf16 %v3076, %v3075
        %v3108 = vpack.c.bf16 %v3078, %v3077
        %v3109 = vpack.c.bf16 %v3080, %v3079
        %v3110 = vpack.c.bf16 %v3082, %v3081
        %v3111 = vpack.c.bf16 %v3084, %v3083
        %v3112 = vpack.c.bf16 %v3086, %v3085
        %v3113 = vpack.c.bf16 %v3088, %v3087
        %v3114 = vpack.c.bf16 %v3090, %v3089
        %v3115 = vpack.c.bf16 %v3092, %v3091
        %v3116 = vpack.c.bf16 %v3094, %v3093
        %v3117 = vpack.c.bf16 %v3096, %v3095
        %v3118 = vpack.c.bf16 %v3098, %v3097
        %v3119 = vpack.c.bf16 %v3100, %v3099
        %v3120 = vpack.c.bf16 %v3102, %v3101
        %v3121 = vpack.c.bf16 %v3104, %v3103
        %v3122 = vpack.c.bf16 %v3106, %v3105
        %3123 = vst [vmem:[#allocation4 + $0x30] sm:$0xff] %v3107
        %3124 = vst [vmem:[#allocation4 + $0x78] sm:$0xff] %v3108
        %3125 = vst [vmem:[#allocation4 + $0xc0] sm:$0xff] %v3109
        %3126 = vst [vmem:[#allocation4 + $0x108] sm:$0xff] %v3110
        %3127 = vst [vmem:[#allocation4 + $0x150] sm:$0xff] %v3111
        %3128 = vst [vmem:[#allocation4 + $0x198] sm:$0xff] %v3112
        %3129 = vst [vmem:[#allocation4 + $0x1e0] sm:$0xff] %v3113
        %3130 = vst [vmem:[#allocation4 + $0x228] sm:$0xff] %v3114
        %3131 = vst [vmem:[#allocation4 + $0x270] sm:$0xff] %v3115
        %3132 = vst [vmem:[#allocation4 + $0x2b8] sm:$0xff] %v3116
        %3133 = vst [vmem:[#allocation4 + $0x300] sm:$0xff] %v3117
        %3134 = vst [vmem:[#allocation4 + $0x348] sm:$0xff] %v3118
        %3135 = vst [vmem:[#allocation4 + $0x390] sm:$0xff] %v3119
        %3136 = vst [vmem:[#allocation4 + $0x3d8] sm:$0xff] %v3120
        %3137 = vst [vmem:[#allocation4 + $0x420] sm:$0xff] %v3121
        %3138 = vst [vmem:[#allocation4 + $0x468] sm:$0xff] %v3122
        %v3139 = vld [vmem:[%s3074 + $0x8] sm:$0xff]
        %v3140 = vld [vmem:[%s3074 + $0x10] sm:$0xff]
        %v3141 = vld [vmem:[%s3074 + $0x28] sm:$0xff]
        %v3142 = vld [vmem:[%s3074 + $0x30] sm:$0xff]
        %v3143 = vld [vmem:[%s3074 + $0x48] sm:$0xff]
        %v3144 = vld [vmem:[%s3074 + $0x50] sm:$0xff]
        %v3145 = vld [vmem:[%s3074 + $0x68] sm:$0xff]
        %v3146 = vld [vmem:[%s3074 + $0x70] sm:$0xff]
        %v3147 = vld [vmem:[%s3074 + $0x88] sm:$0xff]
        %v3148 = vld [vmem:[%s3074 + $0x90] sm:$0xff]
        %v3149 = vld [vmem:[%s3074 + $0xa8] sm:$0xff]
        %v3150 = vld [vmem:[%s3074 + $0xb0] sm:$0xff]
        %v3151 = vld [vmem:[%s3074 + $0xc8] sm:$0xff]
        %v3152 = vld [vmem:[%s3074 + $0xd0] sm:$0xff]
        %v3153 = vld [vmem:[%s3074 + $0xe8] sm:$0xff]
        %v3154 = vld [vmem:[%s3074 + $0xf0] sm:$0xff]
        %v3155 = vld [vmem:[%s3074 + $0x108] sm:$0xff]
        %v3156 = vld [vmem:[%s3074 + $0x110] sm:$0xff]
        %v3157 = vld [vmem:[%s3074 + $0x128] sm:$0xff]
        %v3158 = vld [vmem:[%s3074 + $0x130] sm:$0xff]
        %v3159 = vld [vmem:[%s3074 + $0x148] sm:$0xff]
        %v3160 = vld [vmem:[%s3074 + $0x150] sm:$0xff]
        %v3161 = vld [vmem:[%s3074 + $0x168] sm:$0xff]
        %v3162 = vld [vmem:[%s3074 + $0x170] sm:$0xff]
        %v3163 = vld [vmem:[%s3074 + $0x188] sm:$0xff]
        %v3164 = vld [vmem:[%s3074 + $0x190] sm:$0xff]
        %v3165 = vld [vmem:[%s3074 + $0x1a8] sm:$0xff]
        %v3166 = vld [vmem:[%s3074 + $0x1b0] sm:$0xff]
        %v3167 = vld [vmem:[%s3074 + $0x1c8] sm:$0xff]
        %v3168 = vld [vmem:[%s3074 + $0x1d0] sm:$0xff]
        %v3169 = vld [vmem:[%s3074 + $0x1e8] sm:$0xff]
        %v3170 = vld [vmem:[%s3074 + $0x1f0] sm:$0xff]
        %v3171 = vpack.c.bf16 %v3140, %v3139
        %v3172 = vpack.c.bf16 %v3142, %v3141
        %v3173 = vpack.c.bf16 %v3144, %v3143
        %v3174 = vpack.c.bf16 %v3146, %v3145
        %v3175 = vpack.c.bf16 %v3148, %v3147
        %v3176 = vpack.c.bf16 %v3150, %v3149
        %v3177 = vpack.c.bf16 %v3152, %v3151
        %v3178 = vpack.c.bf16 %v3154, %v3153
        %v3179 = vpack.c.bf16 %v3156, %v3155
        %v3180 = vpack.c.bf16 %v3158, %v3157
        %v3181 = vpack.c.bf16 %v3160, %v3159
        %v3182 = vpack.c.bf16 %v3162, %v3161
        %v3183 = vpack.c.bf16 %v3164, %v3163
        %v3184 = vpack.c.bf16 %v3166, %v3165
        %v3185 = vpack.c.bf16 %v3168, %v3167
        %v3186 = vpack.c.bf16 %v3170, %v3169
        %3187 = vst [vmem:[#allocation4 + $0x38] sm:$0xff] %v3171
        %3188 = vst [vmem:[#allocation4 + $0x80] sm:$0xff] %v3172
        %3189 = vst [vmem:[#allocation4 + $0xc8] sm:$0xff] %v3173
        %3190 = vst [vmem:[#allocation4 + $0x110] sm:$0xff] %v3174
        %3191 = vst [vmem:[#allocation4 + $0x158] sm:$0xff] %v3175
        %3192 = vst [vmem:[#allocation4 + $0x1a0] sm:$0xff] %v3176
        %3193 = vst [vmem:[#allocation4 + $0x1e8] sm:$0xff] %v3177
        %3194 = vst [vmem:[#allocation4 + $0x230] sm:$0xff] %v3178
        %3195 = vst [vmem:[#allocation4 + $0x278] sm:$0xff] %v3179
        %3196 = vst [vmem:[#allocation4 + $0x2c0] sm:$0xff] %v3180
        %3197 = vst [vmem:[#allocation4 + $0x308] sm:$0xff] %v3181
        %3198 = vst [vmem:[#allocation4 + $0x350] sm:$0xff] %v3182
        %3199 = vst [vmem:[#allocation4 + $0x398] sm:$0xff] %v3183
        %3200 = vst [vmem:[#allocation4 + $0x3e0] sm:$0xff] %v3184
        %3201 = vst [vmem:[#allocation4 + $0x428] sm:$0xff] %v3185
        %3202 = vst [vmem:[#allocation4 + $0x470] sm:$0xff] %v3186
        %v3203 = vld [vmem:[%s3074 + $0x9] sm:$0xff]
        %v3204 = vld [vmem:[%s3074 + $0x11] sm:$0xff]
        %v3205 = vld [vmem:[%s3074 + $0x29] sm:$0xff]
        %v3206 = vld [vmem:[%s3074 + $0x31] sm:$0xff]
        %v3207 = vld [vmem:[%s3074 + $0x49] sm:$0xff]
        %v3208 = vld [vmem:[%s3074 + $0x51] sm:$0xff]
        %v3209 = vld [vmem:[%s3074 + $0x69] sm:$0xff]
        %v3210 = vld [vmem:[%s3074 + $0x71] sm:$0xff]
        %v3211 = vld [vmem:[%s3074 + $0x89] sm:$0xff]
        %v3212 = vld [vmem:[%s3074 + $0x91] sm:$0xff]
        %v3213 = vld [vmem:[%s3074 + $0xa9] sm:$0xff]
        %v3214 = vld [vmem:[%s3074 + $0xb1] sm:$0xff]
        %v3215 = vld [vmem:[%s3074 + $0xc9] sm:$0xff]
        %v3216 = vld [vmem:[%s3074 + $0xd1] sm:$0xff]
        %v3217 = vld [vmem:[%s3074 + $0xe9] sm:$0xff]
        %v3218 = vld [vmem:[%s3074 + $0xf1] sm:$0xff]
        %v3219 = vld [vmem:[%s3074 + $0x109] sm:$0xff]
        %v3220 = vld [vmem:[%s3074 + $0x111] sm:$0xff]
        %v3221 = vld [vmem:[%s3074 + $0x129] sm:$0xff]
        %v3222 = vld [vmem:[%s3074 + $0x131] sm:$0xff]
        %v3223 = vld [vmem:[%s3074 + $0x149] sm:$0xff]
        %v3224 = vld [vmem:[%s3074 + $0x151] sm:$0xff]
        %v3225 = vld [vmem:[%s3074 + $0x169] sm:$0xff]
        %v3226 = vld [vmem:[%s3074 + $0x171] sm:$0xff]
        %v3227 = vld [vmem:[%s3074 + $0x189] sm:$0xff]
        %v3228 = vld [vmem:[%s3074 + $0x191] sm:$0xff]
        %v3229 = vld [vmem:[%s3074 + $0x1a9] sm:$0xff]
        %v3230 = vld [vmem:[%s3074 + $0x1b1] sm:$0xff]
        %v3231 = vld [vmem:[%s3074 + $0x1c9] sm:$0xff]
        %v3232 = vld [vmem:[%s3074 + $0x1d1] sm:$0xff]
        %v3233 = vld [vmem:[%s3074 + $0x1e9] sm:$0xff]
        %v3234 = vld [vmem:[%s3074 + $0x1f1] sm:$0xff]
        %v3235 = vpack.c.bf16 %v3204, %v3203
        %v3236 = vpack.c.bf16 %v3206, %v3205
        %v3237 = vpack.c.bf16 %v3208, %v3207
        %v3238 = vpack.c.bf16 %v3210, %v3209
        %v3239 = vpack.c.bf16 %v3212, %v3211
        %v3240 = vpack.c.bf16 %v3214, %v3213
        %v3241 = vpack.c.bf16 %v3216, %v3215
        %v3242 = vpack.c.bf16 %v3218, %v3217
        %v3243 = vpack.c.bf16 %v3220, %v3219
        %v3244 = vpack.c.bf16 %v3222, %v3221
        %v3245 = vpack.c.bf16 %v3224, %v3223
        %v3246 = vpack.c.bf16 %v3226, %v3225
        %v3247 = vpack.c.bf16 %v3228, %v3227
        %v3248 = vpack.c.bf16 %v3230, %v3229
        %v3249 = vpack.c.bf16 %v3232, %v3231
        %v3250 = vpack.c.bf16 %v3234, %v3233
        %3251 = vst [vmem:[#allocation4 + $0x40] sm:$0xff] %v3235
        %3252 = vst [vmem:[#allocation4 + $0x88] sm:$0xff] %v3236
        %3253 = vst [vmem:[#allocation4 + $0xd0] sm:$0xff] %v3237
        %3254 = vst [vmem:[#allocation4 + $0x118] sm:$0xff] %v3238
        %3255 = vst [vmem:[#allocation4 + $0x160] sm:$0xff] %v3239
        %3256 = vst [vmem:[#allocation4 + $0x1a8] sm:$0xff] %v3240
        %3257 = vst [vmem:[#allocation4 + $0x1f0] sm:$0xff] %v3241
        %3258 = vst [vmem:[#allocation4 + $0x238] sm:$0xff] %v3242
        %3259 = vst [vmem:[#allocation4 + $0x280] sm:$0xff] %v3243
        %3260 = vst [vmem:[#allocation4 + $0x2c8] sm:$0xff] %v3244
        %3261 = vst [vmem:[#allocation4 + $0x310] sm:$0xff] %v3245
        %3262 = vst [vmem:[#allocation4 + $0x358] sm:$0xff] %v3246
        %3263 = vst [vmem:[#allocation4 + $0x3a0] sm:$0xff] %v3247
        %3264 = vst [vmem:[#allocation4 + $0x3e8] sm:$0xff] %v3248
        %3265 = vst [vmem:[#allocation4 + $0x430] sm:$0xff] %v3249
        %3266 = vst [vmem:[#allocation4 + $0x478] sm:$0xff] %v3250
        %v3267 = vld [vmem:[#allocation4] sm:$0xff]
        %v3268 = vld [vmem:[#allocation4 + $0x8] sm:$0xff]
        %v3269 = vld [vmem:[#allocation4 + $0x10] sm:$0xff]
        %v3270 = vld [vmem:[#allocation4 + $0x18] sm:$0xff]
        %v3271 = vld [vmem:[#allocation4 + $0x20] sm:$0xff]
        %v3272 = vld [vmem:[#allocation4 + $0x28] sm:$0xff]
        %v3273 = vld [vmem:[#allocation4 + $0x30] sm:$0xff]
        %v3274 = vld [vmem:[#allocation4 + $0x38] sm:$0xff]
        %v3275 = vld [vmem:[#allocation4 + $0x40] sm:$0xff]
        %v3276 = vld [vmem:[#allocation4 + $0x48] sm:$0xff]
        %v3277 = vld [vmem:[#allocation4 + $0x50] sm:$0xff]
        %v3278 = vld [vmem:[#allocation4 + $0x58] sm:$0xff]
        %v3279 = vld [vmem:[#allocation4 + $0x60] sm:$0xff]
        %v3280 = vld [vmem:[#allocation4 + $0x68] sm:$0xff]
        %v3281 = vld [vmem:[#allocation4 + $0x70] sm:$0xff]
        %v3282 = vld [vmem:[#allocation4 + $0x78] sm:$0xff]
        %v3283 = vld [vmem:[#allocation4 + $0x80] sm:$0xff]
        %v3284 = vld [vmem:[#allocation4 + $0x88] sm:$0xff]
        %v3285 = vld [vmem:[#allocation4 + $0x90] sm:$0xff]
        %v3286 = vld [vmem:[#allocation4 + $0x98] sm:$0xff]
        %v3287 = vld [vmem:[#allocation4 + $0xa0] sm:$0xff]
        %v3288 = vld [vmem:[#allocation4 + $0xa8] sm:$0xff]
        %v3289 = vld [vmem:[#allocation4 + $0xb0] sm:$0xff]
        %v3290 = vld [vmem:[#allocation4 + $0xb8] sm:$0xff]
        %v3291 = vld [vmem:[#allocation4 + $0xc0] sm:$0xff]
        %v3292 = vld [vmem:[#allocation4 + $0xc8] sm:$0xff]
        %v3293 = vld [vmem:[#allocation4 + $0xd0] sm:$0xff]
        %v3294 = vld [vmem:[#allocation4 + $0xd8] sm:$0xff]
        %v3295 = vld [vmem:[#allocation4 + $0xe0] sm:$0xff]
        %v3296 = vld [vmem:[#allocation4 + $0xe8] sm:$0xff]
        %v3297 = vld [vmem:[#allocation4 + $0xf0] sm:$0xff]
        %v3298 = vld [vmem:[#allocation4 + $0xf8] sm:$0xff]
        %v3299 = vld [vmem:[#allocation4 + $0x100] sm:$0xff]
        %v3300 = vld [vmem:[#allocation4 + $0x108] sm:$0xff]
        %v3301 = vld [vmem:[#allocation4 + $0x110] sm:$0xff]
        %v3302 = vld [vmem:[#allocation4 + $0x118] sm:$0xff]
        %v3303 = vld [vmem:[#allocation4 + $0x120] sm:$0xff]
        %v3304 = vld [vmem:[#allocation4 + $0x128] sm:$0xff]
        %v3305 = vld [vmem:[#allocation4 + $0x130] sm:$0xff]
        %v3306 = vld [vmem:[#allocation4 + $0x138] sm:$0xff]
        %v3307 = vld [vmem:[#allocation4 + $0x140] sm:$0xff]
        %v3308 = vld [vmem:[#allocation4 + $0x148] sm:$0xff]
        %v3309 = vld [vmem:[#allocation4 + $0x150] sm:$0xff]
        %v3310 = vld [vmem:[#allocation4 + $0x158] sm:$0xff]
        %v3311 = vld [vmem:[#allocation4 + $0x160] sm:$0xff]
        %v3312 = vld [vmem:[#allocation4 + $0x168] sm:$0xff]
        %v3313 = vld [vmem:[#allocation4 + $0x170] sm:$0xff]
        %v3314 = vld [vmem:[#allocation4 + $0x178] sm:$0xff]
        %v3315 = vld [vmem:[#allocation4 + $0x180] sm:$0xff]
        %v3316 = vld [vmem:[#allocation4 + $0x188] sm:$0xff]
        %v3317 = vld [vmem:[#allocation4 + $0x190] sm:$0xff]
        %v3318 = vld [vmem:[#allocation4 + $0x198] sm:$0xff]
        %v3319 = vld [vmem:[#allocation4 + $0x1a0] sm:$0xff]
        %v3320 = vld [vmem:[#allocation4 + $0x1a8] sm:$0xff]
        %v3321 = vld [vmem:[#allocation4 + $0x1b0] sm:$0xff]
        %v3322 = vld [vmem:[#allocation4 + $0x1b8] sm:$0xff]
        %v3323 = vld [vmem:[#allocation4 + $0x1c0] sm:$0xff]
        %v3324 = vld [vmem:[#allocation4 + $0x1c8] sm:$0xff]
        %v3325 = vld [vmem:[#allocation4 + $0x1d0] sm:$0xff]
        %v3326 = vld [vmem:[#allocation4 + $0x1d8] sm:$0xff]
        %v3327 = vld [vmem:[#allocation4 + $0x1e0] sm:$0xff]
        %v3328 = vld [vmem:[#allocation4 + $0x1e8] sm:$0xff]
        %v3329 = vld [vmem:[#allocation4 + $0x1f0] sm:$0xff]
        %v3330 = vld [vmem:[#allocation4 + $0x1f8] sm:$0xff]
        %v3331 = vld [vmem:[#allocation4 + $0x200] sm:$0xff]
        %v3332 = vld [vmem:[#allocation4 + $0x208] sm:$0xff]
        %v3333 = vld [vmem:[#allocation4 + $0x210] sm:$0xff]
        %v3334 = vld [vmem:[#allocation4 + $0x218] sm:$0xff]
        %v3335 = vld [vmem:[#allocation4 + $0x220] sm:$0xff]
        %v3336 = vld [vmem:[#allocation4 + $0x228] sm:$0xff]
        %v3337 = vld [vmem:[#allocation4 + $0x230] sm:$0xff]
        %v3338 = vld [vmem:[#allocation4 + $0x238] sm:$0xff]
        %v3339 = vld [vmem:[#allocation4 + $0x240] sm:$0xff]
        %v3340 = vld [vmem:[#allocation4 + $0x248] sm:$0xff]
        %v3341 = vld [vmem:[#allocation4 + $0x250] sm:$0xff]
        %v3342 = vld [vmem:[#allocation4 + $0x258] sm:$0xff]
        %v3343 = vld [vmem:[#allocation4 + $0x260] sm:$0xff]
        %v3344 = vld [vmem:[#allocation4 + $0x268] sm:$0xff]
        %v3345 = vld [vmem:[#allocation4 + $0x270] sm:$0xff]
        %v3346 = vld [vmem:[#allocation4 + $0x278] sm:$0xff]
        %v3347 = vld [vmem:[#allocation4 + $0x280] sm:$0xff]
        %v3348 = vld [vmem:[#allocation4 + $0x288] sm:$0xff]
        %v3349 = vld [vmem:[#allocation4 + $0x290] sm:$0xff]
        %v3350 = vld [vmem:[#allocation4 + $0x298] sm:$0xff]
        %v3351 = vld [vmem:[#allocation4 + $0x2a0] sm:$0xff]
        %v3352 = vld [vmem:[#allocation4 + $0x2a8] sm:$0xff]
        %v3353 = vld [vmem:[#allocation4 + $0x2b0] sm:$0xff]
        %v3354 = vld [vmem:[#allocation4 + $0x2b8] sm:$0xff]
        %v3355 = vld [vmem:[#allocation4 + $0x2c0] sm:$0xff]
        %v3356 = vld [vmem:[#allocation4 + $0x2c8] sm:$0xff]
        %v3357 = vld [vmem:[#allocation4 + $0x2d0] sm:$0xff]
        %v3358 = vld [vmem:[#allocation4 + $0x2d8] sm:$0xff]
        %v3359 = vld [vmem:[#allocation4 + $0x2e0] sm:$0xff]
        %v3360 = vld [vmem:[#allocation4 + $0x2e8] sm:$0xff]
        %v3361 = vld [vmem:[#allocation4 + $0x2f0] sm:$0xff]
        %v3362 = vld [vmem:[#allocation4 + $0x2f8] sm:$0xff]
        %v3363 = vld [vmem:[#allocation4 + $0x300] sm:$0xff]
        %v3364 = vld [vmem:[#allocation4 + $0x308] sm:$0xff]
        %v3365 = vld [vmem:[#allocation4 + $0x310] sm:$0xff]
        %v3366 = vld [vmem:[#allocation4 + $0x318] sm:$0xff]
        %v3367 = vld [vmem:[#allocation4 + $0x320] sm:$0xff]
        %v3368 = vld [vmem:[#allocation4 + $0x328] sm:$0xff]
        %v3369 = vld [vmem:[#allocation4 + $0x330] sm:$0xff]
        %v3370 = vld [vmem:[#allocation4 + $0x338] sm:$0xff]
        %v3371 = vld [vmem:[#allocation4 + $0x340] sm:$0xff]
        %v3372 = vld [vmem:[#allocation4 + $0x348] sm:$0xff]
        %v3373 = vld [vmem:[#allocation4 + $0x350] sm:$0xff]
        %v3374 = vld [vmem:[#allocation4 + $0x358] sm:$0xff]
        %v3375 = vld [vmem:[#allocation4 + $0x360] sm:$0xff]
        %v3376 = vld [vmem:[#allocation4 + $0x368] sm:$0xff]
        %v3377 = vld [vmem:[#allocation4 + $0x370] sm:$0xff]
        %v3378 = vld [vmem:[#allocation4 + $0x378] sm:$0xff]
        %v3379 = vld [vmem:[#allocation4 + $0x380] sm:$0xff]
        %v3380 = vld [vmem:[#allocation4 + $0x388] sm:$0xff]
        %v3381 = vld [vmem:[#allocation4 + $0x390] sm:$0xff]
        %v3382 = vld [vmem:[#allocation4 + $0x398] sm:$0xff]
        %v3383 = vld [vmem:[#allocation4 + $0x3a0] sm:$0xff]
        %v3384 = vld [vmem:[#allocation4 + $0x3a8] sm:$0xff]
        %v3385 = vld [vmem:[#allocation4 + $0x3b0] sm:$0xff]
        %v3386 = vld [vmem:[#allocation4 + $0x3b8] sm:$0xff]
        %v3387 = vld [vmem:[#allocation4 + $0x3c0] sm:$0xff]
        %v3388 = vld [vmem:[#allocation4 + $0x3c8] sm:$0xff]
        %v3389 = vld [vmem:[#allocation4 + $0x3d0] sm:$0xff]
        %v3390 = vld [vmem:[#allocation4 + $0x3d8] sm:$0xff]
        %v3391 = vld [vmem:[#allocation4 + $0x3e0] sm:$0xff]
        %v3392 = vld [vmem:[#allocation4 + $0x3e8] sm:$0xff]
        %v3393 = vld [vmem:[#allocation4 + $0x3f0] sm:$0xff]
        %v3394 = vld [vmem:[#allocation4 + $0x3f8] sm:$0xff]
        %v3395 = vld [vmem:[#allocation4 + $0x400] sm:$0xff]
        %v3396 = vld [vmem:[#allocation4 + $0x408] sm:$0xff]
        %v3397 = vld [vmem:[#allocation4 + $0x410] sm:$0xff]
        %v3398 = vld [vmem:[#allocation4 + $0x418] sm:$0xff]
        %v3399 = vld [vmem:[#allocation4 + $0x420] sm:$0xff]
        %v3400 = vld [vmem:[#allocation4 + $0x428] sm:$0xff]
        %v3401 = vld [vmem:[#allocation4 + $0x430] sm:$0xff]
        %v3402 = vld [vmem:[#allocation4 + $0x438] sm:$0xff]
        %v3403 = vld [vmem:[#allocation4 + $0x440] sm:$0xff]
        %v3404 = vld [vmem:[#allocation4 + $0x448] sm:$0xff]
        %v3405 = vld [vmem:[#allocation4 + $0x450] sm:$0xff]
        %v3406 = vld [vmem:[#allocation4 + $0x458] sm:$0xff]
        %v3407 = vld [vmem:[#allocation4 + $0x460] sm:$0xff]
        %v3408 = vld [vmem:[#allocation4 + $0x468] sm:$0xff]
        %v3409 = vld [vmem:[#allocation4 + $0x470] sm:$0xff]
        %v3410 = vld [vmem:[#allocation4 + $0x478] sm:$0xff]
        %v3411 = vlaneseq
        %v3412 = vshrl.u32 %v3411, 7
        %v3413 = vsub.s32 0, %v3412
        %v3414 = vrot.slane %v2689, %v3413
        %v3559 = vunpack.c.l.b16 %v2545
        %v3560 = vunpack.c.l.b16 %v2546
        %v3561 = vunpack.c.l.b16 %v2547
        %v3562 = vunpack.c.l.b16 %v2548
        %v3563 = vunpack.c.l.b16 %v2549
        %v3564 = vunpack.c.l.b16 %v2550
        %v3565 = vunpack.c.l.b16 %v2551
        %v3566 = vunpack.c.l.b16 %v2552
        %v3567 = vunpack.c.l.b16 %v2553
        %v3568 = vunpack.c.l.b16 %v2554
        %v3569 = vunpack.c.l.b16 %v2555
        %v3570 = vunpack.c.l.b16 %v2556
        %v3571 = vunpack.c.l.b16 %v2557
        %v3572 = vunpack.c.l.b16 %v2558
        %v3573 = vunpack.c.l.b16 %v2559
        %v3574 = vunpack.c.l.b16 %v2560
        %v3575 = vunpack.c.l.b16 %v2561
        %v3576 = vunpack.c.l.b16 %v2562
        %v3577 = vunpack.c.l.b16 %v2563
        %v3578 = vunpack.c.l.b16 %v2564
        %v3579 = vunpack.c.l.b16 %v2565
        %v3580 = vunpack.c.l.b16 %v2566
        %v3581 = vunpack.c.l.b16 %v2567
        %v3582 = vunpack.c.l.b16 %v2568
        %v3583 = vunpack.c.l.b16 %v2569
        %v3584 = vunpack.c.l.b16 %v2570
        %v3585 = vunpack.c.l.b16 %v2571
        %v3586 = vunpack.c.l.b16 %v2572
        %v3587 = vunpack.c.l.b16 %v2573
        %v3588 = vunpack.c.l.b16 %v2574
        %v3589 = vunpack.c.l.b16 %v2575
        %v3590 = vunpack.c.l.b16 %v2576
        %v3591 = vunpack.c.l.b16 %v2577
        %v3592 = vunpack.c.l.b16 %v2578
        %v3593 = vunpack.c.l.b16 %v2579
        %v3594 = vunpack.c.l.b16 %v2580
        %v3595 = vunpack.c.l.b16 %v2581
        %v3596 = vunpack.c.l.b16 %v2582
        %v3597 = vunpack.c.l.b16 %v2583
        %v3598 = vunpack.c.l.b16 %v2584
        %v3599 = vunpack.c.l.b16 %v2585
        %v3600 = vunpack.c.l.b16 %v2586
        %v3601 = vunpack.c.l.b16 %v2587
        %v3602 = vunpack.c.l.b16 %v2588
        %v3603 = vunpack.c.l.b16 %v2589
        %v3604 = vunpack.c.l.b16 %v2590
        %v3605 = vunpack.c.l.b16 %v2591
        %v3606 = vunpack.c.l.b16 %v2592
        %v3607 = vunpack.c.l.b16 %v2593
        %v3608 = vunpack.c.l.b16 %v2594
        %v3609 = vunpack.c.l.b16 %v2595
        %v3610 = vunpack.c.l.b16 %v2596
        %v3611 = vunpack.c.l.b16 %v2597
        %v3612 = vunpack.c.l.b16 %v2598
        %v3613 = vunpack.c.l.b16 %v2599
        %v3614 = vunpack.c.l.b16 %v2600
        %v3615 = vunpack.c.l.b16 %v2601
        %v3616 = vunpack.c.l.b16 %v2602
        %v3617 = vunpack.c.l.b16 %v2603
        %v3618 = vunpack.c.l.b16 %v2604
        %v3619 = vunpack.c.l.b16 %v2605
        %v3620 = vunpack.c.l.b16 %v2606
        %v3621 = vunpack.c.l.b16 %v2607
        %v3622 = vunpack.c.l.b16 %v2608
        %v3623 = vunpack.c.l.b16 %v2609
        %v3624 = vunpack.c.l.b16 %v2610
        %v3625 = vunpack.c.l.b16 %v2611
        %v3626 = vunpack.c.l.b16 %v2612
        %v3627 = vunpack.c.l.b16 %v2613
        %v3628 = vunpack.c.l.b16 %v2614
        %v3629 = vunpack.c.l.b16 %v2615
        %v3630 = vunpack.c.l.b16 %v2616
        %v3631 = vunpack.c.l.b16 %v2617
        %v3632 = vunpack.c.l.b16 %v2618
        %v3633 = vunpack.c.l.b16 %v2619
        %v3634 = vunpack.c.l.b16 %v2620
        %v3635 = vunpack.c.l.b16 %v2621
        %v3636 = vunpack.c.l.b16 %v2622
        %v3637 = vunpack.c.l.b16 %v2623
        %v3638 = vunpack.c.l.b16 %v2624
        %v3639 = vunpack.c.l.b16 %v2625
        %v3640 = vunpack.c.l.b16 %v2626
        %v3641 = vunpack.c.l.b16 %v2627
        %v3642 = vunpack.c.l.b16 %v2628
        %v3643 = vunpack.c.l.b16 %v2629
        %v3644 = vunpack.c.l.b16 %v2630
        %v3645 = vunpack.c.l.b16 %v2631
        %v3646 = vunpack.c.l.b16 %v2632
        %v3647 = vunpack.c.l.b16 %v2633
        %v3648 = vunpack.c.l.b16 %v2634
        %v3649 = vunpack.c.l.b16 %v2635
        %v3650 = vunpack.c.l.b16 %v2636
        %v3651 = vunpack.c.l.b16 %v2637
        %v3652 = vunpack.c.l.b16 %v2638
        %v3653 = vunpack.c.l.b16 %v2639
        %v3654 = vunpack.c.l.b16 %v2640
        %v3655 = vunpack.c.l.b16 %v2641
        %v3656 = vunpack.c.l.b16 %v2642
        %v3657 = vunpack.c.l.b16 %v2643
        %v3658 = vunpack.c.l.b16 %v2644
        %v3659 = vunpack.c.l.b16 %v2645
        %v3660 = vunpack.c.l.b16 %v2646
        %v3661 = vunpack.c.l.b16 %v2647
        %v3662 = vunpack.c.l.b16 %v2648
        %v3663 = vunpack.c.l.b16 %v2649
        %v3664 = vunpack.c.l.b16 %v2650
        %v3665 = vunpack.c.l.b16 %v2651
        %v3666 = vunpack.c.l.b16 %v2652
        %v3667 = vunpack.c.l.b16 %v2653
        %v3668 = vunpack.c.l.b16 %v2654
        %v3669 = vunpack.c.l.b16 %v2655
        %v3670 = vunpack.c.l.b16 %v2656
        %v3671 = vunpack.c.l.b16 %v2657
        %v3672 = vunpack.c.l.b16 %v2658
        %v3673 = vunpack.c.l.b16 %v2659
        %v3674 = vunpack.c.l.b16 %v2660
        %v3675 = vunpack.c.l.b16 %v2661
        %v3676 = vunpack.c.l.b16 %v2662
        %v3677 = vunpack.c.l.b16 %v2663
        %v3678 = vunpack.c.l.b16 %v2664
        %v3679 = vunpack.c.l.b16 %v2665
        %v3680 = vunpack.c.l.b16 %v2666
        %v3681 = vunpack.c.l.b16 %v2667
        %v3682 = vunpack.c.l.b16 %v2668
        %v3683 = vunpack.c.l.b16 %v2669
        %v3684 = vunpack.c.l.b16 %v2670
        %v3685 = vunpack.c.l.b16 %v2671
        %v3686 = vunpack.c.l.b16 %v2672
        %v3687 = vunpack.c.l.b16 %v2673
        %v3688 = vunpack.c.l.b16 %v2674
        %v3689 = vunpack.c.l.b16 %v2675
        %v3690 = vunpack.c.l.b16 %v2676
        %v3691 = vunpack.c.l.b16 %v2677
        %v3692 = vunpack.c.l.b16 %v2678
        %v3693 = vunpack.c.l.b16 %v2679
        %v3694 = vunpack.c.l.b16 %v2680
        %v3695 = vunpack.c.l.b16 %v2681
        %v3696 = vunpack.c.l.b16 %v2682
        %v3697 = vunpack.c.l.b16 %v2683
        %v3698 = vunpack.c.l.b16 %v2684
        %v3699 = vunpack.c.l.b16 %v2685
        %v3700 = vunpack.c.l.b16 %v2686
        %v3701 = vunpack.c.l.b16 %v2687
        %v3702 = vunpack.c.l.b16 %v2688
        %v3703 = vpack.c.b16 %v3560, %v3559
        %v3704 = vpack.c.b16 %v3562, %v3561
        %v3705 = vpack.c.b16 %v3564, %v3563
        %v3706 = vpack.c.b16 %v3566, %v3565
        %v3707 = vpack.c.b16 %v3568, %v3567
        %v3708 = vpack.c.b16 %v3570, %v3569
        %v3709 = vpack.c.b16 %v3572, %v3571
        %v3710 = vpack.c.b16 %v3574, %v3573
        %v3711 = vpack.c.b16 %v3576, %v3575
        %v3712 = vpack.c.b16 %v3578, %v3577
        %v3713 = vpack.c.b16 %v3580, %v3579
        %v3714 = vpack.c.b16 %v3582, %v3581
        %v3715 = vpack.c.b16 %v3584, %v3583
        %v3716 = vpack.c.b16 %v3586, %v3585
        %v3717 = vpack.c.b16 %v3588, %v3587
        %v3718 = vpack.c.b16 %v3590, %v3589
        %v3719 = vpack.c.b16 %v3592, %v3591
        %v3720 = vpack.c.b16 %v3594, %v3593
        %v3721 = vpack.c.b16 %v3596, %v3595
        %v3722 = vpack.c.b16 %v3598, %v3597
        %v3723 = vpack.c.b16 %v3600, %v3599
        %v3724 = vpack.c.b16 %v3602, %v3601
        %v3725 = vpack.c.b16 %v3604, %v3603
        %v3726 = vpack.c.b16 %v3606, %v3605
        %v3727 = vpack.c.b16 %v3608, %v3607
        %v3728 = vpack.c.b16 %v3610, %v3609
        %v3729 = vpack.c.b16 %v3612, %v3611
        %v3730 = vpack.c.b16 %v3614, %v3613
        %v3731 = vpack.c.b16 %v3616, %v3615
        %v3732 = vpack.c.b16 %v3618, %v3617
        %v3733 = vpack.c.b16 %v3620, %v3619
        %v3734 = vpack.c.b16 %v3622, %v3621
        %v3735 = vpack.c.b16 %v3624, %v3623
        %v3736 = vpack.c.b16 %v3626, %v3625
        %v3737 = vpack.c.b16 %v3628, %v3627
        %v3738 = vpack.c.b16 %v3630, %v3629
        %v3739 = vpack.c.b16 %v3632, %v3631
        %v3740 = vpack.c.b16 %v3634, %v3633
        %v3741 = vpack.c.b16 %v3636, %v3635
        %v3742 = vpack.c.b16 %v3638, %v3637
        %v3743 = vpack.c.b16 %v3640, %v3639
        %v3744 = vpack.c.b16 %v3642, %v3641
        %v3745 = vpack.c.b16 %v3644, %v3643
        %v3746 = vpack.c.b16 %v3646, %v3645
        %v3747 = vpack.c.b16 %v3648, %v3647
        %v3748 = vpack.c.b16 %v3650, %v3649
        %v3749 = vpack.c.b16 %v3652, %v3651
        %v3750 = vpack.c.b16 %v3654, %v3653
        %v3751 = vpack.c.b16 %v3656, %v3655
        %v3752 = vpack.c.b16 %v3658, %v3657
        %v3753 = vpack.c.b16 %v3660, %v3659
        %v3754 = vpack.c.b16 %v3662, %v3661
        %v3755 = vpack.c.b16 %v3664, %v3663
        %v3756 = vpack.c.b16 %v3666, %v3665
        %v3757 = vpack.c.b16 %v3668, %v3667
        %v3758 = vpack.c.b16 %v3670, %v3669
        %v3759 = vpack.c.b16 %v3672, %v3671
        %v3760 = vpack.c.b16 %v3674, %v3673
        %v3761 = vpack.c.b16 %v3676, %v3675
        %v3762 = vpack.c.b16 %v3678, %v3677
        %v3763 = vpack.c.b16 %v3680, %v3679
        %v3764 = vpack.c.b16 %v3682, %v3681
        %v3765 = vpack.c.b16 %v3684, %v3683
        %v3766 = vpack.c.b16 %v3686, %v3685
        %v3767 = vpack.c.b16 %v3688, %v3687
        %v3768 = vpack.c.b16 %v3690, %v3689
        %v3769 = vpack.c.b16 %v3692, %v3691
        %v3770 = vpack.c.b16 %v3694, %v3693
        %v3771 = vpack.c.b16 %v3696, %v3695
        %v3772 = vpack.c.b16 %v3698, %v3697
        %v3773 = vpack.c.b16 %v3700, %v3699
        %v3774 = vpack.c.b16 %v3702, %v3701
        %3847 = vmatprep.subr.bf16.mxu0 0
        %3848 = vmatpush1.bf16.msra.mxu0 %v3703
        %3849 = vmatprep.subr.bf16.mxu0 0
        %3850 = vmatpush1.bf16.msra.mxu0 %v3704
        %3851 = vmatprep.subr.bf16.mxu0 0
        %3852 = vmatpush1.bf16.msra.mxu0 %v3705
        %3853 = vmatprep.subr.bf16.mxu0 0
        %3854 = vmatpush1.bf16.msra.mxu0 %v3706
        %3855 = vmatprep.subr.bf16.mxu0 0
        %3856 = vmatpush1.bf16.msra.mxu0 %v3707
        %3857 = vmatprep.subr.bf16.mxu0 0
        %3858 = vmatpush1.bf16.msra.mxu0 %v3708
        %3859 = vmatprep.subr.bf16.mxu0 0
        %3860 = vmatpush1.bf16.msra.mxu0 %v3709
        %3861 = vmatprep.subr.bf16.mxu0 0
        %3862 = vmatpush1.bf16.msra.mxu0 %v3710
        %3863 = vmatprep.subr.bf16.mxu0 0
        %3864 = vmatpush1.bf16.msra.mxu0 %v3711
        %3865 = vmatprep.subr.bf16.mxu0 0
        %3866 = vmatpush1.bf16.msra.mxu0 %v3712
        %3867 = vmatprep.subr.bf16.mxu0 0
        %3868 = vmatpush1.bf16.msra.mxu0 %v3713
        %3869 = vmatprep.subr.bf16.mxu0 0
        %3870 = vmatpush1.bf16.msra.mxu0 %v3714
        %3871 = vmatprep.subr.bf16.mxu0 0
        %3872 = vmatpush1.bf16.msra.mxu0 %v3715
        %3873 = vmatprep.subr.bf16.mxu0 0
        %3874 = vmatpush1.bf16.msra.mxu0 %v3716
        %3875 = vmatprep.subr.bf16.mxu0 0
        %3876 = vmatpush1.bf16.msra.mxu0 %v3717
        %3877 = vmatprep.subr.bf16.mxu0 0
        %3878 = vmatpush1.bf16.msra.mxu0 %v3718
        %3879 = vmatprep.mubr.bf16.mxu0 %v3268
        %3880 = vmatmul.mubr.bf16.gmra.mrb[0].mxu0 %v3267
        %v3881 = vpop.f32.mrb[0].mxu0
        %v3882 = vadd.f32 %v3414, %v3881
        %v3883 = vpop.f32.mrb[0].mxu0
        %v3884 = vpop.f32.mrb[0].mxu0
        %v3885 = vadd.f32 %v3414, %v3884
        %v3886 = vpop.f32.mrb[0].mxu0
        %3887 = vmatprep.mubr.bf16.mxu0 %v3277
        %3888 = vmatmul.mubr.bf16.gmra.mrb[0].mxu0 %v3276
        %v3889 = vpop.f32.mrb[0].mxu0
        %v3890 = vadd.f32 %v3414, %v3889
        %v3891 = vpop.f32.mrb[0].mxu0
        %v3892 = vpop.f32.mrb[0].mxu0
        %v3893 = vadd.f32 %v3414, %v3892
        %v3894 = vpop.f32.mrb[0].mxu0
        %3895 = vmatprep.mubr.bf16.mxu0 %v3286
        %3896 = vmatmul.mubr.bf16.gmra.mrb[0].mxu0 %v3285
        %v3897 = vpop.f32.mrb[0].mxu0
        %v3898 = vadd.f32 %v3414, %v3897
        %v3899 = vpop.f32.mrb[0].mxu0
        %v3900 = vpop.f32.mrb[0].mxu0
        %v3901 = vadd.f32 %v3414, %v3900
        %v3902 = vpop.f32.mrb[0].mxu0
        %3903 = vmatprep.mubr.bf16.mxu0 %v3295
        %3904 = vmatmul.mubr.bf16.gmra.mrb[0].mxu0 %v3294
        %v3905 = vpop.f32.mrb[0].mxu0
        %v3906 = vadd.f32 %v3414, %v3905
        %v3907 = vpop.f32.mrb[0].mxu0
        %v3908 = vpop.f32.mrb[0].mxu0
        %v3909 = vadd.f32 %v3414, %v3908
        %v3910 = vpop.f32.mrb[0].mxu0
        %3911 = vmatprep.mubr.bf16.mxu0 %v3304
        %3912 = vmatmul.mubr.bf16.gmra.mrb[0].mxu0 %v3303
        %v3913 = vpop.f32.mrb[0].mxu0
        %v3914 = vadd.f32 %v3414, %v3913
        %v3915 = vpop.f32.mrb[0].mxu0
        %v3916 = vpop.f32.mrb[0].mxu0
        %v3917 = vadd.f32 %v3414, %v3916
        %v3918 = vpop.f32.mrb[0].mxu0
        %3919 = vmatprep.mubr.bf16.mxu0 %v3313
        %3920 = vmatmul.mubr.bf16.gmra.mrb[0].mxu0 %v3312
        %v3921 = vpop.f32.mrb[0].mxu0
        %v3922 = vadd.f32 %v3414, %v3921
        %v3923 = vpop.f32.mrb[0].mxu0
        %v3924 = vpop.f32.mrb[0].mxu0
        %v3925 = vadd.f32 %v3414, %v3924
        %v3926 = vpop.f32.mrb[0].mxu0
        %3927 = vmatprep.mubr.bf16.mxu0 %v3322
        %3928 = vmatmul.mubr.bf16.gmra.mrb[0].mxu0 %v3321
        %v3929 = vpop.f32.mrb[0].mxu0
        %v3930 = vadd.f32 %v3414, %v3929
        %v3931 = vpop.f32.mrb[0].mxu0
        %v3932 = vpop.f32.mrb[0].mxu0
        %v3933 = vadd.f32 %v3414, %v3932
        %v3934 = vpop.f32.mrb[0].mxu0
        %3935 = vmatprep.mubr.bf16.mxu0 %v3331
        %3936 = vmatmul.mubr.bf16.gmra.mrb[0].mxu0 %v3330
        %v3937 = vpop.f32.mrb[0].mxu0
        %v3938 = vadd.f32 %v3414, %v3937
        %v3939 = vpop.f32.mrb[0].mxu0
        %v3940 = vpop.f32.mrb[0].mxu0
        %v3941 = vadd.f32 %v3414, %v3940
        %v3942 = vpop.f32.mrb[0].mxu0
        %3943 = vmatprep.mubr.bf16.mxu0 %v3340
        %3944 = vmatmul.mubr.bf16.gmra.mrb[0].mxu0 %v3339
        %v3945 = vpop.f32.mrb[0].mxu0
        %v3946 = vadd.f32 %v3414, %v3945
        %v3947 = vpop.f32.mrb[0].mxu0
        %v3948 = vpop.f32.mrb[0].mxu0
        %v3949 = vadd.f32 %v3414, %v3948
        %v3950 = vpop.f32.mrb[0].mxu0
        %3951 = vmatprep.mubr.bf16.mxu0 %v3349
        %3952 = vmatmul.mubr.bf16.gmra.mrb[0].mxu0 %v3348
        %v3953 = vpop.f32.mrb[0].mxu0
        %v3954 = vadd.f32 %v3414, %v3953
        %v3955 = vpop.f32.mrb[0].mxu0
        %v3956 = vpop.f32.mrb[0].mxu0
        %v3957 = vadd.f32 %v3414, %v3956
        %v3958 = vpop.f32.mrb[0].mxu0
        %3959 = vmatprep.mubr.bf16.mxu0 %v3358
        %3960 = vmatmul.mubr.bf16.gmra.mrb[0].mxu0 %v3357
        %v3961 = vpop.f32.mrb[0].mxu0
        %v3962 = vadd.f32 %v3414, %v3961
        %v3963 = vpop.f32.mrb[0].mxu0
        %v3964 = vpop.f32.mrb[0].mxu0
        %v3965 = vadd.f32 %v3414, %v3964
        %v3966 = vpop.f32.mrb[0].mxu0
        %3967 = vmatprep.mubr.bf16.mxu0 %v3367
        %3968 = vmatmul.mubr.bf16.gmra.mrb[0].mxu0 %v3366
        %v3969 = vpop.f32.mrb[0].mxu0
        %v3970 = vadd.f32 %v3414, %v3969
        %v3971 = vpop.f32.mrb[0].mxu0
        %v3972 = vpop.f32.mrb[0].mxu0
        %v3973 = vadd.f32 %v3414, %v3972
        %v3974 = vpop.f32.mrb[0].mxu0
        %3975 = vmatprep.mubr.bf16.mxu0 %v3376
        %3976 = vmatmul.mubr.bf16.gmra.mrb[0].mxu0 %v3375
        %v3977 = vpop.f32.mrb[0].mxu0
        %v3978 = vadd.f32 %v3414, %v3977
        %v3979 = vpop.f32.mrb[0].mxu0
        %v3980 = vpop.f32.mrb[0].mxu0
        %v3981 = vadd.f32 %v3414, %v3980
        %v3982 = vpop.f32.mrb[0].mxu0
        %3983 = vmatprep.mubr.bf16.mxu0 %v3385
        %3984 = vmatmul.mubr.bf16.gmra.mrb[0].mxu0 %v3384
        %v3985 = vpop.f32.mrb[0].mxu0
        %v3986 = vadd.f32 %v3414, %v3985
        %v3987 = vpop.f32.mrb[0].mxu0
        %v3988 = vpop.f32.mrb[0].mxu0
        %v3989 = vadd.f32 %v3414, %v3988
        %v3990 = vpop.f32.mrb[0].mxu0
        %3991 = vmatprep.mubr.bf16.mxu0 %v3394
        %3992 = vmatmul.mubr.bf16.gmra.mrb[0].mxu0 %v3393
        %v3993 = vpop.f32.mrb[0].mxu0
        %v3994 = vadd.f32 %v3414, %v3993
        %v3995 = vpop.f32.mrb[0].mxu0
        %v3996 = vpop.f32.mrb[0].mxu0
        %v3997 = vadd.f32 %v3414, %v3996
        %v3998 = vpop.f32.mrb[0].mxu0
        %3999 = vmatprep.mubr.bf16.mxu0 %v3403
        %4000 = vmatmul.mubr.bf16.gmra.mrb[0].mxu0 %v3402
        %v4001 = vpop.f32.mrb[0].mxu0
        %v4002 = vadd.f32 %v3414, %v4001
        %v4003 = vpop.f32.mrb[0].mxu0
        %v4004 = vpop.f32.mrb[0].mxu0
        %v4005 = vadd.f32 %v3414, %v4004
        %v4006 = vpop.f32.mrb[0].mxu0
        %4007 = vdwg.mxu0
        %4008 = vmatprep.subr.bf16.mxu0 0
        %4009 = vmatpush1.bf16.msra.mxu0 %v3719
        %4010 = vmatprep.subr.bf16.mxu0 0
        %4011 = vmatpush1.bf16.msra.mxu0 %v3720
        %4012 = vmatprep.subr.bf16.mxu0 0
        %4013 = vmatpush1.bf16.msra.mxu0 %v3721
        %4014 = vmatprep.subr.bf16.mxu0 0
        %4015 = vmatpush1.bf16.msra.mxu0 %v3722
        %4016 = vmatprep.subr.bf16.mxu0 0
        %4017 = vmatpush1.bf16.msra.mxu0 %v3723
        %4018 = vmatprep.subr.bf16.mxu0 0
        %4019 = vmatpush1.bf16.msra.mxu0 %v3724
        %4020 = vmatprep.subr.bf16.mxu0 0
        %4021 = vmatpush1.bf16.msra.mxu0 %v3725
        %4022 = vmatprep.subr.bf16.mxu0 0
        %4023 = vmatpush1.bf16.msra.mxu0 %v3726
        %4024 = vmatprep.subr.bf16.mxu0 0
        %4025 = vmatpush1.bf16.msra.mxu0 %v3727
        %4026 = vmatprep.subr.bf16.mxu0 0
        %4027 = vmatpush1.bf16.msra.mxu0 %v3728
        %4028 = vmatprep.subr.bf16.mxu0 0
        %4029 = vmatpush1.bf16.msra.mxu0 %v3729
        %4030 = vmatprep.subr.bf16.mxu0 0
        %4031 = vmatpush1.bf16.msra.mxu0 %v3730
        %4032 = vmatprep.subr.bf16.mxu0 0
        %4033 = vmatpush1.bf16.msra.mxu0 %v3731
        %4034 = vmatprep.subr.bf16.mxu0 0
        %4035 = vmatpush1.bf16.msra.mxu0 %v3732
        %4036 = vmatprep.subr.bf16.mxu0 0
        %4037 = vmatpush1.bf16.msra.mxu0 %v3733
        %4038 = vmatprep.subr.bf16.mxu0 0
        %4039 = vmatpush1.bf16.msra.mxu0 %v3734
        %4040 = vmatprep.mubr.bf16.mxu0 %v3270
        %4041 = vmatmul.mubr.bf16.gmra.mrb[0].mxu0 %v3269
        %v4042 = vpop.f32.mrb[0].mxu0
        %v4043 = vadd.f32 %v3882, %v4042
        %v4044 = vpop.f32.mrb[0].mxu0
        %v4045 = vpop.f32.mrb[0].mxu0
        %v4046 = vadd.f32 %v3885, %v4045
        %v4047 = vpop.f32.mrb[0].mxu0
        %4048 = vmatprep.mubr.bf16.mxu0 %v3279
        %4049 = vmatmul.mubr.bf16.gmra.mrb[0].mxu0 %v3278
        %v4050 = vpop.f32.mrb[0].mxu0
        %v4051 = vadd.f32 %v3890, %v4050
        %v4052 = vpop.f32.mrb[0].mxu0
        %v4053 = vpop.f32.mrb[0].mxu0
        %v4054 = vadd.f32 %v3893, %v4053
        %v4055 = vpop.f32.mrb[0].mxu0
        %4056 = vmatprep.mubr.bf16.mxu0 %v3288
        %4057 = vmatmul.mubr.bf16.gmra.mrb[0].mxu0 %v3287
        %v4058 = vpop.f32.mrb[0].mxu0
        %v4059 = vadd.f32 %v3898, %v4058
        %v4060 = vpop.f32.mrb[0].mxu0
        %v4061 = vpop.f32.mrb[0].mxu0
        %v4062 = vadd.f32 %v3901, %v4061
        %v4063 = vpop.f32.mrb[0].mxu0
        %4064 = vmatprep.mubr.bf16.mxu0 %v3297
        %4065 = vmatmul.mubr.bf16.gmra.mrb[0].mxu0 %v3296
        %v4066 = vpop.f32.mrb[0].mxu0
        %v4067 = vadd.f32 %v3906, %v4066
        %v4068 = vpop.f32.mrb[0].mxu0
        %v4069 = vpop.f32.mrb[0].mxu0
        %v4070 = vadd.f32 %v3909, %v4069
        %v4071 = vpop.f32.mrb[0].mxu0
        %4072 = vmatprep.mubr.bf16.mxu0 %v3306
        %4073 = vmatmul.mubr.bf16.gmra.mrb[0].mxu0 %v3305
        %v4074 = vpop.f32.mrb[0].mxu0
        %v4075 = vadd.f32 %v3914, %v4074
        %v4076 = vpop.f32.mrb[0].mxu0
        %v4077 = vpop.f32.mrb[0].mxu0
        %v4078 = vadd.f32 %v3917, %v4077
        %v4079 = vpop.f32.mrb[0].mxu0
        %4080 = vmatprep.mubr.bf16.mxu0 %v3315
        %4081 = vmatmul.mubr.bf16.gmra.mrb[0].mxu0 %v3314
        %v4082 = vpop.f32.mrb[0].mxu0
        %v4083 = vadd.f32 %v3922, %v4082
        %v4084 = vpop.f32.mrb[0].mxu0
        %v4085 = vpop.f32.mrb[0].mxu0
        %v4086 = vadd.f32 %v3925, %v4085
        %v4087 = vpop.f32.mrb[0].mxu0
        %4088 = vmatprep.mubr.bf16.mxu0 %v3324
        %4089 = vmatmul.mubr.bf16.gmra.mrb[0].mxu0 %v3323
        %v4090 = vpop.f32.mrb[0].mxu0
        %v4091 = vadd.f32 %v3930, %v4090
        %v4092 = vpop.f32.mrb[0].mxu0
        %v4093 = vpop.f32.mrb[0].mxu0
        %v4094 = vadd.f32 %v3933, %v4093
        %v4095 = vpop.f32.mrb[0].mxu0
        %4096 = vmatprep.mubr.bf16.mxu0 %v3333
        %4097 = vmatmul.mubr.bf16.gmra.mrb[0].mxu0 %v3332
        %v4098 = vpop.f32.mrb[0].mxu0
        %v4099 = vadd.f32 %v3938, %v4098
        %v4100 = vpop.f32.mrb[0].mxu0
        %v4101 = vpop.f32.mrb[0].mxu0
        %v4102 = vadd.f32 %v3941, %v4101
        %v4103 = vpop.f32.mrb[0].mxu0
        %4104 = vmatprep.mubr.bf16.mxu0 %v3342
        %4105 = vmatmul.mubr.bf16.gmra.mrb[0].mxu0 %v3341
        %v4106 = vpop.f32.mrb[0].mxu0
        %v4107 = vadd.f32 %v3946, %v4106
        %v4108 = vpop.f32.mrb[0].mxu0
        %v4109 = vpop.f32.mrb[0].mxu0
        %v4110 = vadd.f32 %v3949, %v4109
        %v4111 = vpop.f32.mrb[0].mxu0
        %4112 = vmatprep.mubr.bf16.mxu0 %v3351
        %4113 = vmatmul.mubr.bf16.gmra.mrb[0].mxu0 %v3350
        %v4114 = vpop.f32.mrb[0].mxu0
        %v4115 = vadd.f32 %v3954, %v4114
        %v4116 = vpop.f32.mrb[0].mxu0
        %v4117 = vpop.f32.mrb[0].mxu0
        %v4118 = vadd.f32 %v3957, %v4117
        %v4119 = vpop.f32.mrb[0].mxu0
        %4120 = vmatprep.mubr.bf16.mxu0 %v3360
        %4121 = vmatmul.mubr.bf16.gmra.mrb[0].mxu0 %v3359
        %v4122 = vpop.f32.mrb[0].mxu0
        %v4123 = vadd.f32 %v3962, %v4122
        %v4124 = vpop.f32.mrb[0].mxu0
        %v4125 = vpop.f32.mrb[0].mxu0
        %v4126 = vadd.f32 %v3965, %v4125
        %v4127 = vpop.f32.mrb[0].mxu0
        %4128 = vmatprep.mubr.bf16.mxu0 %v3369
        %4129 = vmatmul.mubr.bf16.gmra.mrb[0].mxu0 %v3368
        %v4130 = vpop.f32.mrb[0].mxu0
        %v4131 = vadd.f32 %v3970, %v4130
        %v4132 = vpop.f32.mrb[0].mxu0
        %v4133 = vpop.f32.mrb[0].mxu0
        %v4134 = vadd.f32 %v3973, %v4133
        %v4135 = vpop.f32.mrb[0].mxu0
        %4136 = vmatprep.mubr.bf16.mxu0 %v3378
        %4137 = vmatmul.mubr.bf16.gmra.mrb[0].mxu0 %v3377
        %v4138 = vpop.f32.mrb[0].mxu0
        %v4139 = vadd.f32 %v3978, %v4138
        %v4140 = vpop.f32.mrb[0].mxu0
        %v4141 = vpop.f32.mrb[0].mxu0
        %v4142 = vadd.f32 %v3981, %v4141
        %v4143 = vpop.f32.mrb[0].mxu0
        %4144 = vmatprep.mubr.bf16.mxu0 %v3387
        %4145 = vmatmul.mubr.bf16.gmra.mrb[0].mxu0 %v3386
        %v4146 = vpop.f32.mrb[0].mxu0
        %v4147 = vadd.f32 %v3986, %v4146
        %v4148 = vpop.f32.mrb[0].mxu0
        %v4149 = vpop.f32.mrb[0].mxu0
        %v4150 = vadd.f32 %v3989, %v4149
        %v4151 = vpop.f32.mrb[0].mxu0
        %4152 = vmatprep.mubr.bf16.mxu0 %v3396
        %4153 = vmatmul.mubr.bf16.gmra.mrb[0].mxu0 %v3395
        %v4154 = vpop.f32.mrb[0].mxu0
        %v4155 = vadd.f32 %v3994, %v4154
        %v4156 = vpop.f32.mrb[0].mxu0
        %v4157 = vpop.f32.mrb[0].mxu0
        %v4158 = vadd.f32 %v3997, %v4157
        %v4159 = vpop.f32.mrb[0].mxu0
        %4160 = vmatprep.mubr.bf16.mxu0 %v3405
        %4161 = vmatmul.mubr.bf16.gmra.mrb[0].mxu0 %v3404
        %v4162 = vpop.f32.mrb[0].mxu0
        %v4163 = vadd.f32 %v4002, %v4162
        %v4164 = vpop.f32.mrb[0].mxu0
        %v4165 = vpop.f32.mrb[0].mxu0
        %v4166 = vadd.f32 %v4005, %v4165
        %v4167 = vpop.f32.mrb[0].mxu0
        %4168 = vdwg.mxu0
        %4169 = vmatprep.subr.bf16.mxu0 0
        %4170 = vmatpush1.bf16.msra.mxu0 %v3735
        %4171 = vmatprep.subr.bf16.mxu0 0
        %4172 = vmatpush1.bf16.msra.mxu0 %v3736
        %4173 = vmatprep.subr.bf16.mxu0 0
        %4174 = vmatpush1.bf16.msra.mxu0 %v3737
        %4175 = vmatprep.subr.bf16.mxu0 0
        %4176 = vmatpush1.bf16.msra.mxu0 %v3738
        %4177 = vmatprep.subr.bf16.mxu0 0
        %4178 = vmatpush1.bf16.msra.mxu0 %v3739
        %4179 = vmatprep.subr.bf16.mxu0 0
        %4180 = vmatpush1.bf16.msra.mxu0 %v3740
        %4181 = vmatprep.subr.bf16.mxu0 0
        %4182 = vmatpush1.bf16.msra.mxu0 %v3741
        %4183 = vmatprep.subr.bf16.mxu0 0
        %4184 = vmatpush1.bf16.msra.mxu0 %v3742
        %4185 = vmatprep.subr.bf16.mxu0 0
        %4186 = vmatpush1.bf16.msra.mxu0 %v3743
        %4187 = vmatprep.subr.bf16.mxu0 0
        %4188 = vmatpush1.bf16.msra.mxu0 %v3744
        %4189 = vmatprep.subr.bf16.mxu0 0
        %4190 = vmatpush1.bf16.msra.mxu0 %v3745
        %4191 = vmatprep.subr.bf16.mxu0 0
        %4192 = vmatpush1.bf16.msra.mxu0 %v3746
        %4193 = vmatprep.subr.bf16.mxu0 0
        %4194 = vmatpush1.bf16.msra.mxu0 %v3747
        %4195 = vmatprep.subr.bf16.mxu0 0
        %4196 = vmatpush1.bf16.msra.mxu0 %v3748
        %4197 = vmatprep.subr.bf16.mxu0 0
        %4198 = vmatpush1.bf16.msra.mxu0 %v3749
        %4199 = vmatprep.subr.bf16.mxu0 0
        %4200 = vmatpush1.bf16.msra.mxu0 %v3750
        %4201 = vmatprep.mubr.bf16.mxu0 %v3272
        %4202 = vmatmul.mubr.bf16.gmra.mrb[0].mxu0 %v3271
        %v4203 = vpop.f32.mrb[0].mxu0
        %v4204 = vadd.f32 %v4043, %v4203
        %v4205 = vpop.f32.mrb[0].mxu0
        %v4206 = vpop.f32.mrb[0].mxu0
        %v4207 = vadd.f32 %v4046, %v4206
        %v4208 = vpop.f32.mrb[0].mxu0
        %4209 = vmatprep.mubr.bf16.mxu0 %v3281
        %4210 = vmatmul.mubr.bf16.gmra.mrb[0].mxu0 %v3280
        %v4211 = vpop.f32.mrb[0].mxu0
        %v4212 = vadd.f32 %v4051, %v4211
        %v4213 = vpop.f32.mrb[0].mxu0
        %v4214 = vpop.f32.mrb[0].mxu0
        %v4215 = vadd.f32 %v4054, %v4214
        %v4216 = vpop.f32.mrb[0].mxu0
        %4217 = vmatprep.mubr.bf16.mxu0 %v3290
        %4218 = vmatmul.mubr.bf16.gmra.mrb[0].mxu0 %v3289
        %v4219 = vpop.f32.mrb[0].mxu0
        %v4220 = vadd.f32 %v4059, %v4219
        %v4221 = vpop.f32.mrb[0].mxu0
        %v4222 = vpop.f32.mrb[0].mxu0
        %v4223 = vadd.f32 %v4062, %v4222
        %v4224 = vpop.f32.mrb[0].mxu0
        %4225 = vmatprep.mubr.bf16.mxu0 %v3299
        %4226 = vmatmul.mubr.bf16.gmra.mrb[0].mxu0 %v3298
        %v4227 = vpop.f32.mrb[0].mxu0
        %v4228 = vadd.f32 %v4067, %v4227
        %v4229 = vpop.f32.mrb[0].mxu0
        %v4230 = vpop.f32.mrb[0].mxu0
        %v4231 = vadd.f32 %v4070, %v4230
        %v4232 = vpop.f32.mrb[0].mxu0
        %4233 = vmatprep.mubr.bf16.mxu0 %v3308
        %4234 = vmatmul.mubr.bf16.gmra.mrb[0].mxu0 %v3307
        %v4235 = vpop.f32.mrb[0].mxu0
        %v4236 = vadd.f32 %v4075, %v4235
        %v4237 = vpop.f32.mrb[0].mxu0
        %v4238 = vpop.f32.mrb[0].mxu0
        %v4239 = vadd.f32 %v4078, %v4238
        %v4240 = vpop.f32.mrb[0].mxu0
        %4241 = vmatprep.mubr.bf16.mxu0 %v3317
        %4242 = vmatmul.mubr.bf16.gmra.mrb[0].mxu0 %v3316
        %v4243 = vpop.f32.mrb[0].mxu0
        %v4244 = vadd.f32 %v4083, %v4243
        %v4245 = vpop.f32.mrb[0].mxu0
        %v4246 = vpop.f32.mrb[0].mxu0
        %v4247 = vadd.f32 %v4086, %v4246
        %v4248 = vpop.f32.mrb[0].mxu0
        %4249 = vmatprep.mubr.bf16.mxu0 %v3326
        %4250 = vmatmul.mubr.bf16.gmra.mrb[0].mxu0 %v3325
        %v4251 = vpop.f32.mrb[0].mxu0
        %v4252 = vadd.f32 %v4091, %v4251
        %v4253 = vpop.f32.mrb[0].mxu0
        %v4254 = vpop.f32.mrb[0].mxu0
        %v4255 = vadd.f32 %v4094, %v4254
        %v4256 = vpop.f32.mrb[0].mxu0
        %4257 = vmatprep.mubr.bf16.mxu0 %v3335
        %4258 = vmatmul.mubr.bf16.gmra.mrb[0].mxu0 %v3334
        %v4259 = vpop.f32.mrb[0].mxu0
        %v4260 = vadd.f32 %v4099, %v4259
        %v4261 = vpop.f32.mrb[0].mxu0
        %v4262 = vpop.f32.mrb[0].mxu0
        %v4263 = vadd.f32 %v4102, %v4262
        %v4264 = vpop.f32.mrb[0].mxu0
        %4265 = vmatprep.mubr.bf16.mxu0 %v3344
        %4266 = vmatmul.mubr.bf16.gmra.mrb[0].mxu0 %v3343
        %v4267 = vpop.f32.mrb[0].mxu0
        %v4268 = vadd.f32 %v4107, %v4267
        %v4269 = vpop.f32.mrb[0].mxu0
        %v4270 = vpop.f32.mrb[0].mxu0
        %v4271 = vadd.f32 %v4110, %v4270
        %v4272 = vpop.f32.mrb[0].mxu0
        %4273 = vmatprep.mubr.bf16.mxu0 %v3353
        %4274 = vmatmul.mubr.bf16.gmra.mrb[0].mxu0 %v3352
        %v4275 = vpop.f32.mrb[0].mxu0
        %v4276 = vadd.f32 %v4115, %v4275
        %v4277 = vpop.f32.mrb[0].mxu0
        %v4278 = vpop.f32.mrb[0].mxu0
        %v4279 = vadd.f32 %v4118, %v4278
        %v4280 = vpop.f32.mrb[0].mxu0
        %4281 = vmatprep.mubr.bf16.mxu0 %v3362
        %4282 = vmatmul.mubr.bf16.gmra.mrb[0].mxu0 %v3361
        %v4283 = vpop.f32.mrb[0].mxu0
        %v4284 = vadd.f32 %v4123, %v4283
        %v4285 = vpop.f32.mrb[0].mxu0
        %v4286 = vpop.f32.mrb[0].mxu0
        %v4287 = vadd.f32 %v4126, %v4286
        %v4288 = vpop.f32.mrb[0].mxu0
        %4289 = vmatprep.mubr.bf16.mxu0 %v3371
        %4290 = vmatmul.mubr.bf16.gmra.mrb[0].mxu0 %v3370
        %v4291 = vpop.f32.mrb[0].mxu0
        %v4292 = vadd.f32 %v4131, %v4291
        %v4293 = vpop.f32.mrb[0].mxu0
        %v4294 = vpop.f32.mrb[0].mxu0
        %v4295 = vadd.f32 %v4134, %v4294
        %v4296 = vpop.f32.mrb[0].mxu0
        %4297 = vmatprep.mubr.bf16.mxu0 %v3380
        %4298 = vmatmul.mubr.bf16.gmra.mrb[0].mxu0 %v3379
        %v4299 = vpop.f32.mrb[0].mxu0
        %v4300 = vadd.f32 %v4139, %v4299
        %v4301 = vpop.f32.mrb[0].mxu0
        %v4302 = vpop.f32.mrb[0].mxu0
        %v4303 = vadd.f32 %v4142, %v4302
        %v4304 = vpop.f32.mrb[0].mxu0
        %4305 = vmatprep.mubr.bf16.mxu0 %v3389
        %4306 = vmatmul.mubr.bf16.gmra.mrb[0].mxu0 %v3388
        %v4307 = vpop.f32.mrb[0].mxu0
        %v4308 = vadd.f32 %v4147, %v4307
        %v4309 = vpop.f32.mrb[0].mxu0
        %v4310 = vpop.f32.mrb[0].mxu0
        %v4311 = vadd.f32 %v4150, %v4310
        %v4312 = vpop.f32.mrb[0].mxu0
        %4313 = vmatprep.mubr.bf16.mxu0 %v3398
        %4314 = vmatmul.mubr.bf16.gmra.mrb[0].mxu0 %v3397
        %v4315 = vpop.f32.mrb[0].mxu0
        %v4316 = vadd.f32 %v4155, %v4315
        %v4317 = vpop.f32.mrb[0].mxu0
        %v4318 = vpop.f32.mrb[0].mxu0
        %v4319 = vadd.f32 %v4158, %v4318
        %v4320 = vpop.f32.mrb[0].mxu0
        %4321 = vmatprep.mubr.bf16.mxu0 %v3407
        %4322 = vmatmul.mubr.bf16.gmra.mrb[0].mxu0 %v3406
        %v4323 = vpop.f32.mrb[0].mxu0
        %v4324 = vadd.f32 %v4163, %v4323
        %v4325 = vpop.f32.mrb[0].mxu0
        %v4326 = vpop.f32.mrb[0].mxu0
        %v4327 = vadd.f32 %v4166, %v4326
        %v4328 = vpop.f32.mrb[0].mxu0
        %4329 = vdwg.mxu0
        %4330 = vmatprep.subr.bf16.mxu0 0
        %4331 = vmatpush1.bf16.msra.mxu0 %v3751
        %4332 = vmatprep.subr.bf16.mxu0 0
        %4333 = vmatpush1.bf16.msra.mxu0 %v3752
        %4334 = vmatprep.subr.bf16.mxu0 0
        %4335 = vmatpush1.bf16.msra.mxu0 %v3753
        %4336 = vmatprep.subr.bf16.mxu0 0
        %4337 = vmatpush1.bf16.msra.mxu0 %v3754
        %4338 = vmatprep.subr.bf16.mxu0 0
        %4339 = vmatpush1.bf16.msra.mxu0 %v3755
        %4340 = vmatprep.subr.bf16.mxu0 0
        %4341 = vmatpush1.bf16.msra.mxu0 %v3756
        %4342 = vmatprep.subr.bf16.mxu0 0
        %4343 = vmatpush1.bf16.msra.mxu0 %v3757
        %4344 = vmatprep.subr.bf16.mxu0 0
        %4345 = vmatpush1.bf16.msra.mxu0 %v3758
        %4346 = vmatprep.subr.bf16.mxu0 0
        %4347 = vmatpush1.bf16.msra.mxu0 %v3759
        %4348 = vmatprep.subr.bf16.mxu0 0
        %4349 = vmatpush1.bf16.msra.mxu0 %v3760
        %4350 = vmatprep.subr.bf16.mxu0 0
        %4351 = vmatpush1.bf16.msra.mxu0 %v3761
        %4352 = vmatprep.subr.bf16.mxu0 0
        %4353 = vmatpush1.bf16.msra.mxu0 %v3762
        %4354 = vmatprep.subr.bf16.mxu0 0
        %4355 = vmatpush1.bf16.msra.mxu0 %v3763
        %4356 = vmatprep.subr.bf16.mxu0 0
        %4357 = vmatpush1.bf16.msra.mxu0 %v3764
        %4358 = vmatprep.subr.bf16.mxu0 0
        %4359 = vmatpush1.bf16.msra.mxu0 %v3765
        %4360 = vmatprep.subr.bf16.mxu0 0
        %4361 = vmatpush1.bf16.msra.mxu0 %v3766
        %4362 = vmatprep.mubr.bf16.mxu0 %v3274
        %4363 = vmatmul.mubr.bf16.gmra.mrb[0].mxu0 %v3273
        %v4364 = vpop.f32.mrb[0].mxu0
        %v4365 = vadd.f32 %v4204, %v4364
        %v4366 = vpop.f32.mrb[0].mxu0
        %v4367 = vpop.f32.mrb[0].mxu0
        %v4368 = vadd.f32 %v4207, %v4367
        %v4369 = vpop.f32.mrb[0].mxu0
        %4370 = vmatprep.mubr.bf16.mxu0 %v3283
        %4371 = vmatmul.mubr.bf16.gmra.mrb[0].mxu0 %v3282
        %v4372 = vpop.f32.mrb[0].mxu0
        %v4373 = vadd.f32 %v4212, %v4372
        %v4374 = vpop.f32.mrb[0].mxu0
        %v4375 = vpop.f32.mrb[0].mxu0
        %v4376 = vadd.f32 %v4215, %v4375
        %v4377 = vpop.f32.mrb[0].mxu0
        %4378 = vmatprep.mubr.bf16.mxu0 %v3292
        %4379 = vmatmul.mubr.bf16.gmra.mrb[0].mxu0 %v3291
        %v4380 = vpop.f32.mrb[0].mxu0
        %v4381 = vadd.f32 %v4220, %v4380
        %v4382 = vpop.f32.mrb[0].mxu0
        %v4383 = vpop.f32.mrb[0].mxu0
        %v4384 = vadd.f32 %v4223, %v4383
        %v4385 = vpop.f32.mrb[0].mxu0
        %4386 = vmatprep.mubr.bf16.mxu0 %v3301
        %4387 = vmatmul.mubr.bf16.gmra.mrb[0].mxu0 %v3300
        %v4388 = vpop.f32.mrb[0].mxu0
        %v4389 = vadd.f32 %v4228, %v4388
        %v4390 = vpop.f32.mrb[0].mxu0
        %v4391 = vpop.f32.mrb[0].mxu0
        %v4392 = vadd.f32 %v4231, %v4391
        %v4393 = vpop.f32.mrb[0].mxu0
        %4394 = vmatprep.mubr.bf16.mxu0 %v3310
        %4395 = vmatmul.mubr.bf16.gmra.mrb[0].mxu0 %v3309
        %v4396 = vpop.f32.mrb[0].mxu0
        %v4397 = vadd.f32 %v4236, %v4396
        %v4398 = vpop.f32.mrb[0].mxu0
        %v4399 = vpop.f32.mrb[0].mxu0
        %v4400 = vadd.f32 %v4239, %v4399
        %v4401 = vpop.f32.mrb[0].mxu0
        %4402 = vmatprep.mubr.bf16.mxu0 %v3319
        %4403 = vmatmul.mubr.bf16.gmra.mrb[0].mxu0 %v3318
        %v4404 = vpop.f32.mrb[0].mxu0
        %v4405 = vadd.f32 %v4244, %v4404
        %v4406 = vpop.f32.mrb[0].mxu0
        %v4407 = vpop.f32.mrb[0].mxu0
        %v4408 = vadd.f32 %v4247, %v4407
        %v4409 = vpop.f32.mrb[0].mxu0
        %4410 = vmatprep.mubr.bf16.mxu0 %v3328
        %4411 = vmatmul.mubr.bf16.gmra.mrb[0].mxu0 %v3327
        %v4412 = vpop.f32.mrb[0].mxu0
        %v4413 = vadd.f32 %v4252, %v4412
        %v4414 = vpop.f32.mrb[0].mxu0
        %v4415 = vpop.f32.mrb[0].mxu0
        %v4416 = vadd.f32 %v4255, %v4415
        %v4417 = vpop.f32.mrb[0].mxu0
        %4418 = vmatprep.mubr.bf16.mxu0 %v3337
        %4419 = vmatmul.mubr.bf16.gmra.mrb[0].mxu0 %v3336
        %v4420 = vpop.f32.mrb[0].mxu0
        %v4421 = vadd.f32 %v4260, %v4420
        %v4422 = vpop.f32.mrb[0].mxu0
        %v4423 = vpop.f32.mrb[0].mxu0
        %v4424 = vadd.f32 %v4263, %v4423
        %v4425 = vpop.f32.mrb[0].mxu0
        %4426 = vmatprep.mubr.bf16.mxu0 %v3346
        %4427 = vmatmul.mubr.bf16.gmra.mrb[0].mxu0 %v3345
        %v4428 = vpop.f32.mrb[0].mxu0
        %v4429 = vadd.f32 %v4268, %v4428
        %v4430 = vpop.f32.mrb[0].mxu0
        %v4431 = vpop.f32.mrb[0].mxu0
        %v4432 = vadd.f32 %v4271, %v4431
        %v4433 = vpop.f32.mrb[0].mxu0
        %4434 = vmatprep.mubr.bf16.mxu0 %v3355
        %4435 = vmatmul.mubr.bf16.gmra.mrb[0].mxu0 %v3354
        %v4436 = vpop.f32.mrb[0].mxu0
        %v4437 = vadd.f32 %v4276, %v4436
        %v4438 = vpop.f32.mrb[0].mxu0
        %v4439 = vpop.f32.mrb[0].mxu0
        %v4440 = vadd.f32 %v4279, %v4439
        %v4441 = vpop.f32.mrb[0].mxu0
        %4442 = vmatprep.mubr.bf16.mxu0 %v3364
        %4443 = vmatmul.mubr.bf16.gmra.mrb[0].mxu0 %v3363
        %v4444 = vpop.f32.mrb[0].mxu0
        %v4445 = vadd.f32 %v4284, %v4444
        %v4446 = vpop.f32.mrb[0].mxu0
        %v4447 = vpop.f32.mrb[0].mxu0
        %v4448 = vadd.f32 %v4287, %v4447
        %v4449 = vpop.f32.mrb[0].mxu0
        %4450 = vmatprep.mubr.bf16.mxu0 %v3373
        %4451 = vmatmul.mubr.bf16.gmra.mrb[0].mxu0 %v3372
        %v4452 = vpop.f32.mrb[0].mxu0
        %v4453 = vadd.f32 %v4292, %v4452
        %v4454 = vpop.f32.mrb[0].mxu0
        %v4455 = vpop.f32.mrb[0].mxu0
        %v4456 = vadd.f32 %v4295, %v4455
        %v4457 = vpop.f32.mrb[0].mxu0
        %4458 = vmatprep.mubr.bf16.mxu0 %v3382
        %4459 = vmatmul.mubr.bf16.gmra.mrb[0].mxu0 %v3381
        %v4460 = vpop.f32.mrb[0].mxu0
        %v4461 = vadd.f32 %v4300, %v4460
        %v4462 = vpop.f32.mrb[0].mxu0
        %v4463 = vpop.f32.mrb[0].mxu0
        %v4464 = vadd.f32 %v4303, %v4463
        %v4465 = vpop.f32.mrb[0].mxu0
        %4466 = vmatprep.mubr.bf16.mxu0 %v3391
        %4467 = vmatmul.mubr.bf16.gmra.mrb[0].mxu0 %v3390
        %v4468 = vpop.f32.mrb[0].mxu0
        %v4469 = vadd.f32 %v4308, %v4468
        %v4470 = vpop.f32.mrb[0].mxu0
        %v4471 = vpop.f32.mrb[0].mxu0
        %v4472 = vadd.f32 %v4311, %v4471
        %v4473 = vpop.f32.mrb[0].mxu0
        %4474 = vmatprep.mubr.bf16.mxu0 %v3400
        %4475 = vmatmul.mubr.bf16.gmra.mrb[0].mxu0 %v3399
        %v4476 = vpop.f32.mrb[0].mxu0
        %v4477 = vadd.f32 %v4316, %v4476
        %v4478 = vpop.f32.mrb[0].mxu0
        %v4479 = vpop.f32.mrb[0].mxu0
        %v4480 = vadd.f32 %v4319, %v4479
        %v4481 = vpop.f32.mrb[0].mxu0
        %4482 = vmatprep.mubr.bf16.mxu0 %v3409
        %4483 = vmatmul.mubr.bf16.gmra.mrb[0].mxu0 %v3408
        %v4484 = vpop.f32.mrb[0].mxu0
        %v4485 = vadd.f32 %v4324, %v4484
        %v4486 = vpop.f32.mrb[0].mxu0
        %v4487 = vpop.f32.mrb[0].mxu0
        %v4488 = vadd.f32 %v4327, %v4487
        %v4489 = vpop.f32.mrb[0].mxu0
        %4490 = vdwg.mxu0
        %4491 = vmatprep.subr.bf16.mxu0 0
        %4492 = vmatpush1.bf16.msra.mxu0 %v3767
        %4493 = vmatprep.subr.bf16.mxu0 0
        %4494 = vmatpush1.bf16.msra.mxu0 %v3768
        %4495 = vmatprep.subr.bf16.mxu0 0
        %4496 = vmatpush1.bf16.msra.mxu0 %v3769
        %4497 = vmatprep.subr.bf16.mxu0 0
        %4498 = vmatpush1.bf16.msra.mxu0 %v3770
        %4499 = vmatprep.subr.bf16.mxu0 0
        %4500 = vmatpush1.bf16.msra.mxu0 %v3771
        %4501 = vmatprep.subr.bf16.mxu0 0
        %4502 = vmatpush1.bf16.msra.mxu0 %v3772
        %4503 = vmatprep.subr.bf16.mxu0 0
        %4504 = vmatpush1.bf16.msra.mxu0 %v3773
        %4505 = vmatprep.subr.bf16.mxu0 0
        %4506 = vmatpush1.bf16.msra.mxu0 %v3774
        %4507 = vmatprep.subr.bf16.mxu0 0
        %4508 = vmatpush1.bf16.msra.mxu0 0
        %4509 = vmatprep.subr.bf16.mxu0 0
        %4510 = vmatpush1.bf16.msra.mxu0 0
        %4511 = vmatprep.subr.bf16.mxu0 0
        %4512 = vmatpush1.bf16.msra.mxu0 0
        %4513 = vmatprep.subr.bf16.mxu0 0
        %4514 = vmatpush1.bf16.msra.mxu0 0
        %4515 = vmatprep.subr.bf16.mxu0 0
        %4516 = vmatpush1.bf16.msra.mxu0 0
        %4517 = vmatprep.subr.bf16.mxu0 0
        %4518 = vmatpush1.bf16.msra.mxu0 0
        %4519 = vmatprep.subr.bf16.mxu0 0
        %4520 = vmatpush1.bf16.msra.mxu0 0
        %4521 = vmatprep.subr.bf16.mxu0 0
        %4522 = vmatpush1.bf16.msra.mxu0 0
        %4523 = vmatprep.mubr.bf16.mxu0 0
        %4524 = vmatmul.mubr.bf16.gmra.mrb[0].mxu0 %v3275
        %v4525 = vpop.f32.mrb[0].mxu0
        %v4526 = vadd.f32 %v4365, %v4525
        %v4527 = vpop.f32.mrb[0].mxu0
        %v4528 = vpop.f32.mrb[0].mxu0
        %v4529 = vadd.f32 %v4368, %v4528
        %v4530 = vpop.f32.mrb[0].mxu0
        %4531 = vmatprep.mubr.bf16.mxu0 0
        %4532 = vmatmul.mubr.bf16.gmra.mrb[0].mxu0 %v3284
        %v4533 = vpop.f32.mrb[0].mxu0
        %v4534 = vadd.f32 %v4373, %v4533
        %v4535 = vpop.f32.mrb[0].mxu0
        %v4536 = vpop.f32.mrb[0].mxu0
        %v4537 = vadd.f32 %v4376, %v4536
        %v4538 = vpop.f32.mrb[0].mxu0
        %4539 = vmatprep.mubr.bf16.mxu0 0
        %4540 = vmatmul.mubr.bf16.gmra.mrb[0].mxu0 %v3293
        %v4541 = vpop.f32.mrb[0].mxu0
        %v4542 = vadd.f32 %v4381, %v4541
        %v4543 = vpop.f32.mrb[0].mxu0
        %v4544 = vpop.f32.mrb[0].mxu0
        %v4545 = vadd.f32 %v4384, %v4544
        %v4546 = vpop.f32.mrb[0].mxu0
        %4547 = vmatprep.mubr.bf16.mxu0 0
        %4548 = vmatmul.mubr.bf16.gmra.mrb[0].mxu0 %v3302
        %v4549 = vpop.f32.mrb[0].mxu0
        %v4550 = vadd.f32 %v4389, %v4549
        %v4551 = vpop.f32.mrb[0].mxu0
        %v4552 = vpop.f32.mrb[0].mxu0
        %v4553 = vadd.f32 %v4392, %v4552
        %v4554 = vpop.f32.mrb[0].mxu0
        %4555 = vmatprep.mubr.bf16.mxu0 0
        %4556 = vmatmul.mubr.bf16.gmra.mrb[0].mxu0 %v3311
        %v4557 = vpop.f32.mrb[0].mxu0
        %v4558 = vadd.f32 %v4397, %v4557
        %v4559 = vpop.f32.mrb[0].mxu0
        %v4560 = vpop.f32.mrb[0].mxu0
        %v4561 = vadd.f32 %v4400, %v4560
        %v4562 = vpop.f32.mrb[0].mxu0
        %4563 = vmatprep.mubr.bf16.mxu0 0
        %4564 = vmatmul.mubr.bf16.gmra.mrb[0].mxu0 %v3320
        %v4565 = vpop.f32.mrb[0].mxu0
        %v4566 = vadd.f32 %v4405, %v4565
        %v4567 = vpop.f32.mrb[0].mxu0
        %v4568 = vpop.f32.mrb[0].mxu0
        %v4569 = vadd.f32 %v4408, %v4568
        %v4570 = vpop.f32.mrb[0].mxu0
        %4571 = vmatprep.mubr.bf16.mxu0 0
        %4572 = vmatmul.mubr.bf16.gmra.mrb[0].mxu0 %v3329
        %v4573 = vpop.f32.mrb[0].mxu0
        %v4574 = vadd.f32 %v4413, %v4573
        %v4575 = vpop.f32.mrb[0].mxu0
        %v4576 = vpop.f32.mrb[0].mxu0
        %v4577 = vadd.f32 %v4416, %v4576
        %v4578 = vpop.f32.mrb[0].mxu0
        %4579 = vmatprep.mubr.bf16.mxu0 0
        %4580 = vmatmul.mubr.bf16.gmra.mrb[0].mxu0 %v3338
        %v4581 = vpop.f32.mrb[0].mxu0
        %v4582 = vadd.f32 %v4421, %v4581
        %v4583 = vpop.f32.mrb[0].mxu0
        %v4584 = vpop.f32.mrb[0].mxu0
        %v4585 = vadd.f32 %v4424, %v4584
        %v4586 = vpop.f32.mrb[0].mxu0
        %4587 = vmatprep.mubr.bf16.mxu0 0
        %4588 = vmatmul.mubr.bf16.gmra.mrb[0].mxu0 %v3347
        %v4589 = vpop.f32.mrb[0].mxu0
        %v4590 = vadd.f32 %v4429, %v4589
        %v4591 = vpop.f32.mrb[0].mxu0
        %v4592 = vpop.f32.mrb[0].mxu0
        %v4593 = vadd.f32 %v4432, %v4592
        %v4594 = vpop.f32.mrb[0].mxu0
        %4595 = vmatprep.mubr.bf16.mxu0 0
        %4596 = vmatmul.mubr.bf16.gmra.mrb[0].mxu0 %v3356
        %v4597 = vpop.f32.mrb[0].mxu0
        %v4598 = vadd.f32 %v4437, %v4597
        %v4599 = vpop.f32.mrb[0].mxu0
        %v4600 = vpop.f32.mrb[0].mxu0
        %v4601 = vadd.f32 %v4440, %v4600
        %v4602 = vpop.f32.mrb[0].mxu0
        %4603 = vmatprep.mubr.bf16.mxu0 0
        %4604 = vmatmul.mubr.bf16.gmra.mrb[0].mxu0 %v3365
        %v4605 = vpop.f32.mrb[0].mxu0
        %v4606 = vadd.f32 %v4445, %v4605
        %v4607 = vpop.f32.mrb[0].mxu0
        %v4608 = vpop.f32.mrb[0].mxu0
        %v4609 = vadd.f32 %v4448, %v4608
        %v4610 = vpop.f32.mrb[0].mxu0
        %4611 = vmatprep.mubr.bf16.mxu0 0
        %4612 = vmatmul.mubr.bf16.gmra.mrb[0].mxu0 %v3374
        %v4613 = vpop.f32.mrb[0].mxu0
        %v4614 = vadd.f32 %v4453, %v4613
        %v4615 = vpop.f32.mrb[0].mxu0
        %v4616 = vpop.f32.mrb[0].mxu0
        %v4617 = vadd.f32 %v4456, %v4616
        %v4618 = vpop.f32.mrb[0].mxu0
        %4619 = vmatprep.mubr.bf16.mxu0 0
        %4620 = vmatmul.mubr.bf16.gmra.mrb[0].mxu0 %v3383
        %v4621 = vpop.f32.mrb[0].mxu0
        %v4622 = vadd.f32 %v4461, %v4621
        %v4623 = vpop.f32.mrb[0].mxu0
        %v4624 = vpop.f32.mrb[0].mxu0
        %v4625 = vadd.f32 %v4464, %v4624
        %v4626 = vpop.f32.mrb[0].mxu0
        %4627 = vmatprep.mubr.bf16.mxu0 0
        %4628 = vmatmul.mubr.bf16.gmra.mrb[0].mxu0 %v3392
        %v4629 = vpop.f32.mrb[0].mxu0
        %v4630 = vadd.f32 %v4469, %v4629
        %v4631 = vpop.f32.mrb[0].mxu0
        %v4632 = vpop.f32.mrb[0].mxu0
        %v4633 = vadd.f32 %v4472, %v4632
        %v4634 = vpop.f32.mrb[0].mxu0
        %4635 = vmatprep.mubr.bf16.mxu0 0
        %4636 = vmatmul.mubr.bf16.gmra.mrb[0].mxu0 %v3401
        %v4637 = vpop.f32.mrb[0].mxu0
        %v4638 = vadd.f32 %v4477, %v4637
        %v4639 = vpop.f32.mrb[0].mxu0
        %v4640 = vpop.f32.mrb[0].mxu0
        %v4641 = vadd.f32 %v4480, %v4640
        %v4642 = vpop.f32.mrb[0].mxu0
        %4643 = vmatprep.mubr.bf16.mxu0 0
        %4644 = vmatmul.mubr.bf16.gmra.mrb[0].mxu0 %v3410
        %v4645 = vpop.f32.mrb[0].mxu0
        %v4646 = vadd.f32 %v4485, %v4645
        %v4647 = vpop.f32.mrb[0].mxu0
        %v4648 = vpop.f32.mrb[0].mxu0
        %v4649 = vadd.f32 %v4488, %v4648
        %v4650 = vpop.f32.mrb[0].mxu0
        %4651 = vdwg.mxu0
        %v4652 = vmax.f32 %v4526, 0.0
        %v4653 = vmax.f32 %v4529, 0.0
        %v4654 = vmax.f32 %v4534, 0.0
        %v4655 = vmax.f32 %v4537, 0.0
        %v4656 = vmax.f32 %v4542, 0.0
        %v4657 = vmax.f32 %v4545, 0.0
        %v4658 = vmax.f32 %v4550, 0.0
        %v4659 = vmax.f32 %v4553, 0.0
        %v4660 = vmax.f32 %v4558, 0.0
        %v4661 = vmax.f32 %v4561, 0.0
        %v4662 = vmax.f32 %v4566, 0.0
        %v4663 = vmax.f32 %v4569, 0.0
        %v4664 = vmax.f32 %v4574, 0.0
        %v4665 = vmax.f32 %v4577, 0.0
        %v4666 = vmax.f32 %v4582, 0.0
        %v4667 = vmax.f32 %v4585, 0.0
        %v4668 = vmax.f32 %v4590, 0.0
        %v4669 = vmax.f32 %v4593, 0.0
        %v4670 = vmax.f32 %v4598, 0.0
        %v4671 = vmax.f32 %v4601, 0.0
        %v4672 = vmax.f32 %v4606, 0.0
        %v4673 = vmax.f32 %v4609, 0.0
        %v4674 = vmax.f32 %v4614, 0.0
        %v4675 = vmax.f32 %v4617, 0.0
        %v4676 = vmax.f32 %v4622, 0.0
        %v4677 = vmax.f32 %v4625, 0.0
        %v4678 = vmax.f32 %v4630, 0.0
        %v4679 = vmax.f32 %v4633, 0.0
        %v4680 = vmax.f32 %v4638, 0.0
        %v4681 = vmax.f32 %v4641, 0.0
        %v4682 = vmax.f32 %v4646, 0.0
        %v4683 = vmax.f32 %v4649, 0.0
        %v4684 = vld [vmem:[%s339 + $0x8] sm:$0xff]
        %v4685 = vld [vmem:[%s339 + $0x10] sm:$0xff]
        %v4686 = vld [vmem:[%s339 + $0x28] sm:$0xff]
        %v4687 = vld [vmem:[%s339 + $0x30] sm:$0xff]
        %v4688 = vld [vmem:[%s339 + $0x48] sm:$0xff]
        %v4689 = vld [vmem:[%s339 + $0x50] sm:$0xff]
        %v4690 = vld [vmem:[%s339 + $0x68] sm:$0xff]
        %v4691 = vld [vmem:[%s339 + $0x70] sm:$0xff]
        %v4692 = vld [vmem:[%s339 + $0x88] sm:$0xff]
        %v4693 = vld [vmem:[%s339 + $0x90] sm:$0xff]
        %v4694 = vld [vmem:[%s339 + $0xa8] sm:$0xff]
        %v4695 = vld [vmem:[%s339 + $0xb0] sm:$0xff]
        %v4696 = vld [vmem:[%s339 + $0xc8] sm:$0xff]
        %v4697 = vld [vmem:[%s339 + $0xd0] sm:$0xff]
        %v4698 = vld [vmem:[%s339 + $0xe8] sm:$0xff]
        %v4699 = vld [vmem:[%s339 + $0xf0] sm:$0xff]
        %v4700 = vld [vmem:[%s339 + $0x108] sm:$0xff]
        %v4701 = vld [vmem:[%s339 + $0x110] sm:$0xff]
        %v4702 = vld [vmem:[%s339 + $0x128] sm:$0xff]
        %v4703 = vld [vmem:[%s339 + $0x130] sm:$0xff]
        %v4704 = vld [vmem:[%s339 + $0x148] sm:$0xff]
        %v4705 = vld [vmem:[%s339 + $0x150] sm:$0xff]
        %v4706 = vld [vmem:[%s339 + $0x168] sm:$0xff]
        %v4707 = vld [vmem:[%s339 + $0x170] sm:$0xff]
        %v4708 = vld [vmem:[%s339 + $0x188] sm:$0xff]
        %v4709 = vld [vmem:[%s339 + $0x190] sm:$0xff]
        %v4710 = vld [vmem:[%s339 + $0x1a8] sm:$0xff]
        %v4711 = vld [vmem:[%s339 + $0x1b0] sm:$0xff]
        %v4712 = vld [vmem:[%s339 + $0x1c8] sm:$0xff]
        %v4713 = vld [vmem:[%s339 + $0x1d0] sm:$0xff]
        %v4714 = vld [vmem:[%s339 + $0x1e8] sm:$0xff]
        %v4715 = vld [vmem:[%s339 + $0x1f0] sm:$0xff]
        %v4716 = vadd.f32 %v4684, %v4652
        %v4717 = vadd.f32 %v4685, %v4653
        %v4718 = vadd.f32 %v4686, %v4654
        %v4719 = vadd.f32 %v4687, %v4655
        %v4720 = vadd.f32 %v4688, %v4656
        %v4721 = vadd.f32 %v4689, %v4657
        %v4722 = vadd.f32 %v4690, %v4658
        %v4723 = vadd.f32 %v4691, %v4659
        %v4724 = vadd.f32 %v4692, %v4660
        %v4725 = vadd.f32 %v4693, %v4661
        %v4726 = vadd.f32 %v4694, %v4662
        %v4727 = vadd.f32 %v4695, %v4663
        %v4728 = vadd.f32 %v4696, %v4664
        %v4729 = vadd.f32 %v4697, %v4665
        %v4730 = vadd.f32 %v4698, %v4666
        %v4731 = vadd.f32 %v4699, %v4667
        %v4732 = vadd.f32 %v4700, %v4668
        %v4733 = vadd.f32 %v4701, %v4669
        %v4734 = vadd.f32 %v4702, %v4670
        %v4735 = vadd.f32 %v4703, %v4671
        %v4736 = vadd.f32 %v4704, %v4672
        %v4737 = vadd.f32 %v4705, %v4673
        %v4738 = vadd.f32 %v4706, %v4674
        %v4739 = vadd.f32 %v4707, %v4675
        %v4740 = vadd.f32 %v4708, %v4676
        %v4741 = vadd.f32 %v4709, %v4677
        %v4742 = vadd.f32 %v4710, %v4678
        %v4743 = vadd.f32 %v4711, %v4679
        %v4744 = vadd.f32 %v4712, %v4680
        %v4745 = vadd.f32 %v4713, %v4681
        %v4746 = vadd.f32 %v4714, %v4682
        %v4747 = vadd.f32 %v4715, %v4683
        %4748 = vst [vmem:[%s339 + $0x8] sm:$0xff] %v4716
        %4749 = vst [vmem:[%s339 + $0x10] sm:$0xff] %v4717
        %4750 = vst [vmem:[%s339 + $0x28] sm:$0xff] %v4718
        %4751 = vst [vmem:[%s339 + $0x30] sm:$0xff] %v4719
        %4752 = vst [vmem:[%s339 + $0x48] sm:$0xff] %v4720
        %4753 = vst [vmem:[%s339 + $0x50] sm:$0xff] %v4721
        %4754 = vst [vmem:[%s339 + $0x68] sm:$0xff] %v4722
        %4755 = vst [vmem:[%s339 + $0x70] sm:$0xff] %v4723
        %4756 = vst [vmem:[%s339 + $0x88] sm:$0xff] %v4724
        %4757 = vst [vmem:[%s339 + $0x90] sm:$0xff] %v4725
        %4758 = vst [vmem:[%s339 + $0xa8] sm:$0xff] %v4726
        %4759 = vst [vmem:[%s339 + $0xb0] sm:$0xff] %v4727
        %4760 = vst [vmem:[%s339 + $0xc8] sm:$0xff] %v4728
        %4761 = vst [vmem:[%s339 + $0xd0] sm:$0xff] %v4729
        %4762 = vst [vmem:[%s339 + $0xe8] sm:$0xff] %v4730
        %4763 = vst [vmem:[%s339 + $0xf0] sm:$0xff] %v4731
        %4764 = vst [vmem:[%s339 + $0x108] sm:$0xff] %v4732
        %4765 = vst [vmem:[%s339 + $0x110] sm:$0xff] %v4733
        %4766 = vst [vmem:[%s339 + $0x128] sm:$0xff] %v4734
        %4767 = vst [vmem:[%s339 + $0x130] sm:$0xff] %v4735
        %4768 = vst [vmem:[%s339 + $0x148] sm:$0xff] %v4736
        %4769 = vst [vmem:[%s339 + $0x150] sm:$0xff] %v4737
        %4770 = vst [vmem:[%s339 + $0x168] sm:$0xff] %v4738
        %4771 = vst [vmem:[%s339 + $0x170] sm:$0xff] %v4739
        %4772 = vst [vmem:[%s339 + $0x188] sm:$0xff] %v4740
        %4773 = vst [vmem:[%s339 + $0x190] sm:$0xff] %v4741
        %4774 = vst [vmem:[%s339 + $0x1a8] sm:$0xff] %v4742
        %4775 = vst [vmem:[%s339 + $0x1b0] sm:$0xff] %v4743
        %4776 = vst [vmem:[%s339 + $0x1c8] sm:$0xff] %v4744
        %4777 = vst [vmem:[%s339 + $0x1d0] sm:$0xff] %v4745
        %4778 = vst [vmem:[%s339 + $0x1e8] sm:$0xff] %v4746
        %4779 = vst [vmem:[%s339 + $0x1f0] sm:$0xff] %v4747
        %s4780 = scalar_lea.vmem [#allocation8], 1152
        %v4781 = vld [vmem:[%s4780] sm:$0xf]
        %v4782 = vld [vmem:[%s4780 + $0x4] sm:$0xf]
        %v4783 = vld [vmem:[%s4780 + $0x8] sm:$0xf]
        %v4784 = vld [vmem:[%s4780 + $0xc] sm:$0xf]
        %v4785 = vld [vmem:[%s4780 + $0x10] sm:$0xf]
        %v4786 = vld [vmem:[%s4780 + $0x14] sm:$0xf]
        %v4787 = vld [vmem:[%s4780 + $0x18] sm:$0xf]
        %v4788 = vld [vmem:[%s4780 + $0x1c] sm:$0xf]
        %v4789 = vld [vmem:[%s4780 + $0x20] sm:$0xf]
        %v4790 = vld [vmem:[%s4780 + $0x24] sm:$0xf]
        %v4791 = vld [vmem:[%s4780 + $0x28] sm:$0xf]
        %v4792 = vld [vmem:[%s4780 + $0x2c] sm:$0xf]
        %v4793 = vld [vmem:[%s4780 + $0x30] sm:$0xf]
        %v4794 = vld [vmem:[%s4780 + $0x34] sm:$0xf]
        %v4795 = vld [vmem:[%s4780 + $0x38] sm:$0xf]
        %v4796 = vld [vmem:[%s4780 + $0x3c] sm:$0xf]
        %v4797 = vld [vmem:[%s4780 + $0x40] sm:$0xf]
        %v4798 = vld [vmem:[%s4780 + $0x44] sm:$0xf]
        %v4799 = vld [vmem:[%s4780 + $0x48] sm:$0xf]
        %v4800 = vld [vmem:[%s4780 + $0x4c] sm:$0xf]
        %v4801 = vld [vmem:[%s4780 + $0x50] sm:$0xf]
        %v4802 = vld [vmem:[%s4780 + $0x54] sm:$0xf]
        %v4803 = vld [vmem:[%s4780 + $0x58] sm:$0xf]
        %v4804 = vld [vmem:[%s4780 + $0x5c] sm:$0xf]
        %v4805 = vld [vmem:[%s4780 + $0x60] sm:$0xf]
        %v4806 = vld [vmem:[%s4780 + $0x64] sm:$0xf]
        %v4807 = vld [vmem:[%s4780 + $0x68] sm:$0xf]
        %v4808 = vld [vmem:[%s4780 + $0x6c] sm:$0xf]
        %v4809 = vld [vmem:[%s4780 + $0x70] sm:$0xf]
        %v4810 = vld [vmem:[%s4780 + $0x74] sm:$0xf]
        %v4811 = vld [vmem:[%s4780 + $0x78] sm:$0xf]
        %v4812 = vld [vmem:[%s4780 + $0x7c] sm:$0xf]
        %v4813 = vld [vmem:[%s4780 + $0x80] sm:$0xf]
        %v4814 = vld [vmem:[%s4780 + $0x84] sm:$0xf]
        %v4815 = vld [vmem:[%s4780 + $0x88] sm:$0xf]
        %v4816 = vld [vmem:[%s4780 + $0x8c] sm:$0xf]
        %v4817 = vld [vmem:[%s4780 + $0x90] sm:$0xf]
        %v4818 = vld [vmem:[%s4780 + $0x94] sm:$0xf]
        %v4819 = vld [vmem:[%s4780 + $0x98] sm:$0xf]
        %v4820 = vld [vmem:[%s4780 + $0x9c] sm:$0xf]
        %v4821 = vld [vmem:[%s4780 + $0xa0] sm:$0xf]
        %v4822 = vld [vmem:[%s4780 + $0xa4] sm:$0xf]
        %v4823 = vld [vmem:[%s4780 + $0xa8] sm:$0xf]
        %v4824 = vld [vmem:[%s4780 + $0xac] sm:$0xf]
        %v4825 = vld [vmem:[%s4780 + $0xb0] sm:$0xf]
        %v4826 = vld [vmem:[%s4780 + $0xb4] sm:$0xf]
        %v4827 = vld [vmem:[%s4780 + $0xb8] sm:$0xf]
        %v4828 = vld [vmem:[%s4780 + $0xbc] sm:$0xf]
        %v4829 = vld [vmem:[%s4780 + $0xc0] sm:$0xf]
        %v4830 = vld [vmem:[%s4780 + $0xc4] sm:$0xf]
        %v4831 = vld [vmem:[%s4780 + $0xc8] sm:$0xf]
        %v4832 = vld [vmem:[%s4780 + $0xcc] sm:$0xf]
        %v4833 = vld [vmem:[%s4780 + $0xd0] sm:$0xf]
        %v4834 = vld [vmem:[%s4780 + $0xd4] sm:$0xf]
        %v4835 = vld [vmem:[%s4780 + $0xd8] sm:$0xf]
        %v4836 = vld [vmem:[%s4780 + $0xdc] sm:$0xf]
        %v4837 = vld [vmem:[%s4780 + $0xe0] sm:$0xf]
        %v4838 = vld [vmem:[%s4780 + $0xe4] sm:$0xf]
        %v4839 = vld [vmem:[%s4780 + $0xe8] sm:$0xf]
        %v4840 = vld [vmem:[%s4780 + $0xec] sm:$0xf]
        %v4841 = vld [vmem:[%s4780 + $0xf0] sm:$0xf]
        %v4842 = vld [vmem:[%s4780 + $0xf4] sm:$0xf]
        %v4843 = vld [vmem:[%s4780 + $0xf8] sm:$0xf]
        %v4844 = vld [vmem:[%s4780 + $0xfc] sm:$0xf]
        %v4845 = vld [vmem:[%s4780 + $0x100] sm:$0xf]
        %v4846 = vld [vmem:[%s4780 + $0x104] sm:$0xf]
        %v4847 = vld [vmem:[%s4780 + $0x108] sm:$0xf]
        %v4848 = vld [vmem:[%s4780 + $0x10c] sm:$0xf]
        %v4849 = vld [vmem:[%s4780 + $0x110] sm:$0xf]
        %v4850 = vld [vmem:[%s4780 + $0x114] sm:$0xf]
        %v4851 = vld [vmem:[%s4780 + $0x118] sm:$0xf]
        %v4852 = vld [vmem:[%s4780 + $0x11c] sm:$0xf]
        %v4853 = vld [vmem:[%s4780 + $0x120] sm:$0xf]
        %v4854 = vld [vmem:[%s4780 + $0x124] sm:$0xf]
        %v4855 = vld [vmem:[%s4780 + $0x128] sm:$0xf]
        %v4856 = vld [vmem:[%s4780 + $0x12c] sm:$0xf]
        %v4857 = vld [vmem:[%s4780 + $0x130] sm:$0xf]
        %v4858 = vld [vmem:[%s4780 + $0x134] sm:$0xf]
        %v4859 = vld [vmem:[%s4780 + $0x138] sm:$0xf]
        %v4860 = vld [vmem:[%s4780 + $0x13c] sm:$0xf]
        %v4861 = vld [vmem:[%s4780 + $0x140] sm:$0xf]
        %v4862 = vld [vmem:[%s4780 + $0x144] sm:$0xf]
        %v4863 = vld [vmem:[%s4780 + $0x148] sm:$0xf]
        %v4864 = vld [vmem:[%s4780 + $0x14c] sm:$0xf]
        %v4865 = vld [vmem:[%s4780 + $0x150] sm:$0xf]
        %v4866 = vld [vmem:[%s4780 + $0x154] sm:$0xf]
        %v4867 = vld [vmem:[%s4780 + $0x158] sm:$0xf]
        %v4868 = vld [vmem:[%s4780 + $0x15c] sm:$0xf]
        %v4869 = vld [vmem:[%s4780 + $0x160] sm:$0xf]
        %v4870 = vld [vmem:[%s4780 + $0x164] sm:$0xf]
        %v4871 = vld [vmem:[%s4780 + $0x168] sm:$0xf]
        %v4872 = vld [vmem:[%s4780 + $0x16c] sm:$0xf]
        %v4873 = vld [vmem:[%s4780 + $0x170] sm:$0xf]
        %v4874 = vld [vmem:[%s4780 + $0x174] sm:$0xf]
        %v4875 = vld [vmem:[%s4780 + $0x178] sm:$0xf]
        %v4876 = vld [vmem:[%s4780 + $0x17c] sm:$0xf]
        %v4877 = vld [vmem:[%s4780 + $0x180] sm:$0xf]
        %v4878 = vld [vmem:[%s4780 + $0x184] sm:$0xf]
        %v4879 = vld [vmem:[%s4780 + $0x188] sm:$0xf]
        %v4880 = vld [vmem:[%s4780 + $0x18c] sm:$0xf]
        %v4881 = vld [vmem:[%s4780 + $0x190] sm:$0xf]
        %v4882 = vld [vmem:[%s4780 + $0x194] sm:$0xf]
        %v4883 = vld [vmem:[%s4780 + $0x198] sm:$0xf]
        %v4884 = vld [vmem:[%s4780 + $0x19c] sm:$0xf]
        %v4885 = vld [vmem:[%s4780 + $0x1a0] sm:$0xf]
        %v4886 = vld [vmem:[%s4780 + $0x1a4] sm:$0xf]
        %v4887 = vld [vmem:[%s4780 + $0x1a8] sm:$0xf]
        %v4888 = vld [vmem:[%s4780 + $0x1ac] sm:$0xf]
        %v4889 = vld [vmem:[%s4780 + $0x1b0] sm:$0xf]
        %v4890 = vld [vmem:[%s4780 + $0x1b4] sm:$0xf]
        %v4891 = vld [vmem:[%s4780 + $0x1b8] sm:$0xf]
        %v4892 = vld [vmem:[%s4780 + $0x1bc] sm:$0xf]
        %v4893 = vld [vmem:[%s4780 + $0x1c0] sm:$0xf]
        %v4894 = vld [vmem:[%s4780 + $0x1c4] sm:$0xf]
        %v4895 = vld [vmem:[%s4780 + $0x1c8] sm:$0xf]
        %v4896 = vld [vmem:[%s4780 + $0x1cc] sm:$0xf]
        %v4897 = vld [vmem:[%s4780 + $0x1d0] sm:$0xf]
        %v4898 = vld [vmem:[%s4780 + $0x1d4] sm:$0xf]
        %v4899 = vld [vmem:[%s4780 + $0x1d8] sm:$0xf]
        %v4900 = vld [vmem:[%s4780 + $0x1dc] sm:$0xf]
        %v4901 = vld [vmem:[%s4780 + $0x1e0] sm:$0xf]
        %v4902 = vld [vmem:[%s4780 + $0x1e4] sm:$0xf]
        %v4903 = vld [vmem:[%s4780 + $0x1e8] sm:$0xf]
        %v4904 = vld [vmem:[%s4780 + $0x1ec] sm:$0xf]
        %v4905 = vld [vmem:[%s4780 + $0x1f0] sm:$0xf]
        %v4906 = vld [vmem:[%s4780 + $0x1f4] sm:$0xf]
        %v4907 = vld [vmem:[%s4780 + $0x1f8] sm:$0xf]
        %v4908 = vld [vmem:[%s4780 + $0x1fc] sm:$0xf]
        %v4909 = vld [vmem:[%s4780 + $0x200] sm:$0xf]
        %v4910 = vld [vmem:[%s4780 + $0x204] sm:$0xf]
        %v4911 = vld [vmem:[%s4780 + $0x208] sm:$0xf]
        %v4912 = vld [vmem:[%s4780 + $0x20c] sm:$0xf]
        %v4913 = vld [vmem:[%s4780 + $0x210] sm:$0xf]
        %v4914 = vld [vmem:[%s4780 + $0x214] sm:$0xf]
        %v4915 = vld [vmem:[%s4780 + $0x218] sm:$0xf]
        %v4916 = vld [vmem:[%s4780 + $0x21c] sm:$0xf]
        %v4917 = vld [vmem:[%s4780 + $0x220] sm:$0xf]
        %v4918 = vld [vmem:[%s4780 + $0x224] sm:$0xf]
        %v4919 = vld [vmem:[%s4780 + $0x228] sm:$0xf]
        %v4920 = vld [vmem:[%s4780 + $0x22c] sm:$0xf]
        %v4921 = vld [vmem:[%s4780 + $0x230] sm:$0xf]
        %v4922 = vld [vmem:[%s4780 + $0x234] sm:$0xf]
        %v4923 = vld [vmem:[%s4780 + $0x238] sm:$0xf]
        %v4924 = vld [vmem:[%s4780 + $0x23c] sm:$0xf]
        %v4925 = vld [vmem:[#allocation10 + $0x2] sm:$0x1]
        %v4926 = vld [vmem:[#allocation2 + $0x7] sm:$0xff]
        %v4927 = vld [vmem:[#allocation2 + $0xf] sm:$0xff]
        %v4928 = vld [vmem:[#allocation2 + $0x27] sm:$0xff]
        %v4929 = vld [vmem:[#allocation2 + $0x2f] sm:$0xff]
        %v4930 = vld [vmem:[#allocation2 + $0x47] sm:$0xff]
        %v4931 = vld [vmem:[#allocation2 + $0x4f] sm:$0xff]
        %v4932 = vld [vmem:[#allocation2 + $0x67] sm:$0xff]
        %v4933 = vld [vmem:[#allocation2 + $0x6f] sm:$0xff]
        %v4934 = vld [vmem:[#allocation2 + $0x87] sm:$0xff]
        %v4935 = vld [vmem:[#allocation2 + $0x8f] sm:$0xff]
        %v4936 = vld [vmem:[#allocation2 + $0xa7] sm:$0xff]
        %v4937 = vld [vmem:[#allocation2 + $0xaf] sm:$0xff]
        %v4938 = vld [vmem:[#allocation2 + $0xc7] sm:$0xff]
        %v4939 = vld [vmem:[#allocation2 + $0xcf] sm:$0xff]
        %v4940 = vld [vmem:[#allocation2 + $0xe7] sm:$0xff]
        %v4941 = vld [vmem:[#allocation2 + $0xef] sm:$0xff]
        %v4942 = vld [vmem:[#allocation2 + $0x107] sm:$0xff]
        %v4943 = vld [vmem:[#allocation2 + $0x10f] sm:$0xff]
        %v4944 = vld [vmem:[#allocation2 + $0x127] sm:$0xff]
        %v4945 = vld [vmem:[#allocation2 + $0x12f] sm:$0xff]
        %v4946 = vld [vmem:[#allocation2 + $0x147] sm:$0xff]
        %v4947 = vld [vmem:[#allocation2 + $0x14f] sm:$0xff]
        %v4948 = vld [vmem:[#allocation2 + $0x167] sm:$0xff]
        %v4949 = vld [vmem:[#allocation2 + $0x16f] sm:$0xff]
        %v4950 = vld [vmem:[#allocation2 + $0x187] sm:$0xff]
        %v4951 = vld [vmem:[#allocation2 + $0x18f] sm:$0xff]
        %v4952 = vld [vmem:[#allocation2 + $0x1a7] sm:$0xff]
        %v4953 = vld [vmem:[#allocation2 + $0x1af] sm:$0xff]
        %v4954 = vld [vmem:[#allocation2 + $0x1c7] sm:$0xff]
        %v4955 = vld [vmem:[#allocation2 + $0x1cf] sm:$0xff]
        %v4956 = vld [vmem:[#allocation2 + $0x1e7] sm:$0xff]
        %v4957 = vld [vmem:[#allocation2 + $0x1ef] sm:$0xff]
        %v4958 = vpack.c.bf16 %v4927, %v4926
        %v4959 = vpack.c.bf16 %v4929, %v4928
        %v4960 = vpack.c.bf16 %v4931, %v4930
        %v4961 = vpack.c.bf16 %v4933, %v4932
        %v4962 = vpack.c.bf16 %v4935, %v4934
        %v4963 = vpack.c.bf16 %v4937, %v4936
        %v4964 = vpack.c.bf16 %v4939, %v4938
        %v4965 = vpack.c.bf16 %v4941, %v4940
        %v4966 = vpack.c.bf16 %v4943, %v4942
        %v4967 = vpack.c.bf16 %v4945, %v4944
        %v4968 = vpack.c.bf16 %v4947, %v4946
        %v4969 = vpack.c.bf16 %v4949, %v4948
        %v4970 = vpack.c.bf16 %v4951, %v4950
        %v4971 = vpack.c.bf16 %v4953, %v4952
        %v4972 = vpack.c.bf16 %v4955, %v4954
        %v4973 = vpack.c.bf16 %v4957, %v4956
        %4974 = vst [vmem:[#allocation4] sm:$0xff] %v4958
        %4975 = vst [vmem:[#allocation4 + $0x48] sm:$0xff] %v4959
        %4976 = vst [vmem:[#allocation4 + $0x90] sm:$0xff] %v4960
        %4977 = vst [vmem:[#allocation4 + $0xd8] sm:$0xff] %v4961
        %4978 = vst [vmem:[#allocation4 + $0x120] sm:$0xff] %v4962
        %4979 = vst [vmem:[#allocation4 + $0x168] sm:$0xff] %v4963
        %4980 = vst [vmem:[#allocation4 + $0x1b0] sm:$0xff] %v4964
        %4981 = vst [vmem:[#allocation4 + $0x1f8] sm:$0xff] %v4965
        %4982 = vst [vmem:[#allocation4 + $0x240] sm:$0xff] %v4966
        %4983 = vst [vmem:[#allocation4 + $0x288] sm:$0xff] %v4967
        %4984 = vst [vmem:[#allocation4 + $0x2d0] sm:$0xff] %v4968
        %4985 = vst [vmem:[#allocation4 + $0x318] sm:$0xff] %v4969
        %4986 = vst [vmem:[#allocation4 + $0x360] sm:$0xff] %v4970
        %4987 = vst [vmem:[#allocation4 + $0x3a8] sm:$0xff] %v4971
        %4988 = vst [vmem:[#allocation4 + $0x3f0] sm:$0xff] %v4972
        %4989 = vst [vmem:[#allocation4 + $0x438] sm:$0xff] %v4973
        %v4990 = vld [vmem:[#allocation2 + $0x8] sm:$0xff]
        %v4991 = vld [vmem:[#allocation2 + $0x10] sm:$0xff]
        %v4992 = vld [vmem:[#allocation2 + $0x28] sm:$0xff]
        %v4993 = vld [vmem:[#allocation2 + $0x30] sm:$0xff]
        %v4994 = vld [vmem:[#allocation2 + $0x48] sm:$0xff]
        %v4995 = vld [vmem:[#allocation2 + $0x50] sm:$0xff]
        %v4996 = vld [vmem:[#allocation2 + $0x68] sm:$0xff]
        %v4997 = vld [vmem:[#allocation2 + $0x70] sm:$0xff]
        %v4998 = vld [vmem:[#allocation2 + $0x88] sm:$0xff]
        %v4999 = vld [vmem:[#allocation2 + $0x90] sm:$0xff]
        %v5000 = vld [vmem:[#allocation2 + $0xa8] sm:$0xff]
        %v5001 = vld [vmem:[#allocation2 + $0xb0] sm:$0xff]
        %v5002 = vld [vmem:[#allocation2 + $0xc8] sm:$0xff]
        %v5003 = vld [vmem:[#allocation2 + $0xd0] sm:$0xff]
        %v5004 = vld [vmem:[#allocation2 + $0xe8] sm:$0xff]
        %v5005 = vld [vmem:[#allocation2 + $0xf0] sm:$0xff]
        %v5006 = vld [vmem:[#allocation2 + $0x108] sm:$0xff]
        %v5007 = vld [vmem:[#allocation2 + $0x110] sm:$0xff]
        %v5008 = vld [vmem:[#allocation2 + $0x128] sm:$0xff]
        %v5009 = vld [vmem:[#allocation2 + $0x130] sm:$0xff]
        %v5010 = vld [vmem:[#allocation2 + $0x148] sm:$0xff]
        %v5011 = vld [vmem:[#allocation2 + $0x150] sm:$0xff]
        %v5012 = vld [vmem:[#allocation2 + $0x168] sm:$0xff]
        %v5013 = vld [vmem:[#allocation2 + $0x170] sm:$0xff]
        %v5014 = vld [vmem:[#allocation2 + $0x188] sm:$0xff]
        %v5015 = vld [vmem:[#allocation2 + $0x190] sm:$0xff]
        %v5016 = vld [vmem:[#allocation2 + $0x1a8] sm:$0xff]
        %v5017 = vld [vmem:[#allocation2 + $0x1b0] sm:$0xff]
        %v5018 = vld [vmem:[#allocation2 + $0x1c8] sm:$0xff]
        %v5019 = vld [vmem:[#allocation2 + $0x1d0] sm:$0xff]
        %v5020 = vld [vmem:[#allocation2 + $0x1e8] sm:$0xff]
        %v5021 = vld [vmem:[#allocation2 + $0x1f0] sm:$0xff]
        %v5022 = vpack.c.bf16 %v4991, %v4990
        %v5023 = vpack.c.bf16 %v4993, %v4992
        %v5024 = vpack.c.bf16 %v4995, %v4994
        %v5025 = vpack.c.bf16 %v4997, %v4996
        %v5026 = vpack.c.bf16 %v4999, %v4998
        %v5027 = vpack.c.bf16 %v5001, %v5000
        %v5028 = vpack.c.bf16 %v5003, %v5002
        %v5029 = vpack.c.bf16 %v5005, %v5004
        %v5030 = vpack.c.bf16 %v5007, %v5006
        %v5031 = vpack.c.bf16 %v5009, %v5008
        %v5032 = vpack.c.bf16 %v5011, %v5010
        %v5033 = vpack.c.bf16 %v5013, %v5012
        %v5034 = vpack.c.bf16 %v5015, %v5014
        %v5035 = vpack.c.bf16 %v5017, %v5016
        %v5036 = vpack.c.bf16 %v5019, %v5018
        %v5037 = vpack.c.bf16 %v5021, %v5020
        %5038 = vst [vmem:[#allocation4 + $0x8] sm:$0xff] %v5022
        %5039 = vst [vmem:[#allocation4 + $0x50] sm:$0xff] %v5023
        %5040 = vst [vmem:[#allocation4 + $0x98] sm:$0xff] %v5024
        %5041 = vst [vmem:[#allocation4 + $0xe0] sm:$0xff] %v5025
        %5042 = vst [vmem:[#allocation4 + $0x128] sm:$0xff] %v5026
        %5043 = vst [vmem:[#allocation4 + $0x170] sm:$0xff] %v5027
        %5044 = vst [vmem:[#allocation4 + $0x1b8] sm:$0xff] %v5028
        %5045 = vst [vmem:[#allocation4 + $0x200] sm:$0xff] %v5029
        %5046 = vst [vmem:[#allocation4 + $0x248] sm:$0xff] %v5030
        %5047 = vst [vmem:[#allocation4 + $0x290] sm:$0xff] %v5031
        %5048 = vst [vmem:[#allocation4 + $0x2d8] sm:$0xff] %v5032
        %5049 = vst [vmem:[#allocation4 + $0x320] sm:$0xff] %v5033
        %5050 = vst [vmem:[#allocation4 + $0x368] sm:$0xff] %v5034
        %5051 = vst [vmem:[#allocation4 + $0x3b0] sm:$0xff] %v5035
        %5052 = vst [vmem:[#allocation4 + $0x3f8] sm:$0xff] %v5036
        %5053 = vst [vmem:[#allocation4 + $0x440] sm:$0xff] %v5037
        %v5054 = vld [vmem:[#allocation2 + $0x9] sm:$0xff]
        %v5055 = vld [vmem:[#allocation2 + $0x11] sm:$0xff]
        %v5056 = vld [vmem:[#allocation2 + $0x29] sm:$0xff]
        %v5057 = vld [vmem:[#allocation2 + $0x31] sm:$0xff]
        %v5058 = vld [vmem:[#allocation2 + $0x49] sm:$0xff]
        %v5059 = vld [vmem:[#allocation2 + $0x51] sm:$0xff]
        %v5060 = vld [vmem:[#allocation2 + $0x69] sm:$0xff]
        %v5061 = vld [vmem:[#allocation2 + $0x71] sm:$0xff]
        %v5062 = vld [vmem:[#allocation2 + $0x89] sm:$0xff]
        %v5063 = vld [vmem:[#allocation2 + $0x91] sm:$0xff]
        %v5064 = vld [vmem:[#allocation2 + $0xa9] sm:$0xff]
        %v5065 = vld [vmem:[#allocation2 + $0xb1] sm:$0xff]
        %v5066 = vld [vmem:[#allocation2 + $0xc9] sm:$0xff]
        %v5067 = vld [vmem:[#allocation2 + $0xd1] sm:$0xff]
        %v5068 = vld [vmem:[#allocation2 + $0xe9] sm:$0xff]
        %v5069 = vld [vmem:[#allocation2 + $0xf1] sm:$0xff]
        %v5070 = vld [vmem:[#allocation2 + $0x109] sm:$0xff]
        %v5071 = vld [vmem:[#allocation2 + $0x111] sm:$0xff]
        %v5072 = vld [vmem:[#allocation2 + $0x129] sm:$0xff]
        %v5073 = vld [vmem:[#allocation2 + $0x131] sm:$0xff]
        %v5074 = vld [vmem:[#allocation2 + $0x149] sm:$0xff]
        %v5075 = vld [vmem:[#allocation2 + $0x151] sm:$0xff]
        %v5076 = vld [vmem:[#allocation2 + $0x169] sm:$0xff]
        %v5077 = vld [vmem:[#allocation2 + $0x171] sm:$0xff]
        %v5078 = vld [vmem:[#allocation2 + $0x189] sm:$0xff]
        %v5079 = vld [vmem:[#allocation2 + $0x191] sm:$0xff]
        %v5080 = vld [vmem:[#allocation2 + $0x1a9] sm:$0xff]
        %v5081 = vld [vmem:[#allocation2 + $0x1b1] sm:$0xff]
        %v5082 = vld [vmem:[#allocation2 + $0x1c9] sm:$0xff]
        %v5083 = vld [vmem:[#allocation2 + $0x1d1] sm:$0xff]
        %v5084 = vld [vmem:[#allocation2 + $0x1e9] sm:$0xff]
        %v5085 = vld [vmem:[#allocation2 + $0x1f1] sm:$0xff]
        %v5086 = vpack.c.bf16 %v5055, %v5054
        %v5087 = vpack.c.bf16 %v5057, %v5056
        %v5088 = vpack.c.bf16 %v5059, %v5058
        %v5089 = vpack.c.bf16 %v5061, %v5060
        %v5090 = vpack.c.bf16 %v5063, %v5062
        %v5091 = vpack.c.bf16 %v5065, %v5064
        %v5092 = vpack.c.bf16 %v5067, %v5066
        %v5093 = vpack.c.bf16 %v5069, %v5068
        %v5094 = vpack.c.bf16 %v5071, %v5070
        %v5095 = vpack.c.bf16 %v5073, %v5072
        %v5096 = vpack.c.bf16 %v5075, %v5074
        %v5097 = vpack.c.bf16 %v5077, %v5076
        %v5098 = vpack.c.bf16 %v5079, %v5078
        %v5099 = vpack.c.bf16 %v5081, %v5080
        %v5100 = vpack.c.bf16 %v5083, %v5082
        %v5101 = vpack.c.bf16 %v5085, %v5084
        %5102 = vst [vmem:[#allocation4 + $0x10] sm:$0xff] %v5086
        %5103 = vst [vmem:[#allocation4 + $0x58] sm:$0xff] %v5087
        %5104 = vst [vmem:[#allocation4 + $0xa0] sm:$0xff] %v5088
        %5105 = vst [vmem:[#allocation4 + $0xe8] sm:$0xff] %v5089
        %5106 = vst [vmem:[#allocation4 + $0x130] sm:$0xff] %v5090
        %5107 = vst [vmem:[#allocation4 + $0x178] sm:$0xff] %v5091
        %5108 = vst [vmem:[#allocation4 + $0x1c0] sm:$0xff] %v5092
        %5109 = vst [vmem:[#allocation4 + $0x208] sm:$0xff] %v5093
        %5110 = vst [vmem:[#allocation4 + $0x250] sm:$0xff] %v5094
        %5111 = vst [vmem:[#allocation4 + $0x298] sm:$0xff] %v5095
        %5112 = vst [vmem:[#allocation4 + $0x2e0] sm:$0xff] %v5096
        %5113 = vst [vmem:[#allocation4 + $0x328] sm:$0xff] %v5097
        %5114 = vst [vmem:[#allocation4 + $0x370] sm:$0xff] %v5098
        %5115 = vst [vmem:[#allocation4 + $0x3b8] sm:$0xff] %v5099
        %5116 = vst [vmem:[#allocation4 + $0x400] sm:$0xff] %v5100
        %5117 = vst [vmem:[#allocation4 + $0x448] sm:$0xff] %v5101
        %v5118 = vld [vmem:[%s339 + $0x7] sm:$0xff]
        %v5119 = vld [vmem:[%s339 + $0xf] sm:$0xff]
        %v5120 = vld [vmem:[%s339 + $0x27] sm:$0xff]
        %v5121 = vld [vmem:[%s339 + $0x2f] sm:$0xff]
        %v5122 = vld [vmem:[%s339 + $0x47] sm:$0xff]
        %v5123 = vld [vmem:[%s339 + $0x4f] sm:$0xff]
        %v5124 = vld [vmem:[%s339 + $0x67] sm:$0xff]
        %v5125 = vld [vmem:[%s339 + $0x6f] sm:$0xff]
        %v5126 = vld [vmem:[%s339 + $0x87] sm:$0xff]
        %v5127 = vld [vmem:[%s339 + $0x8f] sm:$0xff]
        %v5128 = vld [vmem:[%s339 + $0xa7] sm:$0xff]
        %v5129 = vld [vmem:[%s339 + $0xaf] sm:$0xff]
        %v5130 = vld [vmem:[%s339 + $0xc7] sm:$0xff]
        %v5131 = vld [vmem:[%s339 + $0xcf] sm:$0xff]
        %v5132 = vld [vmem:[%s339 + $0xe7] sm:$0xff]
        %v5133 = vld [vmem:[%s339 + $0xef] sm:$0xff]
        %v5134 = vld [vmem:[%s339 + $0x107] sm:$0xff]
        %v5135 = vld [vmem:[%s339 + $0x10f] sm:$0xff]
        %v5136 = vld [vmem:[%s339 + $0x127] sm:$0xff]
        %v5137 = vld [vmem:[%s339 + $0x12f] sm:$0xff]
        %v5138 = vld [vmem:[%s339 + $0x147] sm:$0xff]
        %v5139 = vld [vmem:[%s339 + $0x14f] sm:$0xff]
        %v5140 = vld [vmem:[%s339 + $0x167] sm:$0xff]
        %v5141 = vld [vmem:[%s339 + $0x16f] sm:$0xff]
        %v5142 = vld [vmem:[%s339 + $0x187] sm:$0xff]
        %v5143 = vld [vmem:[%s339 + $0x18f] sm:$0xff]
        %v5144 = vld [vmem:[%s339 + $0x1a7] sm:$0xff]
        %v5145 = vld [vmem:[%s339 + $0x1af] sm:$0xff]
        %v5146 = vld [vmem:[%s339 + $0x1c7] sm:$0xff]
        %v5147 = vld [vmem:[%s339 + $0x1cf] sm:$0xff]
        %v5148 = vld [vmem:[%s339 + $0x1e7] sm:$0xff]
        %v5149 = vld [vmem:[%s339 + $0x1ef] sm:$0xff]
        %v5150 = vpack.c.bf16 %v5119, %v5118
        %v5151 = vpack.c.bf16 %v5121, %v5120
        %v5152 = vpack.c.bf16 %v5123, %v5122
        %v5153 = vpack.c.bf16 %v5125, %v5124
        %v5154 = vpack.c.bf16 %v5127, %v5126
        %v5155 = vpack.c.bf16 %v5129, %v5128
        %v5156 = vpack.c.bf16 %v5131, %v5130
        %v5157 = vpack.c.bf16 %v5133, %v5132
        %v5158 = vpack.c.bf16 %v5135, %v5134
        %v5159 = vpack.c.bf16 %v5137, %v5136
        %v5160 = vpack.c.bf16 %v5139, %v5138
        %v5161 = vpack.c.bf16 %v5141, %v5140
        %v5162 = vpack.c.bf16 %v5143, %v5142
        %v5163 = vpack.c.bf16 %v5145, %v5144
        %v5164 = vpack.c.bf16 %v5147, %v5146
        %v5165 = vpack.c.bf16 %v5149, %v5148
        %5166 = vst [vmem:[#allocation4 + $0x18] sm:$0xff] %v5150
        %5167 = vst [vmem:[#allocation4 + $0x60] sm:$0xff] %v5151
        %5168 = vst [vmem:[#allocation4 + $0xa8] sm:$0xff] %v5152
        %5169 = vst [vmem:[#allocation4 + $0xf0] sm:$0xff] %v5153
        %5170 = vst [vmem:[#allocation4 + $0x138] sm:$0xff] %v5154
        %5171 = vst [vmem:[#allocation4 + $0x180] sm:$0xff] %v5155
        %5172 = vst [vmem:[#allocation4 + $0x1c8] sm:$0xff] %v5156
        %5173 = vst [vmem:[#allocation4 + $0x210] sm:$0xff] %v5157
        %5174 = vst [vmem:[#allocation4 + $0x258] sm:$0xff] %v5158
        %5175 = vst [vmem:[#allocation4 + $0x2a0] sm:$0xff] %v5159
        %5176 = vst [vmem:[#allocation4 + $0x2e8] sm:$0xff] %v5160
        %5177 = vst [vmem:[#allocation4 + $0x330] sm:$0xff] %v5161
        %5178 = vst [vmem:[#allocation4 + $0x378] sm:$0xff] %v5162
        %5179 = vst [vmem:[#allocation4 + $0x3c0] sm:$0xff] %v5163
        %5180 = vst [vmem:[#allocation4 + $0x408] sm:$0xff] %v5164
        %5181 = vst [vmem:[#allocation4 + $0x450] sm:$0xff] %v5165
        %v5182 = vld [vmem:[%s339 + $0x8] sm:$0xff]
        %v5183 = vld [vmem:[%s339 + $0x10] sm:$0xff]
        %v5184 = vld [vmem:[%s339 + $0x28] sm:$0xff]
        %v5185 = vld [vmem:[%s339 + $0x30] sm:$0xff]
        %v5186 = vld [vmem:[%s339 + $0x48] sm:$0xff]
        %v5187 = vld [vmem:[%s339 + $0x50] sm:$0xff]
        %v5188 = vld [vmem:[%s339 + $0x68] sm:$0xff]
        %v5189 = vld [vmem:[%s339 + $0x70] sm:$0xff]
        %v5190 = vld [vmem:[%s339 + $0x88] sm:$0xff]
        %v5191 = vld [vmem:[%s339 + $0x90] sm:$0xff]
        %v5192 = vld [vmem:[%s339 + $0xa8] sm:$0xff]
        %v5193 = vld [vmem:[%s339 + $0xb0] sm:$0xff]
        %v5194 = vld [vmem:[%s339 + $0xc8] sm:$0xff]
        %v5195 = vld [vmem:[%s339 + $0xd0] sm:$0xff]
        %v5196 = vld [vmem:[%s339 + $0xe8] sm:$0xff]
        %v5197 = vld [vmem:[%s339 + $0xf0] sm:$0xff]
        %v5198 = vld [vmem:[%s339 + $0x108] sm:$0xff]
        %v5199 = vld [vmem:[%s339 + $0x110] sm:$0xff]
        %v5200 = vld [vmem:[%s339 + $0x128] sm:$0xff]
        %v5201 = vld [vmem:[%s339 + $0x130] sm:$0xff]
        %v5202 = vld [vmem:[%s339 + $0x148] sm:$0xff]
        %v5203 = vld [vmem:[%s339 + $0x150] sm:$0xff]
        %v5204 = vld [vmem:[%s339 + $0x168] sm:$0xff]
        %v5205 = vld [vmem:[%s339 + $0x170] sm:$0xff]
        %v5206 = vld [vmem:[%s339 + $0x188] sm:$0xff]
        %v5207 = vld [vmem:[%s339 + $0x190] sm:$0xff]
        %v5208 = vld [vmem:[%s339 + $0x1a8] sm:$0xff]
        %v5209 = vld [vmem:[%s339 + $0x1b0] sm:$0xff]
        %v5210 = vld [vmem:[%s339 + $0x1c8] sm:$0xff]
        %v5211 = vld [vmem:[%s339 + $0x1d0] sm:$0xff]
        %v5212 = vld [vmem:[%s339 + $0x1e8] sm:$0xff]
        %v5213 = vld [vmem:[%s339 + $0x1f0] sm:$0xff]
        %v5214 = vpack.c.bf16 %v5183, %v5182
        %v5215 = vpack.c.bf16 %v5185, %v5184
        %v5216 = vpack.c.bf16 %v5187, %v5186
        %v5217 = vpack.c.bf16 %v5189, %v5188
        %v5218 = vpack.c.bf16 %v5191, %v5190
        %v5219 = vpack.c.bf16 %v5193, %v5192
        %v5220 = vpack.c.bf16 %v5195, %v5194
        %v5221 = vpack.c.bf16 %v5197, %v5196
        %v5222 = vpack.c.bf16 %v5199, %v5198
        %v5223 = vpack.c.bf16 %v5201, %v5200
        %v5224 = vpack.c.bf16 %v5203, %v5202
        %v5225 = vpack.c.bf16 %v5205, %v5204
        %v5226 = vpack.c.bf16 %v5207, %v5206
        %v5227 = vpack.c.bf16 %v5209, %v5208
        %v5228 = vpack.c.bf16 %v5211, %v5210
        %v5229 = vpack.c.bf16 %v5213, %v5212
        %5230 = vst [vmem:[#allocation4 + $0x20] sm:$0xff] %v5214
        %5231 = vst [vmem:[#allocation4 + $0x68] sm:$0xff] %v5215
        %5232 = vst [vmem:[#allocation4 + $0xb0] sm:$0xff] %v5216
        %5233 = vst [vmem:[#allocation4 + $0xf8] sm:$0xff] %v5217
        %5234 = vst [vmem:[#allocation4 + $0x140] sm:$0xff] %v5218
        %5235 = vst [vmem:[#allocation4 + $0x188] sm:$0xff] %v5219
        %5236 = vst [vmem:[#allocation4 + $0x1d0] sm:$0xff] %v5220
        %5237 = vst [vmem:[#allocation4 + $0x218] sm:$0xff] %v5221
        %5238 = vst [vmem:[#allocation4 + $0x260] sm:$0xff] %v5222
        %5239 = vst [vmem:[#allocation4 + $0x2a8] sm:$0xff] %v5223
        %5240 = vst [vmem:[#allocation4 + $0x2f0] sm:$0xff] %v5224
        %5241 = vst [vmem:[#allocation4 + $0x338] sm:$0xff] %v5225
        %5242 = vst [vmem:[#allocation4 + $0x380] sm:$0xff] %v5226
        %5243 = vst [vmem:[#allocation4 + $0x3c8] sm:$0xff] %v5227
        %5244 = vst [vmem:[#allocation4 + $0x410] sm:$0xff] %v5228
        %5245 = vst [vmem:[#allocation4 + $0x458] sm:$0xff] %v5229
        %v5246 = vld [vmem:[%s339 + $0x9] sm:$0xff]
        %v5247 = vld [vmem:[%s339 + $0x11] sm:$0xff]
        %v5248 = vld [vmem:[%s339 + $0x29] sm:$0xff]
        %v5249 = vld [vmem:[%s339 + $0x31] sm:$0xff]
        %v5250 = vld [vmem:[%s339 + $0x49] sm:$0xff]
        %v5251 = vld [vmem:[%s339 + $0x51] sm:$0xff]
        %v5252 = vld [vmem:[%s339 + $0x69] sm:$0xff]
        %v5253 = vld [vmem:[%s339 + $0x71] sm:$0xff]
        %v5254 = vld [vmem:[%s339 + $0x89] sm:$0xff]
        %v5255 = vld [vmem:[%s339 + $0x91] sm:$0xff]
        %v5256 = vld [vmem:[%s339 + $0xa9] sm:$0xff]
        %v5257 = vld [vmem:[%s339 + $0xb1] sm:$0xff]
        %v5258 = vld [vmem:[%s339 + $0xc9] sm:$0xff]
        %v5259 = vld [vmem:[%s339 + $0xd1] sm:$0xff]
        %v5260 = vld [vmem:[%s339 + $0xe9] sm:$0xff]
        %v5261 = vld [vmem:[%s339 + $0xf1] sm:$0xff]
        %v5262 = vld [vmem:[%s339 + $0x109] sm:$0xff]
        %v5263 = vld [vmem:[%s339 + $0x111] sm:$0xff]
        %v5264 = vld [vmem:[%s339 + $0x129] sm:$0xff]
        %v5265 = vld [vmem:[%s339 + $0x131] sm:$0xff]
        %v5266 = vld [vmem:[%s339 + $0x149] sm:$0xff]
        %v5267 = vld [vmem:[%s339 + $0x151] sm:$0xff]
        %v5268 = vld [vmem:[%s339 + $0x169] sm:$0xff]
        %v5269 = vld [vmem:[%s339 + $0x171] sm:$0xff]
        %v5270 = vld [vmem:[%s339 + $0x189] sm:$0xff]
        %v5271 = vld [vmem:[%s339 + $0x191] sm:$0xff]
        %v5272 = vld [vmem:[%s339 + $0x1a9] sm:$0xff]
        %v5273 = vld [vmem:[%s339 + $0x1b1] sm:$0xff]
        %v5274 = vld [vmem:[%s339 + $0x1c9] sm:$0xff]
        %v5275 = vld [vmem:[%s339 + $0x1d1] sm:$0xff]
        %v5276 = vld [vmem:[%s339 + $0x1e9] sm:$0xff]
        %v5277 = vld [vmem:[%s339 + $0x1f1] sm:$0xff]
        %v5278 = vpack.c.bf16 %v5247, %v5246
        %v5279 = vpack.c.bf16 %v5249, %v5248
        %v5280 = vpack.c.bf16 %v5251, %v5250
        %v5281 = vpack.c.bf16 %v5253, %v5252
        %v5282 = vpack.c.bf16 %v5255, %v5254
        %v5283 = vpack.c.bf16 %v5257, %v5256
        %v5284 = vpack.c.bf16 %v5259, %v5258
        %v5285 = vpack.c.bf16 %v5261, %v5260
        %v5286 = vpack.c.bf16 %v5263, %v5262
        %v5287 = vpack.c.bf16 %v5265, %v5264
        %v5288 = vpack.c.bf16 %v5267, %v5266
        %v5289 = vpack.c.bf16 %v5269, %v5268
        %v5290 = vpack.c.bf16 %v5271, %v5270
        %v5291 = vpack.c.bf16 %v5273, %v5272
        %v5292 = vpack.c.bf16 %v5275, %v5274
        %v5293 = vpack.c.bf16 %v5277, %v5276
        %5294 = vst [vmem:[#allocation4 + $0x28] sm:$0xff] %v5278
        %5295 = vst [vmem:[#allocation4 + $0x70] sm:$0xff] %v5279
        %5296 = vst [vmem:[#allocation4 + $0xb8] sm:$0xff] %v5280
        %5297 = vst [vmem:[#allocation4 + $0x100] sm:$0xff] %v5281
        %5298 = vst [vmem:[#allocation4 + $0x148] sm:$0xff] %v5282
        %5299 = vst [vmem:[#allocation4 + $0x190] sm:$0xff] %v5283
        %5300 = vst [vmem:[#allocation4 + $0x1d8] sm:$0xff] %v5284
        %5301 = vst [vmem:[#allocation4 + $0x220] sm:$0xff] %v5285
        %5302 = vst [vmem:[#allocation4 + $0x268] sm:$0xff] %v5286
        %5303 = vst [vmem:[#allocation4 + $0x2b0] sm:$0xff] %v5287
        %5304 = vst [vmem:[#allocation4 + $0x2f8] sm:$0xff] %v5288
        %5305 = vst [vmem:[#allocation4 + $0x340] sm:$0xff] %v5289
        %5306 = vst [vmem:[#allocation4 + $0x388] sm:$0xff] %v5290
        %5307 = vst [vmem:[#allocation4 + $0x3d0] sm:$0xff] %v5291
        %5308 = vst [vmem:[#allocation4 + $0x418] sm:$0xff] %v5292
        %5309 = vst [vmem:[#allocation4 + $0x460] sm:$0xff] %v5293
        %v5310 = vld [vmem:[%s901 + $0x7] sm:$0xff]
        %v5311 = vld [vmem:[%s901 + $0xf] sm:$0xff]
        %v5312 = vld [vmem:[%s901 + $0x27] sm:$0xff]
        %v5313 = vld [vmem:[%s901 + $0x2f] sm:$0xff]
        %v5314 = vld [vmem:[%s901 + $0x47] sm:$0xff]
        %v5315 = vld [vmem:[%s901 + $0x4f] sm:$0xff]
        %v5316 = vld [vmem:[%s901 + $0x67] sm:$0xff]
        %v5317 = vld [vmem:[%s901 + $0x6f] sm:$0xff]
        %v5318 = vld [vmem:[%s901 + $0x87] sm:$0xff]
        %v5319 = vld [vmem:[%s901 + $0x8f] sm:$0xff]
        %v5320 = vld [vmem:[%s901 + $0xa7] sm:$0xff]
        %v5321 = vld [vmem:[%s901 + $0xaf] sm:$0xff]
        %v5322 = vld [vmem:[%s901 + $0xc7] sm:$0xff]
        %v5323 = vld [vmem:[%s901 + $0xcf] sm:$0xff]
        %v5324 = vld [vmem:[%s901 + $0xe7] sm:$0xff]
        %v5325 = vld [vmem:[%s901 + $0xef] sm:$0xff]
        %v5326 = vld [vmem:[%s901 + $0x107] sm:$0xff]
        %v5327 = vld [vmem:[%s901 + $0x10f] sm:$0xff]
        %v5328 = vld [vmem:[%s901 + $0x127] sm:$0xff]
        %v5329 = vld [vmem:[%s901 + $0x12f] sm:$0xff]
        %v5330 = vld [vmem:[%s901 + $0x147] sm:$0xff]
        %v5331 = vld [vmem:[%s901 + $0x14f] sm:$0xff]
        %v5332 = vld [vmem:[%s901 + $0x167] sm:$0xff]
        %v5333 = vld [vmem:[%s901 + $0x16f] sm:$0xff]
        %v5334 = vld [vmem:[%s901 + $0x187] sm:$0xff]
        %v5335 = vld [vmem:[%s901 + $0x18f] sm:$0xff]
        %v5336 = vld [vmem:[%s901 + $0x1a7] sm:$0xff]
        %v5337 = vld [vmem:[%s901 + $0x1af] sm:$0xff]
        %v5338 = vld [vmem:[%s901 + $0x1c7] sm:$0xff]
        %v5339 = vld [vmem:[%s901 + $0x1cf] sm:$0xff]
        %v5340 = vld [vmem:[%s901 + $0x1e7] sm:$0xff]
        %v5341 = vld [vmem:[%s901 + $0x1ef] sm:$0xff]
        %v5342 = vpack.c.bf16 %v5311, %v5310
        %v5343 = vpack.c.bf16 %v5313, %v5312
        %v5344 = vpack.c.bf16 %v5315, %v5314
        %v5345 = vpack.c.bf16 %v5317, %v5316
        %v5346 = vpack.c.bf16 %v5319, %v5318
        %v5347 = vpack.c.bf16 %v5321, %v5320
        %v5348 = vpack.c.bf16 %v5323, %v5322
        %v5349 = vpack.c.bf16 %v5325, %v5324
        %v5350 = vpack.c.bf16 %v5327, %v5326
        %v5351 = vpack.c.bf16 %v5329, %v5328
        %v5352 = vpack.c.bf16 %v5331, %v5330
        %v5353 = vpack.c.bf16 %v5333, %v5332
        %v5354 = vpack.c.bf16 %v5335, %v5334
        %v5355 = vpack.c.bf16 %v5337, %v5336
        %v5356 = vpack.c.bf16 %v5339, %v5338
        %v5357 = vpack.c.bf16 %v5341, %v5340
        %5358 = vst [vmem:[#allocation4 + $0x30] sm:$0xff] %v5342
        %5359 = vst [vmem:[#allocation4 + $0x78] sm:$0xff] %v5343
        %5360 = vst [vmem:[#allocation4 + $0xc0] sm:$0xff] %v5344
        %5361 = vst [vmem:[#allocation4 + $0x108] sm:$0xff] %v5345
        %5362 = vst [vmem:[#allocation4 + $0x150] sm:$0xff] %v5346
        %5363 = vst [vmem:[#allocation4 + $0x198] sm:$0xff] %v5347
        %5364 = vst [vmem:[#allocation4 + $0x1e0] sm:$0xff] %v5348
        %5365 = vst [vmem:[#allocation4 + $0x228] sm:$0xff] %v5349
        %5366 = vst [vmem:[#allocation4 + $0x270] sm:$0xff] %v5350
        %5367 = vst [vmem:[#allocation4 + $0x2b8] sm:$0xff] %v5351
        %5368 = vst [vmem:[#allocation4 + $0x300] sm:$0xff] %v5352
        %5369 = vst [vmem:[#allocation4 + $0x348] sm:$0xff] %v5353
        %5370 = vst [vmem:[#allocation4 + $0x390] sm:$0xff] %v5354
        %5371 = vst [vmem:[#allocation4 + $0x3d8] sm:$0xff] %v5355
        %5372 = vst [vmem:[#allocation4 + $0x420] sm:$0xff] %v5356
        %5373 = vst [vmem:[#allocation4 + $0x468] sm:$0xff] %v5357
        %v5374 = vld [vmem:[%s901 + $0x8] sm:$0xff]
        %v5375 = vld [vmem:[%s901 + $0x10] sm:$0xff]
        %v5376 = vld [vmem:[%s901 + $0x28] sm:$0xff]
        %v5377 = vld [vmem:[%s901 + $0x30] sm:$0xff]
        %v5378 = vld [vmem:[%s901 + $0x48] sm:$0xff]
        %v5379 = vld [vmem:[%s901 + $0x50] sm:$0xff]
        %v5380 = vld [vmem:[%s901 + $0x68] sm:$0xff]
        %v5381 = vld [vmem:[%s901 + $0x70] sm:$0xff]
        %v5382 = vld [vmem:[%s901 + $0x88] sm:$0xff]
        %v5383 = vld [vmem:[%s901 + $0x90] sm:$0xff]
        %v5384 = vld [vmem:[%s901 + $0xa8] sm:$0xff]
        %v5385 = vld [vmem:[%s901 + $0xb0] sm:$0xff]
        %v5386 = vld [vmem:[%s901 + $0xc8] sm:$0xff]
        %v5387 = vld [vmem:[%s901 + $0xd0] sm:$0xff]
        %v5388 = vld [vmem:[%s901 + $0xe8] sm:$0xff]
        %v5389 = vld [vmem:[%s901 + $0xf0] sm:$0xff]
        %v5390 = vld [vmem:[%s901 + $0x108] sm:$0xff]
        %v5391 = vld [vmem:[%s901 + $0x110] sm:$0xff]
        %v5392 = vld [vmem:[%s901 + $0x128] sm:$0xff]
        %v5393 = vld [vmem:[%s901 + $0x130] sm:$0xff]
        %v5394 = vld [vmem:[%s901 + $0x148] sm:$0xff]
        %v5395 = vld [vmem:[%s901 + $0x150] sm:$0xff]
        %v5396 = vld [vmem:[%s901 + $0x168] sm:$0xff]
        %v5397 = vld [vmem:[%s901 + $0x170] sm:$0xff]
        %v5398 = vld [vmem:[%s901 + $0x188] sm:$0xff]
        %v5399 = vld [vmem:[%s901 + $0x190] sm:$0xff]
        %v5400 = vld [vmem:[%s901 + $0x1a8] sm:$0xff]
        %v5401 = vld [vmem:[%s901 + $0x1b0] sm:$0xff]
        %v5402 = vld [vmem:[%s901 + $0x1c8] sm:$0xff]
        %v5403 = vld [vmem:[%s901 + $0x1d0] sm:$0xff]
        %v5404 = vld [vmem:[%s901 + $0x1e8] sm:$0xff]
        %v5405 = vld [vmem:[%s901 + $0x1f0] sm:$0xff]
        %v5406 = vpack.c.bf16 %v5375, %v5374
        %v5407 = vpack.c.bf16 %v5377, %v5376
        %v5408 = vpack.c.bf16 %v5379, %v5378
        %v5409 = vpack.c.bf16 %v5381, %v5380
        %v5410 = vpack.c.bf16 %v5383, %v5382
        %v5411 = vpack.c.bf16 %v5385, %v5384
        %v5412 = vpack.c.bf16 %v5387, %v5386
        %v5413 = vpack.c.bf16 %v5389, %v5388
        %v5414 = vpack.c.bf16 %v5391, %v5390
        %v5415 = vpack.c.bf16 %v5393, %v5392
        %v5416 = vpack.c.bf16 %v5395, %v5394
        %v5417 = vpack.c.bf16 %v5397, %v5396
        %v5418 = vpack.c.bf16 %v5399, %v5398
        %v5419 = vpack.c.bf16 %v5401, %v5400
        %v5420 = vpack.c.bf16 %v5403, %v5402
        %v5421 = vpack.c.bf16 %v5405, %v5404
        %5422 = vst [vmem:[#allocation4 + $0x38] sm:$0xff] %v5406
        %5423 = vst [vmem:[#allocation4 + $0x80] sm:$0xff] %v5407
        %5424 = vst [vmem:[#allocation4 + $0xc8] sm:$0xff] %v5408
        %5425 = vst [vmem:[#allocation4 + $0x110] sm:$0xff] %v5409
        %5426 = vst [vmem:[#allocation4 + $0x158] sm:$0xff] %v5410
        %5427 = vst [vmem:[#allocation4 + $0x1a0] sm:$0xff] %v5411
        %5428 = vst [vmem:[#allocation4 + $0x1e8] sm:$0xff] %v5412
        %5429 = vst [vmem:[#allocation4 + $0x230] sm:$0xff] %v5413
        %5430 = vst [vmem:[#allocation4 + $0x278] sm:$0xff] %v5414
        %5431 = vst [vmem:[#allocation4 + $0x2c0] sm:$0xff] %v5415
        %5432 = vst [vmem:[#allocation4 + $0x308] sm:$0xff] %v5416
        %5433 = vst [vmem:[#allocation4 + $0x350] sm:$0xff] %v5417
        %5434 = vst [vmem:[#allocation4 + $0x398] sm:$0xff] %v5418
        %5435 = vst [vmem:[#allocation4 + $0x3e0] sm:$0xff] %v5419
        %5436 = vst [vmem:[#allocation4 + $0x428] sm:$0xff] %v5420
        %5437 = vst [vmem:[#allocation4 + $0x470] sm:$0xff] %v5421
        %v5438 = vld [vmem:[%s901 + $0x9] sm:$0xff]
        %v5439 = vld [vmem:[%s901 + $0x11] sm:$0xff]
        %v5440 = vld [vmem:[%s901 + $0x29] sm:$0xff]
        %v5441 = vld [vmem:[%s901 + $0x31] sm:$0xff]
        %v5442 = vld [vmem:[%s901 + $0x49] sm:$0xff]
        %v5443 = vld [vmem:[%s901 + $0x51] sm:$0xff]
        %v5444 = vld [vmem:[%s901 + $0x69] sm:$0xff]
        %v5445 = vld [vmem:[%s901 + $0x71] sm:$0xff]
        %v5446 = vld [vmem:[%s901 + $0x89] sm:$0xff]
        %v5447 = vld [vmem:[%s901 + $0x91] sm:$0xff]
        %v5448 = vld [vmem:[%s901 + $0xa9] sm:$0xff]
        %v5449 = vld [vmem:[%s901 + $0xb1] sm:$0xff]
        %v5450 = vld [vmem:[%s901 + $0xc9] sm:$0xff]
        %v5451 = vld [vmem:[%s901 + $0xd1] sm:$0xff]
        %v5452 = vld [vmem:[%s901 + $0xe9] sm:$0xff]
        %v5453 = vld [vmem:[%s901 + $0xf1] sm:$0xff]
        %v5454 = vld [vmem:[%s901 + $0x109] sm:$0xff]
        %v5455 = vld [vmem:[%s901 + $0x111] sm:$0xff]
        %v5456 = vld [vmem:[%s901 + $0x129] sm:$0xff]
        %v5457 = vld [vmem:[%s901 + $0x131] sm:$0xff]
        %v5458 = vld [vmem:[%s901 + $0x149] sm:$0xff]
        %v5459 = vld [vmem:[%s901 + $0x151] sm:$0xff]
        %v5460 = vld [vmem:[%s901 + $0x169] sm:$0xff]
        %v5461 = vld [vmem:[%s901 + $0x171] sm:$0xff]
        %v5462 = vld [vmem:[%s901 + $0x189] sm:$0xff]
        %v5463 = vld [vmem:[%s901 + $0x191] sm:$0xff]
        %v5464 = vld [vmem:[%s901 + $0x1a9] sm:$0xff]
        %v5465 = vld [vmem:[%s901 + $0x1b1] sm:$0xff]
        %v5466 = vld [vmem:[%s901 + $0x1c9] sm:$0xff]
        %v5467 = vld [vmem:[%s901 + $0x1d1] sm:$0xff]
        %v5468 = vld [vmem:[%s901 + $0x1e9] sm:$0xff]
        %v5469 = vld [vmem:[%s901 + $0x1f1] sm:$0xff]
        %v5470 = vpack.c.bf16 %v5439, %v5438
        %v5471 = vpack.c.bf16 %v5441, %v5440
        %v5472 = vpack.c.bf16 %v5443, %v5442
        %v5473 = vpack.c.bf16 %v5445, %v5444
        %v5474 = vpack.c.bf16 %v5447, %v5446
        %v5475 = vpack.c.bf16 %v5449, %v5448
        %v5476 = vpack.c.bf16 %v5451, %v5450
        %v5477 = vpack.c.bf16 %v5453, %v5452
        %v5478 = vpack.c.bf16 %v5455, %v5454
        %v5479 = vpack.c.bf16 %v5457, %v5456
        %v5480 = vpack.c.bf16 %v5459, %v5458
        %v5481 = vpack.c.bf16 %v5461, %v5460
        %v5482 = vpack.c.bf16 %v5463, %v5462
        %v5483 = vpack.c.bf16 %v5465, %v5464
        %v5484 = vpack.c.bf16 %v5467, %v5466
        %v5485 = vpack.c.bf16 %v5469, %v5468
        %5486 = vst [vmem:[#allocation4 + $0x40] sm:$0xff] %v5470
        %5487 = vst [vmem:[#allocation4 + $0x88] sm:$0xff] %v5471
        %5488 = vst [vmem:[#allocation4 + $0xd0] sm:$0xff] %v5472
        %5489 = vst [vmem:[#allocation4 + $0x118] sm:$0xff] %v5473
        %5490 = vst [vmem:[#allocation4 + $0x160] sm:$0xff] %v5474
        %5491 = vst [vmem:[#allocation4 + $0x1a8] sm:$0xff] %v5475
        %5492 = vst [vmem:[#allocation4 + $0x1f0] sm:$0xff] %v5476
        %5493 = vst [vmem:[#allocation4 + $0x238] sm:$0xff] %v5477
        %5494 = vst [vmem:[#allocation4 + $0x280] sm:$0xff] %v5478
        %5495 = vst [vmem:[#allocation4 + $0x2c8] sm:$0xff] %v5479
        %5496 = vst [vmem:[#allocation4 + $0x310] sm:$0xff] %v5480
        %5497 = vst [vmem:[#allocation4 + $0x358] sm:$0xff] %v5481
        %5498 = vst [vmem:[#allocation4 + $0x3a0] sm:$0xff] %v5482
        %5499 = vst [vmem:[#allocation4 + $0x3e8] sm:$0xff] %v5483
        %5500 = vst [vmem:[#allocation4 + $0x430] sm:$0xff] %v5484
        %5501 = vst [vmem:[#allocation4 + $0x478] sm:$0xff] %v5485
        %v5502 = vld [vmem:[#allocation4] sm:$0xff]
        %v5503 = vld [vmem:[#allocation4 + $0x8] sm:$0xff]
        %v5504 = vld [vmem:[#allocation4 + $0x10] sm:$0xff]
        %v5505 = vld [vmem:[#allocation4 + $0x18] sm:$0xff]
        %v5506 = vld [vmem:[#allocation4 + $0x20] sm:$0xff]
        %v5507 = vld [vmem:[#allocation4 + $0x28] sm:$0xff]
        %v5508 = vld [vmem:[#allocation4 + $0x30] sm:$0xff]
        %v5509 = vld [vmem:[#allocation4 + $0x38] sm:$0xff]
        %v5510 = vld [vmem:[#allocation4 + $0x40] sm:$0xff]
        %v5511 = vld [vmem:[#allocation4 + $0x48] sm:$0xff]
        %v5512 = vld [vmem:[#allocation4 + $0x50] sm:$0xff]
        %v5513 = vld [vmem:[#allocation4 + $0x58] sm:$0xff]
        %v5514 = vld [vmem:[#allocation4 + $0x60] sm:$0xff]
        %v5515 = vld [vmem:[#allocation4 + $0x68] sm:$0xff]
        %v5516 = vld [vmem:[#allocation4 + $0x70] sm:$0xff]
        %v5517 = vld [vmem:[#allocation4 + $0x78] sm:$0xff]
        %v5518 = vld [vmem:[#allocation4 + $0x80] sm:$0xff]
        %v5519 = vld [vmem:[#allocation4 + $0x88] sm:$0xff]
        %v5520 = vld [vmem:[#allocation4 + $0x90] sm:$0xff]
        %v5521 = vld [vmem:[#allocation4 + $0x98] sm:$0xff]
        %v5522 = vld [vmem:[#allocation4 + $0xa0] sm:$0xff]
        %v5523 = vld [vmem:[#allocation4 + $0xa8] sm:$0xff]
        %v5524 = vld [vmem:[#allocation4 + $0xb0] sm:$0xff]
        %v5525 = vld [vmem:[#allocation4 + $0xb8] sm:$0xff]
        %v5526 = vld [vmem:[#allocation4 + $0xc0] sm:$0xff]
        %v5527 = vld [vmem:[#allocation4 + $0xc8] sm:$0xff]
        %v5528 = vld [vmem:[#allocation4 + $0xd0] sm:$0xff]
        %v5529 = vld [vmem:[#allocation4 + $0xd8] sm:$0xff]
        %v5530 = vld [vmem:[#allocation4 + $0xe0] sm:$0xff]
        %v5531 = vld [vmem:[#allocation4 + $0xe8] sm:$0xff]
        %v5532 = vld [vmem:[#allocation4 + $0xf0] sm:$0xff]
        %v5533 = vld [vmem:[#allocation4 + $0xf8] sm:$0xff]
        %v5534 = vld [vmem:[#allocation4 + $0x100] sm:$0xff]
        %v5535 = vld [vmem:[#allocation4 + $0x108] sm:$0xff]
        %v5536 = vld [vmem:[#allocation4 + $0x110] sm:$0xff]
        %v5537 = vld [vmem:[#allocation4 + $0x118] sm:$0xff]
        %v5538 = vld [vmem:[#allocation4 + $0x120] sm:$0xff]
        %v5539 = vld [vmem:[#allocation4 + $0x128] sm:$0xff]
        %v5540 = vld [vmem:[#allocation4 + $0x130] sm:$0xff]
        %v5541 = vld [vmem:[#allocation4 + $0x138] sm:$0xff]
        %v5542 = vld [vmem:[#allocation4 + $0x140] sm:$0xff]
        %v5543 = vld [vmem:[#allocation4 + $0x148] sm:$0xff]
        %v5544 = vld [vmem:[#allocation4 + $0x150] sm:$0xff]
        %v5545 = vld [vmem:[#allocation4 + $0x158] sm:$0xff]
        %v5546 = vld [vmem:[#allocation4 + $0x160] sm:$0xff]
        %v5547 = vld [vmem:[#allocation4 + $0x168] sm:$0xff]
        %v5548 = vld [vmem:[#allocation4 + $0x170] sm:$0xff]
        %v5549 = vld [vmem:[#allocation4 + $0x178] sm:$0xff]
        %v5550 = vld [vmem:[#allocation4 + $0x180] sm:$0xff]
        %v5551 = vld [vmem:[#allocation4 + $0x188] sm:$0xff]
        %v5552 = vld [vmem:[#allocation4 + $0x190] sm:$0xff]
        %v5553 = vld [vmem:[#allocation4 + $0x198] sm:$0xff]
        %v5554 = vld [vmem:[#allocation4 + $0x1a0] sm:$0xff]
        %v5555 = vld [vmem:[#allocation4 + $0x1a8] sm:$0xff]
        %v5556 = vld [vmem:[#allocation4 + $0x1b0] sm:$0xff]
        %v5557 = vld [vmem:[#allocation4 + $0x1b8] sm:$0xff]
        %v5558 = vld [vmem:[#allocation4 + $0x1c0] sm:$0xff]
        %v5559 = vld [vmem:[#allocation4 + $0x1c8] sm:$0xff]
        %v5560 = vld [vmem:[#allocation4 + $0x1d0] sm:$0xff]
        %v5561 = vld [vmem:[#allocation4 + $0x1d8] sm:$0xff]
        %v5562 = vld [vmem:[#allocation4 + $0x1e0] sm:$0xff]
        %v5563 = vld [vmem:[#allocation4 + $0x1e8] sm:$0xff]
        %v5564 = vld [vmem:[#allocation4 + $0x1f0] sm:$0xff]
        %v5565 = vld [vmem:[#allocation4 + $0x1f8] sm:$0xff]
        %v5566 = vld [vmem:[#allocation4 + $0x200] sm:$0xff]
        %v5567 = vld [vmem:[#allocation4 + $0x208] sm:$0xff]
        %v5568 = vld [vmem:[#allocation4 + $0x210] sm:$0xff]
        %v5569 = vld [vmem:[#allocation4 + $0x218] sm:$0xff]
        %v5570 = vld [vmem:[#allocation4 + $0x220] sm:$0xff]
        %v5571 = vld [vmem:[#allocation4 + $0x228] sm:$0xff]
        %v5572 = vld [vmem:[#allocation4 + $0x230] sm:$0xff]
        %v5573 = vld [vmem:[#allocation4 + $0x238] sm:$0xff]
        %v5574 = vld [vmem:[#allocation4 + $0x240] sm:$0xff]
        %v5575 = vld [vmem:[#allocation4 + $0x248] sm:$0xff]
        %v5576 = vld [vmem:[#allocation4 + $0x250] sm:$0xff]
        %v5577 = vld [vmem:[#allocation4 + $0x258] sm:$0xff]
        %v5578 = vld [vmem:[#allocation4 + $0x260] sm:$0xff]
        %v5579 = vld [vmem:[#allocation4 + $0x268] sm:$0xff]
        %v5580 = vld [vmem:[#allocation4 + $0x270] sm:$0xff]
        %v5581 = vld [vmem:[#allocation4 + $0x278] sm:$0xff]
        %v5582 = vld [vmem:[#allocation4 + $0x280] sm:$0xff]
        %v5583 = vld [vmem:[#allocation4 + $0x288] sm:$0xff]
        %v5584 = vld [vmem:[#allocation4 + $0x290] sm:$0xff]
        %v5585 = vld [vmem:[#allocation4 + $0x298] sm:$0xff]
        %v5586 = vld [vmem:[#allocation4 + $0x2a0] sm:$0xff]
        %v5587 = vld [vmem:[#allocation4 + $0x2a8] sm:$0xff]
        %v5588 = vld [vmem:[#allocation4 + $0x2b0] sm:$0xff]
        %v5589 = vld [vmem:[#allocation4 + $0x2b8] sm:$0xff]
        %v5590 = vld [vmem:[#allocation4 + $0x2c0] sm:$0xff]
        %v5591 = vld [vmem:[#allocation4 + $0x2c8] sm:$0xff]
        %v5592 = vld [vmem:[#allocation4 + $0x2d0] sm:$0xff]
        %v5593 = vld [vmem:[#allocation4 + $0x2d8] sm:$0xff]
        %v5594 = vld [vmem:[#allocation4 + $0x2e0] sm:$0xff]
        %v5595 = vld [vmem:[#allocation4 + $0x2e8] sm:$0xff]
        %v5596 = vld [vmem:[#allocation4 + $0x2f0] sm:$0xff]
        %v5597 = vld [vmem:[#allocation4 + $0x2f8] sm:$0xff]
        %v5598 = vld [vmem:[#allocation4 + $0x300] sm:$0xff]
        %v5599 = vld [vmem:[#allocation4 + $0x308] sm:$0xff]
        %v5600 = vld [vmem:[#allocation4 + $0x310] sm:$0xff]
        %v5601 = vld [vmem:[#allocation4 + $0x318] sm:$0xff]
        %v5602 = vld [vmem:[#allocation4 + $0x320] sm:$0xff]
        %v5603 = vld [vmem:[#allocation4 + $0x328] sm:$0xff]
        %v5604 = vld [vmem:[#allocation4 + $0x330] sm:$0xff]
        %v5605 = vld [vmem:[#allocation4 + $0x338] sm:$0xff]
        %v5606 = vld [vmem:[#allocation4 + $0x340] sm:$0xff]
        %v5607 = vld [vmem:[#allocation4 + $0x348] sm:$0xff]
        %v5608 = vld [vmem:[#allocation4 + $0x350] sm:$0xff]
        %v5609 = vld [vmem:[#allocation4 + $0x358] sm:$0xff]
        %v5610 = vld [vmem:[#allocation4 + $0x360] sm:$0xff]
        %v5611 = vld [vmem:[#allocation4 + $0x368] sm:$0xff]
        %v5612 = vld [vmem:[#allocation4 + $0x370] sm:$0xff]
        %v5613 = vld [vmem:[#allocation4 + $0x378] sm:$0xff]
        %v5614 = vld [vmem:[#allocation4 + $0x380] sm:$0xff]
        %v5615 = vld [vmem:[#allocation4 + $0x388] sm:$0xff]
        %v5616 = vld [vmem:[#allocation4 + $0x390] sm:$0xff]
        %v5617 = vld [vmem:[#allocation4 + $0x398] sm:$0xff]
        %v5618 = vld [vmem:[#allocation4 + $0x3a0] sm:$0xff]
        %v5619 = vld [vmem:[#allocation4 + $0x3a8] sm:$0xff]
        %v5620 = vld [vmem:[#allocation4 + $0x3b0] sm:$0xff]
        %v5621 = vld [vmem:[#allocation4 + $0x3b8] sm:$0xff]
        %v5622 = vld [vmem:[#allocation4 + $0x3c0] sm:$0xff]
        %v5623 = vld [vmem:[#allocation4 + $0x3c8] sm:$0xff]
        %v5624 = vld [vmem:[#allocation4 + $0x3d0] sm:$0xff]
        %v5625 = vld [vmem:[#allocation4 + $0x3d8] sm:$0xff]
        %v5626 = vld [vmem:[#allocation4 + $0x3e0] sm:$0xff]
        %v5627 = vld [vmem:[#allocation4 + $0x3e8] sm:$0xff]
        %v5628 = vld [vmem:[#allocation4 + $0x3f0] sm:$0xff]
        %v5629 = vld [vmem:[#allocation4 + $0x3f8] sm:$0xff]
        %v5630 = vld [vmem:[#allocation4 + $0x400] sm:$0xff]
        %v5631 = vld [vmem:[#allocation4 + $0x408] sm:$0xff]
        %v5632 = vld [vmem:[#allocation4 + $0x410] sm:$0xff]
        %v5633 = vld [vmem:[#allocation4 + $0x418] sm:$0xff]
        %v5634 = vld [vmem:[#allocation4 + $0x420] sm:$0xff]
        %v5635 = vld [vmem:[#allocation4 + $0x428] sm:$0xff]
        %v5636 = vld [vmem:[#allocation4 + $0x430] sm:$0xff]
        %v5637 = vld [vmem:[#allocation4 + $0x438] sm:$0xff]
        %v5638 = vld [vmem:[#allocation4 + $0x440] sm:$0xff]
        %v5639 = vld [vmem:[#allocation4 + $0x448] sm:$0xff]
        %v5640 = vld [vmem:[#allocation4 + $0x450] sm:$0xff]
        %v5641 = vld [vmem:[#allocation4 + $0x458] sm:$0xff]
        %v5642 = vld [vmem:[#allocation4 + $0x460] sm:$0xff]
        %v5643 = vld [vmem:[#allocation4 + $0x468] sm:$0xff]
        %v5644 = vld [vmem:[#allocation4 + $0x470] sm:$0xff]
        %v5645 = vld [vmem:[#allocation4 + $0x478] sm:$0xff]
        %v5646 = vlaneseq
        %v5647 = vshrl.u32 %v5646, 7
        %v5648 = vsub.s32 0, %v5647
        %v5649 = vrot.slane %v4925, %v5648
        %v5794 = vunpack.c.l.b16 %v4781
        %v5795 = vunpack.c.l.b16 %v4782
        %v5796 = vunpack.c.l.b16 %v4783
        %v5797 = vunpack.c.l.b16 %v4784
        %v5798 = vunpack.c.l.b16 %v4785
        %v5799 = vunpack.c.l.b16 %v4786
        %v5800 = vunpack.c.l.b16 %v4787
        %v5801 = vunpack.c.l.b16 %v4788
        %v5802 = vunpack.c.l.b16 %v4789
        %v5803 = vunpack.c.l.b16 %v4790
        %v5804 = vunpack.c.l.b16 %v4791
        %v5805 = vunpack.c.l.b16 %v4792
        %v5806 = vunpack.c.l.b16 %v4793
        %v5807 = vunpack.c.l.b16 %v4794
        %v5808 = vunpack.c.l.b16 %v4795
        %v5809 = vunpack.c.l.b16 %v4796
        %v5810 = vunpack.c.l.b16 %v4797
        %v5811 = vunpack.c.l.b16 %v4798
        %v5812 = vunpack.c.l.b16 %v4799
        %v5813 = vunpack.c.l.b16 %v4800
        %v5814 = vunpack.c.l.b16 %v4801
        %v5815 = vunpack.c.l.b16 %v4802
        %v5816 = vunpack.c.l.b16 %v4803
        %v5817 = vunpack.c.l.b16 %v4804
        %v5818 = vunpack.c.l.b16 %v4805
        %v5819 = vunpack.c.l.b16 %v4806
        %v5820 = vunpack.c.l.b16 %v4807
        %v5821 = vunpack.c.l.b16 %v4808
        %v5822 = vunpack.c.l.b16 %v4809
        %v5823 = vunpack.c.l.b16 %v4810
        %v5824 = vunpack.c.l.b16 %v4811
        %v5825 = vunpack.c.l.b16 %v4812
        %v5826 = vunpack.c.l.b16 %v4813
        %v5827 = vunpack.c.l.b16 %v4814
        %v5828 = vunpack.c.l.b16 %v4815
        %v5829 = vunpack.c.l.b16 %v4816
        %v5830 = vunpack.c.l.b16 %v4817
        %v5831 = vunpack.c.l.b16 %v4818
        %v5832 = vunpack.c.l.b16 %v4819
        %v5833 = vunpack.c.l.b16 %v4820
        %v5834 = vunpack.c.l.b16 %v4821
        %v5835 = vunpack.c.l.b16 %v4822
        %v5836 = vunpack.c.l.b16 %v4823
        %v5837 = vunpack.c.l.b16 %v4824
        %v5838 = vunpack.c.l.b16 %v4825
        %v5839 = vunpack.c.l.b16 %v4826
        %v5840 = vunpack.c.l.b16 %v4827
        %v5841 = vunpack.c.l.b16 %v4828
        %v5842 = vunpack.c.l.b16 %v4829
        %v5843 = vunpack.c.l.b16 %v4830
        %v5844 = vunpack.c.l.b16 %v4831
        %v5845 = vunpack.c.l.b16 %v4832
        %v5846 = vunpack.c.l.b16 %v4833
        %v5847 = vunpack.c.l.b16 %v4834
        %v5848 = vunpack.c.l.b16 %v4835
        %v5849 = vunpack.c.l.b16 %v4836
        %v5850 = vunpack.c.l.b16 %v4837
        %v5851 = vunpack.c.l.b16 %v4838
        %v5852 = vunpack.c.l.b16 %v4839
        %v5853 = vunpack.c.l.b16 %v4840
        %v5854 = vunpack.c.l.b16 %v4841
        %v5855 = vunpack.c.l.b16 %v4842
        %v5856 = vunpack.c.l.b16 %v4843
        %v5857 = vunpack.c.l.b16 %v4844
        %v5858 = vunpack.c.l.b16 %v4845
        %v5859 = vunpack.c.l.b16 %v4846
        %v5860 = vunpack.c.l.b16 %v4847
        %v5861 = vunpack.c.l.b16 %v4848
        %v5862 = vunpack.c.l.b16 %v4849
        %v5863 = vunpack.c.l.b16 %v4850
        %v5864 = vunpack.c.l.b16 %v4851
        %v5865 = vunpack.c.l.b16 %v4852
        %v5866 = vunpack.c.l.b16 %v4853
        %v5867 = vunpack.c.l.b16 %v4854
        %v5868 = vunpack.c.l.b16 %v4855
        %v5869 = vunpack.c.l.b16 %v4856
        %v5870 = vunpack.c.l.b16 %v4857
        %v5871 = vunpack.c.l.b16 %v4858
        %v5872 = vunpack.c.l.b16 %v4859
        %v5873 = vunpack.c.l.b16 %v4860
        %v5874 = vunpack.c.l.b16 %v4861
        %v5875 = vunpack.c.l.b16 %v4862
        %v5876 = vunpack.c.l.b16 %v4863
        %v5877 = vunpack.c.l.b16 %v4864
        %v5878 = vunpack.c.l.b16 %v4865
        %v5879 = vunpack.c.l.b16 %v4866
        %v5880 = vunpack.c.l.b16 %v4867
        %v5881 = vunpack.c.l.b16 %v4868
        %v5882 = vunpack.c.l.b16 %v4869
        %v5883 = vunpack.c.l.b16 %v4870
        %v5884 = vunpack.c.l.b16 %v4871
        %v5885 = vunpack.c.l.b16 %v4872
        %v5886 = vunpack.c.l.b16 %v4873
        %v5887 = vunpack.c.l.b16 %v4874
        %v5888 = vunpack.c.l.b16 %v4875
        %v5889 = vunpack.c.l.b16 %v4876
        %v5890 = vunpack.c.l.b16 %v4877
        %v5891 = vunpack.c.l.b16 %v4878
        %v5892 = vunpack.c.l.b16 %v4879
        %v5893 = vunpack.c.l.b16 %v4880
        %v5894 = vunpack.c.l.b16 %v4881
        %v5895 = vunpack.c.l.b16 %v4882
        %v5896 = vunpack.c.l.b16 %v4883
        %v5897 = vunpack.c.l.b16 %v4884
        %v5898 = vunpack.c.l.b16 %v4885
        %v5899 = vunpack.c.l.b16 %v4886
        %v5900 = vunpack.c.l.b16 %v4887
        %v5901 = vunpack.c.l.b16 %v4888
        %v5902 = vunpack.c.l.b16 %v4889
        %v5903 = vunpack.c.l.b16 %v4890
        %v5904 = vunpack.c.l.b16 %v4891
        %v5905 = vunpack.c.l.b16 %v4892
        %v5906 = vunpack.c.l.b16 %v4893
        %v5907 = vunpack.c.l.b16 %v4894
        %v5908 = vunpack.c.l.b16 %v4895
        %v5909 = vunpack.c.l.b16 %v4896
        %v5910 = vunpack.c.l.b16 %v4897
        %v5911 = vunpack.c.l.b16 %v4898
        %v5912 = vunpack.c.l.b16 %v4899
        %v5913 = vunpack.c.l.b16 %v4900
        %v5914 = vunpack.c.l.b16 %v4901
        %v5915 = vunpack.c.l.b16 %v4902
        %v5916 = vunpack.c.l.b16 %v4903
        %v5917 = vunpack.c.l.b16 %v4904
        %v5918 = vunpack.c.l.b16 %v4905
        %v5919 = vunpack.c.l.b16 %v4906
        %v5920 = vunpack.c.l.b16 %v4907
        %v5921 = vunpack.c.l.b16 %v4908
        %v5922 = vunpack.c.l.b16 %v4909
        %v5923 = vunpack.c.l.b16 %v4910
        %v5924 = vunpack.c.l.b16 %v4911
        %v5925 = vunpack.c.l.b16 %v4912
        %v5926 = vunpack.c.l.b16 %v4913
        %v5927 = vunpack.c.l.b16 %v4914
        %v5928 = vunpack.c.l.b16 %v4915
        %v5929 = vunpack.c.l.b16 %v4916
        %v5930 = vunpack.c.l.b16 %v4917
        %v5931 = vunpack.c.l.b16 %v4918
        %v5932 = vunpack.c.l.b16 %v4919
        %v5933 = vunpack.c.l.b16 %v4920
        %v5934 = vunpack.c.l.b16 %v4921
        %v5935 = vunpack.c.l.b16 %v4922
        %v5936 = vunpack.c.l.b16 %v4923
        %v5937 = vunpack.c.l.b16 %v4924
        %v5938 = vpack.c.b16 %v5795, %v5794
        %v5939 = vpack.c.b16 %v5797, %v5796
        %v5940 = vpack.c.b16 %v5799, %v5798
        %v5941 = vpack.c.b16 %v5801, %v5800
        %v5942 = vpack.c.b16 %v5803, %v5802
        %v5943 = vpack.c.b16 %v5805, %v5804
        %v5944 = vpack.c.b16 %v5807, %v5806
        %v5945 = vpack.c.b16 %v5809, %v5808
        %v5946 = vpack.c.b16 %v5811, %v5810
        %v5947 = vpack.c.b16 %v5813, %v5812
        %v5948 = vpack.c.b16 %v5815, %v5814
        %v5949 = vpack.c.b16 %v5817, %v5816
        %v5950 = vpack.c.b16 %v5819, %v5818
        %v5951 = vpack.c.b16 %v5821, %v5820
        %v5952 = vpack.c.b16 %v5823, %v5822
        %v5953 = vpack.c.b16 %v5825, %v5824
        %v5954 = vpack.c.b16 %v5827, %v5826
        %v5955 = vpack.c.b16 %v5829, %v5828
        %v5956 = vpack.c.b16 %v5831, %v5830
        %v5957 = vpack.c.b16 %v5833, %v5832
        %v5958 = vpack.c.b16 %v5835, %v5834
        %v5959 = vpack.c.b16 %v5837, %v5836
        %v5960 = vpack.c.b16 %v5839, %v5838
        %v5961 = vpack.c.b16 %v5841, %v5840
        %v5962 = vpack.c.b16 %v5843, %v5842
        %v5963 = vpack.c.b16 %v5845, %v5844
        %v5964 = vpack.c.b16 %v5847, %v5846
        %v5965 = vpack.c.b16 %v5849, %v5848
        %v5966 = vpack.c.b16 %v5851, %v5850
        %v5967 = vpack.c.b16 %v5853, %v5852
        %v5968 = vpack.c.b16 %v5855, %v5854
        %v5969 = vpack.c.b16 %v5857, %v5856
        %v5970 = vpack.c.b16 %v5859, %v5858
        %v5971 = vpack.c.b16 %v5861, %v5860
        %v5972 = vpack.c.b16 %v5863, %v5862
        %v5973 = vpack.c.b16 %v5865, %v5864
        %v5974 = vpack.c.b16 %v5867, %v5866
        %v5975 = vpack.c.b16 %v5869, %v5868
        %v5976 = vpack.c.b16 %v5871, %v5870
        %v5977 = vpack.c.b16 %v5873, %v5872
        %v5978 = vpack.c.b16 %v5875, %v5874
        %v5979 = vpack.c.b16 %v5877, %v5876
        %v5980 = vpack.c.b16 %v5879, %v5878
        %v5981 = vpack.c.b16 %v5881, %v5880
        %v5982 = vpack.c.b16 %v5883, %v5882
        %v5983 = vpack.c.b16 %v5885, %v5884
        %v5984 = vpack.c.b16 %v5887, %v5886
        %v5985 = vpack.c.b16 %v5889, %v5888
        %v5986 = vpack.c.b16 %v5891, %v5890
        %v5987 = vpack.c.b16 %v5893, %v5892
        %v5988 = vpack.c.b16 %v5895, %v5894
        %v5989 = vpack.c.b16 %v5897, %v5896
        %v5990 = vpack.c.b16 %v5899, %v5898
        %v5991 = vpack.c.b16 %v5901, %v5900
        %v5992 = vpack.c.b16 %v5903, %v5902
        %v5993 = vpack.c.b16 %v5905, %v5904
        %v5994 = vpack.c.b16 %v5907, %v5906
        %v5995 = vpack.c.b16 %v5909, %v5908
        %v5996 = vpack.c.b16 %v5911, %v5910
        %v5997 = vpack.c.b16 %v5913, %v5912
        %v5998 = vpack.c.b16 %v5915, %v5914
        %v5999 = vpack.c.b16 %v5917, %v5916
        %v6000 = vpack.c.b16 %v5919, %v5918
        %v6001 = vpack.c.b16 %v5921, %v5920
        %v6002 = vpack.c.b16 %v5923, %v5922
        %v6003 = vpack.c.b16 %v5925, %v5924
        %v6004 = vpack.c.b16 %v5927, %v5926
        %v6005 = vpack.c.b16 %v5929, %v5928
        %v6006 = vpack.c.b16 %v5931, %v5930
        %v6007 = vpack.c.b16 %v5933, %v5932
        %v6008 = vpack.c.b16 %v5935, %v5934
        %v6009 = vpack.c.b16 %v5937, %v5936
        %6082 = vmatprep.subr.bf16.mxu0 0
        %6083 = vmatpush1.bf16.msra.mxu0 %v5938
        %6084 = vmatprep.subr.bf16.mxu0 0
        %6085 = vmatpush1.bf16.msra.mxu0 %v5939
        %6086 = vmatprep.subr.bf16.mxu0 0
        %6087 = vmatpush1.bf16.msra.mxu0 %v5940
        %6088 = vmatprep.subr.bf16.mxu0 0
        %6089 = vmatpush1.bf16.msra.mxu0 %v5941
        %6090 = vmatprep.subr.bf16.mxu0 0
        %6091 = vmatpush1.bf16.msra.mxu0 %v5942
        %6092 = vmatprep.subr.bf16.mxu0 0
        %6093 = vmatpush1.bf16.msra.mxu0 %v5943
        %6094 = vmatprep.subr.bf16.mxu0 0
        %6095 = vmatpush1.bf16.msra.mxu0 %v5944
        %6096 = vmatprep.subr.bf16.mxu0 0
        %6097 = vmatpush1.bf16.msra.mxu0 %v5945
        %6098 = vmatprep.subr.bf16.mxu0 0
        %6099 = vmatpush1.bf16.msra.mxu0 %v5946
        %6100 = vmatprep.subr.bf16.mxu0 0
        %6101 = vmatpush1.bf16.msra.mxu0 %v5947
        %6102 = vmatprep.subr.bf16.mxu0 0
        %6103 = vmatpush1.bf16.msra.mxu0 %v5948
        %6104 = vmatprep.subr.bf16.mxu0 0
        %6105 = vmatpush1.bf16.msra.mxu0 %v5949
        %6106 = vmatprep.subr.bf16.mxu0 0
        %6107 = vmatpush1.bf16.msra.mxu0 %v5950
        %6108 = vmatprep.subr.bf16.mxu0 0
        %6109 = vmatpush1.bf16.msra.mxu0 %v5951
        %6110 = vmatprep.subr.bf16.mxu0 0
        %6111 = vmatpush1.bf16.msra.mxu0 %v5952
        %6112 = vmatprep.subr.bf16.mxu0 0
        %6113 = vmatpush1.bf16.msra.mxu0 %v5953
        %6114 = vmatprep.mubr.bf16.mxu0 %v5503
        %6115 = vmatmul.mubr.bf16.gmra.mrb[0].mxu0 %v5502
        %v6116 = vpop.f32.mrb[0].mxu0
        %v6117 = vadd.f32 %v5649, %v6116
        %v6118 = vpop.f32.mrb[0].mxu0
        %v6119 = vpop.f32.mrb[0].mxu0
        %v6120 = vadd.f32 %v5649, %v6119
        %v6121 = vpop.f32.mrb[0].mxu0
        %6122 = vmatprep.mubr.bf16.mxu0 %v5512
        %6123 = vmatmul.mubr.bf16.gmra.mrb[0].mxu0 %v5511
        %v6124 = vpop.f32.mrb[0].mxu0
        %v6125 = vadd.f32 %v5649, %v6124
        %v6126 = vpop.f32.mrb[0].mxu0
        %v6127 = vpop.f32.mrb[0].mxu0
        %v6128 = vadd.f32 %v5649, %v6127
        %v6129 = vpop.f32.mrb[0].mxu0
        %6130 = vmatprep.mubr.bf16.mxu0 %v5521
        %6131 = vmatmul.mubr.bf16.gmra.mrb[0].mxu0 %v5520
        %v6132 = vpop.f32.mrb[0].mxu0
        %v6133 = vadd.f32 %v5649, %v6132
        %v6134 = vpop.f32.mrb[0].mxu0
        %v6135 = vpop.f32.mrb[0].mxu0
        %v6136 = vadd.f32 %v5649, %v6135
        %v6137 = vpop.f32.mrb[0].mxu0
        %6138 = vmatprep.mubr.bf16.mxu0 %v5530
        %6139 = vmatmul.mubr.bf16.gmra.mrb[0].mxu0 %v5529
        %v6140 = vpop.f32.mrb[0].mxu0
        %v6141 = vadd.f32 %v5649, %v6140
        %v6142 = vpop.f32.mrb[0].mxu0
        %v6143 = vpop.f32.mrb[0].mxu0
        %v6144 = vadd.f32 %v5649, %v6143
        %v6145 = vpop.f32.mrb[0].mxu0
        %6146 = vmatprep.mubr.bf16.mxu0 %v5539
        %6147 = vmatmul.mubr.bf16.gmra.mrb[0].mxu0 %v5538
        %v6148 = vpop.f32.mrb[0].mxu0
        %v6149 = vadd.f32 %v5649, %v6148
        %v6150 = vpop.f32.mrb[0].mxu0
        %v6151 = vpop.f32.mrb[0].mxu0
        %v6152 = vadd.f32 %v5649, %v6151
        %v6153 = vpop.f32.mrb[0].mxu0
        %6154 = vmatprep.mubr.bf16.mxu0 %v5548
        %6155 = vmatmul.mubr.bf16.gmra.mrb[0].mxu0 %v5547
        %v6156 = vpop.f32.mrb[0].mxu0
        %v6157 = vadd.f32 %v5649, %v6156
        %v6158 = vpop.f32.mrb[0].mxu0
        %v6159 = vpop.f32.mrb[0].mxu0
        %v6160 = vadd.f32 %v5649, %v6159
        %v6161 = vpop.f32.mrb[0].mxu0
        %6162 = vmatprep.mubr.bf16.mxu0 %v5557
        %6163 = vmatmul.mubr.bf16.gmra.mrb[0].mxu0 %v5556
        %v6164 = vpop.f32.mrb[0].mxu0
        %v6165 = vadd.f32 %v5649, %v6164
        %v6166 = vpop.f32.mrb[0].mxu0
        %v6167 = vpop.f32.mrb[0].mxu0
        %v6168 = vadd.f32 %v5649, %v6167
        %v6169 = vpop.f32.mrb[0].mxu0
        %6170 = vmatprep.mubr.bf16.mxu0 %v5566
        %6171 = vmatmul.mubr.bf16.gmra.mrb[0].mxu0 %v5565
        %v6172 = vpop.f32.mrb[0].mxu0
        %v6173 = vadd.f32 %v5649, %v6172
        %v6174 = vpop.f32.mrb[0].mxu0
        %v6175 = vpop.f32.mrb[0].mxu0
        %v6176 = vadd.f32 %v5649, %v6175
        %v6177 = vpop.f32.mrb[0].mxu0
        %6178 = vmatprep.mubr.bf16.mxu0 %v5575
        %6179 = vmatmul.mubr.bf16.gmra.mrb[0].mxu0 %v5574
        %v6180 = vpop.f32.mrb[0].mxu0
        %v6181 = vadd.f32 %v5649, %v6180
        %v6182 = vpop.f32.mrb[0].mxu0
        %v6183 = vpop.f32.mrb[0].mxu0
        %v6184 = vadd.f32 %v5649, %v6183
        %v6185 = vpop.f32.mrb[0].mxu0
        %6186 = vmatprep.mubr.bf16.mxu0 %v5584
        %6187 = vmatmul.mubr.bf16.gmra.mrb[0].mxu0 %v5583
        %v6188 = vpop.f32.mrb[0].mxu0
        %v6189 = vadd.f32 %v5649, %v6188
        %v6190 = vpop.f32.mrb[0].mxu0
        %v6191 = vpop.f32.mrb[0].mxu0
        %v6192 = vadd.f32 %v5649, %v6191
        %v6193 = vpop.f32.mrb[0].mxu0
        %6194 = vmatprep.mubr.bf16.mxu0 %v5593
        %6195 = vmatmul.mubr.bf16.gmra.mrb[0].mxu0 %v5592
        %v6196 = vpop.f32.mrb[0].mxu0
        %v6197 = vadd.f32 %v5649, %v6196
        %v6198 = vpop.f32.mrb[0].mxu0
        %v6199 = vpop.f32.mrb[0].mxu0
        %v6200 = vadd.f32 %v5649, %v6199
        %v6201 = vpop.f32.mrb[0].mxu0
        %6202 = vmatprep.mubr.bf16.mxu0 %v5602
        %6203 = vmatmul.mubr.bf16.gmra.mrb[0].mxu0 %v5601
        %v6204 = vpop.f32.mrb[0].mxu0
        %v6205 = vadd.f32 %v5649, %v6204
        %v6206 = vpop.f32.mrb[0].mxu0
        %v6207 = vpop.f32.mrb[0].mxu0
        %v6208 = vadd.f32 %v5649, %v6207
        %v6209 = vpop.f32.mrb[0].mxu0
        %6210 = vmatprep.mubr.bf16.mxu0 %v5611
        %6211 = vmatmul.mubr.bf16.gmra.mrb[0].mxu0 %v5610
        %v6212 = vpop.f32.mrb[0].mxu0
        %v6213 = vadd.f32 %v5649, %v6212
        %v6214 = vpop.f32.mrb[0].mxu0
        %v6215 = vpop.f32.mrb[0].mxu0
        %v6216 = vadd.f32 %v5649, %v6215
        %v6217 = vpop.f32.mrb[0].mxu0
        %6218 = vmatprep.mubr.bf16.mxu0 %v5620
        %6219 = vmatmul.mubr.bf16.gmra.mrb[0].mxu0 %v5619
        %v6220 = vpop.f32.mrb[0].mxu0
        %v6221 = vadd.f32 %v5649, %v6220
        %v6222 = vpop.f32.mrb[0].mxu0
        %v6223 = vpop.f32.mrb[0].mxu0
        %v6224 = vadd.f32 %v5649, %v6223
        %v6225 = vpop.f32.mrb[0].mxu0
        %6226 = vmatprep.mubr.bf16.mxu0 %v5629
        %6227 = vmatmul.mubr.bf16.gmra.mrb[0].mxu0 %v5628
        %v6228 = vpop.f32.mrb[0].mxu0
        %v6229 = vadd.f32 %v5649, %v6228
        %v6230 = vpop.f32.mrb[0].mxu0
        %v6231 = vpop.f32.mrb[0].mxu0
        %v6232 = vadd.f32 %v5649, %v6231
        %v6233 = vpop.f32.mrb[0].mxu0
        %6234 = vmatprep.mubr.bf16.mxu0 %v5638
        %6235 = vmatmul.mubr.bf16.gmra.mrb[0].mxu0 %v5637
        %v6236 = vpop.f32.mrb[0].mxu0
        %v6237 = vadd.f32 %v5649, %v6236
        %v6238 = vpop.f32.mrb[0].mxu0
        %v6239 = vpop.f32.mrb[0].mxu0
        %v6240 = vadd.f32 %v5649, %v6239
        %v6241 = vpop.f32.mrb[0].mxu0
        %6242 = vdwg.mxu0
        %6243 = vmatprep.subr.bf16.mxu0 0
        %6244 = vmatpush1.bf16.msra.mxu0 %v5954
        %6245 = vmatprep.subr.bf16.mxu0 0
        %6246 = vmatpush1.bf16.msra.mxu0 %v5955
        %6247 = vmatprep.subr.bf16.mxu0 0
        %6248 = vmatpush1.bf16.msra.mxu0 %v5956
        %6249 = vmatprep.subr.bf16.mxu0 0
        %6250 = vmatpush1.bf16.msra.mxu0 %v5957
        %6251 = vmatprep.subr.bf16.mxu0 0
        %6252 = vmatpush1.bf16.msra.mxu0 %v5958
        %6253 = vmatprep.subr.bf16.mxu0 0
        %6254 = vmatpush1.bf16.msra.mxu0 %v5959
        %6255 = vmatprep.subr.bf16.mxu0 0
        %6256 = vmatpush1.bf16.msra.mxu0 %v5960
        %6257 = vmatprep.subr.bf16.mxu0 0
        %6258 = vmatpush1.bf16.msra.mxu0 %v5961
        %6259 = vmatprep.subr.bf16.mxu0 0
        %6260 = vmatpush1.bf16.msra.mxu0 %v5962
        %6261 = vmatprep.subr.bf16.mxu0 0
        %6262 = vmatpush1.bf16.msra.mxu0 %v5963
        %6263 = vmatprep.subr.bf16.mxu0 0
        %6264 = vmatpush1.bf16.msra.mxu0 %v5964
        %6265 = vmatprep.subr.bf16.mxu0 0
        %6266 = vmatpush1.bf16.msra.mxu0 %v5965
        %6267 = vmatprep.subr.bf16.mxu0 0
        %6268 = vmatpush1.bf16.msra.mxu0 %v5966
        %6269 = vmatprep.subr.bf16.mxu0 0
        %6270 = vmatpush1.bf16.msra.mxu0 %v5967
        %6271 = vmatprep.subr.bf16.mxu0 0
        %6272 = vmatpush1.bf16.msra.mxu0 %v5968
        %6273 = vmatprep.subr.bf16.mxu0 0
        %6274 = vmatpush1.bf16.msra.mxu0 %v5969
        %6275 = vmatprep.mubr.bf16.mxu0 %v5505
        %6276 = vmatmul.mubr.bf16.gmra.mrb[0].mxu0 %v5504
        %v6277 = vpop.f32.mrb[0].mxu0
        %v6278 = vadd.f32 %v6117, %v6277
        %v6279 = vpop.f32.mrb[0].mxu0
        %v6280 = vpop.f32.mrb[0].mxu0
        %v6281 = vadd.f32 %v6120, %v6280
        %v6282 = vpop.f32.mrb[0].mxu0
        %6283 = vmatprep.mubr.bf16.mxu0 %v5514
        %6284 = vmatmul.mubr.bf16.gmra.mrb[0].mxu0 %v5513
        %v6285 = vpop.f32.mrb[0].mxu0
        %v6286 = vadd.f32 %v6125, %v6285
        %v6287 = vpop.f32.mrb[0].mxu0
        %v6288 = vpop.f32.mrb[0].mxu0
        %v6289 = vadd.f32 %v6128, %v6288
        %v6290 = vpop.f32.mrb[0].mxu0
        %6291 = vmatprep.mubr.bf16.mxu0 %v5523
        %6292 = vmatmul.mubr.bf16.gmra.mrb[0].mxu0 %v5522
        %v6293 = vpop.f32.mrb[0].mxu0
        %v6294 = vadd.f32 %v6133, %v6293
        %v6295 = vpop.f32.mrb[0].mxu0
        %v6296 = vpop.f32.mrb[0].mxu0
        %v6297 = vadd.f32 %v6136, %v6296
        %v6298 = vpop.f32.mrb[0].mxu0
        %6299 = vmatprep.mubr.bf16.mxu0 %v5532
        %6300 = vmatmul.mubr.bf16.gmra.mrb[0].mxu0 %v5531
        %v6301 = vpop.f32.mrb[0].mxu0
        %v6302 = vadd.f32 %v6141, %v6301
        %v6303 = vpop.f32.mrb[0].mxu0
        %v6304 = vpop.f32.mrb[0].mxu0
        %v6305 = vadd.f32 %v6144, %v6304
        %v6306 = vpop.f32.mrb[0].mxu0
        %6307 = vmatprep.mubr.bf16.mxu0 %v5541
        %6308 = vmatmul.mubr.bf16.gmra.mrb[0].mxu0 %v5540
        %v6309 = vpop.f32.mrb[0].mxu0
        %v6310 = vadd.f32 %v6149, %v6309
        %v6311 = vpop.f32.mrb[0].mxu0
        %v6312 = vpop.f32.mrb[0].mxu0
        %v6313 = vadd.f32 %v6152, %v6312
        %v6314 = vpop.f32.mrb[0].mxu0
        %6315 = vmatprep.mubr.bf16.mxu0 %v5550
        %6316 = vmatmul.mubr.bf16.gmra.mrb[0].mxu0 %v5549
        %v6317 = vpop.f32.mrb[0].mxu0
        %v6318 = vadd.f32 %v6157, %v6317
        %v6319 = vpop.f32.mrb[0].mxu0
        %v6320 = vpop.f32.mrb[0].mxu0
        %v6321 = vadd.f32 %v6160, %v6320
        %v6322 = vpop.f32.mrb[0].mxu0
        %6323 = vmatprep.mubr.bf16.mxu0 %v5559
        %6324 = vmatmul.mubr.bf16.gmra.mrb[0].mxu0 %v5558
        %v6325 = vpop.f32.mrb[0].mxu0
        %v6326 = vadd.f32 %v6165, %v6325
        %v6327 = vpop.f32.mrb[0].mxu0
        %v6328 = vpop.f32.mrb[0].mxu0
        %v6329 = vadd.f32 %v6168, %v6328
        %v6330 = vpop.f32.mrb[0].mxu0
        %6331 = vmatprep.mubr.bf16.mxu0 %v5568
        %6332 = vmatmul.mubr.bf16.gmra.mrb[0].mxu0 %v5567
        %v6333 = vpop.f32.mrb[0].mxu0
        %v6334 = vadd.f32 %v6173, %v6333
        %v6335 = vpop.f32.mrb[0].mxu0
        %v6336 = vpop.f32.mrb[0].mxu0
        %v6337 = vadd.f32 %v6176, %v6336
        %v6338 = vpop.f32.mrb[0].mxu0
        %6339 = vmatprep.mubr.bf16.mxu0 %v5577
        %6340 = vmatmul.mubr.bf16.gmra.mrb[0].mxu0 %v5576
        %v6341 = vpop.f32.mrb[0].mxu0
        %v6342 = vadd.f32 %v6181, %v6341
        %v6343 = vpop.f32.mrb[0].mxu0
        %v6344 = vpop.f32.mrb[0].mxu0
        %v6345 = vadd.f32 %v6184, %v6344
        %v6346 = vpop.f32.mrb[0].mxu0
        %6347 = vmatprep.mubr.bf16.mxu0 %v5586
        %6348 = vmatmul.mubr.bf16.gmra.mrb[0].mxu0 %v5585
        %v6349 = vpop.f32.mrb[0].mxu0
        %v6350 = vadd.f32 %v6189, %v6349
        %v6351 = vpop.f32.mrb[0].mxu0
        %v6352 = vpop.f32.mrb[0].mxu0
        %v6353 = vadd.f32 %v6192, %v6352
        %v6354 = vpop.f32.mrb[0].mxu0
        %6355 = vmatprep.mubr.bf16.mxu0 %v5595
        %6356 = vmatmul.mubr.bf16.gmra.mrb[0].mxu0 %v5594
        %v6357 = vpop.f32.mrb[0].mxu0
        %v6358 = vadd.f32 %v6197, %v6357
        %v6359 = vpop.f32.mrb[0].mxu0
        %v6360 = vpop.f32.mrb[0].mxu0
        %v6361 = vadd.f32 %v6200, %v6360
        %v6362 = vpop.f32.mrb[0].mxu0
        %6363 = vmatprep.mubr.bf16.mxu0 %v5604
        %6364 = vmatmul.mubr.bf16.gmra.mrb[0].mxu0 %v5603
        %v6365 = vpop.f32.mrb[0].mxu0
        %v6366 = vadd.f32 %v6205, %v6365
        %v6367 = vpop.f32.mrb[0].mxu0
        %v6368 = vpop.f32.mrb[0].mxu0
        %v6369 = vadd.f32 %v6208, %v6368
        %v6370 = vpop.f32.mrb[0].mxu0
        %6371 = vmatprep.mubr.bf16.mxu0 %v5613
        %6372 = vmatmul.mubr.bf16.gmra.mrb[0].mxu0 %v5612
        %v6373 = vpop.f32.mrb[0].mxu0
        %v6374 = vadd.f32 %v6213, %v6373
        %v6375 = vpop.f32.mrb[0].mxu0
        %v6376 = vpop.f32.mrb[0].mxu0
        %v6377 = vadd.f32 %v6216, %v6376
        %v6378 = vpop.f32.mrb[0].mxu0
        %6379 = vmatprep.mubr.bf16.mxu0 %v5622
        %6380 = vmatmul.mubr.bf16.gmra.mrb[0].mxu0 %v5621
        %v6381 = vpop.f32.mrb[0].mxu0
        %v6382 = vadd.f32 %v6221, %v6381
        %v6383 = vpop.f32.mrb[0].mxu0
        %v6384 = vpop.f32.mrb[0].mxu0
        %v6385 = vadd.f32 %v6224, %v6384
        %v6386 = vpop.f32.mrb[0].mxu0
        %6387 = vmatprep.mubr.bf16.mxu0 %v5631
        %6388 = vmatmul.mubr.bf16.gmra.mrb[0].mxu0 %v5630
        %v6389 = vpop.f32.mrb[0].mxu0
        %v6390 = vadd.f32 %v6229, %v6389
        %v6391 = vpop.f32.mrb[0].mxu0
        %v6392 = vpop.f32.mrb[0].mxu0
        %v6393 = vadd.f32 %v6232, %v6392
        %v6394 = vpop.f32.mrb[0].mxu0
        %6395 = vmatprep.mubr.bf16.mxu0 %v5640
        %6396 = vmatmul.mubr.bf16.gmra.mrb[0].mxu0 %v5639
        %v6397 = vpop.f32.mrb[0].mxu0
        %v6398 = vadd.f32 %v6237, %v6397
        %v6399 = vpop.f32.mrb[0].mxu0
        %v6400 = vpop.f32.mrb[0].mxu0
        %v6401 = vadd.f32 %v6240, %v6400
        %v6402 = vpop.f32.mrb[0].mxu0
        %6403 = vdwg.mxu0
        %6404 = vmatprep.subr.bf16.mxu0 0
        %6405 = vmatpush1.bf16.msra.mxu0 %v5970
        %6406 = vmatprep.subr.bf16.mxu0 0
        %6407 = vmatpush1.bf16.msra.mxu0 %v5971
        %6408 = vmatprep.subr.bf16.mxu0 0
        %6409 = vmatpush1.bf16.msra.mxu0 %v5972
        %6410 = vmatprep.subr.bf16.mxu0 0
        %6411 = vmatpush1.bf16.msra.mxu0 %v5973
        %6412 = vmatprep.subr.bf16.mxu0 0
        %6413 = vmatpush1.bf16.msra.mxu0 %v5974
        %6414 = vmatprep.subr.bf16.mxu0 0
        %6415 = vmatpush1.bf16.msra.mxu0 %v5975
        %6416 = vmatprep.subr.bf16.mxu0 0
        %6417 = vmatpush1.bf16.msra.mxu0 %v5976
        %6418 = vmatprep.subr.bf16.mxu0 0
        %6419 = vmatpush1.bf16.msra.mxu0 %v5977
        %6420 = vmatprep.subr.bf16.mxu0 0
        %6421 = vmatpush1.bf16.msra.mxu0 %v5978
        %6422 = vmatprep.subr.bf16.mxu0 0
        %6423 = vmatpush1.bf16.msra.mxu0 %v5979
        %6424 = vmatprep.subr.bf16.mxu0 0
        %6425 = vmatpush1.bf16.msra.mxu0 %v5980
        %6426 = vmatprep.subr.bf16.mxu0 0
        %6427 = vmatpush1.bf16.msra.mxu0 %v5981
        %6428 = vmatprep.subr.bf16.mxu0 0
        %6429 = vmatpush1.bf16.msra.mxu0 %v5982
        %6430 = vmatprep.subr.bf16.mxu0 0
        %6431 = vmatpush1.bf16.msra.mxu0 %v5983
        %6432 = vmatprep.subr.bf16.mxu0 0
        %6433 = vmatpush1.bf16.msra.mxu0 %v5984
        %6434 = vmatprep.subr.bf16.mxu0 0
        %6435 = vmatpush1.bf16.msra.mxu0 %v5985
        %6436 = vmatprep.mubr.bf16.mxu0 %v5507
        %6437 = vmatmul.mubr.bf16.gmra.mrb[0].mxu0 %v5506
        %v6438 = vpop.f32.mrb[0].mxu0
        %v6439 = vadd.f32 %v6278, %v6438
        %v6440 = vpop.f32.mrb[0].mxu0
        %v6441 = vpop.f32.mrb[0].mxu0
        %v6442 = vadd.f32 %v6281, %v6441
        %v6443 = vpop.f32.mrb[0].mxu0
        %6444 = vmatprep.mubr.bf16.mxu0 %v5516
        %6445 = vmatmul.mubr.bf16.gmra.mrb[0].mxu0 %v5515
        %v6446 = vpop.f32.mrb[0].mxu0
        %v6447 = vadd.f32 %v6286, %v6446
        %v6448 = vpop.f32.mrb[0].mxu0
        %v6449 = vpop.f32.mrb[0].mxu0
        %v6450 = vadd.f32 %v6289, %v6449
        %v6451 = vpop.f32.mrb[0].mxu0
        %6452 = vmatprep.mubr.bf16.mxu0 %v5525
        %6453 = vmatmul.mubr.bf16.gmra.mrb[0].mxu0 %v5524
        %v6454 = vpop.f32.mrb[0].mxu0
        %v6455 = vadd.f32 %v6294, %v6454
        %v6456 = vpop.f32.mrb[0].mxu0
        %v6457 = vpop.f32.mrb[0].mxu0
        %v6458 = vadd.f32 %v6297, %v6457
        %v6459 = vpop.f32.mrb[0].mxu0
        %6460 = vmatprep.mubr.bf16.mxu0 %v5534
        %6461 = vmatmul.mubr.bf16.gmra.mrb[0].mxu0 %v5533
        %v6462 = vpop.f32.mrb[0].mxu0
        %v6463 = vadd.f32 %v6302, %v6462
        %v6464 = vpop.f32.mrb[0].mxu0
        %v6465 = vpop.f32.mrb[0].mxu0
        %v6466 = vadd.f32 %v6305, %v6465
        %v6467 = vpop.f32.mrb[0].mxu0
        %6468 = vmatprep.mubr.bf16.mxu0 %v5543
        %6469 = vmatmul.mubr.bf16.gmra.mrb[0].mxu0 %v5542
        %v6470 = vpop.f32.mrb[0].mxu0
        %v6471 = vadd.f32 %v6310, %v6470
        %v6472 = vpop.f32.mrb[0].mxu0
        %v6473 = vpop.f32.mrb[0].mxu0
        %v6474 = vadd.f32 %v6313, %v6473
        %v6475 = vpop.f32.mrb[0].mxu0
        %6476 = vmatprep.mubr.bf16.mxu0 %v5552
        %6477 = vmatmul.mubr.bf16.gmra.mrb[0].mxu0 %v5551
        %v6478 = vpop.f32.mrb[0].mxu0
        %v6479 = vadd.f32 %v6318, %v6478
        %v6480 = vpop.f32.mrb[0].mxu0
        %v6481 = vpop.f32.mrb[0].mxu0
        %v6482 = vadd.f32 %v6321, %v6481
        %v6483 = vpop.f32.mrb[0].mxu0
        %6484 = vmatprep.mubr.bf16.mxu0 %v5561
        %6485 = vmatmul.mubr.bf16.gmra.mrb[0].mxu0 %v5560
        %v6486 = vpop.f32.mrb[0].mxu0
        %v6487 = vadd.f32 %v6326, %v6486
        %v6488 = vpop.f32.mrb[0].mxu0
        %v6489 = vpop.f32.mrb[0].mxu0
        %v6490 = vadd.f32 %v6329, %v6489
        %v6491 = vpop.f32.mrb[0].mxu0
        %6492 = vmatprep.mubr.bf16.mxu0 %v5570
        %6493 = vmatmul.mubr.bf16.gmra.mrb[0].mxu0 %v5569
        %v6494 = vpop.f32.mrb[0].mxu0
        %v6495 = vadd.f32 %v6334, %v6494
        %v6496 = vpop.f32.mrb[0].mxu0
        %v6497 = vpop.f32.mrb[0].mxu0
        %v6498 = vadd.f32 %v6337, %v6497
        %v6499 = vpop.f32.mrb[0].mxu0
        %6500 = vmatprep.mubr.bf16.mxu0 %v5579
        %6501 = vmatmul.mubr.bf16.gmra.mrb[0].mxu0 %v5578
        %v6502 = vpop.f32.mrb[0].mxu0
        %v6503 = vadd.f32 %v6342, %v6502
        %v6504 = vpop.f32.mrb[0].mxu0
        %v6505 = vpop.f32.mrb[0].mxu0
        %v6506 = vadd.f32 %v6345, %v6505
        %v6507 = vpop.f32.mrb[0].mxu0
        %6508 = vmatprep.mubr.bf16.mxu0 %v5588
        %6509 = vmatmul.mubr.bf16.gmra.mrb[0].mxu0 %v5587
        %v6510 = vpop.f32.mrb[0].mxu0
        %v6511 = vadd.f32 %v6350, %v6510
        %v6512 = vpop.f32.mrb[0].mxu0
        %v6513 = vpop.f32.mrb[0].mxu0
        %v6514 = vadd.f32 %v6353, %v6513
        %v6515 = vpop.f32.mrb[0].mxu0
        %6516 = vmatprep.mubr.bf16.mxu0 %v5597
        %6517 = vmatmul.mubr.bf16.gmra.mrb[0].mxu0 %v5596
        %v6518 = vpop.f32.mrb[0].mxu0
        %v6519 = vadd.f32 %v6358, %v6518
        %v6520 = vpop.f32.mrb[0].mxu0
        %v6521 = vpop.f32.mrb[0].mxu0
        %v6522 = vadd.f32 %v6361, %v6521
        %v6523 = vpop.f32.mrb[0].mxu0
        %6524 = vmatprep.mubr.bf16.mxu0 %v5606
        %6525 = vmatmul.mubr.bf16.gmra.mrb[0].mxu0 %v5605
        %v6526 = vpop.f32.mrb[0].mxu0
        %v6527 = vadd.f32 %v6366, %v6526
        %v6528 = vpop.f32.mrb[0].mxu0
        %v6529 = vpop.f32.mrb[0].mxu0
        %v6530 = vadd.f32 %v6369, %v6529
        %v6531 = vpop.f32.mrb[0].mxu0
        %6532 = vmatprep.mubr.bf16.mxu0 %v5615
        %6533 = vmatmul.mubr.bf16.gmra.mrb[0].mxu0 %v5614
        %v6534 = vpop.f32.mrb[0].mxu0
        %v6535 = vadd.f32 %v6374, %v6534
        %v6536 = vpop.f32.mrb[0].mxu0
        %v6537 = vpop.f32.mrb[0].mxu0
        %v6538 = vadd.f32 %v6377, %v6537
        %v6539 = vpop.f32.mrb[0].mxu0
        %6540 = vmatprep.mubr.bf16.mxu0 %v5624
        %6541 = vmatmul.mubr.bf16.gmra.mrb[0].mxu0 %v5623
        %v6542 = vpop.f32.mrb[0].mxu0
        %v6543 = vadd.f32 %v6382, %v6542
        %v6544 = vpop.f32.mrb[0].mxu0
        %v6545 = vpop.f32.mrb[0].mxu0
        %v6546 = vadd.f32 %v6385, %v6545
        %v6547 = vpop.f32.mrb[0].mxu0
        %6548 = vmatprep.mubr.bf16.mxu0 %v5633
        %6549 = vmatmul.mubr.bf16.gmra.mrb[0].mxu0 %v5632
        %v6550 = vpop.f32.mrb[0].mxu0
        %v6551 = vadd.f32 %v6390, %v6550
        %v6552 = vpop.f32.mrb[0].mxu0
        %v6553 = vpop.f32.mrb[0].mxu0
        %v6554 = vadd.f32 %v6393, %v6553
        %v6555 = vpop.f32.mrb[0].mxu0
        %6556 = vmatprep.mubr.bf16.mxu0 %v5642
        %6557 = vmatmul.mubr.bf16.gmra.mrb[0].mxu0 %v5641
        %v6558 = vpop.f32.mrb[0].mxu0
        %v6559 = vadd.f32 %v6398, %v6558
        %v6560 = vpop.f32.mrb[0].mxu0
        %v6561 = vpop.f32.mrb[0].mxu0
        %v6562 = vadd.f32 %v6401, %v6561
        %v6563 = vpop.f32.mrb[0].mxu0
        %6564 = vdwg.mxu0
        %6565 = vmatprep.subr.bf16.mxu0 0
        %6566 = vmatpush1.bf16.msra.mxu0 %v5986
        %6567 = vmatprep.subr.bf16.mxu0 0
        %6568 = vmatpush1.bf16.msra.mxu0 %v5987
        %6569 = vmatprep.subr.bf16.mxu0 0
        %6570 = vmatpush1.bf16.msra.mxu0 %v5988
        %6571 = vmatprep.subr.bf16.mxu0 0
        %6572 = vmatpush1.bf16.msra.mxu0 %v5989
        %6573 = vmatprep.subr.bf16.mxu0 0
        %6574 = vmatpush1.bf16.msra.mxu0 %v5990
        %6575 = vmatprep.subr.bf16.mxu0 0
        %6576 = vmatpush1.bf16.msra.mxu0 %v5991
        %6577 = vmatprep.subr.bf16.mxu0 0
        %6578 = vmatpush1.bf16.msra.mxu0 %v5992
        %6579 = vmatprep.subr.bf16.mxu0 0
        %6580 = vmatpush1.bf16.msra.mxu0 %v5993
        %6581 = vmatprep.subr.bf16.mxu0 0
        %6582 = vmatpush1.bf16.msra.mxu0 %v5994
        %6583 = vmatprep.subr.bf16.mxu0 0
        %6584 = vmatpush1.bf16.msra.mxu0 %v5995
        %6585 = vmatprep.subr.bf16.mxu0 0
        %6586 = vmatpush1.bf16.msra.mxu0 %v5996
        %6587 = vmatprep.subr.bf16.mxu0 0
        %6588 = vmatpush1.bf16.msra.mxu0 %v5997
        %6589 = vmatprep.subr.bf16.mxu0 0
        %6590 = vmatpush1.bf16.msra.mxu0 %v5998
        %6591 = vmatprep.subr.bf16.mxu0 0
        %6592 = vmatpush1.bf16.msra.mxu0 %v5999
        %6593 = vmatprep.subr.bf16.mxu0 0
        %6594 = vmatpush1.bf16.msra.mxu0 %v6000
        %6595 = vmatprep.subr.bf16.mxu0 0
        %6596 = vmatpush1.bf16.msra.mxu0 %v6001
        %6597 = vmatprep.mubr.bf16.mxu0 %v5509
        %6598 = vmatmul.mubr.bf16.gmra.mrb[0].mxu0 %v5508
        %v6599 = vpop.f32.mrb[0].mxu0
        %v6600 = vadd.f32 %v6439, %v6599
        %v6601 = vpop.f32.mrb[0].mxu0
        %v6602 = vpop.f32.mrb[0].mxu0
        %v6603 = vadd.f32 %v6442, %v6602
        %v6604 = vpop.f32.mrb[0].mxu0
        %6605 = vmatprep.mubr.bf16.mxu0 %v5518
        %6606 = vmatmul.mubr.bf16.gmra.mrb[0].mxu0 %v5517
        %v6607 = vpop.f32.mrb[0].mxu0
        %v6608 = vadd.f32 %v6447, %v6607
        %v6609 = vpop.f32.mrb[0].mxu0
        %v6610 = vpop.f32.mrb[0].mxu0
        %v6611 = vadd.f32 %v6450, %v6610
        %v6612 = vpop.f32.mrb[0].mxu0
        %6613 = vmatprep.mubr.bf16.mxu0 %v5527
        %6614 = vmatmul.mubr.bf16.gmra.mrb[0].mxu0 %v5526
        %v6615 = vpop.f32.mrb[0].mxu0
        %v6616 = vadd.f32 %v6455, %v6615
        %v6617 = vpop.f32.mrb[0].mxu0
        %v6618 = vpop.f32.mrb[0].mxu0
        %v6619 = vadd.f32 %v6458, %v6618
        %v6620 = vpop.f32.mrb[0].mxu0
        %6621 = vmatprep.mubr.bf16.mxu0 %v5536
        %6622 = vmatmul.mubr.bf16.gmra.mrb[0].mxu0 %v5535
        %v6623 = vpop.f32.mrb[0].mxu0
        %v6624 = vadd.f32 %v6463, %v6623
        %v6625 = vpop.f32.mrb[0].mxu0
        %v6626 = vpop.f32.mrb[0].mxu0
        %v6627 = vadd.f32 %v6466, %v6626
        %v6628 = vpop.f32.mrb[0].mxu0
        %6629 = vmatprep.mubr.bf16.mxu0 %v5545
        %6630 = vmatmul.mubr.bf16.gmra.mrb[0].mxu0 %v5544
        %v6631 = vpop.f32.mrb[0].mxu0
        %v6632 = vadd.f32 %v6471, %v6631
        %v6633 = vpop.f32.mrb[0].mxu0
        %v6634 = vpop.f32.mrb[0].mxu0
        %v6635 = vadd.f32 %v6474, %v6634
        %v6636 = vpop.f32.mrb[0].mxu0
        %6637 = vmatprep.mubr.bf16.mxu0 %v5554
        %6638 = vmatmul.mubr.bf16.gmra.mrb[0].mxu0 %v5553
        %v6639 = vpop.f32.mrb[0].mxu0
        %v6640 = vadd.f32 %v6479, %v6639
        %v6641 = vpop.f32.mrb[0].mxu0
        %v6642 = vpop.f32.mrb[0].mxu0
        %v6643 = vadd.f32 %v6482, %v6642
        %v6644 = vpop.f32.mrb[0].mxu0
        %6645 = vmatprep.mubr.bf16.mxu0 %v5563
        %6646 = vmatmul.mubr.bf16.gmra.mrb[0].mxu0 %v5562
        %v6647 = vpop.f32.mrb[0].mxu0
        %v6648 = vadd.f32 %v6487, %v6647
        %v6649 = vpop.f32.mrb[0].mxu0
        %v6650 = vpop.f32.mrb[0].mxu0
        %v6651 = vadd.f32 %v6490, %v6650
        %v6652 = vpop.f32.mrb[0].mxu0
        %6653 = vmatprep.mubr.bf16.mxu0 %v5572
        %6654 = vmatmul.mubr.bf16.gmra.mrb[0].mxu0 %v5571
        %v6655 = vpop.f32.mrb[0].mxu0
        %v6656 = vadd.f32 %v6495, %v6655
        %v6657 = vpop.f32.mrb[0].mxu0
        %v6658 = vpop.f32.mrb[0].mxu0
        %v6659 = vadd.f32 %v6498, %v6658
        %v6660 = vpop.f32.mrb[0].mxu0
        %6661 = vmatprep.mubr.bf16.mxu0 %v5581
        %6662 = vmatmul.mubr.bf16.gmra.mrb[0].mxu0 %v5580
        %v6663 = vpop.f32.mrb[0].mxu0
        %v6664 = vadd.f32 %v6503, %v6663
        %v6665 = vpop.f32.mrb[0].mxu0
        %v6666 = vpop.f32.mrb[0].mxu0
        %v6667 = vadd.f32 %v6506, %v6666
        %v6668 = vpop.f32.mrb[0].mxu0
        %6669 = vmatprep.mubr.bf16.mxu0 %v5590
        %6670 = vmatmul.mubr.bf16.gmra.mrb[0].mxu0 %v5589
        %v6671 = vpop.f32.mrb[0].mxu0
        %v6672 = vadd.f32 %v6511, %v6671
        %v6673 = vpop.f32.mrb[0].mxu0
        %v6674 = vpop.f32.mrb[0].mxu0
        %v6675 = vadd.f32 %v6514, %v6674
        %v6676 = vpop.f32.mrb[0].mxu0
        %6677 = vmatprep.mubr.bf16.mxu0 %v5599
        %6678 = vmatmul.mubr.bf16.gmra.mrb[0].mxu0 %v5598
        %v6679 = vpop.f32.mrb[0].mxu0
        %v6680 = vadd.f32 %v6519, %v6679
        %v6681 = vpop.f32.mrb[0].mxu0
        %v6682 = vpop.f32.mrb[0].mxu0
        %v6683 = vadd.f32 %v6522, %v6682
        %v6684 = vpop.f32.mrb[0].mxu0
        %6685 = vmatprep.mubr.bf16.mxu0 %v5608
        %6686 = vmatmul.mubr.bf16.gmra.mrb[0].mxu0 %v5607
        %v6687 = vpop.f32.mrb[0].mxu0
        %v6688 = vadd.f32 %v6527, %v6687
        %v6689 = vpop.f32.mrb[0].mxu0
        %v6690 = vpop.f32.mrb[0].mxu0
        %v6691 = vadd.f32 %v6530, %v6690
        %v6692 = vpop.f32.mrb[0].mxu0
        %6693 = vmatprep.mubr.bf16.mxu0 %v5617
        %6694 = vmatmul.mubr.bf16.gmra.mrb[0].mxu0 %v5616
        %v6695 = vpop.f32.mrb[0].mxu0
        %v6696 = vadd.f32 %v6535, %v6695
        %v6697 = vpop.f32.mrb[0].mxu0
        %v6698 = vpop.f32.mrb[0].mxu0
        %v6699 = vadd.f32 %v6538, %v6698
        %v6700 = vpop.f32.mrb[0].mxu0
        %6701 = vmatprep.mubr.bf16.mxu0 %v5626
        %6702 = vmatmul.mubr.bf16.gmra.mrb[0].mxu0 %v5625
        %v6703 = vpop.f32.mrb[0].mxu0
        %v6704 = vadd.f32 %v6543, %v6703
        %v6705 = vpop.f32.mrb[0].mxu0
        %v6706 = vpop.f32.mrb[0].mxu0
        %v6707 = vadd.f32 %v6546, %v6706
        %v6708 = vpop.f32.mrb[0].mxu0
        %6709 = vmatprep.mubr.bf16.mxu0 %v5635
        %6710 = vmatmul.mubr.bf16.gmra.mrb[0].mxu0 %v5634
        %v6711 = vpop.f32.mrb[0].mxu0
        %v6712 = vadd.f32 %v6551, %v6711
        %v6713 = vpop.f32.mrb[0].mxu0
        %v6714 = vpop.f32.mrb[0].mxu0
        %v6715 = vadd.f32 %v6554, %v6714
        %v6716 = vpop.f32.mrb[0].mxu0
        %6717 = vmatprep.mubr.bf16.mxu0 %v5644
        %6718 = vmatmul.mubr.bf16.gmra.mrb[0].mxu0 %v5643
        %v6719 = vpop.f32.mrb[0].mxu0
        %v6720 = vadd.f32 %v6559, %v6719
        %v6721 = vpop.f32.mrb[0].mxu0
        %v6722 = vpop.f32.mrb[0].mxu0
        %v6723 = vadd.f32 %v6562, %v6722
        %v6724 = vpop.f32.mrb[0].mxu0
        %6725 = vdwg.mxu0
        %6726 = vmatprep.subr.bf16.mxu0 0
        %6727 = vmatpush1.bf16.msra.mxu0 %v6002
        %6728 = vmatprep.subr.bf16.mxu0 0
        %6729 = vmatpush1.bf16.msra.mxu0 %v6003
        %6730 = vmatprep.subr.bf16.mxu0 0
        %6731 = vmatpush1.bf16.msra.mxu0 %v6004
        %6732 = vmatprep.subr.bf16.mxu0 0
        %6733 = vmatpush1.bf16.msra.mxu0 %v6005
        %6734 = vmatprep.subr.bf16.mxu0 0
        %6735 = vmatpush1.bf16.msra.mxu0 %v6006
        %6736 = vmatprep.subr.bf16.mxu0 0
        %6737 = vmatpush1.bf16.msra.mxu0 %v6007
        %6738 = vmatprep.subr.bf16.mxu0 0
        %6739 = vmatpush1.bf16.msra.mxu0 %v6008
        %6740 = vmatprep.subr.bf16.mxu0 0
        %6741 = vmatpush1.bf16.msra.mxu0 %v6009
        %6742 = vmatprep.subr.bf16.mxu0 0
        %6743 = vmatpush1.bf16.msra.mxu0 0
        %6744 = vmatprep.subr.bf16.mxu0 0
        %6745 = vmatpush1.bf16.msra.mxu0 0
        %6746 = vmatprep.subr.bf16.mxu0 0
        %6747 = vmatpush1.bf16.msra.mxu0 0
        %6748 = vmatprep.subr.bf16.mxu0 0
        %6749 = vmatpush1.bf16.msra.mxu0 0
        %6750 = vmatprep.subr.bf16.mxu0 0
        %6751 = vmatpush1.bf16.msra.mxu0 0
        %6752 = vmatprep.subr.bf16.mxu0 0
        %6753 = vmatpush1.bf16.msra.mxu0 0
        %6754 = vmatprep.subr.bf16.mxu0 0
        %6755 = vmatpush1.bf16.msra.mxu0 0
        %6756 = vmatprep.subr.bf16.mxu0 0
        %6757 = vmatpush1.bf16.msra.mxu0 0
        %6758 = vmatprep.mubr.bf16.mxu0 0
        %6759 = vmatmul.mubr.bf16.gmra.mrb[0].mxu0 %v5510
        %v6760 = vpop.f32.mrb[0].mxu0
        %v6761 = vadd.f32 %v6600, %v6760
        %v6762 = vpop.f32.mrb[0].mxu0
        %v6763 = vpop.f32.mrb[0].mxu0
        %v6764 = vadd.f32 %v6603, %v6763
        %v6765 = vpop.f32.mrb[0].mxu0
        %6766 = vmatprep.mubr.bf16.mxu0 0
        %6767 = vmatmul.mubr.bf16.gmra.mrb[0].mxu0 %v5519
        %v6768 = vpop.f32.mrb[0].mxu0
        %v6769 = vadd.f32 %v6608, %v6768
        %v6770 = vpop.f32.mrb[0].mxu0
        %v6771 = vpop.f32.mrb[0].mxu0
        %v6772 = vadd.f32 %v6611, %v6771
        %v6773 = vpop.f32.mrb[0].mxu0
        %6774 = vmatprep.mubr.bf16.mxu0 0
        %6775 = vmatmul.mubr.bf16.gmra.mrb[0].mxu0 %v5528
        %v6776 = vpop.f32.mrb[0].mxu0
        %v6777 = vadd.f32 %v6616, %v6776
        %v6778 = vpop.f32.mrb[0].mxu0
        %v6779 = vpop.f32.mrb[0].mxu0
        %v6780 = vadd.f32 %v6619, %v6779
        %v6781 = vpop.f32.mrb[0].mxu0
        %6782 = vmatprep.mubr.bf16.mxu0 0
        %6783 = vmatmul.mubr.bf16.gmra.mrb[0].mxu0 %v5537
        %v6784 = vpop.f32.mrb[0].mxu0
        %v6785 = vadd.f32 %v6624, %v6784
        %v6786 = vpop.f32.mrb[0].mxu0
        %v6787 = vpop.f32.mrb[0].mxu0
        %v6788 = vadd.f32 %v6627, %v6787
        %v6789 = vpop.f32.mrb[0].mxu0
        %6790 = vmatprep.mubr.bf16.mxu0 0
        %6791 = vmatmul.mubr.bf16.gmra.mrb[0].mxu0 %v5546
        %v6792 = vpop.f32.mrb[0].mxu0
        %v6793 = vadd.f32 %v6632, %v6792
        %v6794 = vpop.f32.mrb[0].mxu0
        %v6795 = vpop.f32.mrb[0].mxu0
        %v6796 = vadd.f32 %v6635, %v6795
        %v6797 = vpop.f32.mrb[0].mxu0
        %6798 = vmatprep.mubr.bf16.mxu0 0
        %6799 = vmatmul.mubr.bf16.gmra.mrb[0].mxu0 %v5555
        %v6800 = vpop.f32.mrb[0].mxu0
        %v6801 = vadd.f32 %v6640, %v6800
        %v6802 = vpop.f32.mrb[0].mxu0
        %v6803 = vpop.f32.mrb[0].mxu0
        %v6804 = vadd.f32 %v6643, %v6803
        %v6805 = vpop.f32.mrb[0].mxu0
        %6806 = vmatprep.mubr.bf16.mxu0 0
        %6807 = vmatmul.mubr.bf16.gmra.mrb[0].mxu0 %v5564
        %v6808 = vpop.f32.mrb[0].mxu0
        %v6809 = vadd.f32 %v6648, %v6808
        %v6810 = vpop.f32.mrb[0].mxu0
        %v6811 = vpop.f32.mrb[0].mxu0
        %v6812 = vadd.f32 %v6651, %v6811
        %v6813 = vpop.f32.mrb[0].mxu0
        %6814 = vmatprep.mubr.bf16.mxu0 0
        %6815 = vmatmul.mubr.bf16.gmra.mrb[0].mxu0 %v5573
        %v6816 = vpop.f32.mrb[0].mxu0
        %v6817 = vadd.f32 %v6656, %v6816
        %v6818 = vpop.f32.mrb[0].mxu0
        %v6819 = vpop.f32.mrb[0].mxu0
        %v6820 = vadd.f32 %v6659, %v6819
        %v6821 = vpop.f32.mrb[0].mxu0
        %6822 = vmatprep.mubr.bf16.mxu0 0
        %6823 = vmatmul.mubr.bf16.gmra.mrb[0].mxu0 %v5582
        %v6824 = vpop.f32.mrb[0].mxu0
        %v6825 = vadd.f32 %v6664, %v6824
        %v6826 = vpop.f32.mrb[0].mxu0
        %v6827 = vpop.f32.mrb[0].mxu0
        %v6828 = vadd.f32 %v6667, %v6827
        %v6829 = vpop.f32.mrb[0].mxu0
        %6830 = vmatprep.mubr.bf16.mxu0 0
        %6831 = vmatmul.mubr.bf16.gmra.mrb[0].mxu0 %v5591
        %v6832 = vpop.f32.mrb[0].mxu0
        %v6833 = vadd.f32 %v6672, %v6832
        %v6834 = vpop.f32.mrb[0].mxu0
        %v6835 = vpop.f32.mrb[0].mxu0
        %v6836 = vadd.f32 %v6675, %v6835
        %v6837 = vpop.f32.mrb[0].mxu0
        %6838 = vmatprep.mubr.bf16.mxu0 0
        %6839 = vmatmul.mubr.bf16.gmra.mrb[0].mxu0 %v5600
        %v6840 = vpop.f32.mrb[0].mxu0
        %v6841 = vadd.f32 %v6680, %v6840
        %v6842 = vpop.f32.mrb[0].mxu0
        %v6843 = vpop.f32.mrb[0].mxu0
        %v6844 = vadd.f32 %v6683, %v6843
        %v6845 = vpop.f32.mrb[0].mxu0
        %6846 = vmatprep.mubr.bf16.mxu0 0
        %6847 = vmatmul.mubr.bf16.gmra.mrb[0].mxu0 %v5609
        %v6848 = vpop.f32.mrb[0].mxu0
        %v6849 = vadd.f32 %v6688, %v6848
        %v6850 = vpop.f32.mrb[0].mxu0
        %v6851 = vpop.f32.mrb[0].mxu0
        %v6852 = vadd.f32 %v6691, %v6851
        %v6853 = vpop.f32.mrb[0].mxu0
        %6854 = vmatprep.mubr.bf16.mxu0 0
        %6855 = vmatmul.mubr.bf16.gmra.mrb[0].mxu0 %v5618
        %v6856 = vpop.f32.mrb[0].mxu0
        %v6857 = vadd.f32 %v6696, %v6856
        %v6858 = vpop.f32.mrb[0].mxu0
        %v6859 = vpop.f32.mrb[0].mxu0
        %v6860 = vadd.f32 %v6699, %v6859
        %v6861 = vpop.f32.mrb[0].mxu0
        %6862 = vmatprep.mubr.bf16.mxu0 0
        %6863 = vmatmul.mubr.bf16.gmra.mrb[0].mxu0 %v5627
        %v6864 = vpop.f32.mrb[0].mxu0
        %v6865 = vadd.f32 %v6704, %v6864
        %v6866 = vpop.f32.mrb[0].mxu0
        %v6867 = vpop.f32.mrb[0].mxu0
        %v6868 = vadd.f32 %v6707, %v6867
        %v6869 = vpop.f32.mrb[0].mxu0
        %6870 = vmatprep.mubr.bf16.mxu0 0
        %6871 = vmatmul.mubr.bf16.gmra.mrb[0].mxu0 %v5636
        %v6872 = vpop.f32.mrb[0].mxu0
        %v6873 = vadd.f32 %v6712, %v6872
        %v6874 = vpop.f32.mrb[0].mxu0
        %v6875 = vpop.f32.mrb[0].mxu0
        %v6876 = vadd.f32 %v6715, %v6875
        %v6877 = vpop.f32.mrb[0].mxu0
        %6878 = vmatprep.mubr.bf16.mxu0 0
        %6879 = vmatmul.mubr.bf16.gmra.mrb[0].mxu0 %v5645
        %v6880 = vpop.f32.mrb[0].mxu0
        %v6881 = vadd.f32 %v6720, %v6880
        %v6882 = vpop.f32.mrb[0].mxu0
        %v6883 = vpop.f32.mrb[0].mxu0
        %v6884 = vadd.f32 %v6723, %v6883
        %v6885 = vpop.f32.mrb[0].mxu0
        %6886 = vdwg.mxu0
        %v6887 = vmax.f32 %v6761, 0.0
        %v6888 = vmax.f32 %v6764, 0.0
        %v6889 = vmax.f32 %v6769, 0.0
        %v6890 = vmax.f32 %v6772, 0.0
        %v6891 = vmax.f32 %v6777, 0.0
        %v6892 = vmax.f32 %v6780, 0.0
        %v6893 = vmax.f32 %v6785, 0.0
        %v6894 = vmax.f32 %v6788, 0.0
        %v6895 = vmax.f32 %v6793, 0.0
        %v6896 = vmax.f32 %v6796, 0.0
        %v6897 = vmax.f32 %v6801, 0.0
        %v6898 = vmax.f32 %v6804, 0.0
        %v6899 = vmax.f32 %v6809, 0.0
        %v6900 = vmax.f32 %v6812, 0.0
        %v6901 = vmax.f32 %v6817, 0.0
        %v6902 = vmax.f32 %v6820, 0.0
        %v6903 = vmax.f32 %v6825, 0.0
        %v6904 = vmax.f32 %v6828, 0.0
        %v6905 = vmax.f32 %v6833, 0.0
        %v6906 = vmax.f32 %v6836, 0.0
        %v6907 = vmax.f32 %v6841, 0.0
        %v6908 = vmax.f32 %v6844, 0.0
        %v6909 = vmax.f32 %v6849, 0.0
        %v6910 = vmax.f32 %v6852, 0.0
        %v6911 = vmax.f32 %v6857, 0.0
        %v6912 = vmax.f32 %v6860, 0.0
        %v6913 = vmax.f32 %v6865, 0.0
        %v6914 = vmax.f32 %v6868, 0.0
        %v6915 = vmax.f32 %v6873, 0.0
        %v6916 = vmax.f32 %v6876, 0.0
        %v6917 = vmax.f32 %v6881, 0.0
        %v6918 = vmax.f32 %v6884, 0.0
        %6919 = vst [vmem:[%s2511 + $0x8] sm:$0xff] %v6887
        %6920 = vst [vmem:[%s2511 + $0x10] sm:$0xff] %v6888
        %6921 = vst [vmem:[%s2511 + $0x28] sm:$0xff] %v6889
        %6922 = vst [vmem:[%s2511 + $0x30] sm:$0xff] %v6890
        %6923 = vst [vmem:[%s2511 + $0x48] sm:$0xff] %v6891
        %6924 = vst [vmem:[%s2511 + $0x50] sm:$0xff] %v6892
        %6925 = vst [vmem:[%s2511 + $0x68] sm:$0xff] %v6893
        %6926 = vst [vmem:[%s2511 + $0x70] sm:$0xff] %v6894
        %6927 = vst [vmem:[%s2511 + $0x88] sm:$0xff] %v6895
        %6928 = vst [vmem:[%s2511 + $0x90] sm:$0xff] %v6896
        %6929 = vst [vmem:[%s2511 + $0xa8] sm:$0xff] %v6897
        %6930 = vst [vmem:[%s2511 + $0xb0] sm:$0xff] %v6898
        %6931 = vst [vmem:[%s2511 + $0xc8] sm:$0xff] %v6899
        %6932 = vst [vmem:[%s2511 + $0xd0] sm:$0xff] %v6900
        %6933 = vst [vmem:[%s2511 + $0xe8] sm:$0xff] %v6901
        %6934 = vst [vmem:[%s2511 + $0xf0] sm:$0xff] %v6902
        %6935 = vst [vmem:[%s2511 + $0x108] sm:$0xff] %v6903
        %6936 = vst [vmem:[%s2511 + $0x110] sm:$0xff] %v6904
        %6937 = vst [vmem:[%s2511 + $0x128] sm:$0xff] %v6905
        %6938 = vst [vmem:[%s2511 + $0x130] sm:$0xff] %v6906
        %6939 = vst [vmem:[%s2511 + $0x148] sm:$0xff] %v6907
        %6940 = vst [vmem:[%s2511 + $0x150] sm:$0xff] %v6908
        %6941 = vst [vmem:[%s2511 + $0x168] sm:$0xff] %v6909
        %6942 = vst [vmem:[%s2511 + $0x170] sm:$0xff] %v6910
        %6943 = vst [vmem:[%s2511 + $0x188] sm:$0xff] %v6911
        %6944 = vst [vmem:[%s2511 + $0x190] sm:$0xff] %v6912
        %6945 = vst [vmem:[%s2511 + $0x1a8] sm:$0xff] %v6913
        %6946 = vst [vmem:[%s2511 + $0x1b0] sm:$0xff] %v6914
        %6947 = vst [vmem:[%s2511 + $0x1c8] sm:$0xff] %v6915
        %6948 = vst [vmem:[%s2511 + $0x1d0] sm:$0xff] %v6916
        %6949 = vst [vmem:[%s2511 + $0x1e8] sm:$0xff] %v6917
        %6950 = vst [vmem:[%s2511 + $0x1f0] sm:$0xff] %v6918
        %s6951 = scalar_lea.vmem [#allocation8], 1728
        %v6952 = vld [vmem:[%s6951] sm:$0xf]
        %v6953 = vld [vmem:[%s6951 + $0x4] sm:$0xf]
        %v6954 = vld [vmem:[%s6951 + $0x8] sm:$0xf]
        %v6955 = vld [vmem:[%s6951 + $0xc] sm:$0xf]
        %v6956 = vld [vmem:[%s6951 + $0x10] sm:$0xf]
        %v6957 = vld [vmem:[%s6951 + $0x14] sm:$0xf]
        %v6958 = vld [vmem:[%s6951 + $0x18] sm:$0xf]
        %v6959 = vld [vmem:[%s6951 + $0x1c] sm:$0xf]
        %v6960 = vld [vmem:[%s6951 + $0x20] sm:$0xf]
        %v6961 = vld [vmem:[%s6951 + $0x24] sm:$0xf]
        %v6962 = vld [vmem:[%s6951 + $0x28] sm:$0xf]
        %v6963 = vld [vmem:[%s6951 + $0x2c] sm:$0xf]
        %v6964 = vld [vmem:[%s6951 + $0x30] sm:$0xf]
        %v6965 = vld [vmem:[%s6951 + $0x34] sm:$0xf]
        %v6966 = vld [vmem:[%s6951 + $0x38] sm:$0xf]
        %v6967 = vld [vmem:[%s6951 + $0x3c] sm:$0xf]
        %v6968 = vld [vmem:[%s6951 + $0x40] sm:$0xf]
        %v6969 = vld [vmem:[%s6951 + $0x44] sm:$0xf]
        %v6970 = vld [vmem:[%s6951 + $0x48] sm:$0xf]
        %v6971 = vld [vmem:[%s6951 + $0x4c] sm:$0xf]
        %v6972 = vld [vmem:[%s6951 + $0x50] sm:$0xf]
        %v6973 = vld [vmem:[%s6951 + $0x54] sm:$0xf]
        %v6974 = vld [vmem:[%s6951 + $0x58] sm:$0xf]
        %v6975 = vld [vmem:[%s6951 + $0x5c] sm:$0xf]
        %v6976 = vld [vmem:[%s6951 + $0x60] sm:$0xf]
        %v6977 = vld [vmem:[%s6951 + $0x64] sm:$0xf]
        %v6978 = vld [vmem:[%s6951 + $0x68] sm:$0xf]
        %v6979 = vld [vmem:[%s6951 + $0x6c] sm:$0xf]
        %v6980 = vld [vmem:[%s6951 + $0x70] sm:$0xf]
        %v6981 = vld [vmem:[%s6951 + $0x74] sm:$0xf]
        %v6982 = vld [vmem:[%s6951 + $0x78] sm:$0xf]
        %v6983 = vld [vmem:[%s6951 + $0x7c] sm:$0xf]
        %v6984 = vld [vmem:[%s6951 + $0x80] sm:$0xf]
        %v6985 = vld [vmem:[%s6951 + $0x84] sm:$0xf]
        %v6986 = vld [vmem:[%s6951 + $0x88] sm:$0xf]
        %v6987 = vld [vmem:[%s6951 + $0x8c] sm:$0xf]
        %v6988 = vld [vmem:[%s6951 + $0x90] sm:$0xf]
        %v6989 = vld [vmem:[%s6951 + $0x94] sm:$0xf]
        %v6990 = vld [vmem:[%s6951 + $0x98] sm:$0xf]
        %v6991 = vld [vmem:[%s6951 + $0x9c] sm:$0xf]
        %v6992 = vld [vmem:[%s6951 + $0xa0] sm:$0xf]
        %v6993 = vld [vmem:[%s6951 + $0xa4] sm:$0xf]
        %v6994 = vld [vmem:[%s6951 + $0xa8] sm:$0xf]
        %v6995 = vld [vmem:[%s6951 + $0xac] sm:$0xf]
        %v6996 = vld [vmem:[%s6951 + $0xb0] sm:$0xf]
        %v6997 = vld [vmem:[%s6951 + $0xb4] sm:$0xf]
        %v6998 = vld [vmem:[%s6951 + $0xb8] sm:$0xf]
        %v6999 = vld [vmem:[%s6951 + $0xbc] sm:$0xf]
        %v7000 = vld [vmem:[%s6951 + $0xc0] sm:$0xf]
        %v7001 = vld [vmem:[%s6951 + $0xc4] sm:$0xf]
        %v7002 = vld [vmem:[%s6951 + $0xc8] sm:$0xf]
        %v7003 = vld [vmem:[%s6951 + $0xcc] sm:$0xf]
        %v7004 = vld [vmem:[%s6951 + $0xd0] sm:$0xf]
        %v7005 = vld [vmem:[%s6951 + $0xd4] sm:$0xf]
        %v7006 = vld [vmem:[%s6951 + $0xd8] sm:$0xf]
        %v7007 = vld [vmem:[%s6951 + $0xdc] sm:$0xf]
        %v7008 = vld [vmem:[%s6951 + $0xe0] sm:$0xf]
        %v7009 = vld [vmem:[%s6951 + $0xe4] sm:$0xf]
        %v7010 = vld [vmem:[%s6951 + $0xe8] sm:$0xf]
        %v7011 = vld [vmem:[%s6951 + $0xec] sm:$0xf]
        %v7012 = vld [vmem:[%s6951 + $0xf0] sm:$0xf]
        %v7013 = vld [vmem:[%s6951 + $0xf4] sm:$0xf]
        %v7014 = vld [vmem:[%s6951 + $0xf8] sm:$0xf]
        %v7015 = vld [vmem:[%s6951 + $0xfc] sm:$0xf]
        %v7016 = vld [vmem:[%s6951 + $0x100] sm:$0xf]
        %v7017 = vld [vmem:[%s6951 + $0x104] sm:$0xf]
        %v7018 = vld [vmem:[%s6951 + $0x108] sm:$0xf]
        %v7019 = vld [vmem:[%s6951 + $0x10c] sm:$0xf]
        %v7020 = vld [vmem:[%s6951 + $0x110] sm:$0xf]
        %v7021 = vld [vmem:[%s6951 + $0x114] sm:$0xf]
        %v7022 = vld [vmem:[%s6951 + $0x118] sm:$0xf]
        %v7023 = vld [vmem:[%s6951 + $0x11c] sm:$0xf]
        %v7024 = vld [vmem:[%s6951 + $0x120] sm:$0xf]
        %v7025 = vld [vmem:[%s6951 + $0x124] sm:$0xf]
        %v7026 = vld [vmem:[%s6951 + $0x128] sm:$0xf]
        %v7027 = vld [vmem:[%s6951 + $0x12c] sm:$0xf]
        %v7028 = vld [vmem:[%s6951 + $0x130] sm:$0xf]
        %v7029 = vld [vmem:[%s6951 + $0x134] sm:$0xf]
        %v7030 = vld [vmem:[%s6951 + $0x138] sm:$0xf]
        %v7031 = vld [vmem:[%s6951 + $0x13c] sm:$0xf]
        %v7032 = vld [vmem:[%s6951 + $0x140] sm:$0xf]
        %v7033 = vld [vmem:[%s6951 + $0x144] sm:$0xf]
        %v7034 = vld [vmem:[%s6951 + $0x148] sm:$0xf]
        %v7035 = vld [vmem:[%s6951 + $0x14c] sm:$0xf]
        %v7036 = vld [vmem:[%s6951 + $0x150] sm:$0xf]
        %v7037 = vld [vmem:[%s6951 + $0x154] sm:$0xf]
        %v7038 = vld [vmem:[%s6951 + $0x158] sm:$0xf]
        %v7039 = vld [vmem:[%s6951 + $0x15c] sm:$0xf]
        %v7040 = vld [vmem:[%s6951 + $0x160] sm:$0xf]
        %v7041 = vld [vmem:[%s6951 + $0x164] sm:$0xf]
        %v7042 = vld [vmem:[%s6951 + $0x168] sm:$0xf]
        %v7043 = vld [vmem:[%s6951 + $0x16c] sm:$0xf]
        %v7044 = vld [vmem:[%s6951 + $0x170] sm:$0xf]
        %v7045 = vld [vmem:[%s6951 + $0x174] sm:$0xf]
        %v7046 = vld [vmem:[%s6951 + $0x178] sm:$0xf]
        %v7047 = vld [vmem:[%s6951 + $0x17c] sm:$0xf]
        %v7048 = vld [vmem:[%s6951 + $0x180] sm:$0xf]
        %v7049 = vld [vmem:[%s6951 + $0x184] sm:$0xf]
        %v7050 = vld [vmem:[%s6951 + $0x188] sm:$0xf]
        %v7051 = vld [vmem:[%s6951 + $0x18c] sm:$0xf]
        %v7052 = vld [vmem:[%s6951 + $0x190] sm:$0xf]
        %v7053 = vld [vmem:[%s6951 + $0x194] sm:$0xf]
        %v7054 = vld [vmem:[%s6951 + $0x198] sm:$0xf]
        %v7055 = vld [vmem:[%s6951 + $0x19c] sm:$0xf]
        %v7056 = vld [vmem:[%s6951 + $0x1a0] sm:$0xf]
        %v7057 = vld [vmem:[%s6951 + $0x1a4] sm:$0xf]
        %v7058 = vld [vmem:[%s6951 + $0x1a8] sm:$0xf]
        %v7059 = vld [vmem:[%s6951 + $0x1ac] sm:$0xf]
        %v7060 = vld [vmem:[%s6951 + $0x1b0] sm:$0xf]
        %v7061 = vld [vmem:[%s6951 + $0x1b4] sm:$0xf]
        %v7062 = vld [vmem:[%s6951 + $0x1b8] sm:$0xf]
        %v7063 = vld [vmem:[%s6951 + $0x1bc] sm:$0xf]
        %v7064 = vld [vmem:[%s6951 + $0x1c0] sm:$0xf]
        %v7065 = vld [vmem:[%s6951 + $0x1c4] sm:$0xf]
        %v7066 = vld [vmem:[%s6951 + $0x1c8] sm:$0xf]
        %v7067 = vld [vmem:[%s6951 + $0x1cc] sm:$0xf]
        %v7068 = vld [vmem:[%s6951 + $0x1d0] sm:$0xf]
        %v7069 = vld [vmem:[%s6951 + $0x1d4] sm:$0xf]
        %v7070 = vld [vmem:[%s6951 + $0x1d8] sm:$0xf]
        %v7071 = vld [vmem:[%s6951 + $0x1dc] sm:$0xf]
        %v7072 = vld [vmem:[%s6951 + $0x1e0] sm:$0xf]
        %v7073 = vld [vmem:[%s6951 + $0x1e4] sm:$0xf]
        %v7074 = vld [vmem:[%s6951 + $0x1e8] sm:$0xf]
        %v7075 = vld [vmem:[%s6951 + $0x1ec] sm:$0xf]
        %v7076 = vld [vmem:[%s6951 + $0x1f0] sm:$0xf]
        %v7077 = vld [vmem:[%s6951 + $0x1f4] sm:$0xf]
        %v7078 = vld [vmem:[%s6951 + $0x1f8] sm:$0xf]
        %v7079 = vld [vmem:[%s6951 + $0x1fc] sm:$0xf]
        %v7080 = vld [vmem:[%s6951 + $0x200] sm:$0xf]
        %v7081 = vld [vmem:[%s6951 + $0x204] sm:$0xf]
        %v7082 = vld [vmem:[%s6951 + $0x208] sm:$0xf]
        %v7083 = vld [vmem:[%s6951 + $0x20c] sm:$0xf]
        %v7084 = vld [vmem:[%s6951 + $0x210] sm:$0xf]
        %v7085 = vld [vmem:[%s6951 + $0x214] sm:$0xf]
        %v7086 = vld [vmem:[%s6951 + $0x218] sm:$0xf]
        %v7087 = vld [vmem:[%s6951 + $0x21c] sm:$0xf]
        %v7088 = vld [vmem:[%s6951 + $0x220] sm:$0xf]
        %v7089 = vld [vmem:[%s6951 + $0x224] sm:$0xf]
        %v7090 = vld [vmem:[%s6951 + $0x228] sm:$0xf]
        %v7091 = vld [vmem:[%s6951 + $0x22c] sm:$0xf]
        %v7092 = vld [vmem:[%s6951 + $0x230] sm:$0xf]
        %v7093 = vld [vmem:[%s6951 + $0x234] sm:$0xf]
        %v7094 = vld [vmem:[%s6951 + $0x238] sm:$0xf]
        %v7095 = vld [vmem:[%s6951 + $0x23c] sm:$0xf]
        %v7096 = vld [vmem:[#allocation10 + $0x3] sm:$0x1]
        %v7097 = vld [vmem:[#allocation3 + $0x7] sm:$0xff]
        %v7098 = vld [vmem:[#allocation3 + $0xf] sm:$0xff]
        %v7099 = vld [vmem:[#allocation3 + $0x27] sm:$0xff]
        %v7100 = vld [vmem:[#allocation3 + $0x2f] sm:$0xff]
        %v7101 = vld [vmem:[#allocation3 + $0x47] sm:$0xff]
        %v7102 = vld [vmem:[#allocation3 + $0x4f] sm:$0xff]
        %v7103 = vld [vmem:[#allocation3 + $0x67] sm:$0xff]
        %v7104 = vld [vmem:[#allocation3 + $0x6f] sm:$0xff]
        %v7105 = vld [vmem:[#allocation3 + $0x87] sm:$0xff]
        %v7106 = vld [vmem:[#allocation3 + $0x8f] sm:$0xff]
        %v7107 = vld [vmem:[#allocation3 + $0xa7] sm:$0xff]
        %v7108 = vld [vmem:[#allocation3 + $0xaf] sm:$0xff]
        %v7109 = vld [vmem:[#allocation3 + $0xc7] sm:$0xff]
        %v7110 = vld [vmem:[#allocation3 + $0xcf] sm:$0xff]
        %v7111 = vld [vmem:[#allocation3 + $0xe7] sm:$0xff]
        %v7112 = vld [vmem:[#allocation3 + $0xef] sm:$0xff]
        %v7113 = vld [vmem:[#allocation3 + $0x107] sm:$0xff]
        %v7114 = vld [vmem:[#allocation3 + $0x10f] sm:$0xff]
        %v7115 = vld [vmem:[#allocation3 + $0x127] sm:$0xff]
        %v7116 = vld [vmem:[#allocation3 + $0x12f] sm:$0xff]
        %v7117 = vld [vmem:[#allocation3 + $0x147] sm:$0xff]
        %v7118 = vld [vmem:[#allocation3 + $0x14f] sm:$0xff]
        %v7119 = vld [vmem:[#allocation3 + $0x167] sm:$0xff]
        %v7120 = vld [vmem:[#allocation3 + $0x16f] sm:$0xff]
        %v7121 = vld [vmem:[#allocation3 + $0x187] sm:$0xff]
        %v7122 = vld [vmem:[#allocation3 + $0x18f] sm:$0xff]
        %v7123 = vld [vmem:[#allocation3 + $0x1a7] sm:$0xff]
        %v7124 = vld [vmem:[#allocation3 + $0x1af] sm:$0xff]
        %v7125 = vld [vmem:[#allocation3 + $0x1c7] sm:$0xff]
        %v7126 = vld [vmem:[#allocation3 + $0x1cf] sm:$0xff]
        %v7127 = vld [vmem:[#allocation3 + $0x1e7] sm:$0xff]
        %v7128 = vld [vmem:[#allocation3 + $0x1ef] sm:$0xff]
        %v7129 = vpack.c.bf16 %v7098, %v7097
        %v7130 = vpack.c.bf16 %v7100, %v7099
        %v7131 = vpack.c.bf16 %v7102, %v7101
        %v7132 = vpack.c.bf16 %v7104, %v7103
        %v7133 = vpack.c.bf16 %v7106, %v7105
        %v7134 = vpack.c.bf16 %v7108, %v7107
        %v7135 = vpack.c.bf16 %v7110, %v7109
        %v7136 = vpack.c.bf16 %v7112, %v7111
        %v7137 = vpack.c.bf16 %v7114, %v7113
        %v7138 = vpack.c.bf16 %v7116, %v7115
        %v7139 = vpack.c.bf16 %v7118, %v7117
        %v7140 = vpack.c.bf16 %v7120, %v7119
        %v7141 = vpack.c.bf16 %v7122, %v7121
        %v7142 = vpack.c.bf16 %v7124, %v7123
        %v7143 = vpack.c.bf16 %v7126, %v7125
        %v7144 = vpack.c.bf16 %v7128, %v7127
        %7145 = vst [vmem:[#allocation4] sm:$0xff] %v7129
        %7146 = vst [vmem:[#allocation4 + $0x48] sm:$0xff] %v7130
        %7147 = vst [vmem:[#allocation4 + $0x90] sm:$0xff] %v7131
        %7148 = vst [vmem:[#allocation4 + $0xd8] sm:$0xff] %v7132
        %7149 = vst [vmem:[#allocation4 + $0x120] sm:$0xff] %v7133
        %7150 = vst [vmem:[#allocation4 + $0x168] sm:$0xff] %v7134
        %7151 = vst [vmem:[#allocation4 + $0x1b0] sm:$0xff] %v7135
        %7152 = vst [vmem:[#allocation4 + $0x1f8] sm:$0xff] %v7136
        %7153 = vst [vmem:[#allocation4 + $0x240] sm:$0xff] %v7137
        %7154 = vst [vmem:[#allocation4 + $0x288] sm:$0xff] %v7138
        %7155 = vst [vmem:[#allocation4 + $0x2d0] sm:$0xff] %v7139
        %7156 = vst [vmem:[#allocation4 + $0x318] sm:$0xff] %v7140
        %7157 = vst [vmem:[#allocation4 + $0x360] sm:$0xff] %v7141
        %7158 = vst [vmem:[#allocation4 + $0x3a8] sm:$0xff] %v7142
        %7159 = vst [vmem:[#allocation4 + $0x3f0] sm:$0xff] %v7143
        %7160 = vst [vmem:[#allocation4 + $0x438] sm:$0xff] %v7144
        %v7161 = vld [vmem:[#allocation3 + $0x8] sm:$0xff]
        %v7162 = vld [vmem:[#allocation3 + $0x10] sm:$0xff]
        %v7163 = vld [vmem:[#allocation3 + $0x28] sm:$0xff]
        %v7164 = vld [vmem:[#allocation3 + $0x30] sm:$0xff]
        %v7165 = vld [vmem:[#allocation3 + $0x48] sm:$0xff]
        %v7166 = vld [vmem:[#allocation3 + $0x50] sm:$0xff]
        %v7167 = vld [vmem:[#allocation3 + $0x68] sm:$0xff]
        %v7168 = vld [vmem:[#allocation3 + $0x70] sm:$0xff]
        %v7169 = vld [vmem:[#allocation3 + $0x88] sm:$0xff]
        %v7170 = vld [vmem:[#allocation3 + $0x90] sm:$0xff]
        %v7171 = vld [vmem:[#allocation3 + $0xa8] sm:$0xff]
        %v7172 = vld [vmem:[#allocation3 + $0xb0] sm:$0xff]
        %v7173 = vld [vmem:[#allocation3 + $0xc8] sm:$0xff]
        %v7174 = vld [vmem:[#allocation3 + $0xd0] sm:$0xff]
        %v7175 = vld [vmem:[#allocation3 + $0xe8] sm:$0xff]
        %v7176 = vld [vmem:[#allocation3 + $0xf0] sm:$0xff]
        %v7177 = vld [vmem:[#allocation3 + $0x108] sm:$0xff]
        %v7178 = vld [vmem:[#allocation3 + $0x110] sm:$0xff]
        %v7179 = vld [vmem:[#allocation3 + $0x128] sm:$0xff]
        %v7180 = vld [vmem:[#allocation3 + $0x130] sm:$0xff]
        %v7181 = vld [vmem:[#allocation3 + $0x148] sm:$0xff]
        %v7182 = vld [vmem:[#allocation3 + $0x150] sm:$0xff]
        %v7183 = vld [vmem:[#allocation3 + $0x168] sm:$0xff]
        %v7184 = vld [vmem:[#allocation3 + $0x170] sm:$0xff]
        %v7185 = vld [vmem:[#allocation3 + $0x188] sm:$0xff]
        %v7186 = vld [vmem:[#allocation3 + $0x190] sm:$0xff]
        %v7187 = vld [vmem:[#allocation3 + $0x1a8] sm:$0xff]
        %v7188 = vld [vmem:[#allocation3 + $0x1b0] sm:$0xff]
        %v7189 = vld [vmem:[#allocation3 + $0x1c8] sm:$0xff]
        %v7190 = vld [vmem:[#allocation3 + $0x1d0] sm:$0xff]
        %v7191 = vld [vmem:[#allocation3 + $0x1e8] sm:$0xff]
        %v7192 = vld [vmem:[#allocation3 + $0x1f0] sm:$0xff]
        %v7193 = vpack.c.bf16 %v7162, %v7161
        %v7194 = vpack.c.bf16 %v7164, %v7163
        %v7195 = vpack.c.bf16 %v7166, %v7165
        %v7196 = vpack.c.bf16 %v7168, %v7167
        %v7197 = vpack.c.bf16 %v7170, %v7169
        %v7198 = vpack.c.bf16 %v7172, %v7171
        %v7199 = vpack.c.bf16 %v7174, %v7173
        %v7200 = vpack.c.bf16 %v7176, %v7175
        %v7201 = vpack.c.bf16 %v7178, %v7177
        %v7202 = vpack.c.bf16 %v7180, %v7179
        %v7203 = vpack.c.bf16 %v7182, %v7181
        %v7204 = vpack.c.bf16 %v7184, %v7183
        %v7205 = vpack.c.bf16 %v7186, %v7185
        %v7206 = vpack.c.bf16 %v7188, %v7187
        %v7207 = vpack.c.bf16 %v7190, %v7189
        %v7208 = vpack.c.bf16 %v7192, %v7191
        %7209 = vst [vmem:[#allocation4 + $0x8] sm:$0xff] %v7193
        %7210 = vst [vmem:[#allocation4 + $0x50] sm:$0xff] %v7194
        %7211 = vst [vmem:[#allocation4 + $0x98] sm:$0xff] %v7195
        %7212 = vst [vmem:[#allocation4 + $0xe0] sm:$0xff] %v7196
        %7213 = vst [vmem:[#allocation4 + $0x128] sm:$0xff] %v7197
        %7214 = vst [vmem:[#allocation4 + $0x170] sm:$0xff] %v7198
        %7215 = vst [vmem:[#allocation4 + $0x1b8] sm:$0xff] %v7199
        %7216 = vst [vmem:[#allocation4 + $0x200] sm:$0xff] %v7200
        %7217 = vst [vmem:[#allocation4 + $0x248] sm:$0xff] %v7201
        %7218 = vst [vmem:[#allocation4 + $0x290] sm:$0xff] %v7202
        %7219 = vst [vmem:[#allocation4 + $0x2d8] sm:$0xff] %v7203
        %7220 = vst [vmem:[#allocation4 + $0x320] sm:$0xff] %v7204
        %7221 = vst [vmem:[#allocation4 + $0x368] sm:$0xff] %v7205
        %7222 = vst [vmem:[#allocation4 + $0x3b0] sm:$0xff] %v7206
        %7223 = vst [vmem:[#allocation4 + $0x3f8] sm:$0xff] %v7207
        %7224 = vst [vmem:[#allocation4 + $0x440] sm:$0xff] %v7208
        %v7225 = vld [vmem:[#allocation3 + $0x9] sm:$0xff]
        %v7226 = vld [vmem:[#allocation3 + $0x11] sm:$0xff]
        %v7227 = vld [vmem:[#allocation3 + $0x29] sm:$0xff]
        %v7228 = vld [vmem:[#allocation3 + $0x31] sm:$0xff]
        %v7229 = vld [vmem:[#allocation3 + $0x49] sm:$0xff]
        %v7230 = vld [vmem:[#allocation3 + $0x51] sm:$0xff]
        %v7231 = vld [vmem:[#allocation3 + $0x69] sm:$0xff]
        %v7232 = vld [vmem:[#allocation3 + $0x71] sm:$0xff]
        %v7233 = vld [vmem:[#allocation3 + $0x89] sm:$0xff]
        %v7234 = vld [vmem:[#allocation3 + $0x91] sm:$0xff]
        %v7235 = vld [vmem:[#allocation3 + $0xa9] sm:$0xff]
        %v7236 = vld [vmem:[#allocation3 + $0xb1] sm:$0xff]
        %v7237 = vld [vmem:[#allocation3 + $0xc9] sm:$0xff]
        %v7238 = vld [vmem:[#allocation3 + $0xd1] sm:$0xff]
        %v7239 = vld [vmem:[#allocation3 + $0xe9] sm:$0xff]
        %v7240 = vld [vmem:[#allocation3 + $0xf1] sm:$0xff]
        %v7241 = vld [vmem:[#allocation3 + $0x109] sm:$0xff]
        %v7242 = vld [vmem:[#allocation3 + $0x111] sm:$0xff]
        %v7243 = vld [vmem:[#allocation3 + $0x129] sm:$0xff]
        %v7244 = vld [vmem:[#allocation3 + $0x131] sm:$0xff]
        %v7245 = vld [vmem:[#allocation3 + $0x149] sm:$0xff]
        %v7246 = vld [vmem:[#allocation3 + $0x151] sm:$0xff]
        %v7247 = vld [vmem:[#allocation3 + $0x169] sm:$0xff]
        %v7248 = vld [vmem:[#allocation3 + $0x171] sm:$0xff]
        %v7249 = vld [vmem:[#allocation3 + $0x189] sm:$0xff]
        %v7250 = vld [vmem:[#allocation3 + $0x191] sm:$0xff]
        %v7251 = vld [vmem:[#allocation3 + $0x1a9] sm:$0xff]
        %v7252 = vld [vmem:[#allocation3 + $0x1b1] sm:$0xff]
        %v7253 = vld [vmem:[#allocation3 + $0x1c9] sm:$0xff]
        %v7254 = vld [vmem:[#allocation3 + $0x1d1] sm:$0xff]
        %v7255 = vld [vmem:[#allocation3 + $0x1e9] sm:$0xff]
        %v7256 = vld [vmem:[#allocation3 + $0x1f1] sm:$0xff]
        %v7257 = vpack.c.bf16 %v7226, %v7225
        %v7258 = vpack.c.bf16 %v7228, %v7227
        %v7259 = vpack.c.bf16 %v7230, %v7229
        %v7260 = vpack.c.bf16 %v7232, %v7231
        %v7261 = vpack.c.bf16 %v7234, %v7233
        %v7262 = vpack.c.bf16 %v7236, %v7235
        %v7263 = vpack.c.bf16 %v7238, %v7237
        %v7264 = vpack.c.bf16 %v7240, %v7239
        %v7265 = vpack.c.bf16 %v7242, %v7241
        %v7266 = vpack.c.bf16 %v7244, %v7243
        %v7267 = vpack.c.bf16 %v7246, %v7245
        %v7268 = vpack.c.bf16 %v7248, %v7247
        %v7269 = vpack.c.bf16 %v7250, %v7249
        %v7270 = vpack.c.bf16 %v7252, %v7251
        %v7271 = vpack.c.bf16 %v7254, %v7253
        %v7272 = vpack.c.bf16 %v7256, %v7255
        %7273 = vst [vmem:[#allocation4 + $0x10] sm:$0xff] %v7257
        %7274 = vst [vmem:[#allocation4 + $0x58] sm:$0xff] %v7258
        %7275 = vst [vmem:[#allocation4 + $0xa0] sm:$0xff] %v7259
        %7276 = vst [vmem:[#allocation4 + $0xe8] sm:$0xff] %v7260
        %7277 = vst [vmem:[#allocation4 + $0x130] sm:$0xff] %v7261
        %7278 = vst [vmem:[#allocation4 + $0x178] sm:$0xff] %v7262
        %7279 = vst [vmem:[#allocation4 + $0x1c0] sm:$0xff] %v7263
        %7280 = vst [vmem:[#allocation4 + $0x208] sm:$0xff] %v7264
        %7281 = vst [vmem:[#allocation4 + $0x250] sm:$0xff] %v7265
        %7282 = vst [vmem:[#allocation4 + $0x298] sm:$0xff] %v7266
        %7283 = vst [vmem:[#allocation4 + $0x2e0] sm:$0xff] %v7267
        %7284 = vst [vmem:[#allocation4 + $0x328] sm:$0xff] %v7268
        %7285 = vst [vmem:[#allocation4 + $0x370] sm:$0xff] %v7269
        %7286 = vst [vmem:[#allocation4 + $0x3b8] sm:$0xff] %v7270
        %7287 = vst [vmem:[#allocation4 + $0x400] sm:$0xff] %v7271
        %7288 = vst [vmem:[#allocation4 + $0x448] sm:$0xff] %v7272
        %v7289 = vld [vmem:[%s2511 + $0x7] sm:$0xff]
        %v7290 = vld [vmem:[%s2511 + $0xf] sm:$0xff]
        %v7291 = vld [vmem:[%s2511 + $0x27] sm:$0xff]
        %v7292 = vld [vmem:[%s2511 + $0x2f] sm:$0xff]
        %v7293 = vld [vmem:[%s2511 + $0x47] sm:$0xff]
        %v7294 = vld [vmem:[%s2511 + $0x4f] sm:$0xff]
        %v7295 = vld [vmem:[%s2511 + $0x67] sm:$0xff]
        %v7296 = vld [vmem:[%s2511 + $0x6f] sm:$0xff]
        %v7297 = vld [vmem:[%s2511 + $0x87] sm:$0xff]
        %v7298 = vld [vmem:[%s2511 + $0x8f] sm:$0xff]
        %v7299 = vld [vmem:[%s2511 + $0xa7] sm:$0xff]
        %v7300 = vld [vmem:[%s2511 + $0xaf] sm:$0xff]
        %v7301 = vld [vmem:[%s2511 + $0xc7] sm:$0xff]
        %v7302 = vld [vmem:[%s2511 + $0xcf] sm:$0xff]
        %v7303 = vld [vmem:[%s2511 + $0xe7] sm:$0xff]
        %v7304 = vld [vmem:[%s2511 + $0xef] sm:$0xff]
        %v7305 = vld [vmem:[%s2511 + $0x107] sm:$0xff]
        %v7306 = vld [vmem:[%s2511 + $0x10f] sm:$0xff]
        %v7307 = vld [vmem:[%s2511 + $0x127] sm:$0xff]
        %v7308 = vld [vmem:[%s2511 + $0x12f] sm:$0xff]
        %v7309 = vld [vmem:[%s2511 + $0x147] sm:$0xff]
        %v7310 = vld [vmem:[%s2511 + $0x14f] sm:$0xff]
        %v7311 = vld [vmem:[%s2511 + $0x167] sm:$0xff]
        %v7312 = vld [vmem:[%s2511 + $0x16f] sm:$0xff]
        %v7313 = vld [vmem:[%s2511 + $0x187] sm:$0xff]
        %v7314 = vld [vmem:[%s2511 + $0x18f] sm:$0xff]
        %v7315 = vld [vmem:[%s2511 + $0x1a7] sm:$0xff]
        %v7316 = vld [vmem:[%s2511 + $0x1af] sm:$0xff]
        %v7317 = vld [vmem:[%s2511 + $0x1c7] sm:$0xff]
        %v7318 = vld [vmem:[%s2511 + $0x1cf] sm:$0xff]
        %v7319 = vld [vmem:[%s2511 + $0x1e7] sm:$0xff]
        %v7320 = vld [vmem:[%s2511 + $0x1ef] sm:$0xff]
        %v7321 = vpack.c.bf16 %v7290, %v7289
        %v7322 = vpack.c.bf16 %v7292, %v7291
        %v7323 = vpack.c.bf16 %v7294, %v7293
        %v7324 = vpack.c.bf16 %v7296, %v7295
        %v7325 = vpack.c.bf16 %v7298, %v7297
        %v7326 = vpack.c.bf16 %v7300, %v7299
        %v7327 = vpack.c.bf16 %v7302, %v7301
        %v7328 = vpack.c.bf16 %v7304, %v7303
        %v7329 = vpack.c.bf16 %v7306, %v7305
        %v7330 = vpack.c.bf16 %v7308, %v7307
        %v7331 = vpack.c.bf16 %v7310, %v7309
        %v7332 = vpack.c.bf16 %v7312, %v7311
        %v7333 = vpack.c.bf16 %v7314, %v7313
        %v7334 = vpack.c.bf16 %v7316, %v7315
        %v7335 = vpack.c.bf16 %v7318, %v7317
        %v7336 = vpack.c.bf16 %v7320, %v7319
        %7337 = vst [vmem:[#allocation4 + $0x18] sm:$0xff] %v7321
        %7338 = vst [vmem:[#allocation4 + $0x60] sm:$0xff] %v7322
        %7339 = vst [vmem:[#allocation4 + $0xa8] sm:$0xff] %v7323
        %7340 = vst [vmem:[#allocation4 + $0xf0] sm:$0xff] %v7324
        %7341 = vst [vmem:[#allocation4 + $0x138] sm:$0xff] %v7325
        %7342 = vst [vmem:[#allocation4 + $0x180] sm:$0xff] %v7326
        %7343 = vst [vmem:[#allocation4 + $0x1c8] sm:$0xff] %v7327
        %7344 = vst [vmem:[#allocation4 + $0x210] sm:$0xff] %v7328
        %7345 = vst [vmem:[#allocation4 + $0x258] sm:$0xff] %v7329
        %7346 = vst [vmem:[#allocation4 + $0x2a0] sm:$0xff] %v7330
        %7347 = vst [vmem:[#allocation4 + $0x2e8] sm:$0xff] %v7331
        %7348 = vst [vmem:[#allocation4 + $0x330] sm:$0xff] %v7332
        %7349 = vst [vmem:[#allocation4 + $0x378] sm:$0xff] %v7333
        %7350 = vst [vmem:[#allocation4 + $0x3c0] sm:$0xff] %v7334
        %7351 = vst [vmem:[#allocation4 + $0x408] sm:$0xff] %v7335
        %7352 = vst [vmem:[#allocation4 + $0x450] sm:$0xff] %v7336
        %v7353 = vld [vmem:[%s2511 + $0x8] sm:$0xff]
        %v7354 = vld [vmem:[%s2511 + $0x10] sm:$0xff]
        %v7355 = vld [vmem:[%s2511 + $0x28] sm:$0xff]
        %v7356 = vld [vmem:[%s2511 + $0x30] sm:$0xff]
        %v7357 = vld [vmem:[%s2511 + $0x48] sm:$0xff]
        %v7358 = vld [vmem:[%s2511 + $0x50] sm:$0xff]
        %v7359 = vld [vmem:[%s2511 + $0x68] sm:$0xff]
        %v7360 = vld [vmem:[%s2511 + $0x70] sm:$0xff]
        %v7361 = vld [vmem:[%s2511 + $0x88] sm:$0xff]
        %v7362 = vld [vmem:[%s2511 + $0x90] sm:$0xff]
        %v7363 = vld [vmem:[%s2511 + $0xa8] sm:$0xff]
        %v7364 = vld [vmem:[%s2511 + $0xb0] sm:$0xff]
        %v7365 = vld [vmem:[%s2511 + $0xc8] sm:$0xff]
        %v7366 = vld [vmem:[%s2511 + $0xd0] sm:$0xff]
        %v7367 = vld [vmem:[%s2511 + $0xe8] sm:$0xff]
        %v7368 = vld [vmem:[%s2511 + $0xf0] sm:$0xff]
        %v7369 = vld [vmem:[%s2511 + $0x108] sm:$0xff]
        %v7370 = vld [vmem:[%s2511 + $0x110] sm:$0xff]
        %v7371 = vld [vmem:[%s2511 + $0x128] sm:$0xff]
        %v7372 = vld [vmem:[%s2511 + $0x130] sm:$0xff]
        %v7373 = vld [vmem:[%s2511 + $0x148] sm:$0xff]
        %v7374 = vld [vmem:[%s2511 + $0x150] sm:$0xff]
        %v7375 = vld [vmem:[%s2511 + $0x168] sm:$0xff]
        %v7376 = vld [vmem:[%s2511 + $0x170] sm:$0xff]
        %v7377 = vld [vmem:[%s2511 + $0x188] sm:$0xff]
        %v7378 = vld [vmem:[%s2511 + $0x190] sm:$0xff]
        %v7379 = vld [vmem:[%s2511 + $0x1a8] sm:$0xff]
        %v7380 = vld [vmem:[%s2511 + $0x1b0] sm:$0xff]
        %v7381 = vld [vmem:[%s2511 + $0x1c8] sm:$0xff]
        %v7382 = vld [vmem:[%s2511 + $0x1d0] sm:$0xff]
        %v7383 = vld [vmem:[%s2511 + $0x1e8] sm:$0xff]
        %v7384 = vld [vmem:[%s2511 + $0x1f0] sm:$0xff]
        %v7385 = vpack.c.bf16 %v7354, %v7353
        %v7386 = vpack.c.bf16 %v7356, %v7355
        %v7387 = vpack.c.bf16 %v7358, %v7357
        %v7388 = vpack.c.bf16 %v7360, %v7359
        %v7389 = vpack.c.bf16 %v7362, %v7361
        %v7390 = vpack.c.bf16 %v7364, %v7363
        %v7391 = vpack.c.bf16 %v7366, %v7365
        %v7392 = vpack.c.bf16 %v7368, %v7367
        %v7393 = vpack.c.bf16 %v7370, %v7369
        %v7394 = vpack.c.bf16 %v7372, %v7371
        %v7395 = vpack.c.bf16 %v7374, %v7373
        %v7396 = vpack.c.bf16 %v7376, %v7375
        %v7397 = vpack.c.bf16 %v7378, %v7377
        %v7398 = vpack.c.bf16 %v7380, %v7379
        %v7399 = vpack.c.bf16 %v7382, %v7381
        %v7400 = vpack.c.bf16 %v7384, %v7383
        %7401 = vst [vmem:[#allocation4 + $0x20] sm:$0xff] %v7385
        %7402 = vst [vmem:[#allocation4 + $0x68] sm:$0xff] %v7386
        %7403 = vst [vmem:[#allocation4 + $0xb0] sm:$0xff] %v7387
        %7404 = vst [vmem:[#allocation4 + $0xf8] sm:$0xff] %v7388
        %7405 = vst [vmem:[#allocation4 + $0x140] sm:$0xff] %v7389
        %7406 = vst [vmem:[#allocation4 + $0x188] sm:$0xff] %v7390
        %7407 = vst [vmem:[#allocation4 + $0x1d0] sm:$0xff] %v7391
        %7408 = vst [vmem:[#allocation4 + $0x218] sm:$0xff] %v7392
        %7409 = vst [vmem:[#allocation4 + $0x260] sm:$0xff] %v7393
        %7410 = vst [vmem:[#allocation4 + $0x2a8] sm:$0xff] %v7394
        %7411 = vst [vmem:[#allocation4 + $0x2f0] sm:$0xff] %v7395
        %7412 = vst [vmem:[#allocation4 + $0x338] sm:$0xff] %v7396
        %7413 = vst [vmem:[#allocation4 + $0x380] sm:$0xff] %v7397
        %7414 = vst [vmem:[#allocation4 + $0x3c8] sm:$0xff] %v7398
        %7415 = vst [vmem:[#allocation4 + $0x410] sm:$0xff] %v7399
        %7416 = vst [vmem:[#allocation4 + $0x458] sm:$0xff] %v7400
        %v7417 = vld [vmem:[%s2511 + $0x9] sm:$0xff]
        %v7418 = vld [vmem:[%s2511 + $0x11] sm:$0xff]
        %v7419 = vld [vmem:[%s2511 + $0x29] sm:$0xff]
        %v7420 = vld [vmem:[%s2511 + $0x31] sm:$0xff]
        %v7421 = vld [vmem:[%s2511 + $0x49] sm:$0xff]
        %v7422 = vld [vmem:[%s2511 + $0x51] sm:$0xff]
        %v7423 = vld [vmem:[%s2511 + $0x69] sm:$0xff]
        %v7424 = vld [vmem:[%s2511 + $0x71] sm:$0xff]
        %v7425 = vld [vmem:[%s2511 + $0x89] sm:$0xff]
        %v7426 = vld [vmem:[%s2511 + $0x91] sm:$0xff]
        %v7427 = vld [vmem:[%s2511 + $0xa9] sm:$0xff]
        %v7428 = vld [vmem:[%s2511 + $0xb1] sm:$0xff]
        %v7429 = vld [vmem:[%s2511 + $0xc9] sm:$0xff]
        %v7430 = vld [vmem:[%s2511 + $0xd1] sm:$0xff]
        %v7431 = vld [vmem:[%s2511 + $0xe9] sm:$0xff]
        %v7432 = vld [vmem:[%s2511 + $0xf1] sm:$0xff]
        %v7433 = vld [vmem:[%s2511 + $0x109] sm:$0xff]
        %v7434 = vld [vmem:[%s2511 + $0x111] sm:$0xff]
        %v7435 = vld [vmem:[%s2511 + $0x129] sm:$0xff]
        %v7436 = vld [vmem:[%s2511 + $0x131] sm:$0xff]
        %v7437 = vld [vmem:[%s2511 + $0x149] sm:$0xff]
        %v7438 = vld [vmem:[%s2511 + $0x151] sm:$0xff]
        %v7439 = vld [vmem:[%s2511 + $0x169] sm:$0xff]
        %v7440 = vld [vmem:[%s2511 + $0x171] sm:$0xff]
        %v7441 = vld [vmem:[%s2511 + $0x189] sm:$0xff]
        %v7442 = vld [vmem:[%s2511 + $0x191] sm:$0xff]
        %v7443 = vld [vmem:[%s2511 + $0x1a9] sm:$0xff]
        %v7444 = vld [vmem:[%s2511 + $0x1b1] sm:$0xff]
        %v7445 = vld [vmem:[%s2511 + $0x1c9] sm:$0xff]
        %v7446 = vld [vmem:[%s2511 + $0x1d1] sm:$0xff]
        %v7447 = vld [vmem:[%s2511 + $0x1e9] sm:$0xff]
        %v7448 = vld [vmem:[%s2511 + $0x1f1] sm:$0xff]
        %v7449 = vpack.c.bf16 %v7418, %v7417
        %v7450 = vpack.c.bf16 %v7420, %v7419
        %v7451 = vpack.c.bf16 %v7422, %v7421
        %v7452 = vpack.c.bf16 %v7424, %v7423
        %v7453 = vpack.c.bf16 %v7426, %v7425
        %v7454 = vpack.c.bf16 %v7428, %v7427
        %v7455 = vpack.c.bf16 %v7430, %v7429
        %v7456 = vpack.c.bf16 %v7432, %v7431
        %v7457 = vpack.c.bf16 %v7434, %v7433
        %v7458 = vpack.c.bf16 %v7436, %v7435
        %v7459 = vpack.c.bf16 %v7438, %v7437
        %v7460 = vpack.c.bf16 %v7440, %v7439
        %v7461 = vpack.c.bf16 %v7442, %v7441
        %v7462 = vpack.c.bf16 %v7444, %v7443
        %v7463 = vpack.c.bf16 %v7446, %v7445
        %v7464 = vpack.c.bf16 %v7448, %v7447
        %7465 = vst [vmem:[#allocation4 + $0x28] sm:$0xff] %v7449
        %7466 = vst [vmem:[#allocation4 + $0x70] sm:$0xff] %v7450
        %7467 = vst [vmem:[#allocation4 + $0xb8] sm:$0xff] %v7451
        %7468 = vst [vmem:[#allocation4 + $0x100] sm:$0xff] %v7452
        %7469 = vst [vmem:[#allocation4 + $0x148] sm:$0xff] %v7453
        %7470 = vst [vmem:[#allocation4 + $0x190] sm:$0xff] %v7454
        %7471 = vst [vmem:[#allocation4 + $0x1d8] sm:$0xff] %v7455
        %7472 = vst [vmem:[#allocation4 + $0x220] sm:$0xff] %v7456
        %7473 = vst [vmem:[#allocation4 + $0x268] sm:$0xff] %v7457
        %7474 = vst [vmem:[#allocation4 + $0x2b0] sm:$0xff] %v7458
        %7475 = vst [vmem:[#allocation4 + $0x2f8] sm:$0xff] %v7459
        %7476 = vst [vmem:[#allocation4 + $0x340] sm:$0xff] %v7460
        %7477 = vst [vmem:[#allocation4 + $0x388] sm:$0xff] %v7461
        %7478 = vst [vmem:[#allocation4 + $0x3d0] sm:$0xff] %v7462
        %7479 = vst [vmem:[#allocation4 + $0x418] sm:$0xff] %v7463
        %7480 = vst [vmem:[#allocation4 + $0x460] sm:$0xff] %v7464
        %v7481 = vld [vmem:[%s3074 + $0x7] sm:$0xff]
        %v7482 = vld [vmem:[%s3074 + $0xf] sm:$0xff]
        %v7483 = vld [vmem:[%s3074 + $0x27] sm:$0xff]
        %v7484 = vld [vmem:[%s3074 + $0x2f] sm:$0xff]
        %v7485 = vld [vmem:[%s3074 + $0x47] sm:$0xff]
        %v7486 = vld [vmem:[%s3074 + $0x4f] sm:$0xff]
        %v7487 = vld [vmem:[%s3074 + $0x67] sm:$0xff]
        %v7488 = vld [vmem:[%s3074 + $0x6f] sm:$0xff]
        %v7489 = vld [vmem:[%s3074 + $0x87] sm:$0xff]
        %v7490 = vld [vmem:[%s3074 + $0x8f] sm:$0xff]
        %v7491 = vld [vmem:[%s3074 + $0xa7] sm:$0xff]
        %v7492 = vld [vmem:[%s3074 + $0xaf] sm:$0xff]
        %v7493 = vld [vmem:[%s3074 + $0xc7] sm:$0xff]
        %v7494 = vld [vmem:[%s3074 + $0xcf] sm:$0xff]
        %v7495 = vld [vmem:[%s3074 + $0xe7] sm:$0xff]
        %v7496 = vld [vmem:[%s3074 + $0xef] sm:$0xff]
        %v7497 = vld [vmem:[%s3074 + $0x107] sm:$0xff]
        %v7498 = vld [vmem:[%s3074 + $0x10f] sm:$0xff]
        %v7499 = vld [vmem:[%s3074 + $0x127] sm:$0xff]
        %v7500 = vld [vmem:[%s3074 + $0x12f] sm:$0xff]
        %v7501 = vld [vmem:[%s3074 + $0x147] sm:$0xff]
        %v7502 = vld [vmem:[%s3074 + $0x14f] sm:$0xff]
        %v7503 = vld [vmem:[%s3074 + $0x167] sm:$0xff]
        %v7504 = vld [vmem:[%s3074 + $0x16f] sm:$0xff]
        %v7505 = vld [vmem:[%s3074 + $0x187] sm:$0xff]
        %v7506 = vld [vmem:[%s3074 + $0x18f] sm:$0xff]
        %v7507 = vld [vmem:[%s3074 + $0x1a7] sm:$0xff]
        %v7508 = vld [vmem:[%s3074 + $0x1af] sm:$0xff]
        %v7509 = vld [vmem:[%s3074 + $0x1c7] sm:$0xff]
        %v7510 = vld [vmem:[%s3074 + $0x1cf] sm:$0xff]
        %v7511 = vld [vmem:[%s3074 + $0x1e7] sm:$0xff]
        %v7512 = vld [vmem:[%s3074 + $0x1ef] sm:$0xff]
        %v7513 = vpack.c.bf16 %v7482, %v7481
        %v7514 = vpack.c.bf16 %v7484, %v7483
        %v7515 = vpack.c.bf16 %v7486, %v7485
        %v7516 = vpack.c.bf16 %v7488, %v7487
        %v7517 = vpack.c.bf16 %v7490, %v7489
        %v7518 = vpack.c.bf16 %v7492, %v7491
        %v7519 = vpack.c.bf16 %v7494, %v7493
        %v7520 = vpack.c.bf16 %v7496, %v7495
        %v7521 = vpack.c.bf16 %v7498, %v7497
        %v7522 = vpack.c.bf16 %v7500, %v7499
        %v7523 = vpack.c.bf16 %v7502, %v7501
        %v7524 = vpack.c.bf16 %v7504, %v7503
        %v7525 = vpack.c.bf16 %v7506, %v7505
        %v7526 = vpack.c.bf16 %v7508, %v7507
        %v7527 = vpack.c.bf16 %v7510, %v7509
        %v7528 = vpack.c.bf16 %v7512, %v7511
        %7529 = vst [vmem:[#allocation4 + $0x30] sm:$0xff] %v7513
        %7530 = vst [vmem:[#allocation4 + $0x78] sm:$0xff] %v7514
        %7531 = vst [vmem:[#allocation4 + $0xc0] sm:$0xff] %v7515
        %7532 = vst [vmem:[#allocation4 + $0x108] sm:$0xff] %v7516
        %7533 = vst [vmem:[#allocation4 + $0x150] sm:$0xff] %v7517
        %7534 = vst [vmem:[#allocation4 + $0x198] sm:$0xff] %v7518
        %7535 = vst [vmem:[#allocation4 + $0x1e0] sm:$0xff] %v7519
        %7536 = vst [vmem:[#allocation4 + $0x228] sm:$0xff] %v7520
        %7537 = vst [vmem:[#allocation4 + $0x270] sm:$0xff] %v7521
        %7538 = vst [vmem:[#allocation4 + $0x2b8] sm:$0xff] %v7522
        %7539 = vst [vmem:[#allocation4 + $0x300] sm:$0xff] %v7523
        %7540 = vst [vmem:[#allocation4 + $0x348] sm:$0xff] %v7524
        %7541 = vst [vmem:[#allocation4 + $0x390] sm:$0xff] %v7525
        %7542 = vst [vmem:[#allocation4 + $0x3d8] sm:$0xff] %v7526
        %7543 = vst [vmem:[#allocation4 + $0x420] sm:$0xff] %v7527
        %7544 = vst [vmem:[#allocation4 + $0x468] sm:$0xff] %v7528
        %v7545 = vld [vmem:[%s3074 + $0x8] sm:$0xff]
        %v7546 = vld [vmem:[%s3074 + $0x10] sm:$0xff]
        %v7547 = vld [vmem:[%s3074 + $0x28] sm:$0xff]
        %v7548 = vld [vmem:[%s3074 + $0x30] sm:$0xff]
        %v7549 = vld [vmem:[%s3074 + $0x48] sm:$0xff]
        %v7550 = vld [vmem:[%s3074 + $0x50] sm:$0xff]
        %v7551 = vld [vmem:[%s3074 + $0x68] sm:$0xff]
        %v7552 = vld [vmem:[%s3074 + $0x70] sm:$0xff]
        %v7553 = vld [vmem:[%s3074 + $0x88] sm:$0xff]
        %v7554 = vld [vmem:[%s3074 + $0x90] sm:$0xff]
        %v7555 = vld [vmem:[%s3074 + $0xa8] sm:$0xff]
        %v7556 = vld [vmem:[%s3074 + $0xb0] sm:$0xff]
        %v7557 = vld [vmem:[%s3074 + $0xc8] sm:$0xff]
        %v7558 = vld [vmem:[%s3074 + $0xd0] sm:$0xff]
        %v7559 = vld [vmem:[%s3074 + $0xe8] sm:$0xff]
        %v7560 = vld [vmem:[%s3074 + $0xf0] sm:$0xff]
        %v7561 = vld [vmem:[%s3074 + $0x108] sm:$0xff]
        %v7562 = vld [vmem:[%s3074 + $0x110] sm:$0xff]
        %v7563 = vld [vmem:[%s3074 + $0x128] sm:$0xff]
        %v7564 = vld [vmem:[%s3074 + $0x130] sm:$0xff]
        %v7565 = vld [vmem:[%s3074 + $0x148] sm:$0xff]
        %v7566 = vld [vmem:[%s3074 + $0x150] sm:$0xff]
        %v7567 = vld [vmem:[%s3074 + $0x168] sm:$0xff]
        %v7568 = vld [vmem:[%s3074 + $0x170] sm:$0xff]
        %v7569 = vld [vmem:[%s3074 + $0x188] sm:$0xff]
        %v7570 = vld [vmem:[%s3074 + $0x190] sm:$0xff]
        %v7571 = vld [vmem:[%s3074 + $0x1a8] sm:$0xff]
        %v7572 = vld [vmem:[%s3074 + $0x1b0] sm:$0xff]
        %v7573 = vld [vmem:[%s3074 + $0x1c8] sm:$0xff]
        %v7574 = vld [vmem:[%s3074 + $0x1d0] sm:$0xff]
        %v7575 = vld [vmem:[%s3074 + $0x1e8] sm:$0xff]
        %v7576 = vld [vmem:[%s3074 + $0x1f0] sm:$0xff]
        %v7577 = vpack.c.bf16 %v7546, %v7545
        %v7578 = vpack.c.bf16 %v7548, %v7547
        %v7579 = vpack.c.bf16 %v7550, %v7549
        %v7580 = vpack.c.bf16 %v7552, %v7551
        %v7581 = vpack.c.bf16 %v7554, %v7553
        %v7582 = vpack.c.bf16 %v7556, %v7555
        %v7583 = vpack.c.bf16 %v7558, %v7557
        %v7584 = vpack.c.bf16 %v7560, %v7559
        %v7585 = vpack.c.bf16 %v7562, %v7561
        %v7586 = vpack.c.bf16 %v7564, %v7563
        %v7587 = vpack.c.bf16 %v7566, %v7565
        %v7588 = vpack.c.bf16 %v7568, %v7567
        %v7589 = vpack.c.bf16 %v7570, %v7569
        %v7590 = vpack.c.bf16 %v7572, %v7571
        %v7591 = vpack.c.bf16 %v7574, %v7573
        %v7592 = vpack.c.bf16 %v7576, %v7575
        %7593 = vst [vmem:[#allocation4 + $0x38] sm:$0xff] %v7577
        %7594 = vst [vmem:[#allocation4 + $0x80] sm:$0xff] %v7578
        %7595 = vst [vmem:[#allocation4 + $0xc8] sm:$0xff] %v7579
        %7596 = vst [vmem:[#allocation4 + $0x110] sm:$0xff] %v7580
        %7597 = vst [vmem:[#allocation4 + $0x158] sm:$0xff] %v7581
        %7598 = vst [vmem:[#allocation4 + $0x1a0] sm:$0xff] %v7582
        %7599 = vst [vmem:[#allocation4 + $0x1e8] sm:$0xff] %v7583
        %7600 = vst [vmem:[#allocation4 + $0x230] sm:$0xff] %v7584
        %7601 = vst [vmem:[#allocation4 + $0x278] sm:$0xff] %v7585
        %7602 = vst [vmem:[#allocation4 + $0x2c0] sm:$0xff] %v7586
        %7603 = vst [vmem:[#allocation4 + $0x308] sm:$0xff] %v7587
        %7604 = vst [vmem:[#allocation4 + $0x350] sm:$0xff] %v7588
        %7605 = vst [vmem:[#allocation4 + $0x398] sm:$0xff] %v7589
        %7606 = vst [vmem:[#allocation4 + $0x3e0] sm:$0xff] %v7590
        %7607 = vst [vmem:[#allocation4 + $0x428] sm:$0xff] %v7591
        %7608 = vst [vmem:[#allocation4 + $0x470] sm:$0xff] %v7592
        %v7609 = vld [vmem:[%s3074 + $0x9] sm:$0xff]
        %v7610 = vld [vmem:[%s3074 + $0x11] sm:$0xff]
        %v7611 = vld [vmem:[%s3074 + $0x29] sm:$0xff]
        %v7612 = vld [vmem:[%s3074 + $0x31] sm:$0xff]
        %v7613 = vld [vmem:[%s3074 + $0x49] sm:$0xff]
        %v7614 = vld [vmem:[%s3074 + $0x51] sm:$0xff]
        %v7615 = vld [vmem:[%s3074 + $0x69] sm:$0xff]
        %v7616 = vld [vmem:[%s3074 + $0x71] sm:$0xff]
        %v7617 = vld [vmem:[%s3074 + $0x89] sm:$0xff]
        %v7618 = vld [vmem:[%s3074 + $0x91] sm:$0xff]
        %v7619 = vld [vmem:[%s3074 + $0xa9] sm:$0xff]
        %v7620 = vld [vmem:[%s3074 + $0xb1] sm:$0xff]
        %v7621 = vld [vmem:[%s3074 + $0xc9] sm:$0xff]
        %v7622 = vld [vmem:[%s3074 + $0xd1] sm:$0xff]
        %v7623 = vld [vmem:[%s3074 + $0xe9] sm:$0xff]
        %v7624 = vld [vmem:[%s3074 + $0xf1] sm:$0xff]
        %v7625 = vld [vmem:[%s3074 + $0x109] sm:$0xff]
        %v7626 = vld [vmem:[%s3074 + $0x111] sm:$0xff]
        %v7627 = vld [vmem:[%s3074 + $0x129] sm:$0xff]
        %v7628 = vld [vmem:[%s3074 + $0x131] sm:$0xff]
        %v7629 = vld [vmem:[%s3074 + $0x149] sm:$0xff]
        %v7630 = vld [vmem:[%s3074 + $0x151] sm:$0xff]
        %v7631 = vld [vmem:[%s3074 + $0x169] sm:$0xff]
        %v7632 = vld [vmem:[%s3074 + $0x171] sm:$0xff]
        %v7633 = vld [vmem:[%s3074 + $0x189] sm:$0xff]
        %v7634 = vld [vmem:[%s3074 + $0x191] sm:$0xff]
        %v7635 = vld [vmem:[%s3074 + $0x1a9] sm:$0xff]
        %v7636 = vld [vmem:[%s3074 + $0x1b1] sm:$0xff]
        %v7637 = vld [vmem:[%s3074 + $0x1c9] sm:$0xff]
        %v7638 = vld [vmem:[%s3074 + $0x1d1] sm:$0xff]
        %v7639 = vld [vmem:[%s3074 + $0x1e9] sm:$0xff]
        %v7640 = vld [vmem:[%s3074 + $0x1f1] sm:$0xff]
        %v7641 = vpack.c.bf16 %v7610, %v7609
        %v7642 = vpack.c.bf16 %v7612, %v7611
        %v7643 = vpack.c.bf16 %v7614, %v7613
        %v7644 = vpack.c.bf16 %v7616, %v7615
        %v7645 = vpack.c.bf16 %v7618, %v7617
        %v7646 = vpack.c.bf16 %v7620, %v7619
        %v7647 = vpack.c.bf16 %v7622, %v7621
        %v7648 = vpack.c.bf16 %v7624, %v7623
        %v7649 = vpack.c.bf16 %v7626, %v7625
        %v7650 = vpack.c.bf16 %v7628, %v7627
        %v7651 = vpack.c.bf16 %v7630, %v7629
        %v7652 = vpack.c.bf16 %v7632, %v7631
        %v7653 = vpack.c.bf16 %v7634, %v7633
        %v7654 = vpack.c.bf16 %v7636, %v7635
        %v7655 = vpack.c.bf16 %v7638, %v7637
        %v7656 = vpack.c.bf16 %v7640, %v7639
        %7657 = vst [vmem:[#allocation4 + $0x40] sm:$0xff] %v7641
        %7658 = vst [vmem:[#allocation4 + $0x88] sm:$0xff] %v7642
        %7659 = vst [vmem:[#allocation4 + $0xd0] sm:$0xff] %v7643
        %7660 = vst [vmem:[#allocation4 + $0x118] sm:$0xff] %v7644
        %7661 = vst [vmem:[#allocation4 + $0x160] sm:$0xff] %v7645
        %7662 = vst [vmem:[#allocation4 + $0x1a8] sm:$0xff] %v7646
        %7663 = vst [vmem:[#allocation4 + $0x1f0] sm:$0xff] %v7647
        %7664 = vst [vmem:[#allocation4 + $0x238] sm:$0xff] %v7648
        %7665 = vst [vmem:[#allocation4 + $0x280] sm:$0xff] %v7649
        %7666 = vst [vmem:[#allocation4 + $0x2c8] sm:$0xff] %v7650
        %7667 = vst [vmem:[#allocation4 + $0x310] sm:$0xff] %v7651
        %7668 = vst [vmem:[#allocation4 + $0x358] sm:$0xff] %v7652
        %7669 = vst [vmem:[#allocation4 + $0x3a0] sm:$0xff] %v7653
        %7670 = vst [vmem:[#allocation4 + $0x3e8] sm:$0xff] %v7654
        %7671 = vst [vmem:[#allocation4 + $0x430] sm:$0xff] %v7655
        %7672 = vst [vmem:[#allocation4 + $0x478] sm:$0xff] %v7656
        %v7673 = vld [vmem:[#allocation4] sm:$0xff]
        %v7674 = vld [vmem:[#allocation4 + $0x8] sm:$0xff]
        %v7675 = vld [vmem:[#allocation4 + $0x10] sm:$0xff]
        %v7676 = vld [vmem:[#allocation4 + $0x18] sm:$0xff]
        %v7677 = vld [vmem:[#allocation4 + $0x20] sm:$0xff]
        %v7678 = vld [vmem:[#allocation4 + $0x28] sm:$0xff]
        %v7679 = vld [vmem:[#allocation4 + $0x30] sm:$0xff]
        %v7680 = vld [vmem:[#allocation4 + $0x38] sm:$0xff]
        %v7681 = vld [vmem:[#allocation4 + $0x40] sm:$0xff]
        %v7682 = vld [vmem:[#allocation4 + $0x48] sm:$0xff]
        %v7683 = vld [vmem:[#allocation4 + $0x50] sm:$0xff]
        %v7684 = vld [vmem:[#allocation4 + $0x58] sm:$0xff]
        %v7685 = vld [vmem:[#allocation4 + $0x60] sm:$0xff]
        %v7686 = vld [vmem:[#allocation4 + $0x68] sm:$0xff]
        %v7687 = vld [vmem:[#allocation4 + $0x70] sm:$0xff]
        %v7688 = vld [vmem:[#allocation4 + $0x78] sm:$0xff]
        %v7689 = vld [vmem:[#allocation4 + $0x80] sm:$0xff]
        %v7690 = vld [vmem:[#allocation4 + $0x88] sm:$0xff]
        %v7691 = vld [vmem:[#allocation4 + $0x90] sm:$0xff]
        %v7692 = vld [vmem:[#allocation4 + $0x98] sm:$0xff]
        %v7693 = vld [vmem:[#allocation4 + $0xa0] sm:$0xff]
        %v7694 = vld [vmem:[#allocation4 + $0xa8] sm:$0xff]
        %v7695 = vld [vmem:[#allocation4 + $0xb0] sm:$0xff]
        %v7696 = vld [vmem:[#allocation4 + $0xb8] sm:$0xff]
        %v7697 = vld [vmem:[#allocation4 + $0xc0] sm:$0xff]
        %v7698 = vld [vmem:[#allocation4 + $0xc8] sm:$0xff]
        %v7699 = vld [vmem:[#allocation4 + $0xd0] sm:$0xff]
        %v7700 = vld [vmem:[#allocation4 + $0xd8] sm:$0xff]
        %v7701 = vld [vmem:[#allocation4 + $0xe0] sm:$0xff]
        %v7702 = vld [vmem:[#allocation4 + $0xe8] sm:$0xff]
        %v7703 = vld [vmem:[#allocation4 + $0xf0] sm:$0xff]
        %v7704 = vld [vmem:[#allocation4 + $0xf8] sm:$0xff]
        %v7705 = vld [vmem:[#allocation4 + $0x100] sm:$0xff]
        %v7706 = vld [vmem:[#allocation4 + $0x108] sm:$0xff]
        %v7707 = vld [vmem:[#allocation4 + $0x110] sm:$0xff]
        %v7708 = vld [vmem:[#allocation4 + $0x118] sm:$0xff]
        %v7709 = vld [vmem:[#allocation4 + $0x120] sm:$0xff]
        %v7710 = vld [vmem:[#allocation4 + $0x128] sm:$0xff]
        %v7711 = vld [vmem:[#allocation4 + $0x130] sm:$0xff]
        %v7712 = vld [vmem:[#allocation4 + $0x138] sm:$0xff]
        %v7713 = vld [vmem:[#allocation4 + $0x140] sm:$0xff]
        %v7714 = vld [vmem:[#allocation4 + $0x148] sm:$0xff]
        %v7715 = vld [vmem:[#allocation4 + $0x150] sm:$0xff]
        %v7716 = vld [vmem:[#allocation4 + $0x158] sm:$0xff]
        %v7717 = vld [vmem:[#allocation4 + $0x160] sm:$0xff]
        %v7718 = vld [vmem:[#allocation4 + $0x168] sm:$0xff]
        %v7719 = vld [vmem:[#allocation4 + $0x170] sm:$0xff]
        %v7720 = vld [vmem:[#allocation4 + $0x178] sm:$0xff]
        %v7721 = vld [vmem:[#allocation4 + $0x180] sm:$0xff]
        %v7722 = vld [vmem:[#allocation4 + $0x188] sm:$0xff]
        %v7723 = vld [vmem:[#allocation4 + $0x190] sm:$0xff]
        %v7724 = vld [vmem:[#allocation4 + $0x198] sm:$0xff]
        %v7725 = vld [vmem:[#allocation4 + $0x1a0] sm:$0xff]
        %v7726 = vld [vmem:[#allocation4 + $0x1a8] sm:$0xff]
        %v7727 = vld [vmem:[#allocation4 + $0x1b0] sm:$0xff]
        %v7728 = vld [vmem:[#allocation4 + $0x1b8] sm:$0xff]
        %v7729 = vld [vmem:[#allocation4 + $0x1c0] sm:$0xff]
        %v7730 = vld [vmem:[#allocation4 + $0x1c8] sm:$0xff]
        %v7731 = vld [vmem:[#allocation4 + $0x1d0] sm:$0xff]
        %v7732 = vld [vmem:[#allocation4 + $0x1d8] sm:$0xff]
        %v7733 = vld [vmem:[#allocation4 + $0x1e0] sm:$0xff]
        %v7734 = vld [vmem:[#allocation4 + $0x1e8] sm:$0xff]
        %v7735 = vld [vmem:[#allocation4 + $0x1f0] sm:$0xff]
        %v7736 = vld [vmem:[#allocation4 + $0x1f8] sm:$0xff]
        %v7737 = vld [vmem:[#allocation4 + $0x200] sm:$0xff]
        %v7738 = vld [vmem:[#allocation4 + $0x208] sm:$0xff]
        %v7739 = vld [vmem:[#allocation4 + $0x210] sm:$0xff]
        %v7740 = vld [vmem:[#allocation4 + $0x218] sm:$0xff]
        %v7741 = vld [vmem:[#allocation4 + $0x220] sm:$0xff]
        %v7742 = vld [vmem:[#allocation4 + $0x228] sm:$0xff]
        %v7743 = vld [vmem:[#allocation4 + $0x230] sm:$0xff]
        %v7744 = vld [vmem:[#allocation4 + $0x238] sm:$0xff]
        %v7745 = vld [vmem:[#allocation4 + $0x240] sm:$0xff]
        %v7746 = vld [vmem:[#allocation4 + $0x248] sm:$0xff]
        %v7747 = vld [vmem:[#allocation4 + $0x250] sm:$0xff]
        %v7748 = vld [vmem:[#allocation4 + $0x258] sm:$0xff]
        %v7749 = vld [vmem:[#allocation4 + $0x260] sm:$0xff]
        %v7750 = vld [vmem:[#allocation4 + $0x268] sm:$0xff]
        %v7751 = vld [vmem:[#allocation4 + $0x270] sm:$0xff]
        %v7752 = vld [vmem:[#allocation4 + $0x278] sm:$0xff]
        %v7753 = vld [vmem:[#allocation4 + $0x280] sm:$0xff]
        %v7754 = vld [vmem:[#allocation4 + $0x288] sm:$0xff]
        %v7755 = vld [vmem:[#allocation4 + $0x290] sm:$0xff]
        %v7756 = vld [vmem:[#allocation4 + $0x298] sm:$0xff]
        %v7757 = vld [vmem:[#allocation4 + $0x2a0] sm:$0xff]
        %v7758 = vld [vmem:[#allocation4 + $0x2a8] sm:$0xff]
        %v7759 = vld [vmem:[#allocation4 + $0x2b0] sm:$0xff]
        %v7760 = vld [vmem:[#allocation4 + $0x2b8] sm:$0xff]
        %v7761 = vld [vmem:[#allocation4 + $0x2c0] sm:$0xff]
        %v7762 = vld [vmem:[#allocation4 + $0x2c8] sm:$0xff]
        %v7763 = vld [vmem:[#allocation4 + $0x2d0] sm:$0xff]
        %v7764 = vld [vmem:[#allocation4 + $0x2d8] sm:$0xff]
        %v7765 = vld [vmem:[#allocation4 + $0x2e0] sm:$0xff]
        %v7766 = vld [vmem:[#allocation4 + $0x2e8] sm:$0xff]
        %v7767 = vld [vmem:[#allocation4 + $0x2f0] sm:$0xff]
        %v7768 = vld [vmem:[#allocation4 + $0x2f8] sm:$0xff]
        %v7769 = vld [vmem:[#allocation4 + $0x300] sm:$0xff]
        %v7770 = vld [vmem:[#allocation4 + $0x308] sm:$0xff]
        %v7771 = vld [vmem:[#allocation4 + $0x310] sm:$0xff]
        %v7772 = vld [vmem:[#allocation4 + $0x318] sm:$0xff]
        %v7773 = vld [vmem:[#allocation4 + $0x320] sm:$0xff]
        %v7774 = vld [vmem:[#allocation4 + $0x328] sm:$0xff]
        %v7775 = vld [vmem:[#allocation4 + $0x330] sm:$0xff]
        %v7776 = vld [vmem:[#allocation4 + $0x338] sm:$0xff]
        %v7777 = vld [vmem:[#allocation4 + $0x340] sm:$0xff]
        %v7778 = vld [vmem:[#allocation4 + $0x348] sm:$0xff]
        %v7779 = vld [vmem:[#allocation4 + $0x350] sm:$0xff]
        %v7780 = vld [vmem:[#allocation4 + $0x358] sm:$0xff]
        %v7781 = vld [vmem:[#allocation4 + $0x360] sm:$0xff]
        %v7782 = vld [vmem:[#allocation4 + $0x368] sm:$0xff]
        %v7783 = vld [vmem:[#allocation4 + $0x370] sm:$0xff]
        %v7784 = vld [vmem:[#allocation4 + $0x378] sm:$0xff]
        %v7785 = vld [vmem:[#allocation4 + $0x380] sm:$0xff]
        %v7786 = vld [vmem:[#allocation4 + $0x388] sm:$0xff]
        %v7787 = vld [vmem:[#allocation4 + $0x390] sm:$0xff]
        %v7788 = vld [vmem:[#allocation4 + $0x398] sm:$0xff]
        %v7789 = vld [vmem:[#allocation4 + $0x3a0] sm:$0xff]
        %v7790 = vld [vmem:[#allocation4 + $0x3a8] sm:$0xff]
        %v7791 = vld [vmem:[#allocation4 + $0x3b0] sm:$0xff]
        %v7792 = vld [vmem:[#allocation4 + $0x3b8] sm:$0xff]
        %v7793 = vld [vmem:[#allocation4 + $0x3c0] sm:$0xff]
        %v7794 = vld [vmem:[#allocation4 + $0x3c8] sm:$0xff]
        %v7795 = vld [vmem:[#allocation4 + $0x3d0] sm:$0xff]
        %v7796 = vld [vmem:[#allocation4 + $0x3d8] sm:$0xff]
        %v7797 = vld [vmem:[#allocation4 + $0x3e0] sm:$0xff]
        %v7798 = vld [vmem:[#allocation4 + $0x3e8] sm:$0xff]
        %v7799 = vld [vmem:[#allocation4 + $0x3f0] sm:$0xff]
        %v7800 = vld [vmem:[#allocation4 + $0x3f8] sm:$0xff]
        %v7801 = vld [vmem:[#allocation4 + $0x400] sm:$0xff]
        %v7802 = vld [vmem:[#allocation4 + $0x408] sm:$0xff]
        %v7803 = vld [vmem:[#allocation4 + $0x410] sm:$0xff]
        %v7804 = vld [vmem:[#allocation4 + $0x418] sm:$0xff]
        %v7805 = vld [vmem:[#allocation4 + $0x420] sm:$0xff]
        %v7806 = vld [vmem:[#allocation4 + $0x428] sm:$0xff]
        %v7807 = vld [vmem:[#allocation4 + $0x430] sm:$0xff]
        %v7808 = vld [vmem:[#allocation4 + $0x438] sm:$0xff]
        %v7809 = vld [vmem:[#allocation4 + $0x440] sm:$0xff]
        %v7810 = vld [vmem:[#allocation4 + $0x448] sm:$0xff]
        %v7811 = vld [vmem:[#allocation4 + $0x450] sm:$0xff]
        %v7812 = vld [vmem:[#allocation4 + $0x458] sm:$0xff]
        %v7813 = vld [vmem:[#allocation4 + $0x460] sm:$0xff]
        %v7814 = vld [vmem:[#allocation4 + $0x468] sm:$0xff]
        %v7815 = vld [vmem:[#allocation4 + $0x470] sm:$0xff]
        %v7816 = vld [vmem:[#allocation4 + $0x478] sm:$0xff]
        %v7817 = vlaneseq
        %v7818 = vshrl.u32 %v7817, 7
        %v7819 = vsub.s32 0, %v7818
        %v7820 = vrot.slane %v7096, %v7819
        %v7965 = vunpack.c.l.b16 %v6952
        %v7966 = vunpack.c.l.b16 %v6953
        %v7967 = vunpack.c.l.b16 %v6954
        %v7968 = vunpack.c.l.b16 %v6955
        %v7969 = vunpack.c.l.b16 %v6956
        %v7970 = vunpack.c.l.b16 %v6957
        %v7971 = vunpack.c.l.b16 %v6958
        %v7972 = vunpack.c.l.b16 %v6959
        %v7973 = vunpack.c.l.b16 %v6960
        %v7974 = vunpack.c.l.b16 %v6961
        %v7975 = vunpack.c.l.b16 %v6962
        %v7976 = vunpack.c.l.b16 %v6963
        %v7977 = vunpack.c.l.b16 %v6964
        %v7978 = vunpack.c.l.b16 %v6965
        %v7979 = vunpack.c.l.b16 %v6966
        %v7980 = vunpack.c.l.b16 %v6967
        %v7981 = vunpack.c.l.b16 %v6968
        %v7982 = vunpack.c.l.b16 %v6969
        %v7983 = vunpack.c.l.b16 %v6970
        %v7984 = vunpack.c.l.b16 %v6971
        %v7985 = vunpack.c.l.b16 %v6972
        %v7986 = vunpack.c.l.b16 %v6973
        %v7987 = vunpack.c.l.b16 %v6974
        %v7988 = vunpack.c.l.b16 %v6975
        %v7989 = vunpack.c.l.b16 %v6976
        %v7990 = vunpack.c.l.b16 %v6977
        %v7991 = vunpack.c.l.b16 %v6978
        %v7992 = vunpack.c.l.b16 %v6979
        %v7993 = vunpack.c.l.b16 %v6980
        %v7994 = vunpack.c.l.b16 %v6981
        %v7995 = vunpack.c.l.b16 %v6982
        %v7996 = vunpack.c.l.b16 %v6983
        %v7997 = vunpack.c.l.b16 %v6984
        %v7998 = vunpack.c.l.b16 %v6985
        %v7999 = vunpack.c.l.b16 %v6986
        %v8000 = vunpack.c.l.b16 %v6987
        %v8001 = vunpack.c.l.b16 %v6988
        %v8002 = vunpack.c.l.b16 %v6989
        %v8003 = vunpack.c.l.b16 %v6990
        %v8004 = vunpack.c.l.b16 %v6991
        %v8005 = vunpack.c.l.b16 %v6992
        %v8006 = vunpack.c.l.b16 %v6993
        %v8007 = vunpack.c.l.b16 %v6994
        %v8008 = vunpack.c.l.b16 %v6995
        %v8009 = vunpack.c.l.b16 %v6996
        %v8010 = vunpack.c.l.b16 %v6997
        %v8011 = vunpack.c.l.b16 %v6998
        %v8012 = vunpack.c.l.b16 %v6999
        %v8013 = vunpack.c.l.b16 %v7000
        %v8014 = vunpack.c.l.b16 %v7001
        %v8015 = vunpack.c.l.b16 %v7002
        %v8016 = vunpack.c.l.b16 %v7003
        %v8017 = vunpack.c.l.b16 %v7004
        %v8018 = vunpack.c.l.b16 %v7005
        %v8019 = vunpack.c.l.b16 %v7006
        %v8020 = vunpack.c.l.b16 %v7007
        %v8021 = vunpack.c.l.b16 %v7008
        %v8022 = vunpack.c.l.b16 %v7009
        %v8023 = vunpack.c.l.b16 %v7010
        %v8024 = vunpack.c.l.b16 %v7011
        %v8025 = vunpack.c.l.b16 %v7012
        %v8026 = vunpack.c.l.b16 %v7013
        %v8027 = vunpack.c.l.b16 %v7014
        %v8028 = vunpack.c.l.b16 %v7015
        %v8029 = vunpack.c.l.b16 %v7016
        %v8030 = vunpack.c.l.b16 %v7017
        %v8031 = vunpack.c.l.b16 %v7018
        %v8032 = vunpack.c.l.b16 %v7019
        %v8033 = vunpack.c.l.b16 %v7020
        %v8034 = vunpack.c.l.b16 %v7021
        %v8035 = vunpack.c.l.b16 %v7022
        %v8036 = vunpack.c.l.b16 %v7023
        %v8037 = vunpack.c.l.b16 %v7024
        %v8038 = vunpack.c.l.b16 %v7025
        %v8039 = vunpack.c.l.b16 %v7026
        %v8040 = vunpack.c.l.b16 %v7027
        %v8041 = vunpack.c.l.b16 %v7028
        %v8042 = vunpack.c.l.b16 %v7029
        %v8043 = vunpack.c.l.b16 %v7030
        %v8044 = vunpack.c.l.b16 %v7031
        %v8045 = vunpack.c.l.b16 %v7032
        %v8046 = vunpack.c.l.b16 %v7033
        %v8047 = vunpack.c.l.b16 %v7034
        %v8048 = vunpack.c.l.b16 %v7035
        %v8049 = vunpack.c.l.b16 %v7036
        %v8050 = vunpack.c.l.b16 %v7037
        %v8051 = vunpack.c.l.b16 %v7038
        %v8052 = vunpack.c.l.b16 %v7039
        %v8053 = vunpack.c.l.b16 %v7040
        %v8054 = vunpack.c.l.b16 %v7041
        %v8055 = vunpack.c.l.b16 %v7042
        %v8056 = vunpack.c.l.b16 %v7043
        %v8057 = vunpack.c.l.b16 %v7044
        %v8058 = vunpack.c.l.b16 %v7045
        %v8059 = vunpack.c.l.b16 %v7046
        %v8060 = vunpack.c.l.b16 %v7047
        %v8061 = vunpack.c.l.b16 %v7048
        %v8062 = vunpack.c.l.b16 %v7049
        %v8063 = vunpack.c.l.b16 %v7050
        %v8064 = vunpack.c.l.b16 %v7051
        %v8065 = vunpack.c.l.b16 %v7052
        %v8066 = vunpack.c.l.b16 %v7053
        %v8067 = vunpack.c.l.b16 %v7054
        %v8068 = vunpack.c.l.b16 %v7055
        %v8069 = vunpack.c.l.b16 %v7056
        %v8070 = vunpack.c.l.b16 %v7057
        %v8071 = vunpack.c.l.b16 %v7058
        %v8072 = vunpack.c.l.b16 %v7059
        %v8073 = vunpack.c.l.b16 %v7060
        %v8074 = vunpack.c.l.b16 %v7061
        %v8075 = vunpack.c.l.b16 %v7062
        %v8076 = vunpack.c.l.b16 %v7063
        %v8077 = vunpack.c.l.b16 %v7064
        %v8078 = vunpack.c.l.b16 %v7065
        %v8079 = vunpack.c.l.b16 %v7066
        %v8080 = vunpack.c.l.b16 %v7067
        %v8081 = vunpack.c.l.b16 %v7068
        %v8082 = vunpack.c.l.b16 %v7069
        %v8083 = vunpack.c.l.b16 %v7070
        %v8084 = vunpack.c.l.b16 %v7071
        %v8085 = vunpack.c.l.b16 %v7072
        %v8086 = vunpack.c.l.b16 %v7073
        %v8087 = vunpack.c.l.b16 %v7074
        %v8088 = vunpack.c.l.b16 %v7075
        %v8089 = vunpack.c.l.b16 %v7076
        %v8090 = vunpack.c.l.b16 %v7077
        %v8091 = vunpack.c.l.b16 %v7078
        %v8092 = vunpack.c.l.b16 %v7079
        %v8093 = vunpack.c.l.b16 %v7080
        %v8094 = vunpack.c.l.b16 %v7081
        %v8095 = vunpack.c.l.b16 %v7082
        %v8096 = vunpack.c.l.b16 %v7083
        %v8097 = vunpack.c.l.b16 %v7084
        %v8098 = vunpack.c.l.b16 %v7085
        %v8099 = vunpack.c.l.b16 %v7086
        %v8100 = vunpack.c.l.b16 %v7087
        %v8101 = vunpack.c.l.b16 %v7088
        %v8102 = vunpack.c.l.b16 %v7089
        %v8103 = vunpack.c.l.b16 %v7090
        %v8104 = vunpack.c.l.b16 %v7091
        %v8105 = vunpack.c.l.b16 %v7092
        %v8106 = vunpack.c.l.b16 %v7093
        %v8107 = vunpack.c.l.b16 %v7094
        %v8108 = vunpack.c.l.b16 %v7095
        %v8109 = vpack.c.b16 %v7966, %v7965
        %v8110 = vpack.c.b16 %v7968, %v7967
        %v8111 = vpack.c.b16 %v7970, %v7969
        %v8112 = vpack.c.b16 %v7972, %v7971
        %v8113 = vpack.c.b16 %v7974, %v7973
        %v8114 = vpack.c.b16 %v7976, %v7975
        %v8115 = vpack.c.b16 %v7978, %v7977
        %v8116 = vpack.c.b16 %v7980, %v7979
        %v8117 = vpack.c.b16 %v7982, %v7981
        %v8118 = vpack.c.b16 %v7984, %v7983
        %v8119 = vpack.c.b16 %v7986, %v7985
        %v8120 = vpack.c.b16 %v7988, %v7987
        %v8121 = vpack.c.b16 %v7990, %v7989
        %v8122 = vpack.c.b16 %v7992, %v7991
        %v8123 = vpack.c.b16 %v7994, %v7993
        %v8124 = vpack.c.b16 %v7996, %v7995
        %v8125 = vpack.c.b16 %v7998, %v7997
        %v8126 = vpack.c.b16 %v8000, %v7999
        %v8127 = vpack.c.b16 %v8002, %v8001
        %v8128 = vpack.c.b16 %v8004, %v8003
        %v8129 = vpack.c.b16 %v8006, %v8005
        %v8130 = vpack.c.b16 %v8008, %v8007
        %v8131 = vpack.c.b16 %v8010, %v8009
        %v8132 = vpack.c.b16 %v8012, %v8011
        %v8133 = vpack.c.b16 %v8014, %v8013
        %v8134 = vpack.c.b16 %v8016, %v8015
        %v8135 = vpack.c.b16 %v8018, %v8017
        %v8136 = vpack.c.b16 %v8020, %v8019
        %v8137 = vpack.c.b16 %v8022, %v8021
        %v8138 = vpack.c.b16 %v8024, %v8023
        %v8139 = vpack.c.b16 %v8026, %v8025
        %v8140 = vpack.c.b16 %v8028, %v8027
        %v8141 = vpack.c.b16 %v8030, %v8029
        %v8142 = vpack.c.b16 %v8032, %v8031
        %v8143 = vpack.c.b16 %v8034, %v8033
        %v8144 = vpack.c.b16 %v8036, %v8035
        %v8145 = vpack.c.b16 %v8038, %v8037
        %v8146 = vpack.c.b16 %v8040, %v8039
        %v8147 = vpack.c.b16 %v8042, %v8041
        %v8148 = vpack.c.b16 %v8044, %v8043
        %v8149 = vpack.c.b16 %v8046, %v8045
        %v8150 = vpack.c.b16 %v8048, %v8047
        %v8151 = vpack.c.b16 %v8050, %v8049
        %v8152 = vpack.c.b16 %v8052, %v8051
        %v8153 = vpack.c.b16 %v8054, %v8053
        %v8154 = vpack.c.b16 %v8056, %v8055
        %v8155 = vpack.c.b16 %v8058, %v8057
        %v8156 = vpack.c.b16 %v8060, %v8059
        %v8157 = vpack.c.b16 %v8062, %v8061
        %v8158 = vpack.c.b16 %v8064, %v8063
        %v8159 = vpack.c.b16 %v8066, %v8065
        %v8160 = vpack.c.b16 %v8068, %v8067
        %v8161 = vpack.c.b16 %v8070, %v8069
        %v8162 = vpack.c.b16 %v8072, %v8071
        %v8163 = vpack.c.b16 %v8074, %v8073
        %v8164 = vpack.c.b16 %v8076, %v8075
        %v8165 = vpack.c.b16 %v8078, %v8077
        %v8166 = vpack.c.b16 %v8080, %v8079
        %v8167 = vpack.c.b16 %v8082, %v8081
        %v8168 = vpack.c.b16 %v8084, %v8083
        %v8169 = vpack.c.b16 %v8086, %v8085
        %v8170 = vpack.c.b16 %v8088, %v8087
        %v8171 = vpack.c.b16 %v8090, %v8089
        %v8172 = vpack.c.b16 %v8092, %v8091
        %v8173 = vpack.c.b16 %v8094, %v8093
        %v8174 = vpack.c.b16 %v8096, %v8095
        %v8175 = vpack.c.b16 %v8098, %v8097
        %v8176 = vpack.c.b16 %v8100, %v8099
        %v8177 = vpack.c.b16 %v8102, %v8101
        %v8178 = vpack.c.b16 %v8104, %v8103
        %v8179 = vpack.c.b16 %v8106, %v8105
        %v8180 = vpack.c.b16 %v8108, %v8107
        %8253 = vmatprep.subr.bf16.mxu0 0
        %8254 = vmatpush1.bf16.msra.mxu0 %v8109
        %8255 = vmatprep.subr.bf16.mxu0 0
        %8256 = vmatpush1.bf16.msra.mxu0 %v8110
        %8257 = vmatprep.subr.bf16.mxu0 0
        %8258 = vmatpush1.bf16.msra.mxu0 %v8111
        %8259 = vmatprep.subr.bf16.mxu0 0
        %8260 = vmatpush1.bf16.msra.mxu0 %v8112
        %8261 = vmatprep.subr.bf16.mxu0 0
        %8262 = vmatpush1.bf16.msra.mxu0 %v8113
        %8263 = vmatprep.subr.bf16.mxu0 0
        %8264 = vmatpush1.bf16.msra.mxu0 %v8114
        %8265 = vmatprep.subr.bf16.mxu0 0
        %8266 = vmatpush1.bf16.msra.mxu0 %v8115
        %8267 = vmatprep.subr.bf16.mxu0 0
        %8268 = vmatpush1.bf16.msra.mxu0 %v8116
        %8269 = vmatprep.subr.bf16.mxu0 0
        %8270 = vmatpush1.bf16.msra.mxu0 %v8117
        %8271 = vmatprep.subr.bf16.mxu0 0
        %8272 = vmatpush1.bf16.msra.mxu0 %v8118
        %8273 = vmatprep.subr.bf16.mxu0 0
        %8274 = vmatpush1.bf16.msra.mxu0 %v8119
        %8275 = vmatprep.subr.bf16.mxu0 0
        %8276 = vmatpush1.bf16.msra.mxu0 %v8120
        %8277 = vmatprep.subr.bf16.mxu0 0
        %8278 = vmatpush1.bf16.msra.mxu0 %v8121
        %8279 = vmatprep.subr.bf16.mxu0 0
        %8280 = vmatpush1.bf16.msra.mxu0 %v8122
        %8281 = vmatprep.subr.bf16.mxu0 0
        %8282 = vmatpush1.bf16.msra.mxu0 %v8123
        %8283 = vmatprep.subr.bf16.mxu0 0
        %8284 = vmatpush1.bf16.msra.mxu0 %v8124
        %8285 = vmatprep.mubr.bf16.mxu0 %v7674
        %8286 = vmatmul.mubr.bf16.gmra.mrb[0].mxu0 %v7673
        %v8287 = vpop.f32.mrb[0].mxu0
        %v8288 = vadd.f32 %v7820, %v8287
        %v8289 = vpop.f32.mrb[0].mxu0
        %v8290 = vpop.f32.mrb[0].mxu0
        %v8291 = vadd.f32 %v7820, %v8290
        %v8292 = vpop.f32.mrb[0].mxu0
        %8293 = vmatprep.mubr.bf16.mxu0 %v7683
        %8294 = vmatmul.mubr.bf16.gmra.mrb[0].mxu0 %v7682
        %v8295 = vpop.f32.mrb[0].mxu0
        %v8296 = vadd.f32 %v7820, %v8295
        %v8297 = vpop.f32.mrb[0].mxu0
        %v8298 = vpop.f32.mrb[0].mxu0
        %v8299 = vadd.f32 %v7820, %v8298
        %v8300 = vpop.f32.mrb[0].mxu0
        %8301 = vmatprep.mubr.bf16.mxu0 %v7692
        %8302 = vmatmul.mubr.bf16.gmra.mrb[0].mxu0 %v7691
        %v8303 = vpop.f32.mrb[0].mxu0
        %v8304 = vadd.f32 %v7820, %v8303
        %v8305 = vpop.f32.mrb[0].mxu0
        %v8306 = vpop.f32.mrb[0].mxu0
        %v8307 = vadd.f32 %v7820, %v8306
        %v8308 = vpop.f32.mrb[0].mxu0
        %8309 = vmatprep.mubr.bf16.mxu0 %v7701
        %8310 = vmatmul.mubr.bf16.gmra.mrb[0].mxu0 %v7700
        %v8311 = vpop.f32.mrb[0].mxu0
        %v8312 = vadd.f32 %v7820, %v8311
        %v8313 = vpop.f32.mrb[0].mxu0
        %v8314 = vpop.f32.mrb[0].mxu0
        %v8315 = vadd.f32 %v7820, %v8314
        %v8316 = vpop.f32.mrb[0].mxu0
        %8317 = vmatprep.mubr.bf16.mxu0 %v7710
        %8318 = vmatmul.mubr.bf16.gmra.mrb[0].mxu0 %v7709
        %v8319 = vpop.f32.mrb[0].mxu0
        %v8320 = vadd.f32 %v7820, %v8319
        %v8321 = vpop.f32.mrb[0].mxu0
        %v8322 = vpop.f32.mrb[0].mxu0
        %v8323 = vadd.f32 %v7820, %v8322
        %v8324 = vpop.f32.mrb[0].mxu0
        %8325 = vmatprep.mubr.bf16.mxu0 %v7719
        %8326 = vmatmul.mubr.bf16.gmra.mrb[0].mxu0 %v7718
        %v8327 = vpop.f32.mrb[0].mxu0
        %v8328 = vadd.f32 %v7820, %v8327
        %v8329 = vpop.f32.mrb[0].mxu0
        %v8330 = vpop.f32.mrb[0].mxu0
        %v8331 = vadd.f32 %v7820, %v8330
        %v8332 = vpop.f32.mrb[0].mxu0
        %8333 = vmatprep.mubr.bf16.mxu0 %v7728
        %8334 = vmatmul.mubr.bf16.gmra.mrb[0].mxu0 %v7727
        %v8335 = vpop.f32.mrb[0].mxu0
        %v8336 = vadd.f32 %v7820, %v8335
        %v8337 = vpop.f32.mrb[0].mxu0
        %v8338 = vpop.f32.mrb[0].mxu0
        %v8339 = vadd.f32 %v7820, %v8338
        %v8340 = vpop.f32.mrb[0].mxu0
        %8341 = vmatprep.mubr.bf16.mxu0 %v7737
        %8342 = vmatmul.mubr.bf16.gmra.mrb[0].mxu0 %v7736
        %v8343 = vpop.f32.mrb[0].mxu0
        %v8344 = vadd.f32 %v7820, %v8343
        %v8345 = vpop.f32.mrb[0].mxu0
        %v8346 = vpop.f32.mrb[0].mxu0
        %v8347 = vadd.f32 %v7820, %v8346
        %v8348 = vpop.f32.mrb[0].mxu0
        %8349 = vmatprep.mubr.bf16.mxu0 %v7746
        %8350 = vmatmul.mubr.bf16.gmra.mrb[0].mxu0 %v7745
        %v8351 = vpop.f32.mrb[0].mxu0
        %v8352 = vadd.f32 %v7820, %v8351
        %v8353 = vpop.f32.mrb[0].mxu0
        %v8354 = vpop.f32.mrb[0].mxu0
        %v8355 = vadd.f32 %v7820, %v8354
        %v8356 = vpop.f32.mrb[0].mxu0
        %8357 = vmatprep.mubr.bf16.mxu0 %v7755
        %8358 = vmatmul.mubr.bf16.gmra.mrb[0].mxu0 %v7754
        %v8359 = vpop.f32.mrb[0].mxu0
        %v8360 = vadd.f32 %v7820, %v8359
        %v8361 = vpop.f32.mrb[0].mxu0
        %v8362 = vpop.f32.mrb[0].mxu0
        %v8363 = vadd.f32 %v7820, %v8362
        %v8364 = vpop.f32.mrb[0].mxu0
        %8365 = vmatprep.mubr.bf16.mxu0 %v7764
        %8366 = vmatmul.mubr.bf16.gmra.mrb[0].mxu0 %v7763
        %v8367 = vpop.f32.mrb[0].mxu0
        %v8368 = vadd.f32 %v7820, %v8367
        %v8369 = vpop.f32.mrb[0].mxu0
        %v8370 = vpop.f32.mrb[0].mxu0
        %v8371 = vadd.f32 %v7820, %v8370
        %v8372 = vpop.f32.mrb[0].mxu0
        %8373 = vmatprep.mubr.bf16.mxu0 %v7773
        %8374 = vmatmul.mubr.bf16.gmra.mrb[0].mxu0 %v7772
        %v8375 = vpop.f32.mrb[0].mxu0
        %v8376 = vadd.f32 %v7820, %v8375
        %v8377 = vpop.f32.mrb[0].mxu0
        %v8378 = vpop.f32.mrb[0].mxu0
        %v8379 = vadd.f32 %v7820, %v8378
        %v8380 = vpop.f32.mrb[0].mxu0
        %8381 = vmatprep.mubr.bf16.mxu0 %v7782
        %8382 = vmatmul.mubr.bf16.gmra.mrb[0].mxu0 %v7781
        %v8383 = vpop.f32.mrb[0].mxu0
        %v8384 = vadd.f32 %v7820, %v8383
        %v8385 = vpop.f32.mrb[0].mxu0
        %v8386 = vpop.f32.mrb[0].mxu0
        %v8387 = vadd.f32 %v7820, %v8386
        %v8388 = vpop.f32.mrb[0].mxu0
        %8389 = vmatprep.mubr.bf16.mxu0 %v7791
        %8390 = vmatmul.mubr.bf16.gmra.mrb[0].mxu0 %v7790
        %v8391 = vpop.f32.mrb[0].mxu0
        %v8392 = vadd.f32 %v7820, %v8391
        %v8393 = vpop.f32.mrb[0].mxu0
        %v8394 = vpop.f32.mrb[0].mxu0
        %v8395 = vadd.f32 %v7820, %v8394
        %v8396 = vpop.f32.mrb[0].mxu0
        %8397 = vmatprep.mubr.bf16.mxu0 %v7800
        %8398 = vmatmul.mubr.bf16.gmra.mrb[0].mxu0 %v7799
        %v8399 = vpop.f32.mrb[0].mxu0
        %v8400 = vadd.f32 %v7820, %v8399
        %v8401 = vpop.f32.mrb[0].mxu0
        %v8402 = vpop.f32.mrb[0].mxu0
        %v8403 = vadd.f32 %v7820, %v8402
        %v8404 = vpop.f32.mrb[0].mxu0
        %8405 = vmatprep.mubr.bf16.mxu0 %v7809
        %8406 = vmatmul.mubr.bf16.gmra.mrb[0].mxu0 %v7808
        %v8407 = vpop.f32.mrb[0].mxu0
        %v8408 = vadd.f32 %v7820, %v8407
        %v8409 = vpop.f32.mrb[0].mxu0
        %v8410 = vpop.f32.mrb[0].mxu0
        %v8411 = vadd.f32 %v7820, %v8410
        %v8412 = vpop.f32.mrb[0].mxu0
        %8413 = vdwg.mxu0
        %8414 = vmatprep.subr.bf16.mxu0 0
        %8415 = vmatpush1.bf16.msra.mxu0 %v8125
        %8416 = vmatprep.subr.bf16.mxu0 0
        %8417 = vmatpush1.bf16.msra.mxu0 %v8126
        %8418 = vmatprep.subr.bf16.mxu0 0
        %8419 = vmatpush1.bf16.msra.mxu0 %v8127
        %8420 = vmatprep.subr.bf16.mxu0 0
        %8421 = vmatpush1.bf16.msra.mxu0 %v8128
        %8422 = vmatprep.subr.bf16.mxu0 0
        %8423 = vmatpush1.bf16.msra.mxu0 %v8129
        %8424 = vmatprep.subr.bf16.mxu0 0
        %8425 = vmatpush1.bf16.msra.mxu0 %v8130
        %8426 = vmatprep.subr.bf16.mxu0 0
        %8427 = vmatpush1.bf16.msra.mxu0 %v8131
        %8428 = vmatprep.subr.bf16.mxu0 0
        %8429 = vmatpush1.bf16.msra.mxu0 %v8132
        %8430 = vmatprep.subr.bf16.mxu0 0
        %8431 = vmatpush1.bf16.msra.mxu0 %v8133
        %8432 = vmatprep.subr.bf16.mxu0 0
        %8433 = vmatpush1.bf16.msra.mxu0 %v8134
        %8434 = vmatprep.subr.bf16.mxu0 0
        %8435 = vmatpush1.bf16.msra.mxu0 %v8135
        %8436 = vmatprep.subr.bf16.mxu0 0
        %8437 = vmatpush1.bf16.msra.mxu0 %v8136
        %8438 = vmatprep.subr.bf16.mxu0 0
        %8439 = vmatpush1.bf16.msra.mxu0 %v8137
        %8440 = vmatprep.subr.bf16.mxu0 0
        %8441 = vmatpush1.bf16.msra.mxu0 %v8138
        %8442 = vmatprep.subr.bf16.mxu0 0
        %8443 = vmatpush1.bf16.msra.mxu0 %v8139
        %8444 = vmatprep.subr.bf16.mxu0 0
        %8445 = vmatpush1.bf16.msra.mxu0 %v8140
        %8446 = vmatprep.mubr.bf16.mxu0 %v7676
        %8447 = vmatmul.mubr.bf16.gmra.mrb[0].mxu0 %v7675
        %v8448 = vpop.f32.mrb[0].mxu0
        %v8449 = vadd.f32 %v8288, %v8448
        %v8450 = vpop.f32.mrb[0].mxu0
        %v8451 = vpop.f32.mrb[0].mxu0
        %v8452 = vadd.f32 %v8291, %v8451
        %v8453 = vpop.f32.mrb[0].mxu0
        %8454 = vmatprep.mubr.bf16.mxu0 %v7685
        %8455 = vmatmul.mubr.bf16.gmra.mrb[0].mxu0 %v7684
        %v8456 = vpop.f32.mrb[0].mxu0
        %v8457 = vadd.f32 %v8296, %v8456
        %v8458 = vpop.f32.mrb[0].mxu0
        %v8459 = vpop.f32.mrb[0].mxu0
        %v8460 = vadd.f32 %v8299, %v8459
        %v8461 = vpop.f32.mrb[0].mxu0
        %8462 = vmatprep.mubr.bf16.mxu0 %v7694
        %8463 = vmatmul.mubr.bf16.gmra.mrb[0].mxu0 %v7693
        %v8464 = vpop.f32.mrb[0].mxu0
        %v8465 = vadd.f32 %v8304, %v8464
        %v8466 = vpop.f32.mrb[0].mxu0
        %v8467 = vpop.f32.mrb[0].mxu0
        %v8468 = vadd.f32 %v8307, %v8467
        %v8469 = vpop.f32.mrb[0].mxu0
        %8470 = vmatprep.mubr.bf16.mxu0 %v7703
        %8471 = vmatmul.mubr.bf16.gmra.mrb[0].mxu0 %v7702
        %v8472 = vpop.f32.mrb[0].mxu0
        %v8473 = vadd.f32 %v8312, %v8472
        %v8474 = vpop.f32.mrb[0].mxu0
        %v8475 = vpop.f32.mrb[0].mxu0
        %v8476 = vadd.f32 %v8315, %v8475
        %v8477 = vpop.f32.mrb[0].mxu0
        %8478 = vmatprep.mubr.bf16.mxu0 %v7712
        %8479 = vmatmul.mubr.bf16.gmra.mrb[0].mxu0 %v7711
        %v8480 = vpop.f32.mrb[0].mxu0
        %v8481 = vadd.f32 %v8320, %v8480
        %v8482 = vpop.f32.mrb[0].mxu0
        %v8483 = vpop.f32.mrb[0].mxu0
        %v8484 = vadd.f32 %v8323, %v8483
        %v8485 = vpop.f32.mrb[0].mxu0
        %8486 = vmatprep.mubr.bf16.mxu0 %v7721
        %8487 = vmatmul.mubr.bf16.gmra.mrb[0].mxu0 %v7720
        %v8488 = vpop.f32.mrb[0].mxu0
        %v8489 = vadd.f32 %v8328, %v8488
        %v8490 = vpop.f32.mrb[0].mxu0
        %v8491 = vpop.f32.mrb[0].mxu0
        %v8492 = vadd.f32 %v8331, %v8491
        %v8493 = vpop.f32.mrb[0].mxu0
        %8494 = vmatprep.mubr.bf16.mxu0 %v7730
        %8495 = vmatmul.mubr.bf16.gmra.mrb[0].mxu0 %v7729
        %v8496 = vpop.f32.mrb[0].mxu0
        %v8497 = vadd.f32 %v8336, %v8496
        %v8498 = vpop.f32.mrb[0].mxu0
        %v8499 = vpop.f32.mrb[0].mxu0
        %v8500 = vadd.f32 %v8339, %v8499
        %v8501 = vpop.f32.mrb[0].mxu0
        %8502 = vmatprep.mubr.bf16.mxu0 %v7739
        %8503 = vmatmul.mubr.bf16.gmra.mrb[0].mxu0 %v7738
        %v8504 = vpop.f32.mrb[0].mxu0
        %v8505 = vadd.f32 %v8344, %v8504
        %v8506 = vpop.f32.mrb[0].mxu0
        %v8507 = vpop.f32.mrb[0].mxu0
        %v8508 = vadd.f32 %v8347, %v8507
        %v8509 = vpop.f32.mrb[0].mxu0
        %8510 = vmatprep.mubr.bf16.mxu0 %v7748
        %8511 = vmatmul.mubr.bf16.gmra.mrb[0].mxu0 %v7747
        %v8512 = vpop.f32.mrb[0].mxu0
        %v8513 = vadd.f32 %v8352, %v8512
        %v8514 = vpop.f32.mrb[0].mxu0
        %v8515 = vpop.f32.mrb[0].mxu0
        %v8516 = vadd.f32 %v8355, %v8515
        %v8517 = vpop.f32.mrb[0].mxu0
        %8518 = vmatprep.mubr.bf16.mxu0 %v7757
        %8519 = vmatmul.mubr.bf16.gmra.mrb[0].mxu0 %v7756
        %v8520 = vpop.f32.mrb[0].mxu0
        %v8521 = vadd.f32 %v8360, %v8520
        %v8522 = vpop.f32.mrb[0].mxu0
        %v8523 = vpop.f32.mrb[0].mxu0
        %v8524 = vadd.f32 %v8363, %v8523
        %v8525 = vpop.f32.mrb[0].mxu0
        %8526 = vmatprep.mubr.bf16.mxu0 %v7766
        %8527 = vmatmul.mubr.bf16.gmra.mrb[0].mxu0 %v7765
        %v8528 = vpop.f32.mrb[0].mxu0
        %v8529 = vadd.f32 %v8368, %v8528
        %v8530 = vpop.f32.mrb[0].mxu0
        %v8531 = vpop.f32.mrb[0].mxu0
        %v8532 = vadd.f32 %v8371, %v8531
        %v8533 = vpop.f32.mrb[0].mxu0
        %8534 = vmatprep.mubr.bf16.mxu0 %v7775
        %8535 = vmatmul.mubr.bf16.gmra.mrb[0].mxu0 %v7774
        %v8536 = vpop.f32.mrb[0].mxu0
        %v8537 = vadd.f32 %v8376, %v8536
        %v8538 = vpop.f32.mrb[0].mxu0
        %v8539 = vpop.f32.mrb[0].mxu0
        %v8540 = vadd.f32 %v8379, %v8539
        %v8541 = vpop.f32.mrb[0].mxu0
        %8542 = vmatprep.mubr.bf16.mxu0 %v7784
        %8543 = vmatmul.mubr.bf16.gmra.mrb[0].mxu0 %v7783
        %v8544 = vpop.f32.mrb[0].mxu0
        %v8545 = vadd.f32 %v8384, %v8544
        %v8546 = vpop.f32.mrb[0].mxu0
        %v8547 = vpop.f32.mrb[0].mxu0
        %v8548 = vadd.f32 %v8387, %v8547
        %v8549 = vpop.f32.mrb[0].mxu0
        %8550 = vmatprep.mubr.bf16.mxu0 %v7793
        %8551 = vmatmul.mubr.bf16.gmra.mrb[0].mxu0 %v7792
        %v8552 = vpop.f32.mrb[0].mxu0
        %v8553 = vadd.f32 %v8392, %v8552
        %v8554 = vpop.f32.mrb[0].mxu0
        %v8555 = vpop.f32.mrb[0].mxu0
        %v8556 = vadd.f32 %v8395, %v8555
        %v8557 = vpop.f32.mrb[0].mxu0
        %8558 = vmatprep.mubr.bf16.mxu0 %v7802
        %8559 = vmatmul.mubr.bf16.gmra.mrb[0].mxu0 %v7801
        %v8560 = vpop.f32.mrb[0].mxu0
        %v8561 = vadd.f32 %v8400, %v8560
        %v8562 = vpop.f32.mrb[0].mxu0
        %v8563 = vpop.f32.mrb[0].mxu0
        %v8564 = vadd.f32 %v8403, %v8563
        %v8565 = vpop.f32.mrb[0].mxu0
        %8566 = vmatprep.mubr.bf16.mxu0 %v7811
        %8567 = vmatmul.mubr.bf16.gmra.mrb[0].mxu0 %v7810
        %v8568 = vpop.f32.mrb[0].mxu0
        %v8569 = vadd.f32 %v8408, %v8568
        %v8570 = vpop.f32.mrb[0].mxu0
        %v8571 = vpop.f32.mrb[0].mxu0
        %v8572 = vadd.f32 %v8411, %v8571
        %v8573 = vpop.f32.mrb[0].mxu0
        %8574 = vdwg.mxu0
        %8575 = vmatprep.subr.bf16.mxu0 0
        %8576 = vmatpush1.bf16.msra.mxu0 %v8141
        %8577 = vmatprep.subr.bf16.mxu0 0
        %8578 = vmatpush1.bf16.msra.mxu0 %v8142
        %8579 = vmatprep.subr.bf16.mxu0 0
        %8580 = vmatpush1.bf16.msra.mxu0 %v8143
        %8581 = vmatprep.subr.bf16.mxu0 0
        %8582 = vmatpush1.bf16.msra.mxu0 %v8144
        %8583 = vmatprep.subr.bf16.mxu0 0
        %8584 = vmatpush1.bf16.msra.mxu0 %v8145
        %8585 = vmatprep.subr.bf16.mxu0 0
        %8586 = vmatpush1.bf16.msra.mxu0 %v8146
        %8587 = vmatprep.subr.bf16.mxu0 0
        %8588 = vmatpush1.bf16.msra.mxu0 %v8147
        %8589 = vmatprep.subr.bf16.mxu0 0
        %8590 = vmatpush1.bf16.msra.mxu0 %v8148
        %8591 = vmatprep.subr.bf16.mxu0 0
        %8592 = vmatpush1.bf16.msra.mxu0 %v8149
        %8593 = vmatprep.subr.bf16.mxu0 0
        %8594 = vmatpush1.bf16.msra.mxu0 %v8150
        %8595 = vmatprep.subr.bf16.mxu0 0
        %8596 = vmatpush1.bf16.msra.mxu0 %v8151
        %8597 = vmatprep.subr.bf16.mxu0 0
        %8598 = vmatpush1.bf16.msra.mxu0 %v8152
        %8599 = vmatprep.subr.bf16.mxu0 0
        %8600 = vmatpush1.bf16.msra.mxu0 %v8153
        %8601 = vmatprep.subr.bf16.mxu0 0
        %8602 = vmatpush1.bf16.msra.mxu0 %v8154
        %8603 = vmatprep.subr.bf16.mxu0 0
        %8604 = vmatpush1.bf16.msra.mxu0 %v8155
        %8605 = vmatprep.subr.bf16.mxu0 0
        %8606 = vmatpush1.bf16.msra.mxu0 %v8156
        %8607 = vmatprep.mubr.bf16.mxu0 %v7678
        %8608 = vmatmul.mubr.bf16.gmra.mrb[0].mxu0 %v7677
        %v8609 = vpop.f32.mrb[0].mxu0
        %v8610 = vadd.f32 %v8449, %v8609
        %v8611 = vpop.f32.mrb[0].mxu0
        %v8612 = vpop.f32.mrb[0].mxu0
        %v8613 = vadd.f32 %v8452, %v8612
        %v8614 = vpop.f32.mrb[0].mxu0
        %8615 = vmatprep.mubr.bf16.mxu0 %v7687
        %8616 = vmatmul.mubr.bf16.gmra.mrb[0].mxu0 %v7686
        %v8617 = vpop.f32.mrb[0].mxu0
        %v8618 = vadd.f32 %v8457, %v8617
        %v8619 = vpop.f32.mrb[0].mxu0
        %v8620 = vpop.f32.mrb[0].mxu0
        %v8621 = vadd.f32 %v8460, %v8620
        %v8622 = vpop.f32.mrb[0].mxu0
        %8623 = vmatprep.mubr.bf16.mxu0 %v7696
        %8624 = vmatmul.mubr.bf16.gmra.mrb[0].mxu0 %v7695
        %v8625 = vpop.f32.mrb[0].mxu0
        %v8626 = vadd.f32 %v8465, %v8625
        %v8627 = vpop.f32.mrb[0].mxu0
        %v8628 = vpop.f32.mrb[0].mxu0
        %v8629 = vadd.f32 %v8468, %v8628
        %v8630 = vpop.f32.mrb[0].mxu0
        %8631 = vmatprep.mubr.bf16.mxu0 %v7705
        %8632 = vmatmul.mubr.bf16.gmra.mrb[0].mxu0 %v7704
        %v8633 = vpop.f32.mrb[0].mxu0
        %v8634 = vadd.f32 %v8473, %v8633
        %v8635 = vpop.f32.mrb[0].mxu0
        %v8636 = vpop.f32.mrb[0].mxu0
        %v8637 = vadd.f32 %v8476, %v8636
        %v8638 = vpop.f32.mrb[0].mxu0
        %8639 = vmatprep.mubr.bf16.mxu0 %v7714
        %8640 = vmatmul.mubr.bf16.gmra.mrb[0].mxu0 %v7713
        %v8641 = vpop.f32.mrb[0].mxu0
        %v8642 = vadd.f32 %v8481, %v8641
        %v8643 = vpop.f32.mrb[0].mxu0
        %v8644 = vpop.f32.mrb[0].mxu0
        %v8645 = vadd.f32 %v8484, %v8644
        %v8646 = vpop.f32.mrb[0].mxu0
        %8647 = vmatprep.mubr.bf16.mxu0 %v7723
        %8648 = vmatmul.mubr.bf16.gmra.mrb[0].mxu0 %v7722
        %v8649 = vpop.f32.mrb[0].mxu0
        %v8650 = vadd.f32 %v8489, %v8649
        %v8651 = vpop.f32.mrb[0].mxu0
        %v8652 = vpop.f32.mrb[0].mxu0
        %v8653 = vadd.f32 %v8492, %v8652
        %v8654 = vpop.f32.mrb[0].mxu0
        %8655 = vmatprep.mubr.bf16.mxu0 %v7732
        %8656 = vmatmul.mubr.bf16.gmra.mrb[0].mxu0 %v7731
        %v8657 = vpop.f32.mrb[0].mxu0
        %v8658 = vadd.f32 %v8497, %v8657
        %v8659 = vpop.f32.mrb[0].mxu0
        %v8660 = vpop.f32.mrb[0].mxu0
        %v8661 = vadd.f32 %v8500, %v8660
        %v8662 = vpop.f32.mrb[0].mxu0
        %8663 = vmatprep.mubr.bf16.mxu0 %v7741
        %8664 = vmatmul.mubr.bf16.gmra.mrb[0].mxu0 %v7740
        %v8665 = vpop.f32.mrb[0].mxu0
        %v8666 = vadd.f32 %v8505, %v8665
        %v8667 = vpop.f32.mrb[0].mxu0
        %v8668 = vpop.f32.mrb[0].mxu0
        %v8669 = vadd.f32 %v8508, %v8668
        %v8670 = vpop.f32.mrb[0].mxu0
        %8671 = vmatprep.mubr.bf16.mxu0 %v7750
        %8672 = vmatmul.mubr.bf16.gmra.mrb[0].mxu0 %v7749
        %v8673 = vpop.f32.mrb[0].mxu0
        %v8674 = vadd.f32 %v8513, %v8673
        %v8675 = vpop.f32.mrb[0].mxu0
        %v8676 = vpop.f32.mrb[0].mxu0
        %v8677 = vadd.f32 %v8516, %v8676
        %v8678 = vpop.f32.mrb[0].mxu0
        %8679 = vmatprep.mubr.bf16.mxu0 %v7759
        %8680 = vmatmul.mubr.bf16.gmra.mrb[0].mxu0 %v7758
        %v8681 = vpop.f32.mrb[0].mxu0
        %v8682 = vadd.f32 %v8521, %v8681
        %v8683 = vpop.f32.mrb[0].mxu0
        %v8684 = vpop.f32.mrb[0].mxu0
        %v8685 = vadd.f32 %v8524, %v8684
        %v8686 = vpop.f32.mrb[0].mxu0
        %8687 = vmatprep.mubr.bf16.mxu0 %v7768
        %8688 = vmatmul.mubr.bf16.gmra.mrb[0].mxu0 %v7767
        %v8689 = vpop.f32.mrb[0].mxu0
        %v8690 = vadd.f32 %v8529, %v8689
        %v8691 = vpop.f32.mrb[0].mxu0
        %v8692 = vpop.f32.mrb[0].mxu0
        %v8693 = vadd.f32 %v8532, %v8692
        %v8694 = vpop.f32.mrb[0].mxu0
        %8695 = vmatprep.mubr.bf16.mxu0 %v7777
        %8696 = vmatmul.mubr.bf16.gmra.mrb[0].mxu0 %v7776
        %v8697 = vpop.f32.mrb[0].mxu0
        %v8698 = vadd.f32 %v8537, %v8697
        %v8699 = vpop.f32.mrb[0].mxu0
        %v8700 = vpop.f32.mrb[0].mxu0
        %v8701 = vadd.f32 %v8540, %v8700
        %v8702 = vpop.f32.mrb[0].mxu0
        %8703 = vmatprep.mubr.bf16.mxu0 %v7786
        %8704 = vmatmul.mubr.bf16.gmra.mrb[0].mxu0 %v7785
        %v8705 = vpop.f32.mrb[0].mxu0
        %v8706 = vadd.f32 %v8545, %v8705
        %v8707 = vpop.f32.mrb[0].mxu0
        %v8708 = vpop.f32.mrb[0].mxu0
        %v8709 = vadd.f32 %v8548, %v8708
        %v8710 = vpop.f32.mrb[0].mxu0
        %8711 = vmatprep.mubr.bf16.mxu0 %v7795
        %8712 = vmatmul.mubr.bf16.gmra.mrb[0].mxu0 %v7794
        %v8713 = vpop.f32.mrb[0].mxu0
        %v8714 = vadd.f32 %v8553, %v8713
        %v8715 = vpop.f32.mrb[0].mxu0
        %v8716 = vpop.f32.mrb[0].mxu0
        %v8717 = vadd.f32 %v8556, %v8716
        %v8718 = vpop.f32.mrb[0].mxu0
        %8719 = vmatprep.mubr.bf16.mxu0 %v7804
        %8720 = vmatmul.mubr.bf16.gmra.mrb[0].mxu0 %v7803
        %v8721 = vpop.f32.mrb[0].mxu0
        %v8722 = vadd.f32 %v8561, %v8721
        %v8723 = vpop.f32.mrb[0].mxu0
        %v8724 = vpop.f32.mrb[0].mxu0
        %v8725 = vadd.f32 %v8564, %v8724
        %v8726 = vpop.f32.mrb[0].mxu0
        %8727 = vmatprep.mubr.bf16.mxu0 %v7813
        %8728 = vmatmul.mubr.bf16.gmra.mrb[0].mxu0 %v7812
        %v8729 = vpop.f32.mrb[0].mxu0
        %v8730 = vadd.f32 %v8569, %v8729
        %v8731 = vpop.f32.mrb[0].mxu0
        %v8732 = vpop.f32.mrb[0].mxu0
        %v8733 = vadd.f32 %v8572, %v8732
        %v8734 = vpop.f32.mrb[0].mxu0
        %8735 = vdwg.mxu0
        %8736 = vmatprep.subr.bf16.mxu0 0
        %8737 = vmatpush1.bf16.msra.mxu0 %v8157
        %8738 = vmatprep.subr.bf16.mxu0 0
        %8739 = vmatpush1.bf16.msra.mxu0 %v8158
        %8740 = vmatprep.subr.bf16.mxu0 0
        %8741 = vmatpush1.bf16.msra.mxu0 %v8159
        %8742 = vmatprep.subr.bf16.mxu0 0
        %8743 = vmatpush1.bf16.msra.mxu0 %v8160
        %8744 = vmatprep.subr.bf16.mxu0 0
        %8745 = vmatpush1.bf16.msra.mxu0 %v8161
        %8746 = vmatprep.subr.bf16.mxu0 0
        %8747 = vmatpush1.bf16.msra.mxu0 %v8162
        %8748 = vmatprep.subr.bf16.mxu0 0
        %8749 = vmatpush1.bf16.msra.mxu0 %v8163
        %8750 = vmatprep.subr.bf16.mxu0 0
        %8751 = vmatpush1.bf16.msra.mxu0 %v8164
        %8752 = vmatprep.subr.bf16.mxu0 0
        %8753 = vmatpush1.bf16.msra.mxu0 %v8165
        %8754 = vmatprep.subr.bf16.mxu0 0
        %8755 = vmatpush1.bf16.msra.mxu0 %v8166
        %8756 = vmatprep.subr.bf16.mxu0 0
        %8757 = vmatpush1.bf16.msra.mxu0 %v8167
        %8758 = vmatprep.subr.bf16.mxu0 0
        %8759 = vmatpush1.bf16.msra.mxu0 %v8168
        %8760 = vmatprep.subr.bf16.mxu0 0
        %8761 = vmatpush1.bf16.msra.mxu0 %v8169
        %8762 = vmatprep.subr.bf16.mxu0 0
        %8763 = vmatpush1.bf16.msra.mxu0 %v8170
        %8764 = vmatprep.subr.bf16.mxu0 0
        %8765 = vmatpush1.bf16.msra.mxu0 %v8171
        %8766 = vmatprep.subr.bf16.mxu0 0
        %8767 = vmatpush1.bf16.msra.mxu0 %v8172
        %8768 = vmatprep.mubr.bf16.mxu0 %v7680
        %8769 = vmatmul.mubr.bf16.gmra.mrb[0].mxu0 %v7679
        %v8770 = vpop.f32.mrb[0].mxu0
        %v8771 = vadd.f32 %v8610, %v8770
        %v8772 = vpop.f32.mrb[0].mxu0
        %v8773 = vpop.f32.mrb[0].mxu0
        %v8774 = vadd.f32 %v8613, %v8773
        %v8775 = vpop.f32.mrb[0].mxu0
        %8776 = vmatprep.mubr.bf16.mxu0 %v7689
        %8777 = vmatmul.mubr.bf16.gmra.mrb[0].mxu0 %v7688
        %v8778 = vpop.f32.mrb[0].mxu0
        %v8779 = vadd.f32 %v8618, %v8778
        %v8780 = vpop.f32.mrb[0].mxu0
        %v8781 = vpop.f32.mrb[0].mxu0
        %v8782 = vadd.f32 %v8621, %v8781
        %v8783 = vpop.f32.mrb[0].mxu0
        %8784 = vmatprep.mubr.bf16.mxu0 %v7698
        %8785 = vmatmul.mubr.bf16.gmra.mrb[0].mxu0 %v7697
        %v8786 = vpop.f32.mrb[0].mxu0
        %v8787 = vadd.f32 %v8626, %v8786
        %v8788 = vpop.f32.mrb[0].mxu0
        %v8789 = vpop.f32.mrb[0].mxu0
        %v8790 = vadd.f32 %v8629, %v8789
        %v8791 = vpop.f32.mrb[0].mxu0
        %8792 = vmatprep.mubr.bf16.mxu0 %v7707
        %8793 = vmatmul.mubr.bf16.gmra.mrb[0].mxu0 %v7706
        %v8794 = vpop.f32.mrb[0].mxu0
        %v8795 = vadd.f32 %v8634, %v8794
        %v8796 = vpop.f32.mrb[0].mxu0
        %v8797 = vpop.f32.mrb[0].mxu0
        %v8798 = vadd.f32 %v8637, %v8797
        %v8799 = vpop.f32.mrb[0].mxu0
        %8800 = vmatprep.mubr.bf16.mxu0 %v7716
        %8801 = vmatmul.mubr.bf16.gmra.mrb[0].mxu0 %v7715
        %v8802 = vpop.f32.mrb[0].mxu0
        %v8803 = vadd.f32 %v8642, %v8802
        %v8804 = vpop.f32.mrb[0].mxu0
        %v8805 = vpop.f32.mrb[0].mxu0
        %v8806 = vadd.f32 %v8645, %v8805
        %v8807 = vpop.f32.mrb[0].mxu0
        %8808 = vmatprep.mubr.bf16.mxu0 %v7725
        %8809 = vmatmul.mubr.bf16.gmra.mrb[0].mxu0 %v7724
        %v8810 = vpop.f32.mrb[0].mxu0
        %v8811 = vadd.f32 %v8650, %v8810
        %v8812 = vpop.f32.mrb[0].mxu0
        %v8813 = vpop.f32.mrb[0].mxu0
        %v8814 = vadd.f32 %v8653, %v8813
        %v8815 = vpop.f32.mrb[0].mxu0
        %8816 = vmatprep.mubr.bf16.mxu0 %v7734
        %8817 = vmatmul.mubr.bf16.gmra.mrb[0].mxu0 %v7733
        %v8818 = vpop.f32.mrb[0].mxu0
        %v8819 = vadd.f32 %v8658, %v8818
        %v8820 = vpop.f32.mrb[0].mxu0
        %v8821 = vpop.f32.mrb[0].mxu0
        %v8822 = vadd.f32 %v8661, %v8821
        %v8823 = vpop.f32.mrb[0].mxu0
        %8824 = vmatprep.mubr.bf16.mxu0 %v7743
        %8825 = vmatmul.mubr.bf16.gmra.mrb[0].mxu0 %v7742
        %v8826 = vpop.f32.mrb[0].mxu0
        %v8827 = vadd.f32 %v8666, %v8826
        %v8828 = vpop.f32.mrb[0].mxu0
        %v8829 = vpop.f32.mrb[0].mxu0
        %v8830 = vadd.f32 %v8669, %v8829
        %v8831 = vpop.f32.mrb[0].mxu0
        %8832 = vmatprep.mubr.bf16.mxu0 %v7752
        %8833 = vmatmul.mubr.bf16.gmra.mrb[0].mxu0 %v7751
        %v8834 = vpop.f32.mrb[0].mxu0
        %v8835 = vadd.f32 %v8674, %v8834
        %v8836 = vpop.f32.mrb[0].mxu0
        %v8837 = vpop.f32.mrb[0].mxu0
        %v8838 = vadd.f32 %v8677, %v8837
        %v8839 = vpop.f32.mrb[0].mxu0
        %8840 = vmatprep.mubr.bf16.mxu0 %v7761
        %8841 = vmatmul.mubr.bf16.gmra.mrb[0].mxu0 %v7760
        %v8842 = vpop.f32.mrb[0].mxu0
        %v8843 = vadd.f32 %v8682, %v8842
        %v8844 = vpop.f32.mrb[0].mxu0
        %v8845 = vpop.f32.mrb[0].mxu0
        %v8846 = vadd.f32 %v8685, %v8845
        %v8847 = vpop.f32.mrb[0].mxu0
        %8848 = vmatprep.mubr.bf16.mxu0 %v7770
        %8849 = vmatmul.mubr.bf16.gmra.mrb[0].mxu0 %v7769
        %v8850 = vpop.f32.mrb[0].mxu0
        %v8851 = vadd.f32 %v8690, %v8850
        %v8852 = vpop.f32.mrb[0].mxu0
        %v8853 = vpop.f32.mrb[0].mxu0
        %v8854 = vadd.f32 %v8693, %v8853
        %v8855 = vpop.f32.mrb[0].mxu0
        %8856 = vmatprep.mubr.bf16.mxu0 %v7779
        %8857 = vmatmul.mubr.bf16.gmra.mrb[0].mxu0 %v7778
        %v8858 = vpop.f32.mrb[0].mxu0
        %v8859 = vadd.f32 %v8698, %v8858
        %v8860 = vpop.f32.mrb[0].mxu0
        %v8861 = vpop.f32.mrb[0].mxu0
        %v8862 = vadd.f32 %v8701, %v8861
        %v8863 = vpop.f32.mrb[0].mxu0
        %8864 = vmatprep.mubr.bf16.mxu0 %v7788
        %8865 = vmatmul.mubr.bf16.gmra.mrb[0].mxu0 %v7787
        %v8866 = vpop.f32.mrb[0].mxu0
        %v8867 = vadd.f32 %v8706, %v8866
        %v8868 = vpop.f32.mrb[0].mxu0
        %v8869 = vpop.f32.mrb[0].mxu0
        %v8870 = vadd.f32 %v8709, %v8869
        %v8871 = vpop.f32.mrb[0].mxu0
        %8872 = vmatprep.mubr.bf16.mxu0 %v7797
        %8873 = vmatmul.mubr.bf16.gmra.mrb[0].mxu0 %v7796
        %v8874 = vpop.f32.mrb[0].mxu0
        %v8875 = vadd.f32 %v8714, %v8874
        %v8876 = vpop.f32.mrb[0].mxu0
        %v8877 = vpop.f32.mrb[0].mxu0
        %v8878 = vadd.f32 %v8717, %v8877
        %v8879 = vpop.f32.mrb[0].mxu0
        %8880 = vmatprep.mubr.bf16.mxu0 %v7806
        %8881 = vmatmul.mubr.bf16.gmra.mrb[0].mxu0 %v7805
        %v8882 = vpop.f32.mrb[0].mxu0
        %v8883 = vadd.f32 %v8722, %v8882
        %v8884 = vpop.f32.mrb[0].mxu0
        %v8885 = vpop.f32.mrb[0].mxu0
        %v8886 = vadd.f32 %v8725, %v8885
        %v8887 = vpop.f32.mrb[0].mxu0
        %8888 = vmatprep.mubr.bf16.mxu0 %v7815
        %8889 = vmatmul.mubr.bf16.gmra.mrb[0].mxu0 %v7814
        %v8890 = vpop.f32.mrb[0].mxu0
        %v8891 = vadd.f32 %v8730, %v8890
        %v8892 = vpop.f32.mrb[0].mxu0
        %v8893 = vpop.f32.mrb[0].mxu0
        %v8894 = vadd.f32 %v8733, %v8893
        %v8895 = vpop.f32.mrb[0].mxu0
        %8896 = vdwg.mxu0
        %8897 = vmatprep.subr.bf16.mxu0 0
        %8898 = vmatpush1.bf16.msra.mxu0 %v8173
        %8899 = vmatprep.subr.bf16.mxu0 0
        %8900 = vmatpush1.bf16.msra.mxu0 %v8174
        %8901 = vmatprep.subr.bf16.mxu0 0
        %8902 = vmatpush1.bf16.msra.mxu0 %v8175
        %8903 = vmatprep.subr.bf16.mxu0 0
        %8904 = vmatpush1.bf16.msra.mxu0 %v8176
        %8905 = vmatprep.subr.bf16.mxu0 0
        %8906 = vmatpush1.bf16.msra.mxu0 %v8177
        %8907 = vmatprep.subr.bf16.mxu0 0
        %8908 = vmatpush1.bf16.msra.mxu0 %v8178
        %8909 = vmatprep.subr.bf16.mxu0 0
        %8910 = vmatpush1.bf16.msra.mxu0 %v8179
        %8911 = vmatprep.subr.bf16.mxu0 0
        %8912 = vmatpush1.bf16.msra.mxu0 %v8180
        %8913 = vmatprep.subr.bf16.mxu0 0
        %8914 = vmatpush1.bf16.msra.mxu0 0
        %8915 = vmatprep.subr.bf16.mxu0 0
        %8916 = vmatpush1.bf16.msra.mxu0 0
        %8917 = vmatprep.subr.bf16.mxu0 0
        %8918 = vmatpush1.bf16.msra.mxu0 0
        %8919 = vmatprep.subr.bf16.mxu0 0
        %8920 = vmatpush1.bf16.msra.mxu0 0
        %8921 = vmatprep.subr.bf16.mxu0 0
        %8922 = vmatpush1.bf16.msra.mxu0 0
        %8923 = vmatprep.subr.bf16.mxu0 0
        %8924 = vmatpush1.bf16.msra.mxu0 0
        %8925 = vmatprep.subr.bf16.mxu0 0
        %8926 = vmatpush1.bf16.msra.mxu0 0
        %8927 = vmatprep.subr.bf16.mxu0 0
        %8928 = vmatpush1.bf16.msra.mxu0 0
        %8929 = vmatprep.mubr.bf16.mxu0 0
        %8930 = vmatmul.mubr.bf16.gmra.mrb[0].mxu0 %v7681
        %v8931 = vpop.f32.mrb[0].mxu0
        %v8932 = vadd.f32 %v8771, %v8931
        %v8933 = vpop.f32.mrb[0].mxu0
        %v8934 = vpop.f32.mrb[0].mxu0
        %v8935 = vadd.f32 %v8774, %v8934
        %v8936 = vpop.f32.mrb[0].mxu0
        %8937 = vmatprep.mubr.bf16.mxu0 0
        %8938 = vmatmul.mubr.bf16.gmra.mrb[0].mxu0 %v7690
        %v8939 = vpop.f32.mrb[0].mxu0
        %v8940 = vadd.f32 %v8779, %v8939
        %v8941 = vpop.f32.mrb[0].mxu0
        %v8942 = vpop.f32.mrb[0].mxu0
        %v8943 = vadd.f32 %v8782, %v8942
        %v8944 = vpop.f32.mrb[0].mxu0
        %8945 = vmatprep.mubr.bf16.mxu0 0
        %8946 = vmatmul.mubr.bf16.gmra.mrb[0].mxu0 %v7699
        %v8947 = vpop.f32.mrb[0].mxu0
        %v8948 = vadd.f32 %v8787, %v8947
        %v8949 = vpop.f32.mrb[0].mxu0
        %v8950 = vpop.f32.mrb[0].mxu0
        %v8951 = vadd.f32 %v8790, %v8950
        %v8952 = vpop.f32.mrb[0].mxu0
        %8953 = vmatprep.mubr.bf16.mxu0 0
        %8954 = vmatmul.mubr.bf16.gmra.mrb[0].mxu0 %v7708
        %v8955 = vpop.f32.mrb[0].mxu0
        %v8956 = vadd.f32 %v8795, %v8955
        %v8957 = vpop.f32.mrb[0].mxu0
        %v8958 = vpop.f32.mrb[0].mxu0
        %v8959 = vadd.f32 %v8798, %v8958
        %v8960 = vpop.f32.mrb[0].mxu0
        %8961 = vmatprep.mubr.bf16.mxu0 0
        %8962 = vmatmul.mubr.bf16.gmra.mrb[0].mxu0 %v7717
        %v8963 = vpop.f32.mrb[0].mxu0
        %v8964 = vadd.f32 %v8803, %v8963
        %v8965 = vpop.f32.mrb[0].mxu0
        %v8966 = vpop.f32.mrb[0].mxu0
        %v8967 = vadd.f32 %v8806, %v8966
        %v8968 = vpop.f32.mrb[0].mxu0
        %8969 = vmatprep.mubr.bf16.mxu0 0
        %8970 = vmatmul.mubr.bf16.gmra.mrb[0].mxu0 %v7726
        %v8971 = vpop.f32.mrb[0].mxu0
        %v8972 = vadd.f32 %v8811, %v8971
        %v8973 = vpop.f32.mrb[0].mxu0
        %v8974 = vpop.f32.mrb[0].mxu0
        %v8975 = vadd.f32 %v8814, %v8974
        %v8976 = vpop.f32.mrb[0].mxu0
        %8977 = vmatprep.mubr.bf16.mxu0 0
        %8978 = vmatmul.mubr.bf16.gmra.mrb[0].mxu0 %v7735
        %v8979 = vpop.f32.mrb[0].mxu0
        %v8980 = vadd.f32 %v8819, %v8979
        %v8981 = vpop.f32.mrb[0].mxu0
        %v8982 = vpop.f32.mrb[0].mxu0
        %v8983 = vadd.f32 %v8822, %v8982
        %v8984 = vpop.f32.mrb[0].mxu0
        %8985 = vmatprep.mubr.bf16.mxu0 0
        %8986 = vmatmul.mubr.bf16.gmra.mrb[0].mxu0 %v7744
        %v8987 = vpop.f32.mrb[0].mxu0
        %v8988 = vadd.f32 %v8827, %v8987
        %v8989 = vpop.f32.mrb[0].mxu0
        %v8990 = vpop.f32.mrb[0].mxu0
        %v8991 = vadd.f32 %v8830, %v8990
        %v8992 = vpop.f32.mrb[0].mxu0
        %8993 = vmatprep.mubr.bf16.mxu0 0
        %8994 = vmatmul.mubr.bf16.gmra.mrb[0].mxu0 %v7753
        %v8995 = vpop.f32.mrb[0].mxu0
        %v8996 = vadd.f32 %v8835, %v8995
        %v8997 = vpop.f32.mrb[0].mxu0
        %v8998 = vpop.f32.mrb[0].mxu0
        %v8999 = vadd.f32 %v8838, %v8998
        %v9000 = vpop.f32.mrb[0].mxu0
        %9001 = vmatprep.mubr.bf16.mxu0 0
        %9002 = vmatmul.mubr.bf16.gmra.mrb[0].mxu0 %v7762
        %v9003 = vpop.f32.mrb[0].mxu0
        %v9004 = vadd.f32 %v8843, %v9003
        %v9005 = vpop.f32.mrb[0].mxu0
        %v9006 = vpop.f32.mrb[0].mxu0
        %v9007 = vadd.f32 %v8846, %v9006
        %v9008 = vpop.f32.mrb[0].mxu0
        %9009 = vmatprep.mubr.bf16.mxu0 0
        %9010 = vmatmul.mubr.bf16.gmra.mrb[0].mxu0 %v7771
        %v9011 = vpop.f32.mrb[0].mxu0
        %v9012 = vadd.f32 %v8851, %v9011
        %v9013 = vpop.f32.mrb[0].mxu0
        %v9014 = vpop.f32.mrb[0].mxu0
        %v9015 = vadd.f32 %v8854, %v9014
        %v9016 = vpop.f32.mrb[0].mxu0
        %9017 = vmatprep.mubr.bf16.mxu0 0
        %9018 = vmatmul.mubr.bf16.gmra.mrb[0].mxu0 %v7780
        %v9019 = vpop.f32.mrb[0].mxu0
        %v9020 = vadd.f32 %v8859, %v9019
        %v9021 = vpop.f32.mrb[0].mxu0
        %v9022 = vpop.f32.mrb[0].mxu0
        %v9023 = vadd.f32 %v8862, %v9022
        %v9024 = vpop.f32.mrb[0].mxu0
        %9025 = vmatprep.mubr.bf16.mxu0 0
        %9026 = vmatmul.mubr.bf16.gmra.mrb[0].mxu0 %v7789
        %v9027 = vpop.f32.mrb[0].mxu0
        %v9028 = vadd.f32 %v8867, %v9027
        %v9029 = vpop.f32.mrb[0].mxu0
        %v9030 = vpop.f32.mrb[0].mxu0
        %v9031 = vadd.f32 %v8870, %v9030
        %v9032 = vpop.f32.mrb[0].mxu0
        %9033 = vmatprep.mubr.bf16.mxu0 0
        %9034 = vmatmul.mubr.bf16.gmra.mrb[0].mxu0 %v7798
        %v9035 = vpop.f32.mrb[0].mxu0
        %v9036 = vadd.f32 %v8875, %v9035
        %v9037 = vpop.f32.mrb[0].mxu0
        %v9038 = vpop.f32.mrb[0].mxu0
        %v9039 = vadd.f32 %v8878, %v9038
        %v9040 = vpop.f32.mrb[0].mxu0
        %9041 = vmatprep.mubr.bf16.mxu0 0
        %9042 = vmatmul.mubr.bf16.gmra.mrb[0].mxu0 %v7807
        %v9043 = vpop.f32.mrb[0].mxu0
        %v9044 = vadd.f32 %v8883, %v9043
        %v9045 = vpop.f32.mrb[0].mxu0
        %v9046 = vpop.f32.mrb[0].mxu0
        %v9047 = vadd.f32 %v8886, %v9046
        %v9048 = vpop.f32.mrb[0].mxu0
        %9049 = vmatprep.mubr.bf16.mxu0 0
        %9050 = vmatmul.mubr.bf16.gmra.mrb[0].mxu0 %v7816
        %v9051 = vpop.f32.mrb[0].mxu0
        %v9052 = vadd.f32 %v8891, %v9051
        %v9053 = vpop.f32.mrb[0].mxu0
        %v9054 = vpop.f32.mrb[0].mxu0
        %v9055 = vadd.f32 %v8894, %v9054
        %v9056 = vpop.f32.mrb[0].mxu0
        %9057 = vdwg.mxu0
        %v9058 = vmax.f32 %v8932, 0.0
        %v9059 = vmax.f32 %v8935, 0.0
        %v9060 = vmax.f32 %v8940, 0.0
        %v9061 = vmax.f32 %v8943, 0.0
        %v9062 = vmax.f32 %v8948, 0.0
        %v9063 = vmax.f32 %v8951, 0.0
        %v9064 = vmax.f32 %v8956, 0.0
        %v9065 = vmax.f32 %v8959, 0.0
        %v9066 = vmax.f32 %v8964, 0.0
        %v9067 = vmax.f32 %v8967, 0.0
        %v9068 = vmax.f32 %v8972, 0.0
        %v9069 = vmax.f32 %v8975, 0.0
        %v9070 = vmax.f32 %v8980, 0.0
        %v9071 = vmax.f32 %v8983, 0.0
        %v9072 = vmax.f32 %v8988, 0.0
        %v9073 = vmax.f32 %v8991, 0.0
        %v9074 = vmax.f32 %v8996, 0.0
        %v9075 = vmax.f32 %v8999, 0.0
        %v9076 = vmax.f32 %v9004, 0.0
        %v9077 = vmax.f32 %v9007, 0.0
        %v9078 = vmax.f32 %v9012, 0.0
        %v9079 = vmax.f32 %v9015, 0.0
        %v9080 = vmax.f32 %v9020, 0.0
        %v9081 = vmax.f32 %v9023, 0.0
        %v9082 = vmax.f32 %v9028, 0.0
        %v9083 = vmax.f32 %v9031, 0.0
        %v9084 = vmax.f32 %v9036, 0.0
        %v9085 = vmax.f32 %v9039, 0.0
        %v9086 = vmax.f32 %v9044, 0.0
        %v9087 = vmax.f32 %v9047, 0.0
        %v9088 = vmax.f32 %v9052, 0.0
        %v9089 = vmax.f32 %v9055, 0.0
        %v9090 = vld [vmem:[%s339 + $0x8] sm:$0xff]
        %v9091 = vld [vmem:[%s339 + $0x10] sm:$0xff]
        %v9092 = vld [vmem:[%s339 + $0x28] sm:$0xff]
        %v9093 = vld [vmem:[%s339 + $0x30] sm:$0xff]
        %v9094 = vld [vmem:[%s339 + $0x48] sm:$0xff]
        %v9095 = vld [vmem:[%s339 + $0x50] sm:$0xff]
        %v9096 = vld [vmem:[%s339 + $0x68] sm:$0xff]
        %v9097 = vld [vmem:[%s339 + $0x70] sm:$0xff]
        %v9098 = vld [vmem:[%s339 + $0x88] sm:$0xff]
        %v9099 = vld [vmem:[%s339 + $0x90] sm:$0xff]
        %v9100 = vld [vmem:[%s339 + $0xa8] sm:$0xff]
        %v9101 = vld [vmem:[%s339 + $0xb0] sm:$0xff]
        %v9102 = vld [vmem:[%s339 + $0xc8] sm:$0xff]
        %v9103 = vld [vmem:[%s339 + $0xd0] sm:$0xff]
        %v9104 = vld [vmem:[%s339 + $0xe8] sm:$0xff]
        %v9105 = vld [vmem:[%s339 + $0xf0] sm:$0xff]
        %v9106 = vld [vmem:[%s339 + $0x108] sm:$0xff]
        %v9107 = vld [vmem:[%s339 + $0x110] sm:$0xff]
        %v9108 = vld [vmem:[%s339 + $0x128] sm:$0xff]
        %v9109 = vld [vmem:[%s339 + $0x130] sm:$0xff]
        %v9110 = vld [vmem:[%s339 + $0x148] sm:$0xff]
        %v9111 = vld [vmem:[%s339 + $0x150] sm:$0xff]
        %v9112 = vld [vmem:[%s339 + $0x168] sm:$0xff]
        %v9113 = vld [vmem:[%s339 + $0x170] sm:$0xff]
        %v9114 = vld [vmem:[%s339 + $0x188] sm:$0xff]
        %v9115 = vld [vmem:[%s339 + $0x190] sm:$0xff]
        %v9116 = vld [vmem:[%s339 + $0x1a8] sm:$0xff]
        %v9117 = vld [vmem:[%s339 + $0x1b0] sm:$0xff]
        %v9118 = vld [vmem:[%s339 + $0x1c8] sm:$0xff]
        %v9119 = vld [vmem:[%s339 + $0x1d0] sm:$0xff]
        %v9120 = vld [vmem:[%s339 + $0x1e8] sm:$0xff]
        %v9121 = vld [vmem:[%s339 + $0x1f0] sm:$0xff]
        %v9122 = vadd.f32 %v9090, %v9058
        %v9123 = vadd.f32 %v9091, %v9059
        %v9124 = vadd.f32 %v9092, %v9060
        %v9125 = vadd.f32 %v9093, %v9061
        %v9126 = vadd.f32 %v9094, %v9062
        %v9127 = vadd.f32 %v9095, %v9063
        %v9128 = vadd.f32 %v9096, %v9064
        %v9129 = vadd.f32 %v9097, %v9065
        %v9130 = vadd.f32 %v9098, %v9066
        %v9131 = vadd.f32 %v9099, %v9067
        %v9132 = vadd.f32 %v9100, %v9068
        %v9133 = vadd.f32 %v9101, %v9069
        %v9134 = vadd.f32 %v9102, %v9070
        %v9135 = vadd.f32 %v9103, %v9071
        %v9136 = vadd.f32 %v9104, %v9072
        %v9137 = vadd.f32 %v9105, %v9073
        %v9138 = vadd.f32 %v9106, %v9074
        %v9139 = vadd.f32 %v9107, %v9075
        %v9140 = vadd.f32 %v9108, %v9076
        %v9141 = vadd.f32 %v9109, %v9077
        %v9142 = vadd.f32 %v9110, %v9078
        %v9143 = vadd.f32 %v9111, %v9079
        %v9144 = vadd.f32 %v9112, %v9080
        %v9145 = vadd.f32 %v9113, %v9081
        %v9146 = vadd.f32 %v9114, %v9082
        %v9147 = vadd.f32 %v9115, %v9083
        %v9148 = vadd.f32 %v9116, %v9084
        %v9149 = vadd.f32 %v9117, %v9085
        %v9150 = vadd.f32 %v9118, %v9086
        %v9151 = vadd.f32 %v9119, %v9087
        %v9152 = vadd.f32 %v9120, %v9088
        %v9153 = vadd.f32 %v9121, %v9089
        %9154 = vst [vmem:[%s215] sm:$0xff] %v9122
        %9155 = vst [vmem:[%s215 + $0x8] sm:$0xff] %v9123
        %9156 = vst [vmem:[%s215 + $0x10] sm:$0xff] %v9124
        %9157 = vst [vmem:[%s215 + $0x18] sm:$0xff] %v9125
        %9158 = vst [vmem:[%s215 + $0x20] sm:$0xff] %v9126
        %9159 = vst [vmem:[%s215 + $0x28] sm:$0xff] %v9127
        %9160 = vst [vmem:[%s215 + $0x30] sm:$0xff] %v9128
        %9161 = vst [vmem:[%s215 + $0x38] sm:$0xff] %v9129
        %9162 = vst [vmem:[%s215 + $0x40] sm:$0xff] %v9130
        %9163 = vst [vmem:[%s215 + $0x48] sm:$0xff] %v9131
        %9164 = vst [vmem:[%s215 + $0x50] sm:$0xff] %v9132
        %9165 = vst [vmem:[%s215 + $0x58] sm:$0xff] %v9133
        %9166 = vst [vmem:[%s215 + $0x60] sm:$0xff] %v9134
        %9167 = vst [vmem:[%s215 + $0x68] sm:$0xff] %v9135
        %9168 = vst [vmem:[%s215 + $0x70] sm:$0xff] %v9136
        %9169 = vst [vmem:[%s215 + $0x78] sm:$0xff] %v9137
        %9170 = vst [vmem:[%s215 + $0x80] sm:$0xff] %v9138
        %9171 = vst [vmem:[%s215 + $0x88] sm:$0xff] %v9139
        %9172 = vst [vmem:[%s215 + $0x90] sm:$0xff] %v9140
        %9173 = vst [vmem:[%s215 + $0x98] sm:$0xff] %v9141
        %9174 = vst [vmem:[%s215 + $0xa0] sm:$0xff] %v9142
        %9175 = vst [vmem:[%s215 + $0xa8] sm:$0xff] %v9143
        %9176 = vst [vmem:[%s215 + $0xb0] sm:$0xff] %v9144
        %9177 = vst [vmem:[%s215 + $0xb8] sm:$0xff] %v9145
        %9178 = vst [vmem:[%s215 + $0xc0] sm:$0xff] %v9146
        %9179 = vst [vmem:[%s215 + $0xc8] sm:$0xff] %v9147
        %9180 = vst [vmem:[%s215 + $0xd0] sm:$0xff] %v9148
        %9181 = vst [vmem:[%s215 + $0xd8] sm:$0xff] %v9149
        %9182 = vst [vmem:[%s215 + $0xe0] sm:$0xff] %v9150
        %9183 = vst [vmem:[%s215 + $0xe8] sm:$0xff] %v9151
        %9184 = vst [vmem:[%s215 + $0xf0] sm:$0xff] %v9152
        %9185 = vst [vmem:[%s215 + $0xf8] sm:$0xff] %v9153
        %s9186 = sand.u32 %s97, 1
        %s9187 = scalar_lea.sflag [#allocation7], %s9186
        %s9188 = sand.u32 %s97, 1
        %s9189 = smul.addr %s9188, 256
        %s9190 = scalar_lea.vmem [#allocation11], %s9189
        // Predicated region
        $region45: #{residual_double_conv.1} parent=31 // pred_check
          %p9191 = pneg %p107
        $region46: #{residual_double_conv.1} parent=31 // pred_check_branch
          %9193 = sbr.rel (%p9191) target = $region48
        $region47: #{residual_double_conv.1} parent=31 // pred_region
          %s9195 = ssub.s32 4096, 4096
          %9196 = vsyncadd %s9187, %s9195
          %s9197 = smul.addr %s21, 32
          %s9198 = smul.addr %s9197, 128
          %s9199 = scalar_lea.hbm %s3, %s9198
          %s9200 = sshll.u32 %s9190, 4
          %s9201 = int_to_ptr.vmem [resolvable:$true] %s9200
          %9206 = dma.vmem_to_hbm [thread:$0]  %s9201, 4096, %s9199, %s9187, 128, 128, 8
        $region48: #{residual_double_conv.1} parent=31 // pred_fallthru
          _
      $region32: #{residual_double_conv.1} parent=5 // pred_fallthru
        _
      %p9207 = scmp.le.s32.totalorder 2, %s16
      // Predicated region
      $region49: #{residual_double_conv.1} parent=5 // pred_check
        %p9208 = pneg %p9207
      $region50: #{residual_double_conv.1} parent=5 // pred_check_branch
        %9210 = sbr.rel (%p9208) target = $region52
      $region51: #{residual_double_conv.1} parent=5 // pred_region
        %s9211 = ssub.s32 %s16, 2
        // Predicated region
        $region53: #{residual_double_conv.1} parent=51 // pred_check
          %p9212 = pneg %p113
        $region54: #{residual_double_conv.1} parent=51 // pred_check_branch
          %9214 = sbr.rel (%p9212) target = $region56
        $region55: #{residual_double_conv.1} parent=51 // pred_region
          %s9215 = sand.u32 %s98, 1
          %s9216 = scalar_lea.sflag [#allocation7], %s9215
          %s9217 = sand.u32 %s98, 1
          %s9218 = smul.addr %s9217, 256
          %s9219 = scalar_lea.vmem [#allocation11], %s9218
          %9220 = dma.done %s9216, 4096
        $region56: #{residual_double_conv.1} parent=51 // pred_fallthru
          _
      $region52: #{residual_double_conv.1} parent=5 // pred_fallthru
        _
    $region6: #{residual_double_conv.1} parent=1 // loop_footer
      %s20 = sadd.s32 1, %s16
    $region7: #{residual_double_conv.1} parent=1 // loop_footer_branch
      %15 = sbr.rel target = $region3
    $region8: #{residual_double_conv.1} parent=1 // loop_exit
      _
    %9221 = vsyncpa [#allocation6], 1
    %s9222 = scalar_lea.sflag [#allocation6], 1
    %9223 = vsyncpa %s9222, 1
    %9224 = vsyncpa [#allocation9], 1
    %9225 = vsyncpa [#allocation7], 1
    %s9226 = scalar_lea.sflag [#allocation7], 1
    %9227 = vsyncpa %s9226, 1

</llo_original>
